<compile_context>
chip_gen: v5e
topology: v5e:2x2
jax: 0.10.0
libtpu: 0.0.40
codegen_flags: <defaults>
</compile_context>

<pallas_src>
import functools

import jax
import jax.numpy as jnp
from jax.experimental import pallas as pl
from jax.experimental.pallas import tpu as pltpu

_LANE = 128
_SQRT_HALF = 0.7071067811865476


def _round_up(a, b):
    return ((a + b - 1) // b) * b


def _vmem_capacity_bytes():
    """Per-core VMEM capacity; conservative 64 MiB (v7x) if the query fails."""
    try:
        return int(pltpu.get_tpu_info().vmem_capacity_bytes)
    except Exception:
        return 64 << 20


def _footprint_bytes(tm, tk, e_pad, x_bytes, out_bytes, w_bytes):
    """Rough VMEM footprint of one pipelined grid step (double-buffered)."""
    return (2 * tm * e_pad * (x_bytes + out_bytes)      # x / out tiles
            + 2 * (e_pad * tk + tk * e_pad) * w_bytes   # W1 / W2 blocks
            + 2 * (tk + e_pad) * 4                      # bias blocks (f32)
            + tm * e_pad * 4                            # f32 accumulator scratch
            + 2 * tm * tk * 4)                          # staged (tm, tk) f32 h + temps


def _ffn_kernel(x_ref, w1_ref, b1_ref, w2_ref, b2_ref, o_ref, acc_ref,
                *, approximate_gelu):
    # x_ref : (tm, E)   row tile (pipelined; refetched only when the row tile changes)
    # w1_ref: (E, tk)   W1 hidden chunk, native (possibly bf16) dtype
    # b1_ref: (1, tk)   f32
    # w2_ref: (tk, E)   W2 hidden chunk
    # b2_ref: (1, E)    f32
    # o_ref : (tm, E)
    # acc_ref: (tm, E)  f32 VMEM scratch accumulator
    k = pl.program_id(1)

    @pl.when(k == 0)
    def _():
        acc_ref[...] = jnp.zeros_like(acc_ref)

    w1 = w1_ref[...]
    w2 = w2_ref[...]

    # First linear: MXU with f32 accumulation; only the activation tile is cast
    # to the weights' (MXU) dtype.
    h = jnp.dot(x_ref[...].astype(w1.dtype), w1,
                preferred_element_type=jnp.float32) + b1_ref[...]

    # GELU in f32 (v5e VPU/EUP have no bf16 path).
    if approximate_gelu:
        # tanh formulation: transcendentals go to the otherwise-idle EUP slot.
        h = jax.nn.gelu(h, approximate=True)
    else:
        # Exact erf formulation, matches torch.nn.GELU() default numerics.
        h = 0.5 * h * (1.0 + jax.lax.erf(h * jnp.float32(_SQRT_HALF)))

    # Second linear: accumulate the partial product over hidden chunks.
    acc_ref[...] += jnp.dot(h.astype(w2.dtype), w2,
                            preferred_element_type=jnp.float32)

    @pl.when(k == pl.num_programs(1) - 1)
    def _():
        # Dropout(p=0.2) is identity in eval mode.
        o_ref[...] = (acc_ref[...] + b2_ref[...]).astype(o_ref.dtype)


def feed_forward(x, w1, b1, w2, b2, *, tm=None, tk=None,
                 mxu_dtype=jnp.bfloat16, approximate_gelu=False):
    """Fused FeedForward: Dropout(GELU(x @ W1 + b1) @ W2 + b2), eval mode.

    x : [B, T, E]; w1: [E, H]; b1: [H]; w2: [H, E]; b2: [E].
    mxu_dtype : dtype fed to the MXU (weights cast once in the wrapper, the
      activation tile cast in-kernel).  bf16 gives the native MXU rate on
      v5e/v6e/v7x; pass None to keep the weights' own dtype (exact f32 path).
      Accumulation is always f32.
    """
    B, T, E = x.shape
    E_in, H = w1.shape
    assert E_in == E and w2.shape == (H, E) and b1.shape == (H,) and b2.shape == (E,)
    M = B * T
    out_dtype = x.dtype

    x2d = x.reshape(M, E)

    # ---- lane padding (feature axes -> multiples of 128, only when needed) ----
    e_pad = _round_up(E, _LANE)
    if e_pad != E:
        x2d = jnp.pad(x2d, ((0, 0), (0, e_pad - E)))
        w1 = jnp.pad(w1, ((0, e_pad - E), (0, 0)))
        w2 = jnp.pad(w2, ((0, 0), (0, e_pad - E)))
        b2 = jnp.pad(b2, ((0, e_pad - E),))
    h128 = _round_up(H, _LANE)

    # ---- byte sizes / hardware budget -----------------------------------------
    x_bytes = jnp.dtype(x2d.dtype).itemsize
    out_bytes = jnp.dtype(out_dtype).itemsize
    w_dtype = jnp.dtype(mxu_dtype) if mxu_dtype is not None else jnp.dtype(w1.dtype)
    w_bytes = w_dtype.itemsize
    vmem_cap = _vmem_capacity_bytes()
    budget = int(0.70 * vmem_cap)

    # ---- row tile (sublane-rounded, core-aware) --------------------------------
    sub = 8 * (4 // max(1, x_bytes))          # f32 -> 8, bf16 -> 16
    if tm is None:
        tm = 512 if vmem_cap >= (128 << 20) else 256
    tm = max(sub, min(int(tm), _round_up(M, sub)))
    if M > sub:
        # Keep >= 2 row tiles so both TensorCores of a v7x chip get work.
        tm = min(tm, _round_up(pl.cdiv(M, 2), sub))
    tm = _round_up(tm, sub)
    grid_m = pl.cdiv(M, tm)

    # ---- hidden-dim chunk so the per-step footprint fits the VMEM budget -------
    if tk is None:
        tk = h128
        while (_footprint_bytes(tm, tk, e_pad, x_bytes, out_bytes, w_bytes) > budget
               and tk > 512):
            tk = _round_up(max(_LANE, tk // 2), _LANE)
    tk = max(_LANE, min(_round_up(int(tk), _LANE), h128))
    h_pad = _round_up(H, tk)                 # multiple of tk (and of 128)
    grid_k = h_pad // tk

    if h_pad != H:                           # zero-pad hidden dim (exact: gelu(0)=0)
        w1 = jnp.pad(w1, ((0, 0), (0, h_pad - H)))
        b1 = jnp.pad(b1, ((0, h_pad - H),))
        w2 = jnp.pad(w2, ((0, h_pad - H), (0, 0)))

    # ---- one-time dtype handling in the wrapper --------------------------------
    if mxu_dtype is not None:
        w1 = w1.astype(mxu_dtype)
        w2 = w2.astype(mxu_dtype)
    b1_2d = b1.reshape(1, h_pad).astype(jnp.float32)
    b2_2d = b2.reshape(1, e_pad).astype(jnp.float32)

    # ---- VMEM limit from the computed footprint (capped at ~85% of capacity) ---
    footprint = _footprint_bytes(tm, tk, e_pad, x_bytes, out_bytes, w_bytes)
    vmem_limit = max(32 << 20, footprint + (8 << 20))
    vmem_limit = int(min(vmem_limit, int(0.85 * vmem_cap)))

    nbytes = lambda a: a.size * jnp.dtype(a.dtype).itemsize
    weight_stream = nbytes(w1) + nbytes(w2) + nbytes(b1_2d) + nbytes(b2_2d)
    if grid_k > 1:                           # chunked weights re-stream per row tile
        weight_stream *= grid_m
    cost = pl.CostEstimate(
        flops=4 * M * e_pad * h_pad + 2 * M * (h_pad + e_pad),
        transcendentals=M * h_pad,
        bytes_accessed=nbytes(x2d) + M * e_pad * out_bytes + weight_stream,
    )

    kernel = functools.partial(_ffn_kernel, approximate_gelu=approximate_gelu)

    out2d = pl.pallas_call(
        kernel,
        out_shape=jax.ShapeDtypeStruct((M, e_pad), out_dtype),
        grid_spec=pltpu.PrefetchScalarGridSpec(
            num_scalar_prefetch=0,
            grid=(grid_m, grid_k),
            in_specs=[
                pl.BlockSpec((tm, e_pad), lambda i, k: (i, 0)),   # x row tile
                pl.BlockSpec((e_pad, tk), lambda i, k: (0, k)),   # W1 chunk
                pl.BlockSpec((1, tk),     lambda i, k: (0, k)),   # b1 chunk
                pl.BlockSpec((tk, e_pad), lambda i, k: (k, 0)),   # W2 chunk
                pl.BlockSpec((1, e_pad),  lambda i, k: (0, 0)),   # b2
            ],
            out_specs=pl.BlockSpec((tm, e_pad), lambda i, k: (i, 0)),
            scratch_shapes=[pltpu.VMEM((tm, e_pad), jnp.float32)],
        ),
        compiler_params=pltpu.CompilerParams(
            dimension_semantics=("parallel", "arbitrary"),
            vmem_limit_bytes=vmem_limit,
        ),
        cost_estimate=cost,
    )(x2d, w1, b1_2d, w2, b2_2d)

    if e_pad != E:
        out2d = out2d[:, :E]
    return out2d.reshape(B, T, E)


def _reference(x2d, w1, b1, w2, b2):
    h = jnp.dot(x2d, w1) + b1
    h = jax.nn.gelu(h, approximate=False)
    return jnp.dot(h, w2) + b2


if __name__ == "__main__":
    # ---- Test A: module shapes (n_embd=512, hidden=2048), exact f32 matmuls ----
    B, T, n_embd = 2, 16, 512
    hidden = 4 * n_embd

    key = jax.random.PRNGKey(0)
    kx, k1, kb1, k2, kb2 = jax.random.split(key, 5)
    x = jax.random.normal(kx, (B, T, n_embd), dtype=jnp.float32)

    # Deterministic PyTorch-like init: U(-1/sqrt(fan_in), 1/sqrt(fan_in)).
    lim1 = 1.0 / float(n_embd) ** 0.5
    lim2 = 1.0 / float(hidden) ** 0.5
    w1 = jax.random.uniform(k1, (n_embd, hidden), jnp.float32, -lim1, lim1)
    b1 = jax.random.uniform(kb1, (hidden,), jnp.float32, -lim1, lim1)
    w2 = jax.random.uniform(k2, (hidden, n_embd), jnp.float32, -lim2, lim2)
    b2 = jax.random.uniform(kb2, (n_embd,), jnp.float32, -lim2, lim2)

    ref = _reference(x.reshape(-1, n_embd), w1, b1, w2, b2).reshape(B, T, n_embd)

    out_f32 = jax.block_until_ready(feed_forward(x, w1, b1, w2, b2, mxu_dtype=None))
    assert out_f32.shape == (B, T, n_embd)
    assert jnp.allclose(out_f32, ref, atol=1e-4, rtol=1e-4), "mismatch (f32 MXU)"

    # ---- Test B: default bf16-MXU fast path (looser tolerance vs f32 reference) -
    out_bf16 = jax.block_until_ready(feed_forward(x, w1, b1, w2, b2))
    max_err = float(jnp.max(jnp.abs(out_bf16 - ref)))
    assert max_err < 5e-2, f"mismatch (bf16 MXU), max abs err={max_err}"

    # ---- Test C: lane padding (E=64) + forced row tiling and hidden chunking ----
    B2, T2, E2 = 2, 40, 64
    H2 = 4 * E2
    kx2, k12, kb12, k22, kb22 = jax.random.split(jax.random.PRNGKey(1), 5)
    x2 = jax.random.normal(kx2, (B2, T2, E2), dtype=jnp.float32)
    l1 = 1.0 / float(E2) ** 0.5
    l2 = 1.0 / float(H2) ** 0.5
    w1s = jax.random.uniform(k12, (E2, H2), jnp.float32, -l1, l1)
    b1s = jax.random.uniform(kb12, (H2,), jnp.float32, -l1, l1)
    w2s = jax.random.uniform(k22, (H2, E2), jnp.float32, -l2, l2)
    b2s = jax.random.uniform(kb22, (E2,), jnp.float32, -l2, l2)
    ref2 = _reference(x2.reshape(-1, E2), w1s, b1s, w2s, b2s).reshape(B2, T2, E2)

    out2 = jax.block_until_ready(
        feed_forward(x2, w1s, b1s, w2s, b2s, tm=32, tk=128, mxu_dtype=None))
    assert jnp.allclose(out2, ref2, atol=1e-4, rtol=1e-4), "mismatch (chunked/padded)"

    print("KERNEL_OK")
</pallas_src>

<mosaic_0001>
module attributes {stable_mosaic.version = 11 : i64} {
  func.func @_ffn_kernel(%arg0: i32, %arg1: i32, %arg2: memref<16x512xf32, #tpu.memory_space<vmem>>, %arg3: memref<512x2048xf32, #tpu.memory_space<vmem>>, %arg4: memref<1x2048xf32, #tpu.memory_space<vmem>>, %arg5: memref<2048x512xf32, #tpu.memory_space<vmem>>, %arg6: memref<1x512xf32, #tpu.memory_space<vmem>>, %arg7: memref<16x512xf32, #tpu.memory_space<vmem>>, %arg8: memref<16x512xf32, #tpu.memory_space<vmem>>) attributes {dimension_semantics = [#tpu.dimension_semantics<parallel>, #tpu.dimension_semantics<arbitrary>], iteration_bounds = array<i64: 2, 1>, scalar_prefetch = 0 : i64, scratch_operands = 1 : i64, tpu.core_type = #tpu.core_type<tc>, window_params = [{transform_indices = @transform_0, window_bounds = array<i64: 16, 512>}, {transform_indices = @transform_1, window_bounds = array<i64: 512, 2048>}, {transform_indices = @transform_2, window_bounds = array<i64: 1, 2048>}, {transform_indices = @transform_3, window_bounds = array<i64: 2048, 512>}, {pipeline_mode = #tpu.pipeline_mode<synchronous>, transform_indices = @transform_4, window_bounds = array<i64: 1, 512>}, {transform_indices = @transform_5, window_bounds = array<i64: 16, 512>}]} {
    %c0_i32 = arith.constant 0 : i32
    %0 = arith.cmpi eq, %arg1, %c0_i32 : i32
    %1 = arith.extui %0 : i1 to i32
    %c0_i32_0 = arith.constant 0 : i32
    %2 = arith.cmpi ne, %1, %c0_i32_0 : i32
    scf.if %2 {
      %cst_18 = arith.constant 0.000000e+00 : f32
      %25 = vector.broadcast %cst_18 : f32 to vector<16x512xf32>
      %c0_19 = arith.constant 0 : index
      %c0_20 = arith.constant 0 : index
      %26 = vector.load %arg8[%c0_19, %c0_20] : memref<16x512xf32, #tpu.memory_space<vmem>>, vector<16x512xf32>
      tpu.vector_store %arg8[%c0_19, %c0_20], %25 {strides = array<i32>} : memref<16x512xf32, #tpu.memory_space<vmem>>, vector<16x512xf32>,
    } else {
    }
    %c0 = arith.constant 0 : index
    %c0_1 = arith.constant 0 : index
    %3 = vector.load %arg3[%c0, %c0_1] : memref<512x2048xf32, #tpu.memory_space<vmem>>, vector<512x2048xf32>
    %c0_2 = arith.constant 0 : index
    %c0_3 = arith.constant 0 : index
    %4 = vector.load %arg5[%c0_2, %c0_3] : memref<2048x512xf32, #tpu.memory_space<vmem>>, vector<2048x512xf32>
    %c0_4 = arith.constant 0 : index
    %c0_5 = arith.constant 0 : index
    %5 = vector.load %arg2[%c0_4, %c0_5] : memref<16x512xf32, #tpu.memory_space<vmem>>, vector<16x512xf32>
    %cst = arith.constant dense<0.000000e+00> : vector<16x2048xf32>
    %6 = tpu.matmul %5, %3, %cst {dimension_numbers = #tpu.dot_dimension_numbers<[1], [0], [0], [1], [0, 0, 1, 1], [], []>} : vector<16x512xf32>, vector<512x2048xf32>, vector<16x2048xf32> -> vector<16x2048xf32>
    %c0_6 = arith.constant 0 : index
    %c0_7 = arith.constant 0 : index
    %7 = vector.load %arg4[%c0_6, %c0_7] : memref<1x2048xf32, #tpu.memory_space<vmem>>, vector<1x2048xf32>
    %8 = vector.broadcast %7 : vector<1x2048xf32> to vector<16x2048xf32>
    %9 = arith.addf %6, %8 : vector<16x2048xf32>
    %cst_8 = arith.constant 5.000000e-01 : f32
    %10 = vector.broadcast %cst_8 : f32 to vector<16x2048xf32>
    %11 = arith.mulf %10, %9 : vector<16x2048xf32>
    %cst_9 = arith.constant 0.707106769 : f32
    %12 = vector.broadcast %cst_9 : f32 to vector<16x2048xf32>
    %13 = arith.mulf %9, %12 : vector<16x2048xf32>
    %14 = math.erf %13 : vector<16x2048xf32>
    %cst_10 = arith.constant 1.000000e+00 : f32
    %15 = vector.broadcast %cst_10 : f32 to vector<16x2048xf32>
    %16 = arith.addf %15, %14 : vector<16x2048xf32>
    %17 = arith.mulf %11, %16 : vector<16x2048xf32>
    %c0_11 = arith.constant 0 : index
    %c0_12 = arith.constant 0 : index
    %18 = vector.load %arg8[%c0_11, %c0_12] : memref<16x512xf32, #tpu.memory_space<vmem>>, vector<16x512xf32>
    %cst_13 = arith.constant dense<0.000000e+00> : vector<16x512xf32>
    %19 = tpu.matmul %17, %4, %cst_13 {dimension_numbers = #tpu.dot_dimension_numbers<[1], [0], [0], [1], [0, 0, 1, 1], [], []>} : vector<16x2048xf32>, vector<2048x512xf32>, vector<16x512xf32> -> vector<16x512xf32>
    %20 = arith.addf %18, %19 : vector<16x512xf32>
    %c0_14 = arith.constant 0 : index
    %c0_15 = arith.constant 0 : index
    %21 = vector.load %arg8[%c0_14, %c0_15] : memref<16x512xf32, #tpu.memory_space<vmem>>, vector<16x512xf32>
    tpu.vector_store %arg8[%c0_14, %c0_15], %20 {strides = array<i32>} : memref<16x512xf32, #tpu.memory_space<vmem>>, vector<16x512xf32>,
    %c0_i32_16 = arith.constant 0 : i32
    %22 = arith.cmpi eq, %arg1, %c0_i32_16 : i32
    %23 = arith.extui %22 : i1 to i32
    %c0_i32_17 = arith.constant 0 : i32
    %24 = arith.cmpi ne, %23, %c0_i32_17 : i32
    scf.if %24 {
      %c0_18 = arith.constant 0 : index
      %c0_19 = arith.constant 0 : index
      %25 = vector.load %arg8[%c0_18, %c0_19] : memref<16x512xf32, #tpu.memory_space<vmem>>, vector<16x512xf32>
      %c0_20 = arith.constant 0 : index
      %c0_21 = arith.constant 0 : index
      %26 = vector.load %arg6[%c0_20, %c0_21] : memref<1x512xf32, #tpu.memory_space<vmem>>, vector<1x512xf32>
      %27 = vector.broadcast %26 : vector<1x512xf32> to vector<16x512xf32>
      %28 = arith.addf %25, %27 : vector<16x512xf32>
      %c0_22 = arith.constant 0 : index
      %c0_23 = arith.constant 0 : index
      %29 = vector.load %arg7[%c0_22, %c0_23] : memref<16x512xf32, #tpu.memory_space<vmem>>, vector<16x512xf32>
      tpu.vector_store %arg7[%c0_22, %c0_23], %28 {strides = array<i32>} : memref<16x512xf32, #tpu.memory_space<vmem>>, vector<16x512xf32>,
    } else {
    }
    return
  }
  func.func @transform_0(%arg0: i32, %arg1: i32) -> (i32, i32) {
    %c0_i32 = arith.constant 0 : i32
    %c0_i32_0 = arith.constant 0 : i32
    return %arg0, %c0_i32 : i32, i32
  }
  func.func @transform_1(%arg0: i32, %arg1: i32) -> (i32, i32) {
    %c0_i32 = arith.constant 0 : i32
    %c0_i32_0 = arith.constant 0 : i32
    return %c0_i32, %arg1 : i32, i32
  }
  func.func @transform_2(%arg0: i32, %arg1: i32) -> (i32, i32) {
    %c0_i32 = arith.constant 0 : i32
    %c0_i32_0 = arith.constant 0 : i32
    return %c0_i32, %arg1 : i32, i32
  }
  func.func @transform_3(%arg0: i32, %arg1: i32) -> (i32, i32) {
    %c0_i32 = arith.constant 0 : i32
    %c0_i32_0 = arith.constant 0 : i32
    return %arg1, %c0_i32 : i32, i32
  }
  func.func @transform_4(%arg0: i32, %arg1: i32) -> (i32, i32) {
    %c0_i32 = arith.constant 0 : i32
    %c0_i32_0 = arith.constant 0 : i32
    %c0_i32_1 = arith.constant 0 : i32
    return %c0_i32, %c0_i32_0 : i32, i32
  }
  func.func @transform_5(%arg0: i32, %arg1: i32) -> (i32, i32) {
    %c0_i32 = arith.constant 0 : i32
    %c0_i32_0 = arith.constant 0 : i32
    return %arg0, %c0_i32 : i32, i32
  }
}

</mosaic_0001>

<llo_original>
// kernel: tpu_custom_call.1
$region0: #{tpu_custom_call.1}
  #allocation0 [shape = 'u32[]', space=smem, size = 0x4, offset = 0x4, fixed_abs, tag = 'smem constant byte address 0x4 - core index']
  #allocation1 [shape = 'u32[72,128]{1,0:T(1,128)}', space=vmem, size = 0x9000, scoped, tag = 'internal scratch']
  #allocation2 [shape = 'f32[16,512]{1,0:T(8,128)}', space=vmem, size = 0x8000, scoped, tag = 'scratch operand']
  %s0 = inlined_call_operand.hbm [shape: f32[32,512], index: 0, kind: input, shape index: {}]
  %s1 = inlined_call_operand.hbm [shape: f32[512,2048], index: 1, kind: input, shape index: {}]
  %s2 = inlined_call_operand.hbm [shape: f32[1,2048], index: 2, kind: input, shape index: {}]
  %s3 = inlined_call_operand.hbm [shape: f32[2048,512], index: 3, kind: input, shape index: {}]
  %s4 = inlined_call_operand.hbm [shape: f32[1,512], index: 4, kind: input, shape index: {}]
  %s5 = inlined_call_operand.hbm [shape: f32[32,512], index: 5, kind: output, shape index: {}]
  %s6 = sld [smem:[#allocation0]]
  $region81: #{tpu_custom_call.1} parent=0
    _
  %s8 = ssub.s32 1, %s6
  %s9 = scalar_select 0, %s8, %s6
  $region1: #{tpu_custom_call.1} parent=0
    #allocation3 [shape = 'u8[65536]{0}', space=vmem, size = 0x10000, scoped, tag = 'input window, operand 0']
    #allocation4 [shape = 's32[2]{0}', space=sflag, size = 0x8, scoped, tag = 'scoped memory for tpu_custom_call.1']
    #allocation5 [shape = 's32[2]{0}', space=sflag, size = 0x8, scoped, tag = 'scoped memory for tpu_custom_call.1']
    #allocation6 [shape = 'u8[4194304]{0}', space=vmem, size = 0x400000, scoped, tag = 'input window, operand 1, single buffered']
    #allocation7 [shape = 's32[1]{0}', space=sflag, size = 0x4, scoped, tag = 'scoped memory for tpu_custom_call.1']
    #allocation8 [shape = 'u8[8192]{0}', space=vmem, size = 0x2000, scoped, tag = 'input window, operand 2, single buffered']
    #allocation9 [shape = 'u8[4194304]{0}', space=vmem, size = 0x400000, scoped, tag = 'input window, operand 3, single buffered']
    #allocation10 [shape = 's32[1]{0}', space=sflag, size = 0x4, scoped, tag = 'scoped memory for tpu_custom_call.1']
    #allocation11 [shape = 'u8[2048]{0}', space=vmem, size = 0x800, scoped, tag = 'input window, operand 4, single buffered']
    #allocation12 [shape = 'u8[65536]{0}', space=vmem, size = 0x10000, scoped, tag = 'output window, operand 0']
    %10 = vsyncpa [#allocation4], 0
    %s11 = scalar_lea.sflag [#allocation4], 1
    %12 = vsyncpa %s11, 0
    %13 = vsyncpa [#allocation7], 0
    %14 = vsyncpa [#allocation10], 0
    %15 = vsyncpa [#allocation5], 0
    %s16 = scalar_lea.sflag [#allocation5], 1
    %17 = vsyncpa %s16, 0
    loop: start=0, step=1, limit=4
    $region2: #{tpu_custom_call.1} parent=1 // loop_pre_header
      _
    $region3: #{tpu_custom_call.1} parent=1 // loop_header
      %s19 = sphi 0, %s23
      %p20 = scmp.ge.s32.totalorder %s19, 4
      %s26 = sphi 0, %s38
      %s27 = sphi 0, %s34
      %s28 = sphi 0, %s26
      %s29 = sphi 0, %s27
      %s30 = sphi 0, %s28
      %s31 = sphi 0, %s29
      %s41 = sphi 0, %s43
      %s44 = sphi 0, %s41
      %s45 = sphi 0, %s44
      %s61 = sphi 0, %s45
      %s67 = sphi 0, %s69
      %s70 = sphi 0, %s67
      %s71 = sphi 0, %s70
      %s87 = sphi 0, %s71
      %s93 = sphi 0, %s95
      %s96 = sphi 0, %s93
      %s97 = sphi 0, %s96
      %s113 = sphi 0, %s97
      %s119 = sphi 0, %s121
      %s122 = sphi 0, %s119
      %s123 = sphi 0, %s122
      %s139 = sphi 0, %s123
      %s143 = sphi 0, %s143
      %s145 = sphi 0, %s143
      %s146 = sphi 0, %s145
      %s160 = sphi 0, %s146
      %s166 = sphi 0, %s168
      %s169 = sphi 0, %s166
      %s170 = sphi 0, %s169
      %s186 = sphi 0, %s170
    $region4: #{tpu_custom_call.1} parent=1 // loop_header_branch
      %22 = sbr.rel (%p20) target = $region8
    $region5: #{tpu_custom_call.1} parent=1 // loop_body
      %s24 = ssub.s32 %s19, 1
      %s25 = ssub.s32 %s19, 2
      %s32 = sadd.s32 1, %s27
      %p33 = scmp.ge.s32.totalorder %s32, 1
      %s34 = scalar_select %p33, 0, %s32
      %s35 = sadd.s32 1, %s26
      %s36 = scalar_select %p33, %s35, %s26
      %p37 = scmp.ge.s32.totalorder %s36, 2
      %s38 = scalar_select %p37, 0, %s36
      %s39 = ssub.s32 %s26, %s38
      %p40 = scmp.eq.s32.totalorder %s39, 0
      %s42 = sadd.s32 %s41, 1
      %s43 = scalar_select %p40, %s41, %s42
      %p46 = pneg %p40
      %p47 = scmp.eq.s32.totalorder %s19, 1
      %p48 = por %p46, %p47
      %p49 = scmp.ne.s32.totalorder %s41, %s44
      %p50 = scmp.eq.s32.totalorder %s19, 0
      %p51 = por %p49, %p50
      %p52 = scmp.ne.s32.totalorder %s41, %s44
      %p53 = scmp.eq.s32.totalorder %s24, 1
      %p54 = por %p52, %p53
      %p55 = scmp.ne.s32.totalorder %s44, %s45
      %p56 = scmp.eq.s32.totalorder %s24, 0
      %p57 = por %p55, %p56
      %p58 = scmp.ne.s32.totalorder %s44, %s45
      %p59 = scmp.eq.s32.totalorder %s25, 1
      %p60 = por %p58, %p59
      %p62 = scmp.ne.s32.totalorder %s45, %s61
      %p63 = scmp.eq.s32.totalorder %s25, 0
      %p64 = por %p62, %p63
      %s65 = ssub.s32 %s27, %s34
      %p66 = scmp.eq.s32.totalorder %s65, 0
      %s68 = sadd.s32 %s67, 1
      %s69 = scalar_select %p66, %s67, %s68
      %p72 = pneg %p66
      %p73 = scmp.eq.s32.totalorder %s19, 1
      %p74 = por %p72, %p73
      %p75 = scmp.ne.s32.totalorder %s67, %s70
      %p76 = scmp.eq.s32.totalorder %s19, 0
      %p77 = por %p75, %p76
      %p78 = scmp.ne.s32.totalorder %s67, %s70
      %p79 = scmp.eq.s32.totalorder %s24, 1
      %p80 = por %p78, %p79
      %p81 = scmp.ne.s32.totalorder %s70, %s71
      %p82 = scmp.eq.s32.totalorder %s24, 0
      %p83 = por %p81, %p82
      %p84 = scmp.ne.s32.totalorder %s70, %s71
      %p85 = scmp.eq.s32.totalorder %s25, 1
      %p86 = por %p84, %p85
      %p88 = scmp.ne.s32.totalorder %s71, %s87
      %p89 = scmp.eq.s32.totalorder %s25, 0
      %p90 = por %p88, %p89
      %s91 = ssub.s32 %s27, %s34
      %p92 = scmp.eq.s32.totalorder %s91, 0
      %s94 = sadd.s32 %s93, 1
      %s95 = scalar_select %p92, %s93, %s94
      %p98 = pneg %p92
      %p99 = scmp.eq.s32.totalorder %s19, 1
      %p100 = por %p98, %p99
      %p101 = scmp.ne.s32.totalorder %s93, %s96
      %p102 = scmp.eq.s32.totalorder %s19, 0
      %p103 = por %p101, %p102
      %p104 = scmp.ne.s32.totalorder %s93, %s96
      %p105 = scmp.eq.s32.totalorder %s24, 1
      %p106 = por %p104, %p105
      %p107 = scmp.ne.s32.totalorder %s96, %s97
      %p108 = scmp.eq.s32.totalorder %s24, 0
      %p109 = por %p107, %p108
      %p110 = scmp.ne.s32.totalorder %s96, %s97
      %p111 = scmp.eq.s32.totalorder %s25, 1
      %p112 = por %p110, %p111
      %p114 = scmp.ne.s32.totalorder %s97, %s113
      %p115 = scmp.eq.s32.totalorder %s25, 0
      %p116 = por %p114, %p115
      %s117 = ssub.s32 %s27, %s34
      %p118 = scmp.eq.s32.totalorder %s117, 0
      %s120 = sadd.s32 %s119, 1
      %s121 = scalar_select %p118, %s119, %s120
      %p124 = pneg %p118
      %p125 = scmp.eq.s32.totalorder %s19, 1
      %p126 = por %p124, %p125
      %p127 = scmp.ne.s32.totalorder %s119, %s122
      %p128 = scmp.eq.s32.totalorder %s19, 0
      %p129 = por %p127, %p128
      %p130 = scmp.ne.s32.totalorder %s119, %s122
      %p131 = scmp.eq.s32.totalorder %s24, 1
      %p132 = por %p130, %p131
      %p133 = scmp.ne.s32.totalorder %s122, %s123
      %p134 = scmp.eq.s32.totalorder %s24, 0
      %p135 = por %p133, %p134
      %p136 = scmp.ne.s32.totalorder %s122, %s123
      %p137 = scmp.eq.s32.totalorder %s25, 1
      %p138 = por %p136, %p137
      %p140 = scmp.ne.s32.totalorder %s123, %s139
      %p141 = scmp.eq.s32.totalorder %s25, 0
      %p142 = por %p140, %p141
      %s144 = sadd.s32 %s143, 1
      %p147 = scmp.eq.s32.totalorder %s19, 1
      %p148 = scmp.ne.s32.totalorder %s143, %s145
      %p149 = scmp.eq.s32.totalorder %s19, 0
      %p150 = por %p148, %p149
      %p151 = scmp.ne.s32.totalorder %s143, %s145
      %p152 = scmp.eq.s32.totalorder %s24, 1
      %p153 = por %p151, %p152
      %p154 = scmp.ne.s32.totalorder %s145, %s146
      %p155 = scmp.eq.s32.totalorder %s24, 0
      %p156 = por %p154, %p155
      %p157 = scmp.ne.s32.totalorder %s145, %s146
      %p158 = scmp.eq.s32.totalorder %s25, 1
      %p159 = por %p157, %p158
      %p161 = scmp.ne.s32.totalorder %s146, %s160
      %p162 = scmp.eq.s32.totalorder %s25, 0
      %p163 = por %p161, %p162
      %s164 = ssub.s32 %s26, %s38
      %p165 = scmp.eq.s32.totalorder %s164, 0
      %s167 = sadd.s32 %s166, 1
      %s168 = scalar_select %p165, %s166, %s167
      %p171 = pneg %p165
      %p172 = scmp.eq.s32.totalorder %s19, 1
      %p173 = por %p171, %p172
      %p174 = scmp.ne.s32.totalorder %s166, %s169
      %p175 = scmp.eq.s32.totalorder %s19, 0
      %p176 = por %p174, %p175
      %p177 = scmp.ne.s32.totalorder %s166, %s169
      %p178 = scmp.eq.s32.totalorder %s24, 1
      %p179 = por %p177, %p178
      %p180 = scmp.ne.s32.totalorder %s169, %s170
      %p181 = scmp.eq.s32.totalorder %s24, 0
      %p182 = por %p180, %p181
      %p183 = scmp.ne.s32.totalorder %s169, %s170
      %p184 = scmp.eq.s32.totalorder %s25, 1
      %p185 = por %p183, %p184
      %p187 = scmp.ne.s32.totalorder %s170, %s186
      %p188 = scmp.eq.s32.totalorder %s25, 0
      %p189 = por %p187, %p188
      %p190 = scmp.le.s32.totalorder 1, %s19
      %p191 = scmp.lt.s32.totalorder %s19, 3
      %p192 = pnand %p190, %p191
      %p193 = pneg %p192
      // Predicated region
      $region9: #{tpu_custom_call.1} parent=5 // pred_check
        _
      $region10: #{tpu_custom_call.1} parent=5 // pred_check_branch
        %195 = sbr.rel (%p192) target = $region12
      $region11: #{tpu_custom_call.1} parent=5 // pred_region
        %s196 = ssub.s32 %s19, 1
        // Predicated region
        $region13: #{tpu_custom_call.1} parent=11 // pred_check
          %p197 = pneg %p83
        $region14: #{tpu_custom_call.1} parent=11 // pred_check_branch
          %199 = sbr.rel (%p197) target = $region16
        $region15: #{tpu_custom_call.1} parent=11 // pred_region
          %s200 = smul.u32 16, %s29
          %202 = vsyncadd [#allocation7], 0
          %s203 = smul.addr %s200, 8
          %s204 = scalar_lea.hbm %s1, %s203
          %s205 = sshll.u32 %s204, 4
          %s206 = int_to_ptr.hbm [resolvable:$true] %s205
          %s207 = sshll.u32 [#allocation6], 4
          %s208 = int_to_ptr.vmem [resolvable:$true] %s207
          %213 = dma.hbm_to_vmem [thread:$0]  %s206, 131072, %s208, [#allocation7], 2048, 2048, 128
        $region16: #{tpu_custom_call.1} parent=11 // pred_fallthru
          _
        // Predicated region
        $region17: #{tpu_custom_call.1} parent=11 // pred_check
          %p214 = pneg %p109
        $region18: #{tpu_custom_call.1} parent=11 // pred_check_branch
          %216 = sbr.rel (%p214) target = $region20
        $region19: #{tpu_custom_call.1} parent=11 // pred_region
          %s217 = smul.u32 16, %s29
          %219 = vsyncadd [#allocation7], 0
          %s220 = scalar_lea.hbm %s2, %s217
          %s222 = sshll.u32 %s220, 4
          %s223 = int_to_ptr.hbm [resolvable:$true] %s222
          %s224 = sshll.u32 [#allocation8], 4
          %s225 = int_to_ptr.vmem [resolvable:$true] %s224
          %227 = dma.hbm_to_vmem [thread:$0]  %s223, 256, %s225, [#allocation7]
        $region20: #{tpu_custom_call.1} parent=11 // pred_fallthru
          _
        // Predicated region
        $region21: #{tpu_custom_call.1} parent=11 // pred_check
          %p228 = pneg %p135
        $region22: #{tpu_custom_call.1} parent=11 // pred_check_branch
          %230 = sbr.rel (%p228) target = $region24
        $region23: #{tpu_custom_call.1} parent=11 // pred_region
          %s231 = smul.u32 256, %s29
          %233 = vsyncadd [#allocation10], 0
          %s234 = smul.addr %s231, 4
          %s235 = smul.addr %s234, 8
          %s236 = scalar_lea.hbm %s3, %s235
          %s237 = sshll.u32 %s236, 4
          %s238 = int_to_ptr.hbm [resolvable:$true] %s237
          %s239 = sshll.u32 [#allocation9], 4
          %s240 = int_to_ptr.vmem [resolvable:$true] %s239
          %245 = dma.hbm_to_vmem [thread:$0]  %s238, 131072, %s240, [#allocation10], 512, 512, 32
        $region24: #{tpu_custom_call.1} parent=11 // pred_fallthru
          _
        // Predicated region
        $region25: #{tpu_custom_call.1} parent=11 // pred_check
          %p246 = pneg %p156
        $region26: #{tpu_custom_call.1} parent=11 // pred_check_branch
          %248 = sbr.rel (%p246) target = $region28
        $region27: #{tpu_custom_call.1} parent=11 // pred_region
          %250 = vsyncadd [#allocation10], 0
          %s252 = sshll.u32 %s4, 4
          %s253 = int_to_ptr.hbm [resolvable:$true] %s252
          %s254 = sshll.u32 [#allocation11], 4
          %s255 = int_to_ptr.vmem [resolvable:$true] %s254
          %257 = dma.hbm_to_vmem [thread:$0]  %s253, 64, %s255, [#allocation10]
        $region28: #{tpu_custom_call.1} parent=11 // pred_fallthru
          _
      $region12: #{tpu_custom_call.1} parent=5 // pred_fallthru
        _
      %p258 = scmp.lt.s32.totalorder %s19, 2
      // Predicated region
      $region29: #{tpu_custom_call.1} parent=5 // pred_check
        %p259 = pneg %p258
      $region30: #{tpu_custom_call.1} parent=5 // pred_check_branch
        %261 = sbr.rel (%p259) target = $region32
      $region31: #{tpu_custom_call.1} parent=5 // pred_region
        // Predicated region
        $region33: #{tpu_custom_call.1} parent=31 // pred_check
          %p262 = pneg %p51
        $region34: #{tpu_custom_call.1} parent=31 // pred_check_branch
          %264 = sbr.rel (%p262) target = $region36
        $region35: #{tpu_custom_call.1} parent=31 // pred_region
          %s265 = sand.u32 %s41, 1
          %s266 = scalar_lea.sflag [#allocation4], %s265
          %s267 = sand.u32 %s41, 1
          %s268 = smul.addr %s267, 64
          %s269 = scalar_lea.vmem [#allocation3], %s268
          %s270 = smul.u32 2, %s26
          %272 = vsyncadd %s266, 0
          %s273 = smul.addr %s270, 4
          %s274 = smul.addr %s273, 8
          %s275 = scalar_lea.hbm %s0, %s274
          %s276 = sshll.u32 %s275, 4
          %s277 = int_to_ptr.hbm [resolvable:$true] %s276
          %s278 = sshll.u32 %s269, 4
          %s279 = int_to_ptr.vmem [resolvable:$true] %s278
          %284 = dma.hbm_to_vmem [thread:$0]  %s277, 1024, %s279, %s266, 512, 512, 32
        $region36: #{tpu_custom_call.1} parent=31 // pred_fallthru
          _
      $region32: #{tpu_custom_call.1} parent=5 // pred_fallthru
        _
      %p285 = scmp.le.s32.totalorder 1, %s19
      %p286 = scmp.lt.s32.totalorder %s19, 3
      %p287 = pnand %p285, %p286
      %p288 = pneg %p287
      // Predicated region
      $region37: #{tpu_custom_call.1} parent=5 // pred_check
        _
      $region38: #{tpu_custom_call.1} parent=5 // pred_check_branch
        %290 = sbr.rel (%p287) target = $region40
      $region39: #{tpu_custom_call.1} parent=5 // pred_region
        %s291 = ssub.s32 %s19, 1
        %s292 = sand.u32 %s44, 1
        %s293 = scalar_lea.sflag [#allocation4], %s292
        %s294 = sand.u32 %s44, 1
        %s295 = smul.addr %s294, 64
        %s296 = scalar_lea.vmem [#allocation3], %s295
        // Predicated region
        $region41: #{tpu_custom_call.1} parent=39 // pred_check
          %p297 = pneg %p57
        $region42: #{tpu_custom_call.1} parent=39 // pred_check_branch
          %299 = sbr.rel (%p297) target = $region44
        $region43: #{tpu_custom_call.1} parent=39 // pred_region
          %301 = dma.done %s293, 1024
        $region44: #{tpu_custom_call.1} parent=39 // pred_fallthru
          _
        // Predicated region
        $region45: #{tpu_custom_call.1} parent=39 // pred_check
          %p302 = pneg %p83
        $region46: #{tpu_custom_call.1} parent=39 // pred_check_branch
          %304 = sbr.rel (%p302) target = $region48
        $region47: #{tpu_custom_call.1} parent=39 // pred_region
          %306 = dma.done [#allocation7], 131072
        $region48: #{tpu_custom_call.1} parent=39 // pred_fallthru
          _
        // Predicated region
        $region49: #{tpu_custom_call.1} parent=39 // pred_check
          %p307 = pneg %p109
        $region50: #{tpu_custom_call.1} parent=39 // pred_check_branch
          %309 = sbr.rel (%p307) target = $region52
        $region51: #{tpu_custom_call.1} parent=39 // pred_region
          %311 = dma.done [#allocation7], 256
        $region52: #{tpu_custom_call.1} parent=39 // pred_fallthru
          _
        // Predicated region
        $region53: #{tpu_custom_call.1} parent=39 // pred_check
          %p312 = pneg %p135
        $region54: #{tpu_custom_call.1} parent=39 // pred_check_branch
          %314 = sbr.rel (%p312) target = $region56
        $region55: #{tpu_custom_call.1} parent=39 // pred_region
          %316 = dma.done [#allocation10], 131072
        $region56: #{tpu_custom_call.1} parent=39 // pred_fallthru
          _
        // Predicated region
        $region57: #{tpu_custom_call.1} parent=39 // pred_check
          %p317 = pneg %p156
        $region58: #{tpu_custom_call.1} parent=39 // pred_check_branch
          %319 = sbr.rel (%p317) target = $region60
        $region59: #{tpu_custom_call.1} parent=39 // pred_region
          %321 = dma.done [#allocation10], 64
        $region60: #{tpu_custom_call.1} parent=39 // pred_fallthru
          _
        %s322 = sand.u32 %s44, 1
        %s323 = scalar_lea.sflag [#allocation4], %s322
        %s324 = sand.u32 %s44, 1
        %s325 = smul.addr %s324, 64
        %s326 = scalar_lea.vmem [#allocation3], %s325
        %p327 = pneg %p57
        %p328 = pneg %p54
        %p329 = pneg %p83
        %p330 = pneg %p80
        %p331 = pneg %p109
        %p332 = pneg %p106
        %p333 = pneg %p135
        %p334 = pneg %p132
        %p335 = pneg %p156
        %p336 = pneg %p153
        %p337 = pneg %p182
        %p338 = pneg %p179
        %s339 = sand.u32 %s169, 1
        %s340 = scalar_lea.sflag [#allocation5], %s339
        %s341 = sand.u32 %s169, 1
        %s342 = smul.addr %s341, 64
        %s343 = scalar_lea.vmem [#allocation12], %s342
        %s344 = smul.u32 2, %s28
        %s345 = smul.u32 16, %s29
        %s346 = smul.u32 16, %s29
        %s347 = smul.u32 256, %s29
        %s348 = smul.u32 2, %s28
        %p349 = scmp.eq.s32.totalorder %s29, 0
        // Predicated region
        $region61: #{tpu_custom_call.1} parent=39 // pred_check
          %p350 = pneg %p349
        $region62: #{tpu_custom_call.1} parent=39 // pred_check_branch
          %352 = sbr.rel (%p350) target = $region64
        $region63: #{tpu_custom_call.1} parent=39 // pred_region
          %353 = vst [vmem:[#allocation2] sm:$0xff] 0.0
          %354 = vst [vmem:[#allocation2 + $0x8] sm:$0xff] 0.0
          %355 = vst [vmem:[#allocation2 + $0x10] sm:$0xff] 0.0
          %356 = vst [vmem:[#allocation2 + $0x18] sm:$0xff] 0.0
          %357 = vst [vmem:[#allocation2 + $0x20] sm:$0xff] 0.0
          %358 = vst [vmem:[#allocation2 + $0x28] sm:$0xff] 0.0
          %359 = vst [vmem:[#allocation2 + $0x30] sm:$0xff] 0.0
          %360 = vst [vmem:[#allocation2 + $0x38] sm:$0xff] 0.0
        $region64: #{tpu_custom_call.1} parent=39 // pred_fallthru
          _
        %v361 = vld [vmem:[#allocation6] sm:$0xff]
        %v362 = vld [vmem:[#allocation6 + $0x8] sm:$0xff]
        %v363 = vld [vmem:[#allocation6 + $0x10] sm:$0xff]
        %v364 = vld [vmem:[#allocation6 + $0x18] sm:$0xff]
        %v365 = vld [vmem:[#allocation6 + $0x20] sm:$0xff]
        %v366 = vld [vmem:[#allocation6 + $0x28] sm:$0xff]
        %v367 = vld [vmem:[#allocation6 + $0x30] sm:$0xff]
        %v368 = vld [vmem:[#allocation6 + $0x38] sm:$0xff]
        %v369 = vld [vmem:[#allocation6 + $0x40] sm:$0xff]
        %v370 = vld [vmem:[#allocation6 + $0x48] sm:$0xff]
        %v371 = vld [vmem:[#allocation6 + $0x50] sm:$0xff]
        %v372 = vld [vmem:[#allocation6 + $0x58] sm:$0xff]
        %v373 = vld [vmem:[#allocation6 + $0x60] sm:$0xff]
        %v374 = vld [vmem:[#allocation6 + $0x68] sm:$0xff]
        %v375 = vld [vmem:[#allocation6 + $0x70] sm:$0xff]
        %v376 = vld [vmem:[#allocation6 + $0x78] sm:$0xff]
        %v377 = vld [vmem:[#allocation6 + $0x80] sm:$0xff]
        %v378 = vld [vmem:[#allocation6 + $0x88] sm:$0xff]
        %v379 = vld [vmem:[#allocation6 + $0x90] sm:$0xff]
        %v380 = vld [vmem:[#allocation6 + $0x98] sm:$0xff]
        %v381 = vld [vmem:[#allocation6 + $0xa0] sm:$0xff]
        %v382 = vld [vmem:[#allocation6 + $0xa8] sm:$0xff]
        %v383 = vld [vmem:[#allocation6 + $0xb0] sm:$0xff]
        %v384 = vld [vmem:[#allocation6 + $0xb8] sm:$0xff]
        %v385 = vld [vmem:[#allocation6 + $0xc0] sm:$0xff]
        %v386 = vld [vmem:[#allocation6 + $0xc8] sm:$0xff]
        %v387 = vld [vmem:[#allocation6 + $0xd0] sm:$0xff]
        %v388 = vld [vmem:[#allocation6 + $0xd8] sm:$0xff]
        %v389 = vld [vmem:[#allocation6 + $0xe0] sm:$0xff]
        %v390 = vld [vmem:[#allocation6 + $0xe8] sm:$0xff]
        %v391 = vld [vmem:[#allocation6 + $0xf0] sm:$0xff]
        %v392 = vld [vmem:[#allocation6 + $0xf8] sm:$0xff]
        %v393 = vld [vmem:[#allocation6 + $0x100] sm:$0xff]
        %v394 = vld [vmem:[#allocation6 + $0x108] sm:$0xff]
        %v395 = vld [vmem:[#allocation6 + $0x110] sm:$0xff]
        %v396 = vld [vmem:[#allocation6 + $0x118] sm:$0xff]
        %v397 = vld [vmem:[#allocation6 + $0x120] sm:$0xff]
        %v398 = vld [vmem:[#allocation6 + $0x128] sm:$0xff]
        %v399 = vld [vmem:[#allocation6 + $0x130] sm:$0xff]
        %v400 = vld [vmem:[#allocation6 + $0x138] sm:$0xff]
        %v401 = vld [vmem:[#allocation6 + $0x140] sm:$0xff]
        %v402 = vld [vmem:[#allocation6 + $0x148] sm:$0xff]
        %v403 = vld [vmem:[#allocation6 + $0x150] sm:$0xff]
        %v404 = vld [vmem:[#allocation6 + $0x158] sm:$0xff]
        %v405 = vld [vmem:[#allocation6 + $0x160] sm:$0xff]
        %v406 = vld [vmem:[#allocation6 + $0x168] sm:$0xff]
        %v407 = vld [vmem:[#allocation6 + $0x170] sm:$0xff]
        %v408 = vld [vmem:[#allocation6 + $0x178] sm:$0xff]
        %v409 = vld [vmem:[#allocation6 + $0x180] sm:$0xff]
        %v410 = vld [vmem:[#allocation6 + $0x188] sm:$0xff]
        %v411 = vld [vmem:[#allocation6 + $0x190] sm:$0xff]
        %v412 = vld [vmem:[#allocation6 + $0x198] sm:$0xff]
        %v413 = vld [vmem:[#allocation6 + $0x1a0] sm:$0xff]
        %v414 = vld [vmem:[#allocation6 + $0x1a8] sm:$0xff]
        %v415 = vld [vmem:[#allocation6 + $0x1b0] sm:$0xff]
        %v416 = vld [vmem:[#allocation6 + $0x1b8] sm:$0xff]
        %v417 = vld [vmem:[#allocation6 + $0x1c0] sm:$0xff]
        %v418 = vld [vmem:[#allocation6 + $0x1c8] sm:$0xff]
        %v419 = vld [vmem:[#allocation6 + $0x1d0] sm:$0xff]
        %v420 = vld [vmem:[#allocation6 + $0x1d8] sm:$0xff]
        %v421 = vld [vmem:[#allocation6 + $0x1e0] sm:$0xff]
        %v422 = vld [vmem:[#allocation6 + $0x1e8] sm:$0xff]
        %v423 = vld [vmem:[#allocation6 + $0x1f0] sm:$0xff]
        %v424 = vld [vmem:[#allocation6 + $0x1f8] sm:$0xff]
        %v425 = vld [vmem:[#allocation6 + $0x200] sm:$0xff]
        %v426 = vld [vmem:[#allocation6 + $0x208] sm:$0xff]
        %v427 = vld [vmem:[#allocation6 + $0x210] sm:$0xff]
        %v428 = vld [vmem:[#allocation6 + $0x218] sm:$0xff]
        %v429 = vld [vmem:[#allocation6 + $0x220] sm:$0xff]
        %v430 = vld [vmem:[#allocation6 + $0x228] sm:$0xff]
        %v431 = vld [vmem:[#allocation6 + $0x230] sm:$0xff]
        %v432 = vld [vmem:[#allocation6 + $0x238] sm:$0xff]
        %v433 = vld [vmem:[#allocation6 + $0x240] sm:$0xff]
        %v434 = vld [vmem:[#allocation6 + $0x248] sm:$0xff]
        %v435 = vld [vmem:[#allocation6 + $0x250] sm:$0xff]
        %v436 = vld [vmem:[#allocation6 + $0x258] sm:$0xff]
        %v437 = vld [vmem:[#allocation6 + $0x260] sm:$0xff]
        %v438 = vld [vmem:[#allocation6 + $0x268] sm:$0xff]
        %v439 = vld [vmem:[#allocation6 + $0x270] sm:$0xff]
        %v440 = vld [vmem:[#allocation6 + $0x278] sm:$0xff]
        %v441 = vld [vmem:[#allocation6 + $0x280] sm:$0xff]
        %v442 = vld [vmem:[#allocation6 + $0x288] sm:$0xff]
        %v443 = vld [vmem:[#allocation6 + $0x290] sm:$0xff]
        %v444 = vld [vmem:[#allocation6 + $0x298] sm:$0xff]
        %v445 = vld [vmem:[#allocation6 + $0x2a0] sm:$0xff]
        %v446 = vld [vmem:[#allocation6 + $0x2a8] sm:$0xff]
        %v447 = vld [vmem:[#allocation6 + $0x2b0] sm:$0xff]
        %v448 = vld [vmem:[#allocation6 + $0x2b8] sm:$0xff]
        %v449 = vld [vmem:[#allocation6 + $0x2c0] sm:$0xff]
        %v450 = vld [vmem:[#allocation6 + $0x2c8] sm:$0xff]
        %v451 = vld [vmem:[#allocation6 + $0x2d0] sm:$0xff]
        %v452 = vld [vmem:[#allocation6 + $0x2d8] sm:$0xff]
        %v453 = vld [vmem:[#allocation6 + $0x2e0] sm:$0xff]
        %v454 = vld [vmem:[#allocation6 + $0x2e8] sm:$0xff]
        %v455 = vld [vmem:[#allocation6 + $0x2f0] sm:$0xff]
        %v456 = vld [vmem:[#allocation6 + $0x2f8] sm:$0xff]
        %v457 = vld [vmem:[#allocation6 + $0x300] sm:$0xff]
        %v458 = vld [vmem:[#allocation6 + $0x308] sm:$0xff]
        %v459 = vld [vmem:[#allocation6 + $0x310] sm:$0xff]
        %v460 = vld [vmem:[#allocation6 + $0x318] sm:$0xff]
        %v461 = vld [vmem:[#allocation6 + $0x320] sm:$0xff]
        %v462 = vld [vmem:[#allocation6 + $0x328] sm:$0xff]
        %v463 = vld [vmem:[#allocation6 + $0x330] sm:$0xff]
        %v464 = vld [vmem:[#allocation6 + $0x338] sm:$0xff]
        %v465 = vld [vmem:[#allocation6 + $0x340] sm:$0xff]
        %v466 = vld [vmem:[#allocation6 + $0x348] sm:$0xff]
        %v467 = vld [vmem:[#allocation6 + $0x350] sm:$0xff]
        %v468 = vld [vmem:[#allocation6 + $0x358] sm:$0xff]
        %v469 = vld [vmem:[#allocation6 + $0x360] sm:$0xff]
        %v470 = vld [vmem:[#allocation6 + $0x368] sm:$0xff]
        %v471 = vld [vmem:[#allocation6 + $0x370] sm:$0xff]
        %v472 = vld [vmem:[#allocation6 + $0x378] sm:$0xff]
        %v473 = vld [vmem:[#allocation6 + $0x380] sm:$0xff]
        %v474 = vld [vmem:[#allocation6 + $0x388] sm:$0xff]
        %v475 = vld [vmem:[#allocation6 + $0x390] sm:$0xff]
        %v476 = vld [vmem:[#allocation6 + $0x398] sm:$0xff]
        %v477 = vld [vmem:[#allocation6 + $0x3a0] sm:$0xff]
        %v478 = vld [vmem:[#allocation6 + $0x3a8] sm:$0xff]
        %v479 = vld [vmem:[#allocation6 + $0x3b0] sm:$0xff]
        %v480 = vld [vmem:[#allocation6 + $0x3b8] sm:$0xff]
        %v481 = vld [vmem:[#allocation6 + $0x3c0] sm:$0xff]
        %v482 = vld [vmem:[#allocation6 + $0x3c8] sm:$0xff]
        %v483 = vld [vmem:[#allocation6 + $0x3d0] sm:$0xff]
        %v484 = vld [vmem:[#allocation6 + $0x3d8] sm:$0xff]
        %v485 = vld [vmem:[#allocation6 + $0x3e0] sm:$0xff]
        %v486 = vld [vmem:[#allocation6 + $0x3e8] sm:$0xff]
        %v487 = vld [vmem:[#allocation6 + $0x3f0] sm:$0xff]
        %v488 = vld [vmem:[#allocation6 + $0x3f8] sm:$0xff]
        %v489 = vld [vmem:[#allocation6 + $0x400] sm:$0xff]
        %v490 = vld [vmem:[#allocation6 + $0x408] sm:$0xff]
        %v491 = vld [vmem:[#allocation6 + $0x410] sm:$0xff]
        %v492 = vld [vmem:[#allocation6 + $0x418] sm:$0xff]
        %v493 = vld [vmem:[#allocation6 + $0x420] sm:$0xff]
        %v494 = vld [vmem:[#allocation6 + $0x428] sm:$0xff]
        %v495 = vld [vmem:[#allocation6 + $0x430] sm:$0xff]
        %v496 = vld [vmem:[#allocation6 + $0x438] sm:$0xff]
        %v497 = vld [vmem:[#allocation6 + $0x440] sm:$0xff]
        %v498 = vld [vmem:[#allocation6 + $0x448] sm:$0xff]
        %v499 = vld [vmem:[#allocation6 + $0x450] sm:$0xff]
        %v500 = vld [vmem:[#allocation6 + $0x458] sm:$0xff]
        %v501 = vld [vmem:[#allocation6 + $0x460] sm:$0xff]
        %v502 = vld [vmem:[#allocation6 + $0x468] sm:$0xff]
        %v503 = vld [vmem:[#allocation6 + $0x470] sm:$0xff]
        %v504 = vld [vmem:[#allocation6 + $0x478] sm:$0xff]
        %v505 = vld [vmem:[#allocation6 + $0x480] sm:$0xff]
        %v506 = vld [vmem:[#allocation6 + $0x488] sm:$0xff]
        %v507 = vld [vmem:[#allocation6 + $0x490] sm:$0xff]
        %v508 = vld [vmem:[#allocation6 + $0x498] sm:$0xff]
        %v509 = vld [vmem:[#allocation6 + $0x4a0] sm:$0xff]
        %v510 = vld [vmem:[#allocation6 + $0x4a8] sm:$0xff]
        %v511 = vld [vmem:[#allocation6 + $0x4b0] sm:$0xff]
        %v512 = vld [vmem:[#allocation6 + $0x4b8] sm:$0xff]
        %v513 = vld [vmem:[#allocation6 + $0x4c0] sm:$0xff]
        %v514 = vld [vmem:[#allocation6 + $0x4c8] sm:$0xff]
        %v515 = vld [vmem:[#allocation6 + $0x4d0] sm:$0xff]
        %v516 = vld [vmem:[#allocation6 + $0x4d8] sm:$0xff]
        %v517 = vld [vmem:[#allocation6 + $0x4e0] sm:$0xff]
        %v518 = vld [vmem:[#allocation6 + $0x4e8] sm:$0xff]
        %v519 = vld [vmem:[#allocation6 + $0x4f0] sm:$0xff]
        %v520 = vld [vmem:[#allocation6 + $0x4f8] sm:$0xff]
        %v521 = vld [vmem:[#allocation6 + $0x500] sm:$0xff]
        %v522 = vld [vmem:[#allocation6 + $0x508] sm:$0xff]
        %v523 = vld [vmem:[#allocation6 + $0x510] sm:$0xff]
        %v524 = vld [vmem:[#allocation6 + $0x518] sm:$0xff]
        %v525 = vld [vmem:[#allocation6 + $0x520] sm:$0xff]
        %v526 = vld [vmem:[#allocation6 + $0x528] sm:$0xff]
        %v527 = vld [vmem:[#allocation6 + $0x530] sm:$0xff]
        %v528 = vld [vmem:[#allocation6 + $0x538] sm:$0xff]
        %v529 = vld [vmem:[#allocation6 + $0x540] sm:$0xff]
        %v530 = vld [vmem:[#allocation6 + $0x548] sm:$0xff]
        %v531 = vld [vmem:[#allocation6 + $0x550] sm:$0xff]
        %v532 = vld [vmem:[#allocation6 + $0x558] sm:$0xff]
        %v533 = vld [vmem:[#allocation6 + $0x560] sm:$0xff]
        %v534 = vld [vmem:[#allocation6 + $0x568] sm:$0xff]
        %v535 = vld [vmem:[#allocation6 + $0x570] sm:$0xff]
        %v536 = vld [vmem:[#allocation6 + $0x578] sm:$0xff]
        %v537 = vld [vmem:[#allocation6 + $0x580] sm:$0xff]
        %v538 = vld [vmem:[#allocation6 + $0x588] sm:$0xff]
        %v539 = vld [vmem:[#allocation6 + $0x590] sm:$0xff]
        %v540 = vld [vmem:[#allocation6 + $0x598] sm:$0xff]
        %v541 = vld [vmem:[#allocation6 + $0x5a0] sm:$0xff]
        %v542 = vld [vmem:[#allocation6 + $0x5a8] sm:$0xff]
        %v543 = vld [vmem:[#allocation6 + $0x5b0] sm:$0xff]
        %v544 = vld [vmem:[#allocation6 + $0x5b8] sm:$0xff]
        %v545 = vld [vmem:[#allocation6 + $0x5c0] sm:$0xff]
        %v546 = vld [vmem:[#allocation6 + $0x5c8] sm:$0xff]
        %v547 = vld [vmem:[#allocation6 + $0x5d0] sm:$0xff]
        %v548 = vld [vmem:[#allocation6 + $0x5d8] sm:$0xff]
        %v549 = vld [vmem:[#allocation6 + $0x5e0] sm:$0xff]
        %v550 = vld [vmem:[#allocation6 + $0x5e8] sm:$0xff]
        %v551 = vld [vmem:[#allocation6 + $0x5f0] sm:$0xff]
        %v552 = vld [vmem:[#allocation6 + $0x5f8] sm:$0xff]
        %v553 = vld [vmem:[#allocation6 + $0x600] sm:$0xff]
        %v554 = vld [vmem:[#allocation6 + $0x608] sm:$0xff]
        %v555 = vld [vmem:[#allocation6 + $0x610] sm:$0xff]
        %v556 = vld [vmem:[#allocation6 + $0x618] sm:$0xff]
        %v557 = vld [vmem:[#allocation6 + $0x620] sm:$0xff]
        %v558 = vld [vmem:[#allocation6 + $0x628] sm:$0xff]
        %v559 = vld [vmem:[#allocation6 + $0x630] sm:$0xff]
        %v560 = vld [vmem:[#allocation6 + $0x638] sm:$0xff]
        %v561 = vld [vmem:[#allocation6 + $0x640] sm:$0xff]
        %v562 = vld [vmem:[#allocation6 + $0x648] sm:$0xff]
        %v563 = vld [vmem:[#allocation6 + $0x650] sm:$0xff]
        %v564 = vld [vmem:[#allocation6 + $0x658] sm:$0xff]
        %v565 = vld [vmem:[#allocation6 + $0x660] sm:$0xff]
        %v566 = vld [vmem:[#allocation6 + $0x668] sm:$0xff]
        %v567 = vld [vmem:[#allocation6 + $0x670] sm:$0xff]
        %v568 = vld [vmem:[#allocation6 + $0x678] sm:$0xff]
        %v569 = vld [vmem:[#allocation6 + $0x680] sm:$0xff]
        %v570 = vld [vmem:[#allocation6 + $0x688] sm:$0xff]
        %v571 = vld [vmem:[#allocation6 + $0x690] sm:$0xff]
        %v572 = vld [vmem:[#allocation6 + $0x698] sm:$0xff]
        %v573 = vld [vmem:[#allocation6 + $0x6a0] sm:$0xff]
        %v574 = vld [vmem:[#allocation6 + $0x6a8] sm:$0xff]
        %v575 = vld [vmem:[#allocation6 + $0x6b0] sm:$0xff]
        %v576 = vld [vmem:[#allocation6 + $0x6b8] sm:$0xff]
        %v577 = vld [vmem:[#allocation6 + $0x6c0] sm:$0xff]
        %v578 = vld [vmem:[#allocation6 + $0x6c8] sm:$0xff]
        %v579 = vld [vmem:[#allocation6 + $0x6d0] sm:$0xff]
        %v580 = vld [vmem:[#allocation6 + $0x6d8] sm:$0xff]
        %v581 = vld [vmem:[#allocation6 + $0x6e0] sm:$0xff]
        %v582 = vld [vmem:[#allocation6 + $0x6e8] sm:$0xff]
        %v583 = vld [vmem:[#allocation6 + $0x6f0] sm:$0xff]
        %v584 = vld [vmem:[#allocation6 + $0x6f8] sm:$0xff]
        %v585 = vld [vmem:[#allocation6 + $0x700] sm:$0xff]
        %v586 = vld [vmem:[#allocation6 + $0x708] sm:$0xff]
        %v587 = vld [vmem:[#allocation6 + $0x710] sm:$0xff]
        %v588 = vld [vmem:[#allocation6 + $0x718] sm:$0xff]
        %v589 = vld [vmem:[#allocation6 + $0x720] sm:$0xff]
        %v590 = vld [vmem:[#allocation6 + $0x728] sm:$0xff]
        %v591 = vld [vmem:[#allocation6 + $0x730] sm:$0xff]
        %v592 = vld [vmem:[#allocation6 + $0x738] sm:$0xff]
        %v593 = vld [vmem:[#allocation6 + $0x740] sm:$0xff]
        %v594 = vld [vmem:[#allocation6 + $0x748] sm:$0xff]
        %v595 = vld [vmem:[#allocation6 + $0x750] sm:$0xff]
        %v596 = vld [vmem:[#allocation6 + $0x758] sm:$0xff]
        %v597 = vld [vmem:[#allocation6 + $0x760] sm:$0xff]
        %v598 = vld [vmem:[#allocation6 + $0x768] sm:$0xff]
        %v599 = vld [vmem:[#allocation6 + $0x770] sm:$0xff]
        %v600 = vld [vmem:[#allocation6 + $0x778] sm:$0xff]
        %v601 = vld [vmem:[#allocation6 + $0x780] sm:$0xff]
        %v602 = vld [vmem:[#allocation6 + $0x788] sm:$0xff]
        %v603 = vld [vmem:[#allocation6 + $0x790] sm:$0xff]
        %v604 = vld [vmem:[#allocation6 + $0x798] sm:$0xff]
        %v605 = vld [vmem:[#allocation6 + $0x7a0] sm:$0xff]
        %v606 = vld [vmem:[#allocation6 + $0x7a8] sm:$0xff]
        %v607 = vld [vmem:[#allocation6 + $0x7b0] sm:$0xff]
        %v608 = vld [vmem:[#allocation6 + $0x7b8] sm:$0xff]
        %v609 = vld [vmem:[#allocation6 + $0x7c0] sm:$0xff]
        %v610 = vld [vmem:[#allocation6 + $0x7c8] sm:$0xff]
        %v611 = vld [vmem:[#allocation6 + $0x7d0] sm:$0xff]
        %v612 = vld [vmem:[#allocation6 + $0x7d8] sm:$0xff]
        %v613 = vld [vmem:[#allocation6 + $0x7e0] sm:$0xff]
        %v614 = vld [vmem:[#allocation6 + $0x7e8] sm:$0xff]
        %v615 = vld [vmem:[#allocation6 + $0x7f0] sm:$0xff]
        %v616 = vld [vmem:[#allocation6 + $0x7f8] sm:$0xff]
        %v617 = vld [vmem:[#allocation6 + $0x800] sm:$0xff]
        %v618 = vld [vmem:[#allocation6 + $0x808] sm:$0xff]
        %v619 = vld [vmem:[#allocation6 + $0x810] sm:$0xff]
        %v620 = vld [vmem:[#allocation6 + $0x818] sm:$0xff]
        %v621 = vld [vmem:[#allocation6 + $0x820] sm:$0xff]
        %v622 = vld [vmem:[#allocation6 + $0x828] sm:$0xff]
        %v623 = vld [vmem:[#allocation6 + $0x830] sm:$0xff]
        %v624 = vld [vmem:[#allocation6 + $0x838] sm:$0xff]
        %v625 = vld [vmem:[#allocation6 + $0x840] sm:$0xff]
        %v626 = vld [vmem:[#allocation6 + $0x848] sm:$0xff]
        %v627 = vld [vmem:[#allocation6 + $0x850] sm:$0xff]
        %v628 = vld [vmem:[#allocation6 + $0x858] sm:$0xff]
        %v629 = vld [vmem:[#allocation6 + $0x860] sm:$0xff]
        %v630 = vld [vmem:[#allocation6 + $0x868] sm:$0xff]
        %v631 = vld [vmem:[#allocation6 + $0x870] sm:$0xff]
        %v632 = vld [vmem:[#allocation6 + $0x878] sm:$0xff]
        %v633 = vld [vmem:[#allocation6 + $0x880] sm:$0xff]
        %v634 = vld [vmem:[#allocation6 + $0x888] sm:$0xff]
        %v635 = vld [vmem:[#allocation6 + $0x890] sm:$0xff]
        %v636 = vld [vmem:[#allocation6 + $0x898] sm:$0xff]
        %v637 = vld [vmem:[#allocation6 + $0x8a0] sm:$0xff]
        %v638 = vld [vmem:[#allocation6 + $0x8a8] sm:$0xff]
        %v639 = vld [vmem:[#allocation6 + $0x8b0] sm:$0xff]
        %v640 = vld [vmem:[#allocation6 + $0x8b8] sm:$0xff]
        %v641 = vld [vmem:[#allocation6 + $0x8c0] sm:$0xff]
        %v642 = vld [vmem:[#allocation6 + $0x8c8] sm:$0xff]
        %v643 = vld [vmem:[#allocation6 + $0x8d0] sm:$0xff]
        %v644 = vld [vmem:[#allocation6 + $0x8d8] sm:$0xff]
        %v645 = vld [vmem:[#allocation6 + $0x8e0] sm:$0xff]
        %v646 = vld [vmem:[#allocation6 + $0x8e8] sm:$0xff]
        %v647 = vld [vmem:[#allocation6 + $0x8f0] sm:$0xff]
        %v648 = vld [vmem:[#allocation6 + $0x8f8] sm:$0xff]
        %v649 = vld [vmem:[#allocation6 + $0x900] sm:$0xff]
        %v650 = vld [vmem:[#allocation6 + $0x908] sm:$0xff]
        %v651 = vld [vmem:[#allocation6 + $0x910] sm:$0xff]
        %v652 = vld [vmem:[#allocation6 + $0x918] sm:$0xff]
        %v653 = vld [vmem:[#allocation6 + $0x920] sm:$0xff]
        %v654 = vld [vmem:[#allocation6 + $0x928] sm:$0xff]
        %v655 = vld [vmem:[#allocation6 + $0x930] sm:$0xff]
        %v656 = vld [vmem:[#allocation6 + $0x938] sm:$0xff]
        %v657 = vld [vmem:[#allocation6 + $0x940] sm:$0xff]
        %v658 = vld [vmem:[#allocation6 + $0x948] sm:$0xff]
        %v659 = vld [vmem:[#allocation6 + $0x950] sm:$0xff]
        %v660 = vld [vmem:[#allocation6 + $0x958] sm:$0xff]
        %v661 = vld [vmem:[#allocation6 + $0x960] sm:$0xff]
        %v662 = vld [vmem:[#allocation6 + $0x968] sm:$0xff]
        %v663 = vld [vmem:[#allocation6 + $0x970] sm:$0xff]
        %v664 = vld [vmem:[#allocation6 + $0x978] sm:$0xff]
        %v665 = vld [vmem:[#allocation6 + $0x980] sm:$0xff]
        %v666 = vld [vmem:[#allocation6 + $0x988] sm:$0xff]
        %v667 = vld [vmem:[#allocation6 + $0x990] sm:$0xff]
        %v668 = vld [vmem:[#allocation6 + $0x998] sm:$0xff]
        %v669 = vld [vmem:[#allocation6 + $0x9a0] sm:$0xff]
        %v670 = vld [vmem:[#allocation6 + $0x9a8] sm:$0xff]
        %v671 = vld [vmem:[#allocation6 + $0x9b0] sm:$0xff]
        %v672 = vld [vmem:[#allocation6 + $0x9b8] sm:$0xff]
        %v673 = vld [vmem:[#allocation6 + $0x9c0] sm:$0xff]
        %v674 = vld [vmem:[#allocation6 + $0x9c8] sm:$0xff]
        %v675 = vld [vmem:[#allocation6 + $0x9d0] sm:$0xff]
        %v676 = vld [vmem:[#allocation6 + $0x9d8] sm:$0xff]
        %v677 = vld [vmem:[#allocation6 + $0x9e0] sm:$0xff]
        %v678 = vld [vmem:[#allocation6 + $0x9e8] sm:$0xff]
        %v679 = vld [vmem:[#allocation6 + $0x9f0] sm:$0xff]
        %v680 = vld [vmem:[#allocation6 + $0x9f8] sm:$0xff]
        %v681 = vld [vmem:[#allocation6 + $0xa00] sm:$0xff]
        %v682 = vld [vmem:[#allocation6 + $0xa08] sm:$0xff]
        %v683 = vld [vmem:[#allocation6 + $0xa10] sm:$0xff]
        %v684 = vld [vmem:[#allocation6 + $0xa18] sm:$0xff]
        %v685 = vld [vmem:[#allocation6 + $0xa20] sm:$0xff]
        %v686 = vld [vmem:[#allocation6 + $0xa28] sm:$0xff]
        %v687 = vld [vmem:[#allocation6 + $0xa30] sm:$0xff]
        %v688 = vld [vmem:[#allocation6 + $0xa38] sm:$0xff]
        %v689 = vld [vmem:[#allocation6 + $0xa40] sm:$0xff]
        %v690 = vld [vmem:[#allocation6 + $0xa48] sm:$0xff]
        %v691 = vld [vmem:[#allocation6 + $0xa50] sm:$0xff]
        %v692 = vld [vmem:[#allocation6 + $0xa58] sm:$0xff]
        %v693 = vld [vmem:[#allocation6 + $0xa60] sm:$0xff]
        %v694 = vld [vmem:[#allocation6 + $0xa68] sm:$0xff]
        %v695 = vld [vmem:[#allocation6 + $0xa70] sm:$0xff]
        %v696 = vld [vmem:[#allocation6 + $0xa78] sm:$0xff]
        %v697 = vld [vmem:[#allocation6 + $0xa80] sm:$0xff]
        %v698 = vld [vmem:[#allocation6 + $0xa88] sm:$0xff]
        %v699 = vld [vmem:[#allocation6 + $0xa90] sm:$0xff]
        %v700 = vld [vmem:[#allocation6 + $0xa98] sm:$0xff]
        %v701 = vld [vmem:[#allocation6 + $0xaa0] sm:$0xff]
        %v702 = vld [vmem:[#allocation6 + $0xaa8] sm:$0xff]
        %v703 = vld [vmem:[#allocation6 + $0xab0] sm:$0xff]
        %v704 = vld [vmem:[#allocation6 + $0xab8] sm:$0xff]
        %v705 = vld [vmem:[#allocation6 + $0xac0] sm:$0xff]
        %v706 = vld [vmem:[#allocation6 + $0xac8] sm:$0xff]
        %v707 = vld [vmem:[#allocation6 + $0xad0] sm:$0xff]
        %v708 = vld [vmem:[#allocation6 + $0xad8] sm:$0xff]
        %v709 = vld [vmem:[#allocation6 + $0xae0] sm:$0xff]
        %v710 = vld [vmem:[#allocation6 + $0xae8] sm:$0xff]
        %v711 = vld [vmem:[#allocation6 + $0xaf0] sm:$0xff]
        %v712 = vld [vmem:[#allocation6 + $0xaf8] sm:$0xff]
        %v713 = vld [vmem:[#allocation6 + $0xb00] sm:$0xff]
        %v714 = vld [vmem:[#allocation6 + $0xb08] sm:$0xff]
        %v715 = vld [vmem:[#allocation6 + $0xb10] sm:$0xff]
        %v716 = vld [vmem:[#allocation6 + $0xb18] sm:$0xff]
        %v717 = vld [vmem:[#allocation6 + $0xb20] sm:$0xff]
        %v718 = vld [vmem:[#allocation6 + $0xb28] sm:$0xff]
        %v719 = vld [vmem:[#allocation6 + $0xb30] sm:$0xff]
        %v720 = vld [vmem:[#allocation6 + $0xb38] sm:$0xff]
        %v721 = vld [vmem:[#allocation6 + $0xb40] sm:$0xff]
        %v722 = vld [vmem:[#allocation6 + $0xb48] sm:$0xff]
        %v723 = vld [vmem:[#allocation6 + $0xb50] sm:$0xff]
        %v724 = vld [vmem:[#allocation6 + $0xb58] sm:$0xff]
        %v725 = vld [vmem:[#allocation6 + $0xb60] sm:$0xff]
        %v726 = vld [vmem:[#allocation6 + $0xb68] sm:$0xff]
        %v727 = vld [vmem:[#allocation6 + $0xb70] sm:$0xff]
        %v728 = vld [vmem:[#allocation6 + $0xb78] sm:$0xff]
        %v729 = vld [vmem:[#allocation6 + $0xb80] sm:$0xff]
        %v730 = vld [vmem:[#allocation6 + $0xb88] sm:$0xff]
        %v731 = vld [vmem:[#allocation6 + $0xb90] sm:$0xff]
        %v732 = vld [vmem:[#allocation6 + $0xb98] sm:$0xff]
        %v733 = vld [vmem:[#allocation6 + $0xba0] sm:$0xff]
        %v734 = vld [vmem:[#allocation6 + $0xba8] sm:$0xff]
        %v735 = vld [vmem:[#allocation6 + $0xbb0] sm:$0xff]
        %v736 = vld [vmem:[#allocation6 + $0xbb8] sm:$0xff]
        %v737 = vld [vmem:[#allocation6 + $0xbc0] sm:$0xff]
        %v738 = vld [vmem:[#allocation6 + $0xbc8] sm:$0xff]
        %v739 = vld [vmem:[#allocation6 + $0xbd0] sm:$0xff]
        %v740 = vld [vmem:[#allocation6 + $0xbd8] sm:$0xff]
        %v741 = vld [vmem:[#allocation6 + $0xbe0] sm:$0xff]
        %v742 = vld [vmem:[#allocation6 + $0xbe8] sm:$0xff]
        %v743 = vld [vmem:[#allocation6 + $0xbf0] sm:$0xff]
        %v744 = vld [vmem:[#allocation6 + $0xbf8] sm:$0xff]
        %v745 = vld [vmem:[#allocation6 + $0xc00] sm:$0xff]
        %v746 = vld [vmem:[#allocation6 + $0xc08] sm:$0xff]
        %v747 = vld [vmem:[#allocation6 + $0xc10] sm:$0xff]
        %v748 = vld [vmem:[#allocation6 + $0xc18] sm:$0xff]
        %v749 = vld [vmem:[#allocation6 + $0xc20] sm:$0xff]
        %v750 = vld [vmem:[#allocation6 + $0xc28] sm:$0xff]
        %v751 = vld [vmem:[#allocation6 + $0xc30] sm:$0xff]
        %v752 = vld [vmem:[#allocation6 + $0xc38] sm:$0xff]
        %v753 = vld [vmem:[#allocation6 + $0xc40] sm:$0xff]
        %v754 = vld [vmem:[#allocation6 + $0xc48] sm:$0xff]
        %v755 = vld [vmem:[#allocation6 + $0xc50] sm:$0xff]
        %v756 = vld [vmem:[#allocation6 + $0xc58] sm:$0xff]
        %v757 = vld [vmem:[#allocation6 + $0xc60] sm:$0xff]
        %v758 = vld [vmem:[#allocation6 + $0xc68] sm:$0xff]
        %v759 = vld [vmem:[#allocation6 + $0xc70] sm:$0xff]
        %v760 = vld [vmem:[#allocation6 + $0xc78] sm:$0xff]
        %v761 = vld [vmem:[#allocation6 + $0xc80] sm:$0xff]
        %v762 = vld [vmem:[#allocation6 + $0xc88] sm:$0xff]
        %v763 = vld [vmem:[#allocation6 + $0xc90] sm:$0xff]
        %v764 = vld [vmem:[#allocation6 + $0xc98] sm:$0xff]
        %v765 = vld [vmem:[#allocation6 + $0xca0] sm:$0xff]
        %v766 = vld [vmem:[#allocation6 + $0xca8] sm:$0xff]
        %v767 = vld [vmem:[#allocation6 + $0xcb0] sm:$0xff]
        %v768 = vld [vmem:[#allocation6 + $0xcb8] sm:$0xff]
        %v769 = vld [vmem:[#allocation6 + $0xcc0] sm:$0xff]
        %v770 = vld [vmem:[#allocation6 + $0xcc8] sm:$0xff]
        %v771 = vld [vmem:[#allocation6 + $0xcd0] sm:$0xff]
        %v772 = vld [vmem:[#allocation6 + $0xcd8] sm:$0xff]
        %v773 = vld [vmem:[#allocation6 + $0xce0] sm:$0xff]
        %v774 = vld [vmem:[#allocation6 + $0xce8] sm:$0xff]
        %v775 = vld [vmem:[#allocation6 + $0xcf0] sm:$0xff]
        %v776 = vld [vmem:[#allocation6 + $0xcf8] sm:$0xff]
        %v777 = vld [vmem:[#allocation6 + $0xd00] sm:$0xff]
        %v778 = vld [vmem:[#allocation6 + $0xd08] sm:$0xff]
        %v779 = vld [vmem:[#allocation6 + $0xd10] sm:$0xff]
        %v780 = vld [vmem:[#allocation6 + $0xd18] sm:$0xff]
        %v781 = vld [vmem:[#allocation6 + $0xd20] sm:$0xff]
        %v782 = vld [vmem:[#allocation6 + $0xd28] sm:$0xff]
        %v783 = vld [vmem:[#allocation6 + $0xd30] sm:$0xff]
        %v784 = vld [vmem:[#allocation6 + $0xd38] sm:$0xff]
        %v785 = vld [vmem:[#allocation6 + $0xd40] sm:$0xff]
        %v786 = vld [vmem:[#allocation6 + $0xd48] sm:$0xff]
        %v787 = vld [vmem:[#allocation6 + $0xd50] sm:$0xff]
        %v788 = vld [vmem:[#allocation6 + $0xd58] sm:$0xff]
        %v789 = vld [vmem:[#allocation6 + $0xd60] sm:$0xff]
        %v790 = vld [vmem:[#allocation6 + $0xd68] sm:$0xff]
        %v791 = vld [vmem:[#allocation6 + $0xd70] sm:$0xff]
        %v792 = vld [vmem:[#allocation6 + $0xd78] sm:$0xff]
        %v793 = vld [vmem:[#allocation6 + $0xd80] sm:$0xff]
        %v794 = vld [vmem:[#allocation6 + $0xd88] sm:$0xff]
        %v795 = vld [vmem:[#allocation6 + $0xd90] sm:$0xff]
        %v796 = vld [vmem:[#allocation6 + $0xd98] sm:$0xff]
        %v797 = vld [vmem:[#allocation6 + $0xda0] sm:$0xff]
        %v798 = vld [vmem:[#allocation6 + $0xda8] sm:$0xff]
        %v799 = vld [vmem:[#allocation6 + $0xdb0] sm:$0xff]
        %v800 = vld [vmem:[#allocation6 + $0xdb8] sm:$0xff]
        %v801 = vld [vmem:[#allocation6 + $0xdc0] sm:$0xff]
        %v802 = vld [vmem:[#allocation6 + $0xdc8] sm:$0xff]
        %v803 = vld [vmem:[#allocation6 + $0xdd0] sm:$0xff]
        %v804 = vld [vmem:[#allocation6 + $0xdd8] sm:$0xff]
        %v805 = vld [vmem:[#allocation6 + $0xde0] sm:$0xff]
        %v806 = vld [vmem:[#allocation6 + $0xde8] sm:$0xff]
        %v807 = vld [vmem:[#allocation6 + $0xdf0] sm:$0xff]
        %v808 = vld [vmem:[#allocation6 + $0xdf8] sm:$0xff]
        %v809 = vld [vmem:[#allocation6 + $0xe00] sm:$0xff]
        %v810 = vld [vmem:[#allocation6 + $0xe08] sm:$0xff]
        %v811 = vld [vmem:[#allocation6 + $0xe10] sm:$0xff]
        %v812 = vld [vmem:[#allocation6 + $0xe18] sm:$0xff]
        %v813 = vld [vmem:[#allocation6 + $0xe20] sm:$0xff]
        %v814 = vld [vmem:[#allocation6 + $0xe28] sm:$0xff]
        %v815 = vld [vmem:[#allocation6 + $0xe30] sm:$0xff]
        %v816 = vld [vmem:[#allocation6 + $0xe38] sm:$0xff]
        %v817 = vld [vmem:[#allocation6 + $0xe40] sm:$0xff]
        %v818 = vld [vmem:[#allocation6 + $0xe48] sm:$0xff]
        %v819 = vld [vmem:[#allocation6 + $0xe50] sm:$0xff]
        %v820 = vld [vmem:[#allocation6 + $0xe58] sm:$0xff]
        %v821 = vld [vmem:[#allocation6 + $0xe60] sm:$0xff]
        %v822 = vld [vmem:[#allocation6 + $0xe68] sm:$0xff]
        %v823 = vld [vmem:[#allocation6 + $0xe70] sm:$0xff]
        %v824 = vld [vmem:[#allocation6 + $0xe78] sm:$0xff]
        %v825 = vld [vmem:[#allocation6 + $0xe80] sm:$0xff]
        %v826 = vld [vmem:[#allocation6 + $0xe88] sm:$0xff]
        %v827 = vld [vmem:[#allocation6 + $0xe90] sm:$0xff]
        %v828 = vld [vmem:[#allocation6 + $0xe98] sm:$0xff]
        %v829 = vld [vmem:[#allocation6 + $0xea0] sm:$0xff]
        %v830 = vld [vmem:[#allocation6 + $0xea8] sm:$0xff]
        %v831 = vld [vmem:[#allocation6 + $0xeb0] sm:$0xff]
        %v832 = vld [vmem:[#allocation6 + $0xeb8] sm:$0xff]
        %v833 = vld [vmem:[#allocation6 + $0xec0] sm:$0xff]
        %v834 = vld [vmem:[#allocation6 + $0xec8] sm:$0xff]
        %v835 = vld [vmem:[#allocation6 + $0xed0] sm:$0xff]
        %v836 = vld [vmem:[#allocation6 + $0xed8] sm:$0xff]
        %v837 = vld [vmem:[#allocation6 + $0xee0] sm:$0xff]
        %v838 = vld [vmem:[#allocation6 + $0xee8] sm:$0xff]
        %v839 = vld [vmem:[#allocation6 + $0xef0] sm:$0xff]
        %v840 = vld [vmem:[#allocation6 + $0xef8] sm:$0xff]
        %v841 = vld [vmem:[#allocation6 + $0xf00] sm:$0xff]
        %v842 = vld [vmem:[#allocation6 + $0xf08] sm:$0xff]
        %v843 = vld [vmem:[#allocation6 + $0xf10] sm:$0xff]
        %v844 = vld [vmem:[#allocation6 + $0xf18] sm:$0xff]
        %v845 = vld [vmem:[#allocation6 + $0xf20] sm:$0xff]
        %v846 = vld [vmem:[#allocation6 + $0xf28] sm:$0xff]
        %v847 = vld [vmem:[#allocation6 + $0xf30] sm:$0xff]
        %v848 = vld [vmem:[#allocation6 + $0xf38] sm:$0xff]
        %v849 = vld [vmem:[#allocation6 + $0xf40] sm:$0xff]
        %v850 = vld [vmem:[#allocation6 + $0xf48] sm:$0xff]
        %v851 = vld [vmem:[#allocation6 + $0xf50] sm:$0xff]
        %v852 = vld [vmem:[#allocation6 + $0xf58] sm:$0xff]
        %v853 = vld [vmem:[#allocation6 + $0xf60] sm:$0xff]
        %v854 = vld [vmem:[#allocation6 + $0xf68] sm:$0xff]
        %v855 = vld [vmem:[#allocation6 + $0xf70] sm:$0xff]
        %v856 = vld [vmem:[#allocation6 + $0xf78] sm:$0xff]
        %v857 = vld [vmem:[#allocation6 + $0xf80] sm:$0xff]
        %v858 = vld [vmem:[#allocation6 + $0xf88] sm:$0xff]
        %v859 = vld [vmem:[#allocation6 + $0xf90] sm:$0xff]
        %v860 = vld [vmem:[#allocation6 + $0xf98] sm:$0xff]
        %v861 = vld [vmem:[#allocation6 + $0xfa0] sm:$0xff]
        %v862 = vld [vmem:[#allocation6 + $0xfa8] sm:$0xff]
        %v863 = vld [vmem:[#allocation6 + $0xfb0] sm:$0xff]
        %v864 = vld [vmem:[#allocation6 + $0xfb8] sm:$0xff]
        %v865 = vld [vmem:[#allocation6 + $0xfc0] sm:$0xff]
        %v866 = vld [vmem:[#allocation6 + $0xfc8] sm:$0xff]
        %v867 = vld [vmem:[#allocation6 + $0xfd0] sm:$0xff]
        %v868 = vld [vmem:[#allocation6 + $0xfd8] sm:$0xff]
        %v869 = vld [vmem:[#allocation6 + $0xfe0] sm:$0xff]
        %v870 = vld [vmem:[#allocation6 + $0xfe8] sm:$0xff]
        %v871 = vld [vmem:[#allocation6 + $0xff0] sm:$0xff]
        %v872 = vld [vmem:[#allocation6 + $0xff8] sm:$0xff]
        %v873 = vld [vmem:[#allocation6 + $0x1000] sm:$0xff]
        %v874 = vld [vmem:[#allocation6 + $0x1008] sm:$0xff]
        %v875 = vld [vmem:[#allocation6 + $0x1010] sm:$0xff]
        %v876 = vld [vmem:[#allocation6 + $0x1018] sm:$0xff]
        %v877 = vld [vmem:[#allocation6 + $0x1020] sm:$0xff]
        %v878 = vld [vmem:[#allocation6 + $0x1028] sm:$0xff]
        %v879 = vld [vmem:[#allocation6 + $0x1030] sm:$0xff]
        %v880 = vld [vmem:[#allocation6 + $0x1038] sm:$0xff]
        %v881 = vld [vmem:[#allocation6 + $0x1040] sm:$0xff]
        %v882 = vld [vmem:[#allocation6 + $0x1048] sm:$0xff]
        %v883 = vld [vmem:[#allocation6 + $0x1050] sm:$0xff]
        %v884 = vld [vmem:[#allocation6 + $0x1058] sm:$0xff]
        %v885 = vld [vmem:[#allocation6 + $0x1060] sm:$0xff]
        %v886 = vld [vmem:[#allocation6 + $0x1068] sm:$0xff]
        %v887 = vld [vmem:[#allocation6 + $0x1070] sm:$0xff]
        %v888 = vld [vmem:[#allocation6 + $0x1078] sm:$0xff]
        %v889 = vld [vmem:[#allocation6 + $0x1080] sm:$0xff]
        %v890 = vld [vmem:[#allocation6 + $0x1088] sm:$0xff]
        %v891 = vld [vmem:[#allocation6 + $0x1090] sm:$0xff]
        %v892 = vld [vmem:[#allocation6 + $0x1098] sm:$0xff]
        %v893 = vld [vmem:[#allocation6 + $0x10a0] sm:$0xff]
        %v894 = vld [vmem:[#allocation6 + $0x10a8] sm:$0xff]
        %v895 = vld [vmem:[#allocation6 + $0x10b0] sm:$0xff]
        %v896 = vld [vmem:[#allocation6 + $0x10b8] sm:$0xff]
        %v897 = vld [vmem:[#allocation6 + $0x10c0] sm:$0xff]
        %v898 = vld [vmem:[#allocation6 + $0x10c8] sm:$0xff]
        %v899 = vld [vmem:[#allocation6 + $0x10d0] sm:$0xff]
        %v900 = vld [vmem:[#allocation6 + $0x10d8] sm:$0xff]
        %v901 = vld [vmem:[#allocation6 + $0x10e0] sm:$0xff]
        %v902 = vld [vmem:[#allocation6 + $0x10e8] sm:$0xff]
        %v903 = vld [vmem:[#allocation6 + $0x10f0] sm:$0xff]
        %v904 = vld [vmem:[#allocation6 + $0x10f8] sm:$0xff]
        %v905 = vld [vmem:[#allocation6 + $0x1100] sm:$0xff]
        %v906 = vld [vmem:[#allocation6 + $0x1108] sm:$0xff]
        %v907 = vld [vmem:[#allocation6 + $0x1110] sm:$0xff]
        %v908 = vld [vmem:[#allocation6 + $0x1118] sm:$0xff]
        %v909 = vld [vmem:[#allocation6 + $0x1120] sm:$0xff]
        %v910 = vld [vmem:[#allocation6 + $0x1128] sm:$0xff]
        %v911 = vld [vmem:[#allocation6 + $0x1130] sm:$0xff]
        %v912 = vld [vmem:[#allocation6 + $0x1138] sm:$0xff]
        %v913 = vld [vmem:[#allocation6 + $0x1140] sm:$0xff]
        %v914 = vld [vmem:[#allocation6 + $0x1148] sm:$0xff]
        %v915 = vld [vmem:[#allocation6 + $0x1150] sm:$0xff]
        %v916 = vld [vmem:[#allocation6 + $0x1158] sm:$0xff]
        %v917 = vld [vmem:[#allocation6 + $0x1160] sm:$0xff]
        %v918 = vld [vmem:[#allocation6 + $0x1168] sm:$0xff]
        %v919 = vld [vmem:[#allocation6 + $0x1170] sm:$0xff]
        %v920 = vld [vmem:[#allocation6 + $0x1178] sm:$0xff]
        %v921 = vld [vmem:[#allocation6 + $0x1180] sm:$0xff]
        %v922 = vld [vmem:[#allocation6 + $0x1188] sm:$0xff]
        %v923 = vld [vmem:[#allocation6 + $0x1190] sm:$0xff]
        %v924 = vld [vmem:[#allocation6 + $0x1198] sm:$0xff]
        %v925 = vld [vmem:[#allocation6 + $0x11a0] sm:$0xff]
        %v926 = vld [vmem:[#allocation6 + $0x11a8] sm:$0xff]
        %v927 = vld [vmem:[#allocation6 + $0x11b0] sm:$0xff]
        %v928 = vld [vmem:[#allocation6 + $0x11b8] sm:$0xff]
        %v929 = vld [vmem:[#allocation6 + $0x11c0] sm:$0xff]
        %v930 = vld [vmem:[#allocation6 + $0x11c8] sm:$0xff]
        %v931 = vld [vmem:[#allocation6 + $0x11d0] sm:$0xff]
        %v932 = vld [vmem:[#allocation6 + $0x11d8] sm:$0xff]
        %v933 = vld [vmem:[#allocation6 + $0x11e0] sm:$0xff]
        %v934 = vld [vmem:[#allocation6 + $0x11e8] sm:$0xff]
        %v935 = vld [vmem:[#allocation6 + $0x11f0] sm:$0xff]
        %v936 = vld [vmem:[#allocation6 + $0x11f8] sm:$0xff]
        %v937 = vld [vmem:[#allocation6 + $0x1200] sm:$0xff]
        %v938 = vld [vmem:[#allocation6 + $0x1208] sm:$0xff]
        %v939 = vld [vmem:[#allocation6 + $0x1210] sm:$0xff]
        %v940 = vld [vmem:[#allocation6 + $0x1218] sm:$0xff]
        %v941 = vld [vmem:[#allocation6 + $0x1220] sm:$0xff]
        %v942 = vld [vmem:[#allocation6 + $0x1228] sm:$0xff]
        %v943 = vld [vmem:[#allocation6 + $0x1230] sm:$0xff]
        %v944 = vld [vmem:[#allocation6 + $0x1238] sm:$0xff]
        %v945 = vld [vmem:[#allocation6 + $0x1240] sm:$0xff]
        %v946 = vld [vmem:[#allocation6 + $0x1248] sm:$0xff]
        %v947 = vld [vmem:[#allocation6 + $0x1250] sm:$0xff]
        %v948 = vld [vmem:[#allocation6 + $0x1258] sm:$0xff]
        %v949 = vld [vmem:[#allocation6 + $0x1260] sm:$0xff]
        %v950 = vld [vmem:[#allocation6 + $0x1268] sm:$0xff]
        %v951 = vld [vmem:[#allocation6 + $0x1270] sm:$0xff]
        %v952 = vld [vmem:[#allocation6 + $0x1278] sm:$0xff]
        %v953 = vld [vmem:[#allocation6 + $0x1280] sm:$0xff]
        %v954 = vld [vmem:[#allocation6 + $0x1288] sm:$0xff]
        %v955 = vld [vmem:[#allocation6 + $0x1290] sm:$0xff]
        %v956 = vld [vmem:[#allocation6 + $0x1298] sm:$0xff]
        %v957 = vld [vmem:[#allocation6 + $0x12a0] sm:$0xff]
        %v958 = vld [vmem:[#allocation6 + $0x12a8] sm:$0xff]
        %v959 = vld [vmem:[#allocation6 + $0x12b0] sm:$0xff]
        %v960 = vld [vmem:[#allocation6 + $0x12b8] sm:$0xff]
        %v961 = vld [vmem:[#allocation6 + $0x12c0] sm:$0xff]
        %v962 = vld [vmem:[#allocation6 + $0x12c8] sm:$0xff]
        %v963 = vld [vmem:[#allocation6 + $0x12d0] sm:$0xff]
        %v964 = vld [vmem:[#allocation6 + $0x12d8] sm:$0xff]
        %v965 = vld [vmem:[#allocation6 + $0x12e0] sm:$0xff]
        %v966 = vld [vmem:[#allocation6 + $0x12e8] sm:$0xff]
        %v967 = vld [vmem:[#allocation6 + $0x12f0] sm:$0xff]
        %v968 = vld [vmem:[#allocation6 + $0x12f8] sm:$0xff]
        %v969 = vld [vmem:[#allocation6 + $0x1300] sm:$0xff]
        %v970 = vld [vmem:[#allocation6 + $0x1308] sm:$0xff]
        %v971 = vld [vmem:[#allocation6 + $0x1310] sm:$0xff]
        %v972 = vld [vmem:[#allocation6 + $0x1318] sm:$0xff]
        %v973 = vld [vmem:[#allocation6 + $0x1320] sm:$0xff]
        %v974 = vld [vmem:[#allocation6 + $0x1328] sm:$0xff]
        %v975 = vld [vmem:[#allocation6 + $0x1330] sm:$0xff]
        %v976 = vld [vmem:[#allocation6 + $0x1338] sm:$0xff]
        %v977 = vld [vmem:[#allocation6 + $0x1340] sm:$0xff]
        %v978 = vld [vmem:[#allocation6 + $0x1348] sm:$0xff]
        %v979 = vld [vmem:[#allocation6 + $0x1350] sm:$0xff]
        %v980 = vld [vmem:[#allocation6 + $0x1358] sm:$0xff]
        %v981 = vld [vmem:[#allocation6 + $0x1360] sm:$0xff]
        %v982 = vld [vmem:[#allocation6 + $0x1368] sm:$0xff]
        %v983 = vld [vmem:[#allocation6 + $0x1370] sm:$0xff]
        %v984 = vld [vmem:[#allocation6 + $0x1378] sm:$0xff]
        %v985 = vld [vmem:[#allocation6 + $0x1380] sm:$0xff]
        %v986 = vld [vmem:[#allocation6 + $0x1388] sm:$0xff]
        %v987 = vld [vmem:[#allocation6 + $0x1390] sm:$0xff]
        %v988 = vld [vmem:[#allocation6 + $0x1398] sm:$0xff]
        %v989 = vld [vmem:[#allocation6 + $0x13a0] sm:$0xff]
        %v990 = vld [vmem:[#allocation6 + $0x13a8] sm:$0xff]
        %v991 = vld [vmem:[#allocation6 + $0x13b0] sm:$0xff]
        %v992 = vld [vmem:[#allocation6 + $0x13b8] sm:$0xff]
        %v993 = vld [vmem:[#allocation6 + $0x13c0] sm:$0xff]
        %v994 = vld [vmem:[#allocation6 + $0x13c8] sm:$0xff]
        %v995 = vld [vmem:[#allocation6 + $0x13d0] sm:$0xff]
        %v996 = vld [vmem:[#allocation6 + $0x13d8] sm:$0xff]
        %v997 = vld [vmem:[#allocation6 + $0x13e0] sm:$0xff]
        %v998 = vld [vmem:[#allocation6 + $0x13e8] sm:$0xff]
        %v999 = vld [vmem:[#allocation6 + $0x13f0] sm:$0xff]
        %v1000 = vld [vmem:[#allocation6 + $0x13f8] sm:$0xff]
        %v1001 = vld [vmem:[#allocation6 + $0x1400] sm:$0xff]
        %v1002 = vld [vmem:[#allocation6 + $0x1408] sm:$0xff]
        %v1003 = vld [vmem:[#allocation6 + $0x1410] sm:$0xff]
        %v1004 = vld [vmem:[#allocation6 + $0x1418] sm:$0xff]
        %v1005 = vld [vmem:[#allocation6 + $0x1420] sm:$0xff]
        %v1006 = vld [vmem:[#allocation6 + $0x1428] sm:$0xff]
        %v1007 = vld [vmem:[#allocation6 + $0x1430] sm:$0xff]
        %v1008 = vld [vmem:[#allocation6 + $0x1438] sm:$0xff]
        %v1009 = vld [vmem:[#allocation6 + $0x1440] sm:$0xff]
        %v1010 = vld [vmem:[#allocation6 + $0x1448] sm:$0xff]
        %v1011 = vld [vmem:[#allocation6 + $0x1450] sm:$0xff]
        %v1012 = vld [vmem:[#allocation6 + $0x1458] sm:$0xff]
        %v1013 = vld [vmem:[#allocation6 + $0x1460] sm:$0xff]
        %v1014 = vld [vmem:[#allocation6 + $0x1468] sm:$0xff]
        %v1015 = vld [vmem:[#allocation6 + $0x1470] sm:$0xff]
        %v1016 = vld [vmem:[#allocation6 + $0x1478] sm:$0xff]
        %v1017 = vld [vmem:[#allocation6 + $0x1480] sm:$0xff]
        %v1018 = vld [vmem:[#allocation6 + $0x1488] sm:$0xff]
        %v1019 = vld [vmem:[#allocation6 + $0x1490] sm:$0xff]
        %v1020 = vld [vmem:[#allocation6 + $0x1498] sm:$0xff]
        %v1021 = vld [vmem:[#allocation6 + $0x14a0] sm:$0xff]
        %v1022 = vld [vmem:[#allocation6 + $0x14a8] sm:$0xff]
        %v1023 = vld [vmem:[#allocation6 + $0x14b0] sm:$0xff]
        %v1024 = vld [vmem:[#allocation6 + $0x14b8] sm:$0xff]
        %v1025 = vld [vmem:[#allocation6 + $0x14c0] sm:$0xff]
        %v1026 = vld [vmem:[#allocation6 + $0x14c8] sm:$0xff]
        %v1027 = vld [vmem:[#allocation6 + $0x14d0] sm:$0xff]
        %v1028 = vld [vmem:[#allocation6 + $0x14d8] sm:$0xff]
        %v1029 = vld [vmem:[#allocation6 + $0x14e0] sm:$0xff]
        %v1030 = vld [vmem:[#allocation6 + $0x14e8] sm:$0xff]
        %v1031 = vld [vmem:[#allocation6 + $0x14f0] sm:$0xff]
        %v1032 = vld [vmem:[#allocation6 + $0x14f8] sm:$0xff]
        %v1033 = vld [vmem:[#allocation6 + $0x1500] sm:$0xff]
        %v1034 = vld [vmem:[#allocation6 + $0x1508] sm:$0xff]
        %v1035 = vld [vmem:[#allocation6 + $0x1510] sm:$0xff]
        %v1036 = vld [vmem:[#allocation6 + $0x1518] sm:$0xff]
        %v1037 = vld [vmem:[#allocation6 + $0x1520] sm:$0xff]
        %v1038 = vld [vmem:[#allocation6 + $0x1528] sm:$0xff]
        %v1039 = vld [vmem:[#allocation6 + $0x1530] sm:$0xff]
        %v1040 = vld [vmem:[#allocation6 + $0x1538] sm:$0xff]
        %v1041 = vld [vmem:[#allocation6 + $0x1540] sm:$0xff]
        %v1042 = vld [vmem:[#allocation6 + $0x1548] sm:$0xff]
        %v1043 = vld [vmem:[#allocation6 + $0x1550] sm:$0xff]
        %v1044 = vld [vmem:[#allocation6 + $0x1558] sm:$0xff]
        %v1045 = vld [vmem:[#allocation6 + $0x1560] sm:$0xff]
        %v1046 = vld [vmem:[#allocation6 + $0x1568] sm:$0xff]
        %v1047 = vld [vmem:[#allocation6 + $0x1570] sm:$0xff]
        %v1048 = vld [vmem:[#allocation6 + $0x1578] sm:$0xff]
        %v1049 = vld [vmem:[#allocation6 + $0x1580] sm:$0xff]
        %v1050 = vld [vmem:[#allocation6 + $0x1588] sm:$0xff]
        %v1051 = vld [vmem:[#allocation6 + $0x1590] sm:$0xff]
        %v1052 = vld [vmem:[#allocation6 + $0x1598] sm:$0xff]
        %v1053 = vld [vmem:[#allocation6 + $0x15a0] sm:$0xff]
        %v1054 = vld [vmem:[#allocation6 + $0x15a8] sm:$0xff]
        %v1055 = vld [vmem:[#allocation6 + $0x15b0] sm:$0xff]
        %v1056 = vld [vmem:[#allocation6 + $0x15b8] sm:$0xff]
        %v1057 = vld [vmem:[#allocation6 + $0x15c0] sm:$0xff]
        %v1058 = vld [vmem:[#allocation6 + $0x15c8] sm:$0xff]
        %v1059 = vld [vmem:[#allocation6 + $0x15d0] sm:$0xff]
        %v1060 = vld [vmem:[#allocation6 + $0x15d8] sm:$0xff]
        %v1061 = vld [vmem:[#allocation6 + $0x15e0] sm:$0xff]
        %v1062 = vld [vmem:[#allocation6 + $0x15e8] sm:$0xff]
        %v1063 = vld [vmem:[#allocation6 + $0x15f0] sm:$0xff]
        %v1064 = vld [vmem:[#allocation6 + $0x15f8] sm:$0xff]
        %v1065 = vld [vmem:[#allocation6 + $0x1600] sm:$0xff]
        %v1066 = vld [vmem:[#allocation6 + $0x1608] sm:$0xff]
        %v1067 = vld [vmem:[#allocation6 + $0x1610] sm:$0xff]
        %v1068 = vld [vmem:[#allocation6 + $0x1618] sm:$0xff]
        %v1069 = vld [vmem:[#allocation6 + $0x1620] sm:$0xff]
        %v1070 = vld [vmem:[#allocation6 + $0x1628] sm:$0xff]
        %v1071 = vld [vmem:[#allocation6 + $0x1630] sm:$0xff]
        %v1072 = vld [vmem:[#allocation6 + $0x1638] sm:$0xff]
        %v1073 = vld [vmem:[#allocation6 + $0x1640] sm:$0xff]
        %v1074 = vld [vmem:[#allocation6 + $0x1648] sm:$0xff]
        %v1075 = vld [vmem:[#allocation6 + $0x1650] sm:$0xff]
        %v1076 = vld [vmem:[#allocation6 + $0x1658] sm:$0xff]
        %v1077 = vld [vmem:[#allocation6 + $0x1660] sm:$0xff]
        %v1078 = vld [vmem:[#allocation6 + $0x1668] sm:$0xff]
        %v1079 = vld [vmem:[#allocation6 + $0x1670] sm:$0xff]
        %v1080 = vld [vmem:[#allocation6 + $0x1678] sm:$0xff]
        %v1081 = vld [vmem:[#allocation6 + $0x1680] sm:$0xff]
        %v1082 = vld [vmem:[#allocation6 + $0x1688] sm:$0xff]
        %v1083 = vld [vmem:[#allocation6 + $0x1690] sm:$0xff]
        %v1084 = vld [vmem:[#allocation6 + $0x1698] sm:$0xff]
        %v1085 = vld [vmem:[#allocation6 + $0x16a0] sm:$0xff]
        %v1086 = vld [vmem:[#allocation6 + $0x16a8] sm:$0xff]
        %v1087 = vld [vmem:[#allocation6 + $0x16b0] sm:$0xff]
        %v1088 = vld [vmem:[#allocation6 + $0x16b8] sm:$0xff]
        %v1089 = vld [vmem:[#allocation6 + $0x16c0] sm:$0xff]
        %v1090 = vld [vmem:[#allocation6 + $0x16c8] sm:$0xff]
        %v1091 = vld [vmem:[#allocation6 + $0x16d0] sm:$0xff]
        %v1092 = vld [vmem:[#allocation6 + $0x16d8] sm:$0xff]
        %v1093 = vld [vmem:[#allocation6 + $0x16e0] sm:$0xff]
        %v1094 = vld [vmem:[#allocation6 + $0x16e8] sm:$0xff]
        %v1095 = vld [vmem:[#allocation6 + $0x16f0] sm:$0xff]
        %v1096 = vld [vmem:[#allocation6 + $0x16f8] sm:$0xff]
        %v1097 = vld [vmem:[#allocation6 + $0x1700] sm:$0xff]
        %v1098 = vld [vmem:[#allocation6 + $0x1708] sm:$0xff]
        %v1099 = vld [vmem:[#allocation6 + $0x1710] sm:$0xff]
        %v1100 = vld [vmem:[#allocation6 + $0x1718] sm:$0xff]
        %v1101 = vld [vmem:[#allocation6 + $0x1720] sm:$0xff]
        %v1102 = vld [vmem:[#allocation6 + $0x1728] sm:$0xff]
        %v1103 = vld [vmem:[#allocation6 + $0x1730] sm:$0xff]
        %v1104 = vld [vmem:[#allocation6 + $0x1738] sm:$0xff]
        %v1105 = vld [vmem:[#allocation6 + $0x1740] sm:$0xff]
        %v1106 = vld [vmem:[#allocation6 + $0x1748] sm:$0xff]
        %v1107 = vld [vmem:[#allocation6 + $0x1750] sm:$0xff]
        %v1108 = vld [vmem:[#allocation6 + $0x1758] sm:$0xff]
        %v1109 = vld [vmem:[#allocation6 + $0x1760] sm:$0xff]
        %v1110 = vld [vmem:[#allocation6 + $0x1768] sm:$0xff]
        %v1111 = vld [vmem:[#allocation6 + $0x1770] sm:$0xff]
        %v1112 = vld [vmem:[#allocation6 + $0x1778] sm:$0xff]
        %v1113 = vld [vmem:[#allocation6 + $0x1780] sm:$0xff]
        %v1114 = vld [vmem:[#allocation6 + $0x1788] sm:$0xff]
        %v1115 = vld [vmem:[#allocation6 + $0x1790] sm:$0xff]
        %v1116 = vld [vmem:[#allocation6 + $0x1798] sm:$0xff]
        %v1117 = vld [vmem:[#allocation6 + $0x17a0] sm:$0xff]
        %v1118 = vld [vmem:[#allocation6 + $0x17a8] sm:$0xff]
        %v1119 = vld [vmem:[#allocation6 + $0x17b0] sm:$0xff]
        %v1120 = vld [vmem:[#allocation6 + $0x17b8] sm:$0xff]
        %v1121 = vld [vmem:[#allocation6 + $0x17c0] sm:$0xff]
        %v1122 = vld [vmem:[#allocation6 + $0x17c8] sm:$0xff]
        %v1123 = vld [vmem:[#allocation6 + $0x17d0] sm:$0xff]
        %v1124 = vld [vmem:[#allocation6 + $0x17d8] sm:$0xff]
        %v1125 = vld [vmem:[#allocation6 + $0x17e0] sm:$0xff]
        %v1126 = vld [vmem:[#allocation6 + $0x17e8] sm:$0xff]
        %v1127 = vld [vmem:[#allocation6 + $0x17f0] sm:$0xff]
        %v1128 = vld [vmem:[#allocation6 + $0x17f8] sm:$0xff]
        %v1129 = vld [vmem:[#allocation6 + $0x1800] sm:$0xff]
        %v1130 = vld [vmem:[#allocation6 + $0x1808] sm:$0xff]
        %v1131 = vld [vmem:[#allocation6 + $0x1810] sm:$0xff]
        %v1132 = vld [vmem:[#allocation6 + $0x1818] sm:$0xff]
        %v1133 = vld [vmem:[#allocation6 + $0x1820] sm:$0xff]
        %v1134 = vld [vmem:[#allocation6 + $0x1828] sm:$0xff]
        %v1135 = vld [vmem:[#allocation6 + $0x1830] sm:$0xff]
        %v1136 = vld [vmem:[#allocation6 + $0x1838] sm:$0xff]
        %v1137 = vld [vmem:[#allocation6 + $0x1840] sm:$0xff]
        %v1138 = vld [vmem:[#allocation6 + $0x1848] sm:$0xff]
        %v1139 = vld [vmem:[#allocation6 + $0x1850] sm:$0xff]
        %v1140 = vld [vmem:[#allocation6 + $0x1858] sm:$0xff]
        %v1141 = vld [vmem:[#allocation6 + $0x1860] sm:$0xff]
        %v1142 = vld [vmem:[#allocation6 + $0x1868] sm:$0xff]
        %v1143 = vld [vmem:[#allocation6 + $0x1870] sm:$0xff]
        %v1144 = vld [vmem:[#allocation6 + $0x1878] sm:$0xff]
        %v1145 = vld [vmem:[#allocation6 + $0x1880] sm:$0xff]
        %v1146 = vld [vmem:[#allocation6 + $0x1888] sm:$0xff]
        %v1147 = vld [vmem:[#allocation6 + $0x1890] sm:$0xff]
        %v1148 = vld [vmem:[#allocation6 + $0x1898] sm:$0xff]
        %v1149 = vld [vmem:[#allocation6 + $0x18a0] sm:$0xff]
        %v1150 = vld [vmem:[#allocation6 + $0x18a8] sm:$0xff]
        %v1151 = vld [vmem:[#allocation6 + $0x18b0] sm:$0xff]
        %v1152 = vld [vmem:[#allocation6 + $0x18b8] sm:$0xff]
        %v1153 = vld [vmem:[#allocation6 + $0x18c0] sm:$0xff]
        %v1154 = vld [vmem:[#allocation6 + $0x18c8] sm:$0xff]
        %v1155 = vld [vmem:[#allocation6 + $0x18d0] sm:$0xff]
        %v1156 = vld [vmem:[#allocation6 + $0x18d8] sm:$0xff]
        %v1157 = vld [vmem:[#allocation6 + $0x18e0] sm:$0xff]
        %v1158 = vld [vmem:[#allocation6 + $0x18e8] sm:$0xff]
        %v1159 = vld [vmem:[#allocation6 + $0x18f0] sm:$0xff]
        %v1160 = vld [vmem:[#allocation6 + $0x18f8] sm:$0xff]
        %v1161 = vld [vmem:[#allocation6 + $0x1900] sm:$0xff]
        %v1162 = vld [vmem:[#allocation6 + $0x1908] sm:$0xff]
        %v1163 = vld [vmem:[#allocation6 + $0x1910] sm:$0xff]
        %v1164 = vld [vmem:[#allocation6 + $0x1918] sm:$0xff]
        %v1165 = vld [vmem:[#allocation6 + $0x1920] sm:$0xff]
        %v1166 = vld [vmem:[#allocation6 + $0x1928] sm:$0xff]
        %v1167 = vld [vmem:[#allocation6 + $0x1930] sm:$0xff]
        %v1168 = vld [vmem:[#allocation6 + $0x1938] sm:$0xff]
        %v1169 = vld [vmem:[#allocation6 + $0x1940] sm:$0xff]
        %v1170 = vld [vmem:[#allocation6 + $0x1948] sm:$0xff]
        %v1171 = vld [vmem:[#allocation6 + $0x1950] sm:$0xff]
        %v1172 = vld [vmem:[#allocation6 + $0x1958] sm:$0xff]
        %v1173 = vld [vmem:[#allocation6 + $0x1960] sm:$0xff]
        %v1174 = vld [vmem:[#allocation6 + $0x1968] sm:$0xff]
        %v1175 = vld [vmem:[#allocation6 + $0x1970] sm:$0xff]
        %v1176 = vld [vmem:[#allocation6 + $0x1978] sm:$0xff]
        %v1177 = vld [vmem:[#allocation6 + $0x1980] sm:$0xff]
        %v1178 = vld [vmem:[#allocation6 + $0x1988] sm:$0xff]
        %v1179 = vld [vmem:[#allocation6 + $0x1990] sm:$0xff]
        %v1180 = vld [vmem:[#allocation6 + $0x1998] sm:$0xff]
        %v1181 = vld [vmem:[#allocation6 + $0x19a0] sm:$0xff]
        %v1182 = vld [vmem:[#allocation6 + $0x19a8] sm:$0xff]
        %v1183 = vld [vmem:[#allocation6 + $0x19b0] sm:$0xff]
        %v1184 = vld [vmem:[#allocation6 + $0x19b8] sm:$0xff]
        %v1185 = vld [vmem:[#allocation6 + $0x19c0] sm:$0xff]
        %v1186 = vld [vmem:[#allocation6 + $0x19c8] sm:$0xff]
        %v1187 = vld [vmem:[#allocation6 + $0x19d0] sm:$0xff]
        %v1188 = vld [vmem:[#allocation6 + $0x19d8] sm:$0xff]
        %v1189 = vld [vmem:[#allocation6 + $0x19e0] sm:$0xff]
        %v1190 = vld [vmem:[#allocation6 + $0x19e8] sm:$0xff]
        %v1191 = vld [vmem:[#allocation6 + $0x19f0] sm:$0xff]
        %v1192 = vld [vmem:[#allocation6 + $0x19f8] sm:$0xff]
        %v1193 = vld [vmem:[#allocation6 + $0x1a00] sm:$0xff]
        %v1194 = vld [vmem:[#allocation6 + $0x1a08] sm:$0xff]
        %v1195 = vld [vmem:[#allocation6 + $0x1a10] sm:$0xff]
        %v1196 = vld [vmem:[#allocation6 + $0x1a18] sm:$0xff]
        %v1197 = vld [vmem:[#allocation6 + $0x1a20] sm:$0xff]
        %v1198 = vld [vmem:[#allocation6 + $0x1a28] sm:$0xff]
        %v1199 = vld [vmem:[#allocation6 + $0x1a30] sm:$0xff]
        %v1200 = vld [vmem:[#allocation6 + $0x1a38] sm:$0xff]
        %v1201 = vld [vmem:[#allocation6 + $0x1a40] sm:$0xff]
        %v1202 = vld [vmem:[#allocation6 + $0x1a48] sm:$0xff]
        %v1203 = vld [vmem:[#allocation6 + $0x1a50] sm:$0xff]
        %v1204 = vld [vmem:[#allocation6 + $0x1a58] sm:$0xff]
        %v1205 = vld [vmem:[#allocation6 + $0x1a60] sm:$0xff]
        %v1206 = vld [vmem:[#allocation6 + $0x1a68] sm:$0xff]
        %v1207 = vld [vmem:[#allocation6 + $0x1a70] sm:$0xff]
        %v1208 = vld [vmem:[#allocation6 + $0x1a78] sm:$0xff]
        %v1209 = vld [vmem:[#allocation6 + $0x1a80] sm:$0xff]
        %v1210 = vld [vmem:[#allocation6 + $0x1a88] sm:$0xff]
        %v1211 = vld [vmem:[#allocation6 + $0x1a90] sm:$0xff]
        %v1212 = vld [vmem:[#allocation6 + $0x1a98] sm:$0xff]
        %v1213 = vld [vmem:[#allocation6 + $0x1aa0] sm:$0xff]
        %v1214 = vld [vmem:[#allocation6 + $0x1aa8] sm:$0xff]
        %v1215 = vld [vmem:[#allocation6 + $0x1ab0] sm:$0xff]
        %v1216 = vld [vmem:[#allocation6 + $0x1ab8] sm:$0xff]
        %v1217 = vld [vmem:[#allocation6 + $0x1ac0] sm:$0xff]
        %v1218 = vld [vmem:[#allocation6 + $0x1ac8] sm:$0xff]
        %v1219 = vld [vmem:[#allocation6 + $0x1ad0] sm:$0xff]
        %v1220 = vld [vmem:[#allocation6 + $0x1ad8] sm:$0xff]
        %v1221 = vld [vmem:[#allocation6 + $0x1ae0] sm:$0xff]
        %v1222 = vld [vmem:[#allocation6 + $0x1ae8] sm:$0xff]
        %v1223 = vld [vmem:[#allocation6 + $0x1af0] sm:$0xff]
        %v1224 = vld [vmem:[#allocation6 + $0x1af8] sm:$0xff]
        %v1225 = vld [vmem:[#allocation6 + $0x1b00] sm:$0xff]
        %v1226 = vld [vmem:[#allocation6 + $0x1b08] sm:$0xff]
        %v1227 = vld [vmem:[#allocation6 + $0x1b10] sm:$0xff]
        %v1228 = vld [vmem:[#allocation6 + $0x1b18] sm:$0xff]
        %v1229 = vld [vmem:[#allocation6 + $0x1b20] sm:$0xff]
        %v1230 = vld [vmem:[#allocation6 + $0x1b28] sm:$0xff]
        %v1231 = vld [vmem:[#allocation6 + $0x1b30] sm:$0xff]
        %v1232 = vld [vmem:[#allocation6 + $0x1b38] sm:$0xff]
        %v1233 = vld [vmem:[#allocation6 + $0x1b40] sm:$0xff]
        %v1234 = vld [vmem:[#allocation6 + $0x1b48] sm:$0xff]
        %v1235 = vld [vmem:[#allocation6 + $0x1b50] sm:$0xff]
        %v1236 = vld [vmem:[#allocation6 + $0x1b58] sm:$0xff]
        %v1237 = vld [vmem:[#allocation6 + $0x1b60] sm:$0xff]
        %v1238 = vld [vmem:[#allocation6 + $0x1b68] sm:$0xff]
        %v1239 = vld [vmem:[#allocation6 + $0x1b70] sm:$0xff]
        %v1240 = vld [vmem:[#allocation6 + $0x1b78] sm:$0xff]
        %v1241 = vld [vmem:[#allocation6 + $0x1b80] sm:$0xff]
        %v1242 = vld [vmem:[#allocation6 + $0x1b88] sm:$0xff]
        %v1243 = vld [vmem:[#allocation6 + $0x1b90] sm:$0xff]
        %v1244 = vld [vmem:[#allocation6 + $0x1b98] sm:$0xff]
        %v1245 = vld [vmem:[#allocation6 + $0x1ba0] sm:$0xff]
        %v1246 = vld [vmem:[#allocation6 + $0x1ba8] sm:$0xff]
        %v1247 = vld [vmem:[#allocation6 + $0x1bb0] sm:$0xff]
        %v1248 = vld [vmem:[#allocation6 + $0x1bb8] sm:$0xff]
        %v1249 = vld [vmem:[#allocation6 + $0x1bc0] sm:$0xff]
        %v1250 = vld [vmem:[#allocation6 + $0x1bc8] sm:$0xff]
        %v1251 = vld [vmem:[#allocation6 + $0x1bd0] sm:$0xff]
        %v1252 = vld [vmem:[#allocation6 + $0x1bd8] sm:$0xff]
        %v1253 = vld [vmem:[#allocation6 + $0x1be0] sm:$0xff]
        %v1254 = vld [vmem:[#allocation6 + $0x1be8] sm:$0xff]
        %v1255 = vld [vmem:[#allocation6 + $0x1bf0] sm:$0xff]
        %v1256 = vld [vmem:[#allocation6 + $0x1bf8] sm:$0xff]
        %v1257 = vld [vmem:[#allocation6 + $0x1c00] sm:$0xff]
        %v1258 = vld [vmem:[#allocation6 + $0x1c08] sm:$0xff]
        %v1259 = vld [vmem:[#allocation6 + $0x1c10] sm:$0xff]
        %v1260 = vld [vmem:[#allocation6 + $0x1c18] sm:$0xff]
        %v1261 = vld [vmem:[#allocation6 + $0x1c20] sm:$0xff]
        %v1262 = vld [vmem:[#allocation6 + $0x1c28] sm:$0xff]
        %v1263 = vld [vmem:[#allocation6 + $0x1c30] sm:$0xff]
        %v1264 = vld [vmem:[#allocation6 + $0x1c38] sm:$0xff]
        %v1265 = vld [vmem:[#allocation6 + $0x1c40] sm:$0xff]
        %v1266 = vld [vmem:[#allocation6 + $0x1c48] sm:$0xff]
        %v1267 = vld [vmem:[#allocation6 + $0x1c50] sm:$0xff]
        %v1268 = vld [vmem:[#allocation6 + $0x1c58] sm:$0xff]
        %v1269 = vld [vmem:[#allocation6 + $0x1c60] sm:$0xff]
        %v1270 = vld [vmem:[#allocation6 + $0x1c68] sm:$0xff]
        %v1271 = vld [vmem:[#allocation6 + $0x1c70] sm:$0xff]
        %v1272 = vld [vmem:[#allocation6 + $0x1c78] sm:$0xff]
        %v1273 = vld [vmem:[#allocation6 + $0x1c80] sm:$0xff]
        %v1274 = vld [vmem:[#allocation6 + $0x1c88] sm:$0xff]
        %v1275 = vld [vmem:[#allocation6 + $0x1c90] sm:$0xff]
        %v1276 = vld [vmem:[#allocation6 + $0x1c98] sm:$0xff]
        %v1277 = vld [vmem:[#allocation6 + $0x1ca0] sm:$0xff]
        %v1278 = vld [vmem:[#allocation6 + $0x1ca8] sm:$0xff]
        %v1279 = vld [vmem:[#allocation6 + $0x1cb0] sm:$0xff]
        %v1280 = vld [vmem:[#allocation6 + $0x1cb8] sm:$0xff]
        %v1281 = vld [vmem:[#allocation6 + $0x1cc0] sm:$0xff]
        %v1282 = vld [vmem:[#allocation6 + $0x1cc8] sm:$0xff]
        %v1283 = vld [vmem:[#allocation6 + $0x1cd0] sm:$0xff]
        %v1284 = vld [vmem:[#allocation6 + $0x1cd8] sm:$0xff]
        %v1285 = vld [vmem:[#allocation6 + $0x1ce0] sm:$0xff]
        %v1286 = vld [vmem:[#allocation6 + $0x1ce8] sm:$0xff]
        %v1287 = vld [vmem:[#allocation6 + $0x1cf0] sm:$0xff]
        %v1288 = vld [vmem:[#allocation6 + $0x1cf8] sm:$0xff]
        %v1289 = vld [vmem:[#allocation6 + $0x1d00] sm:$0xff]
        %v1290 = vld [vmem:[#allocation6 + $0x1d08] sm:$0xff]
        %v1291 = vld [vmem:[#allocation6 + $0x1d10] sm:$0xff]
        %v1292 = vld [vmem:[#allocation6 + $0x1d18] sm:$0xff]
        %v1293 = vld [vmem:[#allocation6 + $0x1d20] sm:$0xff]
        %v1294 = vld [vmem:[#allocation6 + $0x1d28] sm:$0xff]
        %v1295 = vld [vmem:[#allocation6 + $0x1d30] sm:$0xff]
        %v1296 = vld [vmem:[#allocation6 + $0x1d38] sm:$0xff]
        %v1297 = vld [vmem:[#allocation6 + $0x1d40] sm:$0xff]
        %v1298 = vld [vmem:[#allocation6 + $0x1d48] sm:$0xff]
        %v1299 = vld [vmem:[#allocation6 + $0x1d50] sm:$0xff]
        %v1300 = vld [vmem:[#allocation6 + $0x1d58] sm:$0xff]
        %v1301 = vld [vmem:[#allocation6 + $0x1d60] sm:$0xff]
        %v1302 = vld [vmem:[#allocation6 + $0x1d68] sm:$0xff]
        %v1303 = vld [vmem:[#allocation6 + $0x1d70] sm:$0xff]
        %v1304 = vld [vmem:[#allocation6 + $0x1d78] sm:$0xff]
        %v1305 = vld [vmem:[#allocation6 + $0x1d80] sm:$0xff]
        %v1306 = vld [vmem:[#allocation6 + $0x1d88] sm:$0xff]
        %v1307 = vld [vmem:[#allocation6 + $0x1d90] sm:$0xff]
        %v1308 = vld [vmem:[#allocation6 + $0x1d98] sm:$0xff]
        %v1309 = vld [vmem:[#allocation6 + $0x1da0] sm:$0xff]
        %v1310 = vld [vmem:[#allocation6 + $0x1da8] sm:$0xff]
        %v1311 = vld [vmem:[#allocation6 + $0x1db0] sm:$0xff]
        %v1312 = vld [vmem:[#allocation6 + $0x1db8] sm:$0xff]
        %v1313 = vld [vmem:[#allocation6 + $0x1dc0] sm:$0xff]
        %v1314 = vld [vmem:[#allocation6 + $0x1dc8] sm:$0xff]
        %v1315 = vld [vmem:[#allocation6 + $0x1dd0] sm:$0xff]
        %v1316 = vld [vmem:[#allocation6 + $0x1dd8] sm:$0xff]
        %v1317 = vld [vmem:[#allocation6 + $0x1de0] sm:$0xff]
        %v1318 = vld [vmem:[#allocation6 + $0x1de8] sm:$0xff]
        %v1319 = vld [vmem:[#allocation6 + $0x1df0] sm:$0xff]
        %v1320 = vld [vmem:[#allocation6 + $0x1df8] sm:$0xff]
        %v1321 = vld [vmem:[#allocation6 + $0x1e00] sm:$0xff]
        %v1322 = vld [vmem:[#allocation6 + $0x1e08] sm:$0xff]
        %v1323 = vld [vmem:[#allocation6 + $0x1e10] sm:$0xff]
        %v1324 = vld [vmem:[#allocation6 + $0x1e18] sm:$0xff]
        %v1325 = vld [vmem:[#allocation6 + $0x1e20] sm:$0xff]
        %v1326 = vld [vmem:[#allocation6 + $0x1e28] sm:$0xff]
        %v1327 = vld [vmem:[#allocation6 + $0x1e30] sm:$0xff]
        %v1328 = vld [vmem:[#allocation6 + $0x1e38] sm:$0xff]
        %v1329 = vld [vmem:[#allocation6 + $0x1e40] sm:$0xff]
        %v1330 = vld [vmem:[#allocation6 + $0x1e48] sm:$0xff]
        %v1331 = vld [vmem:[#allocation6 + $0x1e50] sm:$0xff]
        %v1332 = vld [vmem:[#allocation6 + $0x1e58] sm:$0xff]
        %v1333 = vld [vmem:[#allocation6 + $0x1e60] sm:$0xff]
        %v1334 = vld [vmem:[#allocation6 + $0x1e68] sm:$0xff]
        %v1335 = vld [vmem:[#allocation6 + $0x1e70] sm:$0xff]
        %v1336 = vld [vmem:[#allocation6 + $0x1e78] sm:$0xff]
        %v1337 = vld [vmem:[#allocation6 + $0x1e80] sm:$0xff]
        %v1338 = vld [vmem:[#allocation6 + $0x1e88] sm:$0xff]
        %v1339 = vld [vmem:[#allocation6 + $0x1e90] sm:$0xff]
        %v1340 = vld [vmem:[#allocation6 + $0x1e98] sm:$0xff]
        %v1341 = vld [vmem:[#allocation6 + $0x1ea0] sm:$0xff]
        %v1342 = vld [vmem:[#allocation6 + $0x1ea8] sm:$0xff]
        %v1343 = vld [vmem:[#allocation6 + $0x1eb0] sm:$0xff]
        %v1344 = vld [vmem:[#allocation6 + $0x1eb8] sm:$0xff]
        %v1345 = vld [vmem:[#allocation6 + $0x1ec0] sm:$0xff]
        %v1346 = vld [vmem:[#allocation6 + $0x1ec8] sm:$0xff]
        %v1347 = vld [vmem:[#allocation6 + $0x1ed0] sm:$0xff]
        %v1348 = vld [vmem:[#allocation6 + $0x1ed8] sm:$0xff]
        %v1349 = vld [vmem:[#allocation6 + $0x1ee0] sm:$0xff]
        %v1350 = vld [vmem:[#allocation6 + $0x1ee8] sm:$0xff]
        %v1351 = vld [vmem:[#allocation6 + $0x1ef0] sm:$0xff]
        %v1352 = vld [vmem:[#allocation6 + $0x1ef8] sm:$0xff]
        %v1353 = vld [vmem:[#allocation6 + $0x1f00] sm:$0xff]
        %v1354 = vld [vmem:[#allocation6 + $0x1f08] sm:$0xff]
        %v1355 = vld [vmem:[#allocation6 + $0x1f10] sm:$0xff]
        %v1356 = vld [vmem:[#allocation6 + $0x1f18] sm:$0xff]
        %v1357 = vld [vmem:[#allocation6 + $0x1f20] sm:$0xff]
        %v1358 = vld [vmem:[#allocation6 + $0x1f28] sm:$0xff]
        %v1359 = vld [vmem:[#allocation6 + $0x1f30] sm:$0xff]
        %v1360 = vld [vmem:[#allocation6 + $0x1f38] sm:$0xff]
        %v1361 = vld [vmem:[#allocation6 + $0x1f40] sm:$0xff]
        %v1362 = vld [vmem:[#allocation6 + $0x1f48] sm:$0xff]
        %v1363 = vld [vmem:[#allocation6 + $0x1f50] sm:$0xff]
        %v1364 = vld [vmem:[#allocation6 + $0x1f58] sm:$0xff]
        %v1365 = vld [vmem:[#allocation6 + $0x1f60] sm:$0xff]
        %v1366 = vld [vmem:[#allocation6 + $0x1f68] sm:$0xff]
        %v1367 = vld [vmem:[#allocation6 + $0x1f70] sm:$0xff]
        %v1368 = vld [vmem:[#allocation6 + $0x1f78] sm:$0xff]
        %v1369 = vld [vmem:[#allocation6 + $0x1f80] sm:$0xff]
        %v1370 = vld [vmem:[#allocation6 + $0x1f88] sm:$0xff]
        %v1371 = vld [vmem:[#allocation6 + $0x1f90] sm:$0xff]
        %v1372 = vld [vmem:[#allocation6 + $0x1f98] sm:$0xff]
        %v1373 = vld [vmem:[#allocation6 + $0x1fa0] sm:$0xff]
        %v1374 = vld [vmem:[#allocation6 + $0x1fa8] sm:$0xff]
        %v1375 = vld [vmem:[#allocation6 + $0x1fb0] sm:$0xff]
        %v1376 = vld [vmem:[#allocation6 + $0x1fb8] sm:$0xff]
        %v1377 = vld [vmem:[#allocation6 + $0x1fc0] sm:$0xff]
        %v1378 = vld [vmem:[#allocation6 + $0x1fc8] sm:$0xff]
        %v1379 = vld [vmem:[#allocation6 + $0x1fd0] sm:$0xff]
        %v1380 = vld [vmem:[#allocation6 + $0x1fd8] sm:$0xff]
        %v1381 = vld [vmem:[#allocation6 + $0x1fe0] sm:$0xff]
        %v1382 = vld [vmem:[#allocation6 + $0x1fe8] sm:$0xff]
        %v1383 = vld [vmem:[#allocation6 + $0x1ff0] sm:$0xff]
        %v1384 = vld [vmem:[#allocation6 + $0x1ff8] sm:$0xff]
        %v1385 = vld [vmem:[#allocation9] sm:$0xff]
        %v1386 = vld [vmem:[#allocation9 + $0x8] sm:$0xff]
        %v1387 = vld [vmem:[#allocation9 + $0x10] sm:$0xff]
        %v1388 = vld [vmem:[#allocation9 + $0x18] sm:$0xff]
        %v1389 = vld [vmem:[#allocation9 + $0x20] sm:$0xff]
        %v1390 = vld [vmem:[#allocation9 + $0x28] sm:$0xff]
        %v1391 = vld [vmem:[#allocation9 + $0x30] sm:$0xff]
        %v1392 = vld [vmem:[#allocation9 + $0x38] sm:$0xff]
        %v1393 = vld [vmem:[#allocation9 + $0x40] sm:$0xff]
        %v1394 = vld [vmem:[#allocation9 + $0x48] sm:$0xff]
        %v1395 = vld [vmem:[#allocation9 + $0x50] sm:$0xff]
        %v1396 = vld [vmem:[#allocation9 + $0x58] sm:$0xff]
        %v1397 = vld [vmem:[#allocation9 + $0x60] sm:$0xff]
        %v1398 = vld [vmem:[#allocation9 + $0x68] sm:$0xff]
        %v1399 = vld [vmem:[#allocation9 + $0x70] sm:$0xff]
        %v1400 = vld [vmem:[#allocation9 + $0x78] sm:$0xff]
        %v1401 = vld [vmem:[#allocation9 + $0x80] sm:$0xff]
        %v1402 = vld [vmem:[#allocation9 + $0x88] sm:$0xff]
        %v1403 = vld [vmem:[#allocation9 + $0x90] sm:$0xff]
        %v1404 = vld [vmem:[#allocation9 + $0x98] sm:$0xff]
        %v1405 = vld [vmem:[#allocation9 + $0xa0] sm:$0xff]
        %v1406 = vld [vmem:[#allocation9 + $0xa8] sm:$0xff]
        %v1407 = vld [vmem:[#allocation9 + $0xb0] sm:$0xff]
        %v1408 = vld [vmem:[#allocation9 + $0xb8] sm:$0xff]
        %v1409 = vld [vmem:[#allocation9 + $0xc0] sm:$0xff]
        %v1410 = vld [vmem:[#allocation9 + $0xc8] sm:$0xff]
        %v1411 = vld [vmem:[#allocation9 + $0xd0] sm:$0xff]
        %v1412 = vld [vmem:[#allocation9 + $0xd8] sm:$0xff]
        %v1413 = vld [vmem:[#allocation9 + $0xe0] sm:$0xff]
        %v1414 = vld [vmem:[#allocation9 + $0xe8] sm:$0xff]
        %v1415 = vld [vmem:[#allocation9 + $0xf0] sm:$0xff]
        %v1416 = vld [vmem:[#allocation9 + $0xf8] sm:$0xff]
        %v1417 = vld [vmem:[#allocation9 + $0x100] sm:$0xff]
        %v1418 = vld [vmem:[#allocation9 + $0x108] sm:$0xff]
        %v1419 = vld [vmem:[#allocation9 + $0x110] sm:$0xff]
        %v1420 = vld [vmem:[#allocation9 + $0x118] sm:$0xff]
        %v1421 = vld [vmem:[#allocation9 + $0x120] sm:$0xff]
        %v1422 = vld [vmem:[#allocation9 + $0x128] sm:$0xff]
        %v1423 = vld [vmem:[#allocation9 + $0x130] sm:$0xff]
        %v1424 = vld [vmem:[#allocation9 + $0x138] sm:$0xff]
        %v1425 = vld [vmem:[#allocation9 + $0x140] sm:$0xff]
        %v1426 = vld [vmem:[#allocation9 + $0x148] sm:$0xff]
        %v1427 = vld [vmem:[#allocation9 + $0x150] sm:$0xff]
        %v1428 = vld [vmem:[#allocation9 + $0x158] sm:$0xff]
        %v1429 = vld [vmem:[#allocation9 + $0x160] sm:$0xff]
        %v1430 = vld [vmem:[#allocation9 + $0x168] sm:$0xff]
        %v1431 = vld [vmem:[#allocation9 + $0x170] sm:$0xff]
        %v1432 = vld [vmem:[#allocation9 + $0x178] sm:$0xff]
        %v1433 = vld [vmem:[#allocation9 + $0x180] sm:$0xff]
        %v1434 = vld [vmem:[#allocation9 + $0x188] sm:$0xff]
        %v1435 = vld [vmem:[#allocation9 + $0x190] sm:$0xff]
        %v1436 = vld [vmem:[#allocation9 + $0x198] sm:$0xff]
        %v1437 = vld [vmem:[#allocation9 + $0x1a0] sm:$0xff]
        %v1438 = vld [vmem:[#allocation9 + $0x1a8] sm:$0xff]
        %v1439 = vld [vmem:[#allocation9 + $0x1b0] sm:$0xff]
        %v1440 = vld [vmem:[#allocation9 + $0x1b8] sm:$0xff]
        %v1441 = vld [vmem:[#allocation9 + $0x1c0] sm:$0xff]
        %v1442 = vld [vmem:[#allocation9 + $0x1c8] sm:$0xff]
        %v1443 = vld [vmem:[#allocation9 + $0x1d0] sm:$0xff]
        %v1444 = vld [vmem:[#allocation9 + $0x1d8] sm:$0xff]
        %v1445 = vld [vmem:[#allocation9 + $0x1e0] sm:$0xff]
        %v1446 = vld [vmem:[#allocation9 + $0x1e8] sm:$0xff]
        %v1447 = vld [vmem:[#allocation9 + $0x1f0] sm:$0xff]
        %v1448 = vld [vmem:[#allocation9 + $0x1f8] sm:$0xff]
        %v1449 = vld [vmem:[#allocation9 + $0x200] sm:$0xff]
        %v1450 = vld [vmem:[#allocation9 + $0x208] sm:$0xff]
        %v1451 = vld [vmem:[#allocation9 + $0x210] sm:$0xff]
        %v1452 = vld [vmem:[#allocation9 + $0x218] sm:$0xff]
        %v1453 = vld [vmem:[#allocation9 + $0x220] sm:$0xff]
        %v1454 = vld [vmem:[#allocation9 + $0x228] sm:$0xff]
        %v1455 = vld [vmem:[#allocation9 + $0x230] sm:$0xff]
        %v1456 = vld [vmem:[#allocation9 + $0x238] sm:$0xff]
        %v1457 = vld [vmem:[#allocation9 + $0x240] sm:$0xff]
        %v1458 = vld [vmem:[#allocation9 + $0x248] sm:$0xff]
        %v1459 = vld [vmem:[#allocation9 + $0x250] sm:$0xff]
        %v1460 = vld [vmem:[#allocation9 + $0x258] sm:$0xff]
        %v1461 = vld [vmem:[#allocation9 + $0x260] sm:$0xff]
        %v1462 = vld [vmem:[#allocation9 + $0x268] sm:$0xff]
        %v1463 = vld [vmem:[#allocation9 + $0x270] sm:$0xff]
        %v1464 = vld [vmem:[#allocation9 + $0x278] sm:$0xff]
        %v1465 = vld [vmem:[#allocation9 + $0x280] sm:$0xff]
        %v1466 = vld [vmem:[#allocation9 + $0x288] sm:$0xff]
        %v1467 = vld [vmem:[#allocation9 + $0x290] sm:$0xff]
        %v1468 = vld [vmem:[#allocation9 + $0x298] sm:$0xff]
        %v1469 = vld [vmem:[#allocation9 + $0x2a0] sm:$0xff]
        %v1470 = vld [vmem:[#allocation9 + $0x2a8] sm:$0xff]
        %v1471 = vld [vmem:[#allocation9 + $0x2b0] sm:$0xff]
        %v1472 = vld [vmem:[#allocation9 + $0x2b8] sm:$0xff]
        %v1473 = vld [vmem:[#allocation9 + $0x2c0] sm:$0xff]
        %v1474 = vld [vmem:[#allocation9 + $0x2c8] sm:$0xff]
        %v1475 = vld [vmem:[#allocation9 + $0x2d0] sm:$0xff]
        %v1476 = vld [vmem:[#allocation9 + $0x2d8] sm:$0xff]
        %v1477 = vld [vmem:[#allocation9 + $0x2e0] sm:$0xff]
        %v1478 = vld [vmem:[#allocation9 + $0x2e8] sm:$0xff]
        %v1479 = vld [vmem:[#allocation9 + $0x2f0] sm:$0xff]
        %v1480 = vld [vmem:[#allocation9 + $0x2f8] sm:$0xff]
        %v1481 = vld [vmem:[#allocation9 + $0x300] sm:$0xff]
        %v1482 = vld [vmem:[#allocation9 + $0x308] sm:$0xff]
        %v1483 = vld [vmem:[#allocation9 + $0x310] sm:$0xff]
        %v1484 = vld [vmem:[#allocation9 + $0x318] sm:$0xff]
        %v1485 = vld [vmem:[#allocation9 + $0x320] sm:$0xff]
        %v1486 = vld [vmem:[#allocation9 + $0x328] sm:$0xff]
        %v1487 = vld [vmem:[#allocation9 + $0x330] sm:$0xff]
        %v1488 = vld [vmem:[#allocation9 + $0x338] sm:$0xff]
        %v1489 = vld [vmem:[#allocation9 + $0x340] sm:$0xff]
        %v1490 = vld [vmem:[#allocation9 + $0x348] sm:$0xff]
        %v1491 = vld [vmem:[#allocation9 + $0x350] sm:$0xff]
        %v1492 = vld [vmem:[#allocation9 + $0x358] sm:$0xff]
        %v1493 = vld [vmem:[#allocation9 + $0x360] sm:$0xff]
        %v1494 = vld [vmem:[#allocation9 + $0x368] sm:$0xff]
        %v1495 = vld [vmem:[#allocation9 + $0x370] sm:$0xff]
        %v1496 = vld [vmem:[#allocation9 + $0x378] sm:$0xff]
        %v1497 = vld [vmem:[#allocation9 + $0x380] sm:$0xff]
        %v1498 = vld [vmem:[#allocation9 + $0x388] sm:$0xff]
        %v1499 = vld [vmem:[#allocation9 + $0x390] sm:$0xff]
        %v1500 = vld [vmem:[#allocation9 + $0x398] sm:$0xff]
        %v1501 = vld [vmem:[#allocation9 + $0x3a0] sm:$0xff]
        %v1502 = vld [vmem:[#allocation9 + $0x3a8] sm:$0xff]
        %v1503 = vld [vmem:[#allocation9 + $0x3b0] sm:$0xff]
        %v1504 = vld [vmem:[#allocation9 + $0x3b8] sm:$0xff]
        %v1505 = vld [vmem:[#allocation9 + $0x3c0] sm:$0xff]
        %v1506 = vld [vmem:[#allocation9 + $0x3c8] sm:$0xff]
        %v1507 = vld [vmem:[#allocation9 + $0x3d0] sm:$0xff]
        %v1508 = vld [vmem:[#allocation9 + $0x3d8] sm:$0xff]
        %v1509 = vld [vmem:[#allocation9 + $0x3e0] sm:$0xff]
        %v1510 = vld [vmem:[#allocation9 + $0x3e8] sm:$0xff]
        %v1511 = vld [vmem:[#allocation9 + $0x3f0] sm:$0xff]
        %v1512 = vld [vmem:[#allocation9 + $0x3f8] sm:$0xff]
        %v1513 = vld [vmem:[#allocation9 + $0x400] sm:$0xff]
        %v1514 = vld [vmem:[#allocation9 + $0x408] sm:$0xff]
        %v1515 = vld [vmem:[#allocation9 + $0x410] sm:$0xff]
        %v1516 = vld [vmem:[#allocation9 + $0x418] sm:$0xff]
        %v1517 = vld [vmem:[#allocation9 + $0x420] sm:$0xff]
        %v1518 = vld [vmem:[#allocation9 + $0x428] sm:$0xff]
        %v1519 = vld [vmem:[#allocation9 + $0x430] sm:$0xff]
        %v1520 = vld [vmem:[#allocation9 + $0x438] sm:$0xff]
        %v1521 = vld [vmem:[#allocation9 + $0x440] sm:$0xff]
        %v1522 = vld [vmem:[#allocation9 + $0x448] sm:$0xff]
        %v1523 = vld [vmem:[#allocation9 + $0x450] sm:$0xff]
        %v1524 = vld [vmem:[#allocation9 + $0x458] sm:$0xff]
        %v1525 = vld [vmem:[#allocation9 + $0x460] sm:$0xff]
        %v1526 = vld [vmem:[#allocation9 + $0x468] sm:$0xff]
        %v1527 = vld [vmem:[#allocation9 + $0x470] sm:$0xff]
        %v1528 = vld [vmem:[#allocation9 + $0x478] sm:$0xff]
        %v1529 = vld [vmem:[#allocation9 + $0x480] sm:$0xff]
        %v1530 = vld [vmem:[#allocation9 + $0x488] sm:$0xff]
        %v1531 = vld [vmem:[#allocation9 + $0x490] sm:$0xff]
        %v1532 = vld [vmem:[#allocation9 + $0x498] sm:$0xff]
        %v1533 = vld [vmem:[#allocation9 + $0x4a0] sm:$0xff]
        %v1534 = vld [vmem:[#allocation9 + $0x4a8] sm:$0xff]
        %v1535 = vld [vmem:[#allocation9 + $0x4b0] sm:$0xff]
        %v1536 = vld [vmem:[#allocation9 + $0x4b8] sm:$0xff]
        %v1537 = vld [vmem:[#allocation9 + $0x4c0] sm:$0xff]
        %v1538 = vld [vmem:[#allocation9 + $0x4c8] sm:$0xff]
        %v1539 = vld [vmem:[#allocation9 + $0x4d0] sm:$0xff]
        %v1540 = vld [vmem:[#allocation9 + $0x4d8] sm:$0xff]
        %v1541 = vld [vmem:[#allocation9 + $0x4e0] sm:$0xff]
        %v1542 = vld [vmem:[#allocation9 + $0x4e8] sm:$0xff]
        %v1543 = vld [vmem:[#allocation9 + $0x4f0] sm:$0xff]
        %v1544 = vld [vmem:[#allocation9 + $0x4f8] sm:$0xff]
        %v1545 = vld [vmem:[#allocation9 + $0x500] sm:$0xff]
        %v1546 = vld [vmem:[#allocation9 + $0x508] sm:$0xff]
        %v1547 = vld [vmem:[#allocation9 + $0x510] sm:$0xff]
        %v1548 = vld [vmem:[#allocation9 + $0x518] sm:$0xff]
        %v1549 = vld [vmem:[#allocation9 + $0x520] sm:$0xff]
        %v1550 = vld [vmem:[#allocation9 + $0x528] sm:$0xff]
        %v1551 = vld [vmem:[#allocation9 + $0x530] sm:$0xff]
        %v1552 = vld [vmem:[#allocation9 + $0x538] sm:$0xff]
        %v1553 = vld [vmem:[#allocation9 + $0x540] sm:$0xff]
        %v1554 = vld [vmem:[#allocation9 + $0x548] sm:$0xff]
        %v1555 = vld [vmem:[#allocation9 + $0x550] sm:$0xff]
        %v1556 = vld [vmem:[#allocation9 + $0x558] sm:$0xff]
        %v1557 = vld [vmem:[#allocation9 + $0x560] sm:$0xff]
        %v1558 = vld [vmem:[#allocation9 + $0x568] sm:$0xff]
        %v1559 = vld [vmem:[#allocation9 + $0x570] sm:$0xff]
        %v1560 = vld [vmem:[#allocation9 + $0x578] sm:$0xff]
        %v1561 = vld [vmem:[#allocation9 + $0x580] sm:$0xff]
        %v1562 = vld [vmem:[#allocation9 + $0x588] sm:$0xff]
        %v1563 = vld [vmem:[#allocation9 + $0x590] sm:$0xff]
        %v1564 = vld [vmem:[#allocation9 + $0x598] sm:$0xff]
        %v1565 = vld [vmem:[#allocation9 + $0x5a0] sm:$0xff]
        %v1566 = vld [vmem:[#allocation9 + $0x5a8] sm:$0xff]
        %v1567 = vld [vmem:[#allocation9 + $0x5b0] sm:$0xff]
        %v1568 = vld [vmem:[#allocation9 + $0x5b8] sm:$0xff]
        %v1569 = vld [vmem:[#allocation9 + $0x5c0] sm:$0xff]
        %v1570 = vld [vmem:[#allocation9 + $0x5c8] sm:$0xff]
        %v1571 = vld [vmem:[#allocation9 + $0x5d0] sm:$0xff]
        %v1572 = vld [vmem:[#allocation9 + $0x5d8] sm:$0xff]
        %v1573 = vld [vmem:[#allocation9 + $0x5e0] sm:$0xff]
        %v1574 = vld [vmem:[#allocation9 + $0x5e8] sm:$0xff]
        %v1575 = vld [vmem:[#allocation9 + $0x5f0] sm:$0xff]
        %v1576 = vld [vmem:[#allocation9 + $0x5f8] sm:$0xff]
        %v1577 = vld [vmem:[#allocation9 + $0x600] sm:$0xff]
        %v1578 = vld [vmem:[#allocation9 + $0x608] sm:$0xff]
        %v1579 = vld [vmem:[#allocation9 + $0x610] sm:$0xff]
        %v1580 = vld [vmem:[#allocation9 + $0x618] sm:$0xff]
        %v1581 = vld [vmem:[#allocation9 + $0x620] sm:$0xff]
        %v1582 = vld [vmem:[#allocation9 + $0x628] sm:$0xff]
        %v1583 = vld [vmem:[#allocation9 + $0x630] sm:$0xff]
        %v1584 = vld [vmem:[#allocation9 + $0x638] sm:$0xff]
        %v1585 = vld [vmem:[#allocation9 + $0x640] sm:$0xff]
        %v1586 = vld [vmem:[#allocation9 + $0x648] sm:$0xff]
        %v1587 = vld [vmem:[#allocation9 + $0x650] sm:$0xff]
        %v1588 = vld [vmem:[#allocation9 + $0x658] sm:$0xff]
        %v1589 = vld [vmem:[#allocation9 + $0x660] sm:$0xff]
        %v1590 = vld [vmem:[#allocation9 + $0x668] sm:$0xff]
        %v1591 = vld [vmem:[#allocation9 + $0x670] sm:$0xff]
        %v1592 = vld [vmem:[#allocation9 + $0x678] sm:$0xff]
        %v1593 = vld [vmem:[#allocation9 + $0x680] sm:$0xff]
        %v1594 = vld [vmem:[#allocation9 + $0x688] sm:$0xff]
        %v1595 = vld [vmem:[#allocation9 + $0x690] sm:$0xff]
        %v1596 = vld [vmem:[#allocation9 + $0x698] sm:$0xff]
        %v1597 = vld [vmem:[#allocation9 + $0x6a0] sm:$0xff]
        %v1598 = vld [vmem:[#allocation9 + $0x6a8] sm:$0xff]
        %v1599 = vld [vmem:[#allocation9 + $0x6b0] sm:$0xff]
        %v1600 = vld [vmem:[#allocation9 + $0x6b8] sm:$0xff]
        %v1601 = vld [vmem:[#allocation9 + $0x6c0] sm:$0xff]
        %v1602 = vld [vmem:[#allocation9 + $0x6c8] sm:$0xff]
        %v1603 = vld [vmem:[#allocation9 + $0x6d0] sm:$0xff]
        %v1604 = vld [vmem:[#allocation9 + $0x6d8] sm:$0xff]
        %v1605 = vld [vmem:[#allocation9 + $0x6e0] sm:$0xff]
        %v1606 = vld [vmem:[#allocation9 + $0x6e8] sm:$0xff]
        %v1607 = vld [vmem:[#allocation9 + $0x6f0] sm:$0xff]
        %v1608 = vld [vmem:[#allocation9 + $0x6f8] sm:$0xff]
        %v1609 = vld [vmem:[#allocation9 + $0x700] sm:$0xff]
        %v1610 = vld [vmem:[#allocation9 + $0x708] sm:$0xff]
        %v1611 = vld [vmem:[#allocation9 + $0x710] sm:$0xff]
        %v1612 = vld [vmem:[#allocation9 + $0x718] sm:$0xff]
        %v1613 = vld [vmem:[#allocation9 + $0x720] sm:$0xff]
        %v1614 = vld [vmem:[#allocation9 + $0x728] sm:$0xff]
        %v1615 = vld [vmem:[#allocation9 + $0x730] sm:$0xff]
        %v1616 = vld [vmem:[#allocation9 + $0x738] sm:$0xff]
        %v1617 = vld [vmem:[#allocation9 + $0x740] sm:$0xff]
        %v1618 = vld [vmem:[#allocation9 + $0x748] sm:$0xff]
        %v1619 = vld [vmem:[#allocation9 + $0x750] sm:$0xff]
        %v1620 = vld [vmem:[#allocation9 + $0x758] sm:$0xff]
        %v1621 = vld [vmem:[#allocation9 + $0x760] sm:$0xff]
        %v1622 = vld [vmem:[#allocation9 + $0x768] sm:$0xff]
        %v1623 = vld [vmem:[#allocation9 + $0x770] sm:$0xff]
        %v1624 = vld [vmem:[#allocation9 + $0x778] sm:$0xff]
        %v1625 = vld [vmem:[#allocation9 + $0x780] sm:$0xff]
        %v1626 = vld [vmem:[#allocation9 + $0x788] sm:$0xff]
        %v1627 = vld [vmem:[#allocation9 + $0x790] sm:$0xff]
        %v1628 = vld [vmem:[#allocation9 + $0x798] sm:$0xff]
        %v1629 = vld [vmem:[#allocation9 + $0x7a0] sm:$0xff]
        %v1630 = vld [vmem:[#allocation9 + $0x7a8] sm:$0xff]
        %v1631 = vld [vmem:[#allocation9 + $0x7b0] sm:$0xff]
        %v1632 = vld [vmem:[#allocation9 + $0x7b8] sm:$0xff]
        %v1633 = vld [vmem:[#allocation9 + $0x7c0] sm:$0xff]
        %v1634 = vld [vmem:[#allocation9 + $0x7c8] sm:$0xff]
        %v1635 = vld [vmem:[#allocation9 + $0x7d0] sm:$0xff]
        %v1636 = vld [vmem:[#allocation9 + $0x7d8] sm:$0xff]
        %v1637 = vld [vmem:[#allocation9 + $0x7e0] sm:$0xff]
        %v1638 = vld [vmem:[#allocation9 + $0x7e8] sm:$0xff]
        %v1639 = vld [vmem:[#allocation9 + $0x7f0] sm:$0xff]
        %v1640 = vld [vmem:[#allocation9 + $0x7f8] sm:$0xff]
        %v1641 = vld [vmem:[#allocation9 + $0x800] sm:$0xff]
        %v1642 = vld [vmem:[#allocation9 + $0x808] sm:$0xff]
        %v1643 = vld [vmem:[#allocation9 + $0x810] sm:$0xff]
        %v1644 = vld [vmem:[#allocation9 + $0x818] sm:$0xff]
        %v1645 = vld [vmem:[#allocation9 + $0x820] sm:$0xff]
        %v1646 = vld [vmem:[#allocation9 + $0x828] sm:$0xff]
        %v1647 = vld [vmem:[#allocation9 + $0x830] sm:$0xff]
        %v1648 = vld [vmem:[#allocation9 + $0x838] sm:$0xff]
        %v1649 = vld [vmem:[#allocation9 + $0x840] sm:$0xff]
        %v1650 = vld [vmem:[#allocation9 + $0x848] sm:$0xff]
        %v1651 = vld [vmem:[#allocation9 + $0x850] sm:$0xff]
        %v1652 = vld [vmem:[#allocation9 + $0x858] sm:$0xff]
        %v1653 = vld [vmem:[#allocation9 + $0x860] sm:$0xff]
        %v1654 = vld [vmem:[#allocation9 + $0x868] sm:$0xff]
        %v1655 = vld [vmem:[#allocation9 + $0x870] sm:$0xff]
        %v1656 = vld [vmem:[#allocation9 + $0x878] sm:$0xff]
        %v1657 = vld [vmem:[#allocation9 + $0x880] sm:$0xff]
        %v1658 = vld [vmem:[#allocation9 + $0x888] sm:$0xff]
        %v1659 = vld [vmem:[#allocation9 + $0x890] sm:$0xff]
        %v1660 = vld [vmem:[#allocation9 + $0x898] sm:$0xff]
        %v1661 = vld [vmem:[#allocation9 + $0x8a0] sm:$0xff]
        %v1662 = vld [vmem:[#allocation9 + $0x8a8] sm:$0xff]
        %v1663 = vld [vmem:[#allocation9 + $0x8b0] sm:$0xff]
        %v1664 = vld [vmem:[#allocation9 + $0x8b8] sm:$0xff]
        %v1665 = vld [vmem:[#allocation9 + $0x8c0] sm:$0xff]
        %v1666 = vld [vmem:[#allocation9 + $0x8c8] sm:$0xff]
        %v1667 = vld [vmem:[#allocation9 + $0x8d0] sm:$0xff]
        %v1668 = vld [vmem:[#allocation9 + $0x8d8] sm:$0xff]
        %v1669 = vld [vmem:[#allocation9 + $0x8e0] sm:$0xff]
        %v1670 = vld [vmem:[#allocation9 + $0x8e8] sm:$0xff]
        %v1671 = vld [vmem:[#allocation9 + $0x8f0] sm:$0xff]
        %v1672 = vld [vmem:[#allocation9 + $0x8f8] sm:$0xff]
        %v1673 = vld [vmem:[#allocation9 + $0x900] sm:$0xff]
        %v1674 = vld [vmem:[#allocation9 + $0x908] sm:$0xff]
        %v1675 = vld [vmem:[#allocation9 + $0x910] sm:$0xff]
        %v1676 = vld [vmem:[#allocation9 + $0x918] sm:$0xff]
        %v1677 = vld [vmem:[#allocation9 + $0x920] sm:$0xff]
        %v1678 = vld [vmem:[#allocation9 + $0x928] sm:$0xff]
        %v1679 = vld [vmem:[#allocation9 + $0x930] sm:$0xff]
        %v1680 = vld [vmem:[#allocation9 + $0x938] sm:$0xff]
        %v1681 = vld [vmem:[#allocation9 + $0x940] sm:$0xff]
        %v1682 = vld [vmem:[#allocation9 + $0x948] sm:$0xff]
        %v1683 = vld [vmem:[#allocation9 + $0x950] sm:$0xff]
        %v1684 = vld [vmem:[#allocation9 + $0x958] sm:$0xff]
        %v1685 = vld [vmem:[#allocation9 + $0x960] sm:$0xff]
        %v1686 = vld [vmem:[#allocation9 + $0x968] sm:$0xff]
        %v1687 = vld [vmem:[#allocation9 + $0x970] sm:$0xff]
        %v1688 = vld [vmem:[#allocation9 + $0x978] sm:$0xff]
        %v1689 = vld [vmem:[#allocation9 + $0x980] sm:$0xff]
        %v1690 = vld [vmem:[#allocation9 + $0x988] sm:$0xff]
        %v1691 = vld [vmem:[#allocation9 + $0x990] sm:$0xff]
        %v1692 = vld [vmem:[#allocation9 + $0x998] sm:$0xff]
        %v1693 = vld [vmem:[#allocation9 + $0x9a0] sm:$0xff]
        %v1694 = vld [vmem:[#allocation9 + $0x9a8] sm:$0xff]
        %v1695 = vld [vmem:[#allocation9 + $0x9b0] sm:$0xff]
        %v1696 = vld [vmem:[#allocation9 + $0x9b8] sm:$0xff]
        %v1697 = vld [vmem:[#allocation9 + $0x9c0] sm:$0xff]
        %v1698 = vld [vmem:[#allocation9 + $0x9c8] sm:$0xff]
        %v1699 = vld [vmem:[#allocation9 + $0x9d0] sm:$0xff]
        %v1700 = vld [vmem:[#allocation9 + $0x9d8] sm:$0xff]
        %v1701 = vld [vmem:[#allocation9 + $0x9e0] sm:$0xff]
        %v1702 = vld [vmem:[#allocation9 + $0x9e8] sm:$0xff]
        %v1703 = vld [vmem:[#allocation9 + $0x9f0] sm:$0xff]
        %v1704 = vld [vmem:[#allocation9 + $0x9f8] sm:$0xff]
        %v1705 = vld [vmem:[#allocation9 + $0xa00] sm:$0xff]
        %v1706 = vld [vmem:[#allocation9 + $0xa08] sm:$0xff]
        %v1707 = vld [vmem:[#allocation9 + $0xa10] sm:$0xff]
        %v1708 = vld [vmem:[#allocation9 + $0xa18] sm:$0xff]
        %v1709 = vld [vmem:[#allocation9 + $0xa20] sm:$0xff]
        %v1710 = vld [vmem:[#allocation9 + $0xa28] sm:$0xff]
        %v1711 = vld [vmem:[#allocation9 + $0xa30] sm:$0xff]
        %v1712 = vld [vmem:[#allocation9 + $0xa38] sm:$0xff]
        %v1713 = vld [vmem:[#allocation9 + $0xa40] sm:$0xff]
        %v1714 = vld [vmem:[#allocation9 + $0xa48] sm:$0xff]
        %v1715 = vld [vmem:[#allocation9 + $0xa50] sm:$0xff]
        %v1716 = vld [vmem:[#allocation9 + $0xa58] sm:$0xff]
        %v1717 = vld [vmem:[#allocation9 + $0xa60] sm:$0xff]
        %v1718 = vld [vmem:[#allocation9 + $0xa68] sm:$0xff]
        %v1719 = vld [vmem:[#allocation9 + $0xa70] sm:$0xff]
        %v1720 = vld [vmem:[#allocation9 + $0xa78] sm:$0xff]
        %v1721 = vld [vmem:[#allocation9 + $0xa80] sm:$0xff]
        %v1722 = vld [vmem:[#allocation9 + $0xa88] sm:$0xff]
        %v1723 = vld [vmem:[#allocation9 + $0xa90] sm:$0xff]
        %v1724 = vld [vmem:[#allocation9 + $0xa98] sm:$0xff]
        %v1725 = vld [vmem:[#allocation9 + $0xaa0] sm:$0xff]
        %v1726 = vld [vmem:[#allocation9 + $0xaa8] sm:$0xff]
        %v1727 = vld [vmem:[#allocation9 + $0xab0] sm:$0xff]
        %v1728 = vld [vmem:[#allocation9 + $0xab8] sm:$0xff]
        %v1729 = vld [vmem:[#allocation9 + $0xac0] sm:$0xff]
        %v1730 = vld [vmem:[#allocation9 + $0xac8] sm:$0xff]
        %v1731 = vld [vmem:[#allocation9 + $0xad0] sm:$0xff]
        %v1732 = vld [vmem:[#allocation9 + $0xad8] sm:$0xff]
        %v1733 = vld [vmem:[#allocation9 + $0xae0] sm:$0xff]
        %v1734 = vld [vmem:[#allocation9 + $0xae8] sm:$0xff]
        %v1735 = vld [vmem:[#allocation9 + $0xaf0] sm:$0xff]
        %v1736 = vld [vmem:[#allocation9 + $0xaf8] sm:$0xff]
        %v1737 = vld [vmem:[#allocation9 + $0xb00] sm:$0xff]
        %v1738 = vld [vmem:[#allocation9 + $0xb08] sm:$0xff]
        %v1739 = vld [vmem:[#allocation9 + $0xb10] sm:$0xff]
        %v1740 = vld [vmem:[#allocation9 + $0xb18] sm:$0xff]
        %v1741 = vld [vmem:[#allocation9 + $0xb20] sm:$0xff]
        %v1742 = vld [vmem:[#allocation9 + $0xb28] sm:$0xff]
        %v1743 = vld [vmem:[#allocation9 + $0xb30] sm:$0xff]
        %v1744 = vld [vmem:[#allocation9 + $0xb38] sm:$0xff]
        %v1745 = vld [vmem:[#allocation9 + $0xb40] sm:$0xff]
        %v1746 = vld [vmem:[#allocation9 + $0xb48] sm:$0xff]
        %v1747 = vld [vmem:[#allocation9 + $0xb50] sm:$0xff]
        %v1748 = vld [vmem:[#allocation9 + $0xb58] sm:$0xff]
        %v1749 = vld [vmem:[#allocation9 + $0xb60] sm:$0xff]
        %v1750 = vld [vmem:[#allocation9 + $0xb68] sm:$0xff]
        %v1751 = vld [vmem:[#allocation9 + $0xb70] sm:$0xff]
        %v1752 = vld [vmem:[#allocation9 + $0xb78] sm:$0xff]
        %v1753 = vld [vmem:[#allocation9 + $0xb80] sm:$0xff]
        %v1754 = vld [vmem:[#allocation9 + $0xb88] sm:$0xff]
        %v1755 = vld [vmem:[#allocation9 + $0xb90] sm:$0xff]
        %v1756 = vld [vmem:[#allocation9 + $0xb98] sm:$0xff]
        %v1757 = vld [vmem:[#allocation9 + $0xba0] sm:$0xff]
        %v1758 = vld [vmem:[#allocation9 + $0xba8] sm:$0xff]
        %v1759 = vld [vmem:[#allocation9 + $0xbb0] sm:$0xff]
        %v1760 = vld [vmem:[#allocation9 + $0xbb8] sm:$0xff]
        %v1761 = vld [vmem:[#allocation9 + $0xbc0] sm:$0xff]
        %v1762 = vld [vmem:[#allocation9 + $0xbc8] sm:$0xff]
        %v1763 = vld [vmem:[#allocation9 + $0xbd0] sm:$0xff]
        %v1764 = vld [vmem:[#allocation9 + $0xbd8] sm:$0xff]
        %v1765 = vld [vmem:[#allocation9 + $0xbe0] sm:$0xff]
        %v1766 = vld [vmem:[#allocation9 + $0xbe8] sm:$0xff]
        %v1767 = vld [vmem:[#allocation9 + $0xbf0] sm:$0xff]
        %v1768 = vld [vmem:[#allocation9 + $0xbf8] sm:$0xff]
        %v1769 = vld [vmem:[#allocation9 + $0xc00] sm:$0xff]
        %v1770 = vld [vmem:[#allocation9 + $0xc08] sm:$0xff]
        %v1771 = vld [vmem:[#allocation9 + $0xc10] sm:$0xff]
        %v1772 = vld [vmem:[#allocation9 + $0xc18] sm:$0xff]
        %v1773 = vld [vmem:[#allocation9 + $0xc20] sm:$0xff]
        %v1774 = vld [vmem:[#allocation9 + $0xc28] sm:$0xff]
        %v1775 = vld [vmem:[#allocation9 + $0xc30] sm:$0xff]
        %v1776 = vld [vmem:[#allocation9 + $0xc38] sm:$0xff]
        %v1777 = vld [vmem:[#allocation9 + $0xc40] sm:$0xff]
        %v1778 = vld [vmem:[#allocation9 + $0xc48] sm:$0xff]
        %v1779 = vld [vmem:[#allocation9 + $0xc50] sm:$0xff]
        %v1780 = vld [vmem:[#allocation9 + $0xc58] sm:$0xff]
        %v1781 = vld [vmem:[#allocation9 + $0xc60] sm:$0xff]
        %v1782 = vld [vmem:[#allocation9 + $0xc68] sm:$0xff]
        %v1783 = vld [vmem:[#allocation9 + $0xc70] sm:$0xff]
        %v1784 = vld [vmem:[#allocation9 + $0xc78] sm:$0xff]
        %v1785 = vld [vmem:[#allocation9 + $0xc80] sm:$0xff]
        %v1786 = vld [vmem:[#allocation9 + $0xc88] sm:$0xff]
        %v1787 = vld [vmem:[#allocation9 + $0xc90] sm:$0xff]
        %v1788 = vld [vmem:[#allocation9 + $0xc98] sm:$0xff]
        %v1789 = vld [vmem:[#allocation9 + $0xca0] sm:$0xff]
        %v1790 = vld [vmem:[#allocation9 + $0xca8] sm:$0xff]
        %v1791 = vld [vmem:[#allocation9 + $0xcb0] sm:$0xff]
        %v1792 = vld [vmem:[#allocation9 + $0xcb8] sm:$0xff]
        %v1793 = vld [vmem:[#allocation9 + $0xcc0] sm:$0xff]
        %v1794 = vld [vmem:[#allocation9 + $0xcc8] sm:$0xff]
        %v1795 = vld [vmem:[#allocation9 + $0xcd0] sm:$0xff]
        %v1796 = vld [vmem:[#allocation9 + $0xcd8] sm:$0xff]
        %v1797 = vld [vmem:[#allocation9 + $0xce0] sm:$0xff]
        %v1798 = vld [vmem:[#allocation9 + $0xce8] sm:$0xff]
        %v1799 = vld [vmem:[#allocation9 + $0xcf0] sm:$0xff]
        %v1800 = vld [vmem:[#allocation9 + $0xcf8] sm:$0xff]
        %v1801 = vld [vmem:[#allocation9 + $0xd00] sm:$0xff]
        %v1802 = vld [vmem:[#allocation9 + $0xd08] sm:$0xff]
        %v1803 = vld [vmem:[#allocation9 + $0xd10] sm:$0xff]
        %v1804 = vld [vmem:[#allocation9 + $0xd18] sm:$0xff]
        %v1805 = vld [vmem:[#allocation9 + $0xd20] sm:$0xff]
        %v1806 = vld [vmem:[#allocation9 + $0xd28] sm:$0xff]
        %v1807 = vld [vmem:[#allocation9 + $0xd30] sm:$0xff]
        %v1808 = vld [vmem:[#allocation9 + $0xd38] sm:$0xff]
        %v1809 = vld [vmem:[#allocation9 + $0xd40] sm:$0xff]
        %v1810 = vld [vmem:[#allocation9 + $0xd48] sm:$0xff]
        %v1811 = vld [vmem:[#allocation9 + $0xd50] sm:$0xff]
        %v1812 = vld [vmem:[#allocation9 + $0xd58] sm:$0xff]
        %v1813 = vld [vmem:[#allocation9 + $0xd60] sm:$0xff]
        %v1814 = vld [vmem:[#allocation9 + $0xd68] sm:$0xff]
        %v1815 = vld [vmem:[#allocation9 + $0xd70] sm:$0xff]
        %v1816 = vld [vmem:[#allocation9 + $0xd78] sm:$0xff]
        %v1817 = vld [vmem:[#allocation9 + $0xd80] sm:$0xff]
        %v1818 = vld [vmem:[#allocation9 + $0xd88] sm:$0xff]
        %v1819 = vld [vmem:[#allocation9 + $0xd90] sm:$0xff]
        %v1820 = vld [vmem:[#allocation9 + $0xd98] sm:$0xff]
        %v1821 = vld [vmem:[#allocation9 + $0xda0] sm:$0xff]
        %v1822 = vld [vmem:[#allocation9 + $0xda8] sm:$0xff]
        %v1823 = vld [vmem:[#allocation9 + $0xdb0] sm:$0xff]
        %v1824 = vld [vmem:[#allocation9 + $0xdb8] sm:$0xff]
        %v1825 = vld [vmem:[#allocation9 + $0xdc0] sm:$0xff]
        %v1826 = vld [vmem:[#allocation9 + $0xdc8] sm:$0xff]
        %v1827 = vld [vmem:[#allocation9 + $0xdd0] sm:$0xff]
        %v1828 = vld [vmem:[#allocation9 + $0xdd8] sm:$0xff]
        %v1829 = vld [vmem:[#allocation9 + $0xde0] sm:$0xff]
        %v1830 = vld [vmem:[#allocation9 + $0xde8] sm:$0xff]
        %v1831 = vld [vmem:[#allocation9 + $0xdf0] sm:$0xff]
        %v1832 = vld [vmem:[#allocation9 + $0xdf8] sm:$0xff]
        %v1833 = vld [vmem:[#allocation9 + $0xe00] sm:$0xff]
        %v1834 = vld [vmem:[#allocation9 + $0xe08] sm:$0xff]
        %v1835 = vld [vmem:[#allocation9 + $0xe10] sm:$0xff]
        %v1836 = vld [vmem:[#allocation9 + $0xe18] sm:$0xff]
        %v1837 = vld [vmem:[#allocation9 + $0xe20] sm:$0xff]
        %v1838 = vld [vmem:[#allocation9 + $0xe28] sm:$0xff]
        %v1839 = vld [vmem:[#allocation9 + $0xe30] sm:$0xff]
        %v1840 = vld [vmem:[#allocation9 + $0xe38] sm:$0xff]
        %v1841 = vld [vmem:[#allocation9 + $0xe40] sm:$0xff]
        %v1842 = vld [vmem:[#allocation9 + $0xe48] sm:$0xff]
        %v1843 = vld [vmem:[#allocation9 + $0xe50] sm:$0xff]
        %v1844 = vld [vmem:[#allocation9 + $0xe58] sm:$0xff]
        %v1845 = vld [vmem:[#allocation9 + $0xe60] sm:$0xff]
        %v1846 = vld [vmem:[#allocation9 + $0xe68] sm:$0xff]
        %v1847 = vld [vmem:[#allocation9 + $0xe70] sm:$0xff]
        %v1848 = vld [vmem:[#allocation9 + $0xe78] sm:$0xff]
        %v1849 = vld [vmem:[#allocation9 + $0xe80] sm:$0xff]
        %v1850 = vld [vmem:[#allocation9 + $0xe88] sm:$0xff]
        %v1851 = vld [vmem:[#allocation9 + $0xe90] sm:$0xff]
        %v1852 = vld [vmem:[#allocation9 + $0xe98] sm:$0xff]
        %v1853 = vld [vmem:[#allocation9 + $0xea0] sm:$0xff]
        %v1854 = vld [vmem:[#allocation9 + $0xea8] sm:$0xff]
        %v1855 = vld [vmem:[#allocation9 + $0xeb0] sm:$0xff]
        %v1856 = vld [vmem:[#allocation9 + $0xeb8] sm:$0xff]
        %v1857 = vld [vmem:[#allocation9 + $0xec0] sm:$0xff]
        %v1858 = vld [vmem:[#allocation9 + $0xec8] sm:$0xff]
        %v1859 = vld [vmem:[#allocation9 + $0xed0] sm:$0xff]
        %v1860 = vld [vmem:[#allocation9 + $0xed8] sm:$0xff]
        %v1861 = vld [vmem:[#allocation9 + $0xee0] sm:$0xff]
        %v1862 = vld [vmem:[#allocation9 + $0xee8] sm:$0xff]
        %v1863 = vld [vmem:[#allocation9 + $0xef0] sm:$0xff]
        %v1864 = vld [vmem:[#allocation9 + $0xef8] sm:$0xff]
        %v1865 = vld [vmem:[#allocation9 + $0xf00] sm:$0xff]
        %v1866 = vld [vmem:[#allocation9 + $0xf08] sm:$0xff]
        %v1867 = vld [vmem:[#allocation9 + $0xf10] sm:$0xff]
        %v1868 = vld [vmem:[#allocation9 + $0xf18] sm:$0xff]
        %v1869 = vld [vmem:[#allocation9 + $0xf20] sm:$0xff]
        %v1870 = vld [vmem:[#allocation9 + $0xf28] sm:$0xff]
        %v1871 = vld [vmem:[#allocation9 + $0xf30] sm:$0xff]
        %v1872 = vld [vmem:[#allocation9 + $0xf38] sm:$0xff]
        %v1873 = vld [vmem:[#allocation9 + $0xf40] sm:$0xff]
        %v1874 = vld [vmem:[#allocation9 + $0xf48] sm:$0xff]
        %v1875 = vld [vmem:[#allocation9 + $0xf50] sm:$0xff]
        %v1876 = vld [vmem:[#allocation9 + $0xf58] sm:$0xff]
        %v1877 = vld [vmem:[#allocation9 + $0xf60] sm:$0xff]
        %v1878 = vld [vmem:[#allocation9 + $0xf68] sm:$0xff]
        %v1879 = vld [vmem:[#allocation9 + $0xf70] sm:$0xff]
        %v1880 = vld [vmem:[#allocation9 + $0xf78] sm:$0xff]
        %v1881 = vld [vmem:[#allocation9 + $0xf80] sm:$0xff]
        %v1882 = vld [vmem:[#allocation9 + $0xf88] sm:$0xff]
        %v1883 = vld [vmem:[#allocation9 + $0xf90] sm:$0xff]
        %v1884 = vld [vmem:[#allocation9 + $0xf98] sm:$0xff]
        %v1885 = vld [vmem:[#allocation9 + $0xfa0] sm:$0xff]
        %v1886 = vld [vmem:[#allocation9 + $0xfa8] sm:$0xff]
        %v1887 = vld [vmem:[#allocation9 + $0xfb0] sm:$0xff]
        %v1888 = vld [vmem:[#allocation9 + $0xfb8] sm:$0xff]
        %v1889 = vld [vmem:[#allocation9 + $0xfc0] sm:$0xff]
        %v1890 = vld [vmem:[#allocation9 + $0xfc8] sm:$0xff]
        %v1891 = vld [vmem:[#allocation9 + $0xfd0] sm:$0xff]
        %v1892 = vld [vmem:[#allocation9 + $0xfd8] sm:$0xff]
        %v1893 = vld [vmem:[#allocation9 + $0xfe0] sm:$0xff]
        %v1894 = vld [vmem:[#allocation9 + $0xfe8] sm:$0xff]
        %v1895 = vld [vmem:[#allocation9 + $0xff0] sm:$0xff]
        %v1896 = vld [vmem:[#allocation9 + $0xff8] sm:$0xff]
        %v1897 = vld [vmem:[#allocation9 + $0x1000] sm:$0xff]
        %v1898 = vld [vmem:[#allocation9 + $0x1008] sm:$0xff]
        %v1899 = vld [vmem:[#allocation9 + $0x1010] sm:$0xff]
        %v1900 = vld [vmem:[#allocation9 + $0x1018] sm:$0xff]
        %v1901 = vld [vmem:[#allocation9 + $0x1020] sm:$0xff]
        %v1902 = vld [vmem:[#allocation9 + $0x1028] sm:$0xff]
        %v1903 = vld [vmem:[#allocation9 + $0x1030] sm:$0xff]
        %v1904 = vld [vmem:[#allocation9 + $0x1038] sm:$0xff]
        %v1905 = vld [vmem:[#allocation9 + $0x1040] sm:$0xff]
        %v1906 = vld [vmem:[#allocation9 + $0x1048] sm:$0xff]
        %v1907 = vld [vmem:[#allocation9 + $0x1050] sm:$0xff]
        %v1908 = vld [vmem:[#allocation9 + $0x1058] sm:$0xff]
        %v1909 = vld [vmem:[#allocation9 + $0x1060] sm:$0xff]
        %v1910 = vld [vmem:[#allocation9 + $0x1068] sm:$0xff]
        %v1911 = vld [vmem:[#allocation9 + $0x1070] sm:$0xff]
        %v1912 = vld [vmem:[#allocation9 + $0x1078] sm:$0xff]
        %v1913 = vld [vmem:[#allocation9 + $0x1080] sm:$0xff]
        %v1914 = vld [vmem:[#allocation9 + $0x1088] sm:$0xff]
        %v1915 = vld [vmem:[#allocation9 + $0x1090] sm:$0xff]
        %v1916 = vld [vmem:[#allocation9 + $0x1098] sm:$0xff]
        %v1917 = vld [vmem:[#allocation9 + $0x10a0] sm:$0xff]
        %v1918 = vld [vmem:[#allocation9 + $0x10a8] sm:$0xff]
        %v1919 = vld [vmem:[#allocation9 + $0x10b0] sm:$0xff]
        %v1920 = vld [vmem:[#allocation9 + $0x10b8] sm:$0xff]
        %v1921 = vld [vmem:[#allocation9 + $0x10c0] sm:$0xff]
        %v1922 = vld [vmem:[#allocation9 + $0x10c8] sm:$0xff]
        %v1923 = vld [vmem:[#allocation9 + $0x10d0] sm:$0xff]
        %v1924 = vld [vmem:[#allocation9 + $0x10d8] sm:$0xff]
        %v1925 = vld [vmem:[#allocation9 + $0x10e0] sm:$0xff]
        %v1926 = vld [vmem:[#allocation9 + $0x10e8] sm:$0xff]
        %v1927 = vld [vmem:[#allocation9 + $0x10f0] sm:$0xff]
        %v1928 = vld [vmem:[#allocation9 + $0x10f8] sm:$0xff]
        %v1929 = vld [vmem:[#allocation9 + $0x1100] sm:$0xff]
        %v1930 = vld [vmem:[#allocation9 + $0x1108] sm:$0xff]
        %v1931 = vld [vmem:[#allocation9 + $0x1110] sm:$0xff]
        %v1932 = vld [vmem:[#allocation9 + $0x1118] sm:$0xff]
        %v1933 = vld [vmem:[#allocation9 + $0x1120] sm:$0xff]
        %v1934 = vld [vmem:[#allocation9 + $0x1128] sm:$0xff]
        %v1935 = vld [vmem:[#allocation9 + $0x1130] sm:$0xff]
        %v1936 = vld [vmem:[#allocation9 + $0x1138] sm:$0xff]
        %v1937 = vld [vmem:[#allocation9 + $0x1140] sm:$0xff]
        %v1938 = vld [vmem:[#allocation9 + $0x1148] sm:$0xff]
        %v1939 = vld [vmem:[#allocation9 + $0x1150] sm:$0xff]
        %v1940 = vld [vmem:[#allocation9 + $0x1158] sm:$0xff]
        %v1941 = vld [vmem:[#allocation9 + $0x1160] sm:$0xff]
        %v1942 = vld [vmem:[#allocation9 + $0x1168] sm:$0xff]
        %v1943 = vld [vmem:[#allocation9 + $0x1170] sm:$0xff]
        %v1944 = vld [vmem:[#allocation9 + $0x1178] sm:$0xff]
        %v1945 = vld [vmem:[#allocation9 + $0x1180] sm:$0xff]
        %v1946 = vld [vmem:[#allocation9 + $0x1188] sm:$0xff]
        %v1947 = vld [vmem:[#allocation9 + $0x1190] sm:$0xff]
        %v1948 = vld [vmem:[#allocation9 + $0x1198] sm:$0xff]
        %v1949 = vld [vmem:[#allocation9 + $0x11a0] sm:$0xff]
        %v1950 = vld [vmem:[#allocation9 + $0x11a8] sm:$0xff]
        %v1951 = vld [vmem:[#allocation9 + $0x11b0] sm:$0xff]
        %v1952 = vld [vmem:[#allocation9 + $0x11b8] sm:$0xff]
        %v1953 = vld [vmem:[#allocation9 + $0x11c0] sm:$0xff]
        %v1954 = vld [vmem:[#allocation9 + $0x11c8] sm:$0xff]
        %v1955 = vld [vmem:[#allocation9 + $0x11d0] sm:$0xff]
        %v1956 = vld [vmem:[#allocation9 + $0x11d8] sm:$0xff]
        %v1957 = vld [vmem:[#allocation9 + $0x11e0] sm:$0xff]
        %v1958 = vld [vmem:[#allocation9 + $0x11e8] sm:$0xff]
        %v1959 = vld [vmem:[#allocation9 + $0x11f0] sm:$0xff]
        %v1960 = vld [vmem:[#allocation9 + $0x11f8] sm:$0xff]
        %v1961 = vld [vmem:[#allocation9 + $0x1200] sm:$0xff]
        %v1962 = vld [vmem:[#allocation9 + $0x1208] sm:$0xff]
        %v1963 = vld [vmem:[#allocation9 + $0x1210] sm:$0xff]
        %v1964 = vld [vmem:[#allocation9 + $0x1218] sm:$0xff]
        %v1965 = vld [vmem:[#allocation9 + $0x1220] sm:$0xff]
        %v1966 = vld [vmem:[#allocation9 + $0x1228] sm:$0xff]
        %v1967 = vld [vmem:[#allocation9 + $0x1230] sm:$0xff]
        %v1968 = vld [vmem:[#allocation9 + $0x1238] sm:$0xff]
        %v1969 = vld [vmem:[#allocation9 + $0x1240] sm:$0xff]
        %v1970 = vld [vmem:[#allocation9 + $0x1248] sm:$0xff]
        %v1971 = vld [vmem:[#allocation9 + $0x1250] sm:$0xff]
        %v1972 = vld [vmem:[#allocation9 + $0x1258] sm:$0xff]
        %v1973 = vld [vmem:[#allocation9 + $0x1260] sm:$0xff]
        %v1974 = vld [vmem:[#allocation9 + $0x1268] sm:$0xff]
        %v1975 = vld [vmem:[#allocation9 + $0x1270] sm:$0xff]
        %v1976 = vld [vmem:[#allocation9 + $0x1278] sm:$0xff]
        %v1977 = vld [vmem:[#allocation9 + $0x1280] sm:$0xff]
        %v1978 = vld [vmem:[#allocation9 + $0x1288] sm:$0xff]
        %v1979 = vld [vmem:[#allocation9 + $0x1290] sm:$0xff]
        %v1980 = vld [vmem:[#allocation9 + $0x1298] sm:$0xff]
        %v1981 = vld [vmem:[#allocation9 + $0x12a0] sm:$0xff]
        %v1982 = vld [vmem:[#allocation9 + $0x12a8] sm:$0xff]
        %v1983 = vld [vmem:[#allocation9 + $0x12b0] sm:$0xff]
        %v1984 = vld [vmem:[#allocation9 + $0x12b8] sm:$0xff]
        %v1985 = vld [vmem:[#allocation9 + $0x12c0] sm:$0xff]
        %v1986 = vld [vmem:[#allocation9 + $0x12c8] sm:$0xff]
        %v1987 = vld [vmem:[#allocation9 + $0x12d0] sm:$0xff]
        %v1988 = vld [vmem:[#allocation9 + $0x12d8] sm:$0xff]
        %v1989 = vld [vmem:[#allocation9 + $0x12e0] sm:$0xff]
        %v1990 = vld [vmem:[#allocation9 + $0x12e8] sm:$0xff]
        %v1991 = vld [vmem:[#allocation9 + $0x12f0] sm:$0xff]
        %v1992 = vld [vmem:[#allocation9 + $0x12f8] sm:$0xff]
        %v1993 = vld [vmem:[#allocation9 + $0x1300] sm:$0xff]
        %v1994 = vld [vmem:[#allocation9 + $0x1308] sm:$0xff]
        %v1995 = vld [vmem:[#allocation9 + $0x1310] sm:$0xff]
        %v1996 = vld [vmem:[#allocation9 + $0x1318] sm:$0xff]
        %v1997 = vld [vmem:[#allocation9 + $0x1320] sm:$0xff]
        %v1998 = vld [vmem:[#allocation9 + $0x1328] sm:$0xff]
        %v1999 = vld [vmem:[#allocation9 + $0x1330] sm:$0xff]
        %v2000 = vld [vmem:[#allocation9 + $0x1338] sm:$0xff]
        %v2001 = vld [vmem:[#allocation9 + $0x1340] sm:$0xff]
        %v2002 = vld [vmem:[#allocation9 + $0x1348] sm:$0xff]
        %v2003 = vld [vmem:[#allocation9 + $0x1350] sm:$0xff]
        %v2004 = vld [vmem:[#allocation9 + $0x1358] sm:$0xff]
        %v2005 = vld [vmem:[#allocation9 + $0x1360] sm:$0xff]
        %v2006 = vld [vmem:[#allocation9 + $0x1368] sm:$0xff]
        %v2007 = vld [vmem:[#allocation9 + $0x1370] sm:$0xff]
        %v2008 = vld [vmem:[#allocation9 + $0x1378] sm:$0xff]
        %v2009 = vld [vmem:[#allocation9 + $0x1380] sm:$0xff]
        %v2010 = vld [vmem:[#allocation9 + $0x1388] sm:$0xff]
        %v2011 = vld [vmem:[#allocation9 + $0x1390] sm:$0xff]
        %v2012 = vld [vmem:[#allocation9 + $0x1398] sm:$0xff]
        %v2013 = vld [vmem:[#allocation9 + $0x13a0] sm:$0xff]
        %v2014 = vld [vmem:[#allocation9 + $0x13a8] sm:$0xff]
        %v2015 = vld [vmem:[#allocation9 + $0x13b0] sm:$0xff]
        %v2016 = vld [vmem:[#allocation9 + $0x13b8] sm:$0xff]
        %v2017 = vld [vmem:[#allocation9 + $0x13c0] sm:$0xff]
        %v2018 = vld [vmem:[#allocation9 + $0x13c8] sm:$0xff]
        %v2019 = vld [vmem:[#allocation9 + $0x13d0] sm:$0xff]
        %v2020 = vld [vmem:[#allocation9 + $0x13d8] sm:$0xff]
        %v2021 = vld [vmem:[#allocation9 + $0x13e0] sm:$0xff]
        %v2022 = vld [vmem:[#allocation9 + $0x13e8] sm:$0xff]
        %v2023 = vld [vmem:[#allocation9 + $0x13f0] sm:$0xff]
        %v2024 = vld [vmem:[#allocation9 + $0x13f8] sm:$0xff]
        %v2025 = vld [vmem:[#allocation9 + $0x1400] sm:$0xff]
        %v2026 = vld [vmem:[#allocation9 + $0x1408] sm:$0xff]
        %v2027 = vld [vmem:[#allocation9 + $0x1410] sm:$0xff]
        %v2028 = vld [vmem:[#allocation9 + $0x1418] sm:$0xff]
        %v2029 = vld [vmem:[#allocation9 + $0x1420] sm:$0xff]
        %v2030 = vld [vmem:[#allocation9 + $0x1428] sm:$0xff]
        %v2031 = vld [vmem:[#allocation9 + $0x1430] sm:$0xff]
        %v2032 = vld [vmem:[#allocation9 + $0x1438] sm:$0xff]
        %v2033 = vld [vmem:[#allocation9 + $0x1440] sm:$0xff]
        %v2034 = vld [vmem:[#allocation9 + $0x1448] sm:$0xff]
        %v2035 = vld [vmem:[#allocation9 + $0x1450] sm:$0xff]
        %v2036 = vld [vmem:[#allocation9 + $0x1458] sm:$0xff]
        %v2037 = vld [vmem:[#allocation9 + $0x1460] sm:$0xff]
        %v2038 = vld [vmem:[#allocation9 + $0x1468] sm:$0xff]
        %v2039 = vld [vmem:[#allocation9 + $0x1470] sm:$0xff]
        %v2040 = vld [vmem:[#allocation9 + $0x1478] sm:$0xff]
        %v2041 = vld [vmem:[#allocation9 + $0x1480] sm:$0xff]
        %v2042 = vld [vmem:[#allocation9 + $0x1488] sm:$0xff]
        %v2043 = vld [vmem:[#allocation9 + $0x1490] sm:$0xff]
        %v2044 = vld [vmem:[#allocation9 + $0x1498] sm:$0xff]
        %v2045 = vld [vmem:[#allocation9 + $0x14a0] sm:$0xff]
        %v2046 = vld [vmem:[#allocation9 + $0x14a8] sm:$0xff]
        %v2047 = vld [vmem:[#allocation9 + $0x14b0] sm:$0xff]
        %v2048 = vld [vmem:[#allocation9 + $0x14b8] sm:$0xff]
        %v2049 = vld [vmem:[#allocation9 + $0x14c0] sm:$0xff]
        %v2050 = vld [vmem:[#allocation9 + $0x14c8] sm:$0xff]
        %v2051 = vld [vmem:[#allocation9 + $0x14d0] sm:$0xff]
        %v2052 = vld [vmem:[#allocation9 + $0x14d8] sm:$0xff]
        %v2053 = vld [vmem:[#allocation9 + $0x14e0] sm:$0xff]
        %v2054 = vld [vmem:[#allocation9 + $0x14e8] sm:$0xff]
        %v2055 = vld [vmem:[#allocation9 + $0x14f0] sm:$0xff]
        %v2056 = vld [vmem:[#allocation9 + $0x14f8] sm:$0xff]
        %v2057 = vld [vmem:[#allocation9 + $0x1500] sm:$0xff]
        %v2058 = vld [vmem:[#allocation9 + $0x1508] sm:$0xff]
        %v2059 = vld [vmem:[#allocation9 + $0x1510] sm:$0xff]
        %v2060 = vld [vmem:[#allocation9 + $0x1518] sm:$0xff]
        %v2061 = vld [vmem:[#allocation9 + $0x1520] sm:$0xff]
        %v2062 = vld [vmem:[#allocation9 + $0x1528] sm:$0xff]
        %v2063 = vld [vmem:[#allocation9 + $0x1530] sm:$0xff]
        %v2064 = vld [vmem:[#allocation9 + $0x1538] sm:$0xff]
        %v2065 = vld [vmem:[#allocation9 + $0x1540] sm:$0xff]
        %v2066 = vld [vmem:[#allocation9 + $0x1548] sm:$0xff]
        %v2067 = vld [vmem:[#allocation9 + $0x1550] sm:$0xff]
        %v2068 = vld [vmem:[#allocation9 + $0x1558] sm:$0xff]
        %v2069 = vld [vmem:[#allocation9 + $0x1560] sm:$0xff]
        %v2070 = vld [vmem:[#allocation9 + $0x1568] sm:$0xff]
        %v2071 = vld [vmem:[#allocation9 + $0x1570] sm:$0xff]
        %v2072 = vld [vmem:[#allocation9 + $0x1578] sm:$0xff]
        %v2073 = vld [vmem:[#allocation9 + $0x1580] sm:$0xff]
        %v2074 = vld [vmem:[#allocation9 + $0x1588] sm:$0xff]
        %v2075 = vld [vmem:[#allocation9 + $0x1590] sm:$0xff]
        %v2076 = vld [vmem:[#allocation9 + $0x1598] sm:$0xff]
        %v2077 = vld [vmem:[#allocation9 + $0x15a0] sm:$0xff]
        %v2078 = vld [vmem:[#allocation9 + $0x15a8] sm:$0xff]
        %v2079 = vld [vmem:[#allocation9 + $0x15b0] sm:$0xff]
        %v2080 = vld [vmem:[#allocation9 + $0x15b8] sm:$0xff]
        %v2081 = vld [vmem:[#allocation9 + $0x15c0] sm:$0xff]
        %v2082 = vld [vmem:[#allocation9 + $0x15c8] sm:$0xff]
        %v2083 = vld [vmem:[#allocation9 + $0x15d0] sm:$0xff]
        %v2084 = vld [vmem:[#allocation9 + $0x15d8] sm:$0xff]
        %v2085 = vld [vmem:[#allocation9 + $0x15e0] sm:$0xff]
        %v2086 = vld [vmem:[#allocation9 + $0x15e8] sm:$0xff]
        %v2087 = vld [vmem:[#allocation9 + $0x15f0] sm:$0xff]
        %v2088 = vld [vmem:[#allocation9 + $0x15f8] sm:$0xff]
        %v2089 = vld [vmem:[#allocation9 + $0x1600] sm:$0xff]
        %v2090 = vld [vmem:[#allocation9 + $0x1608] sm:$0xff]
        %v2091 = vld [vmem:[#allocation9 + $0x1610] sm:$0xff]
        %v2092 = vld [vmem:[#allocation9 + $0x1618] sm:$0xff]
        %v2093 = vld [vmem:[#allocation9 + $0x1620] sm:$0xff]
        %v2094 = vld [vmem:[#allocation9 + $0x1628] sm:$0xff]
        %v2095 = vld [vmem:[#allocation9 + $0x1630] sm:$0xff]
        %v2096 = vld [vmem:[#allocation9 + $0x1638] sm:$0xff]
        %v2097 = vld [vmem:[#allocation9 + $0x1640] sm:$0xff]
        %v2098 = vld [vmem:[#allocation9 + $0x1648] sm:$0xff]
        %v2099 = vld [vmem:[#allocation9 + $0x1650] sm:$0xff]
        %v2100 = vld [vmem:[#allocation9 + $0x1658] sm:$0xff]
        %v2101 = vld [vmem:[#allocation9 + $0x1660] sm:$0xff]
        %v2102 = vld [vmem:[#allocation9 + $0x1668] sm:$0xff]
        %v2103 = vld [vmem:[#allocation9 + $0x1670] sm:$0xff]
        %v2104 = vld [vmem:[#allocation9 + $0x1678] sm:$0xff]
        %v2105 = vld [vmem:[#allocation9 + $0x1680] sm:$0xff]
        %v2106 = vld [vmem:[#allocation9 + $0x1688] sm:$0xff]
        %v2107 = vld [vmem:[#allocation9 + $0x1690] sm:$0xff]
        %v2108 = vld [vmem:[#allocation9 + $0x1698] sm:$0xff]
        %v2109 = vld [vmem:[#allocation9 + $0x16a0] sm:$0xff]
        %v2110 = vld [vmem:[#allocation9 + $0x16a8] sm:$0xff]
        %v2111 = vld [vmem:[#allocation9 + $0x16b0] sm:$0xff]
        %v2112 = vld [vmem:[#allocation9 + $0x16b8] sm:$0xff]
        %v2113 = vld [vmem:[#allocation9 + $0x16c0] sm:$0xff]
        %v2114 = vld [vmem:[#allocation9 + $0x16c8] sm:$0xff]
        %v2115 = vld [vmem:[#allocation9 + $0x16d0] sm:$0xff]
        %v2116 = vld [vmem:[#allocation9 + $0x16d8] sm:$0xff]
        %v2117 = vld [vmem:[#allocation9 + $0x16e0] sm:$0xff]
        %v2118 = vld [vmem:[#allocation9 + $0x16e8] sm:$0xff]
        %v2119 = vld [vmem:[#allocation9 + $0x16f0] sm:$0xff]
        %v2120 = vld [vmem:[#allocation9 + $0x16f8] sm:$0xff]
        %v2121 = vld [vmem:[#allocation9 + $0x1700] sm:$0xff]
        %v2122 = vld [vmem:[#allocation9 + $0x1708] sm:$0xff]
        %v2123 = vld [vmem:[#allocation9 + $0x1710] sm:$0xff]
        %v2124 = vld [vmem:[#allocation9 + $0x1718] sm:$0xff]
        %v2125 = vld [vmem:[#allocation9 + $0x1720] sm:$0xff]
        %v2126 = vld [vmem:[#allocation9 + $0x1728] sm:$0xff]
        %v2127 = vld [vmem:[#allocation9 + $0x1730] sm:$0xff]
        %v2128 = vld [vmem:[#allocation9 + $0x1738] sm:$0xff]
        %v2129 = vld [vmem:[#allocation9 + $0x1740] sm:$0xff]
        %v2130 = vld [vmem:[#allocation9 + $0x1748] sm:$0xff]
        %v2131 = vld [vmem:[#allocation9 + $0x1750] sm:$0xff]
        %v2132 = vld [vmem:[#allocation9 + $0x1758] sm:$0xff]
        %v2133 = vld [vmem:[#allocation9 + $0x1760] sm:$0xff]
        %v2134 = vld [vmem:[#allocation9 + $0x1768] sm:$0xff]
        %v2135 = vld [vmem:[#allocation9 + $0x1770] sm:$0xff]
        %v2136 = vld [vmem:[#allocation9 + $0x1778] sm:$0xff]
        %v2137 = vld [vmem:[#allocation9 + $0x1780] sm:$0xff]
        %v2138 = vld [vmem:[#allocation9 + $0x1788] sm:$0xff]
        %v2139 = vld [vmem:[#allocation9 + $0x1790] sm:$0xff]
        %v2140 = vld [vmem:[#allocation9 + $0x1798] sm:$0xff]
        %v2141 = vld [vmem:[#allocation9 + $0x17a0] sm:$0xff]
        %v2142 = vld [vmem:[#allocation9 + $0x17a8] sm:$0xff]
        %v2143 = vld [vmem:[#allocation9 + $0x17b0] sm:$0xff]
        %v2144 = vld [vmem:[#allocation9 + $0x17b8] sm:$0xff]
        %v2145 = vld [vmem:[#allocation9 + $0x17c0] sm:$0xff]
        %v2146 = vld [vmem:[#allocation9 + $0x17c8] sm:$0xff]
        %v2147 = vld [vmem:[#allocation9 + $0x17d0] sm:$0xff]
        %v2148 = vld [vmem:[#allocation9 + $0x17d8] sm:$0xff]
        %v2149 = vld [vmem:[#allocation9 + $0x17e0] sm:$0xff]
        %v2150 = vld [vmem:[#allocation9 + $0x17e8] sm:$0xff]
        %v2151 = vld [vmem:[#allocation9 + $0x17f0] sm:$0xff]
        %v2152 = vld [vmem:[#allocation9 + $0x17f8] sm:$0xff]
        %v2153 = vld [vmem:[#allocation9 + $0x1800] sm:$0xff]
        %v2154 = vld [vmem:[#allocation9 + $0x1808] sm:$0xff]
        %v2155 = vld [vmem:[#allocation9 + $0x1810] sm:$0xff]
        %v2156 = vld [vmem:[#allocation9 + $0x1818] sm:$0xff]
        %v2157 = vld [vmem:[#allocation9 + $0x1820] sm:$0xff]
        %v2158 = vld [vmem:[#allocation9 + $0x1828] sm:$0xff]
        %v2159 = vld [vmem:[#allocation9 + $0x1830] sm:$0xff]
        %v2160 = vld [vmem:[#allocation9 + $0x1838] sm:$0xff]
        %v2161 = vld [vmem:[#allocation9 + $0x1840] sm:$0xff]
        %v2162 = vld [vmem:[#allocation9 + $0x1848] sm:$0xff]
        %v2163 = vld [vmem:[#allocation9 + $0x1850] sm:$0xff]
        %v2164 = vld [vmem:[#allocation9 + $0x1858] sm:$0xff]
        %v2165 = vld [vmem:[#allocation9 + $0x1860] sm:$0xff]
        %v2166 = vld [vmem:[#allocation9 + $0x1868] sm:$0xff]
        %v2167 = vld [vmem:[#allocation9 + $0x1870] sm:$0xff]
        %v2168 = vld [vmem:[#allocation9 + $0x1878] sm:$0xff]
        %v2169 = vld [vmem:[#allocation9 + $0x1880] sm:$0xff]
        %v2170 = vld [vmem:[#allocation9 + $0x1888] sm:$0xff]
        %v2171 = vld [vmem:[#allocation9 + $0x1890] sm:$0xff]
        %v2172 = vld [vmem:[#allocation9 + $0x1898] sm:$0xff]
        %v2173 = vld [vmem:[#allocation9 + $0x18a0] sm:$0xff]
        %v2174 = vld [vmem:[#allocation9 + $0x18a8] sm:$0xff]
        %v2175 = vld [vmem:[#allocation9 + $0x18b0] sm:$0xff]
        %v2176 = vld [vmem:[#allocation9 + $0x18b8] sm:$0xff]
        %v2177 = vld [vmem:[#allocation9 + $0x18c0] sm:$0xff]
        %v2178 = vld [vmem:[#allocation9 + $0x18c8] sm:$0xff]
        %v2179 = vld [vmem:[#allocation9 + $0x18d0] sm:$0xff]
        %v2180 = vld [vmem:[#allocation9 + $0x18d8] sm:$0xff]
        %v2181 = vld [vmem:[#allocation9 + $0x18e0] sm:$0xff]
        %v2182 = vld [vmem:[#allocation9 + $0x18e8] sm:$0xff]
        %v2183 = vld [vmem:[#allocation9 + $0x18f0] sm:$0xff]
        %v2184 = vld [vmem:[#allocation9 + $0x18f8] sm:$0xff]
        %v2185 = vld [vmem:[#allocation9 + $0x1900] sm:$0xff]
        %v2186 = vld [vmem:[#allocation9 + $0x1908] sm:$0xff]
        %v2187 = vld [vmem:[#allocation9 + $0x1910] sm:$0xff]
        %v2188 = vld [vmem:[#allocation9 + $0x1918] sm:$0xff]
        %v2189 = vld [vmem:[#allocation9 + $0x1920] sm:$0xff]
        %v2190 = vld [vmem:[#allocation9 + $0x1928] sm:$0xff]
        %v2191 = vld [vmem:[#allocation9 + $0x1930] sm:$0xff]
        %v2192 = vld [vmem:[#allocation9 + $0x1938] sm:$0xff]
        %v2193 = vld [vmem:[#allocation9 + $0x1940] sm:$0xff]
        %v2194 = vld [vmem:[#allocation9 + $0x1948] sm:$0xff]
        %v2195 = vld [vmem:[#allocation9 + $0x1950] sm:$0xff]
        %v2196 = vld [vmem:[#allocation9 + $0x1958] sm:$0xff]
        %v2197 = vld [vmem:[#allocation9 + $0x1960] sm:$0xff]
        %v2198 = vld [vmem:[#allocation9 + $0x1968] sm:$0xff]
        %v2199 = vld [vmem:[#allocation9 + $0x1970] sm:$0xff]
        %v2200 = vld [vmem:[#allocation9 + $0x1978] sm:$0xff]
        %v2201 = vld [vmem:[#allocation9 + $0x1980] sm:$0xff]
        %v2202 = vld [vmem:[#allocation9 + $0x1988] sm:$0xff]
        %v2203 = vld [vmem:[#allocation9 + $0x1990] sm:$0xff]
        %v2204 = vld [vmem:[#allocation9 + $0x1998] sm:$0xff]
        %v2205 = vld [vmem:[#allocation9 + $0x19a0] sm:$0xff]
        %v2206 = vld [vmem:[#allocation9 + $0x19a8] sm:$0xff]
        %v2207 = vld [vmem:[#allocation9 + $0x19b0] sm:$0xff]
        %v2208 = vld [vmem:[#allocation9 + $0x19b8] sm:$0xff]
        %v2209 = vld [vmem:[#allocation9 + $0x19c0] sm:$0xff]
        %v2210 = vld [vmem:[#allocation9 + $0x19c8] sm:$0xff]
        %v2211 = vld [vmem:[#allocation9 + $0x19d0] sm:$0xff]
        %v2212 = vld [vmem:[#allocation9 + $0x19d8] sm:$0xff]
        %v2213 = vld [vmem:[#allocation9 + $0x19e0] sm:$0xff]
        %v2214 = vld [vmem:[#allocation9 + $0x19e8] sm:$0xff]
        %v2215 = vld [vmem:[#allocation9 + $0x19f0] sm:$0xff]
        %v2216 = vld [vmem:[#allocation9 + $0x19f8] sm:$0xff]
        %v2217 = vld [vmem:[#allocation9 + $0x1a00] sm:$0xff]
        %v2218 = vld [vmem:[#allocation9 + $0x1a08] sm:$0xff]
        %v2219 = vld [vmem:[#allocation9 + $0x1a10] sm:$0xff]
        %v2220 = vld [vmem:[#allocation9 + $0x1a18] sm:$0xff]
        %v2221 = vld [vmem:[#allocation9 + $0x1a20] sm:$0xff]
        %v2222 = vld [vmem:[#allocation9 + $0x1a28] sm:$0xff]
        %v2223 = vld [vmem:[#allocation9 + $0x1a30] sm:$0xff]
        %v2224 = vld [vmem:[#allocation9 + $0x1a38] sm:$0xff]
        %v2225 = vld [vmem:[#allocation9 + $0x1a40] sm:$0xff]
        %v2226 = vld [vmem:[#allocation9 + $0x1a48] sm:$0xff]
        %v2227 = vld [vmem:[#allocation9 + $0x1a50] sm:$0xff]
        %v2228 = vld [vmem:[#allocation9 + $0x1a58] sm:$0xff]
        %v2229 = vld [vmem:[#allocation9 + $0x1a60] sm:$0xff]
        %v2230 = vld [vmem:[#allocation9 + $0x1a68] sm:$0xff]
        %v2231 = vld [vmem:[#allocation9 + $0x1a70] sm:$0xff]
        %v2232 = vld [vmem:[#allocation9 + $0x1a78] sm:$0xff]
        %v2233 = vld [vmem:[#allocation9 + $0x1a80] sm:$0xff]
        %v2234 = vld [vmem:[#allocation9 + $0x1a88] sm:$0xff]
        %v2235 = vld [vmem:[#allocation9 + $0x1a90] sm:$0xff]
        %v2236 = vld [vmem:[#allocation9 + $0x1a98] sm:$0xff]
        %v2237 = vld [vmem:[#allocation9 + $0x1aa0] sm:$0xff]
        %v2238 = vld [vmem:[#allocation9 + $0x1aa8] sm:$0xff]
        %v2239 = vld [vmem:[#allocation9 + $0x1ab0] sm:$0xff]
        %v2240 = vld [vmem:[#allocation9 + $0x1ab8] sm:$0xff]
        %v2241 = vld [vmem:[#allocation9 + $0x1ac0] sm:$0xff]
        %v2242 = vld [vmem:[#allocation9 + $0x1ac8] sm:$0xff]
        %v2243 = vld [vmem:[#allocation9 + $0x1ad0] sm:$0xff]
        %v2244 = vld [vmem:[#allocation9 + $0x1ad8] sm:$0xff]
        %v2245 = vld [vmem:[#allocation9 + $0x1ae0] sm:$0xff]
        %v2246 = vld [vmem:[#allocation9 + $0x1ae8] sm:$0xff]
        %v2247 = vld [vmem:[#allocation9 + $0x1af0] sm:$0xff]
        %v2248 = vld [vmem:[#allocation9 + $0x1af8] sm:$0xff]
        %v2249 = vld [vmem:[#allocation9 + $0x1b00] sm:$0xff]
        %v2250 = vld [vmem:[#allocation9 + $0x1b08] sm:$0xff]
        %v2251 = vld [vmem:[#allocation9 + $0x1b10] sm:$0xff]
        %v2252 = vld [vmem:[#allocation9 + $0x1b18] sm:$0xff]
        %v2253 = vld [vmem:[#allocation9 + $0x1b20] sm:$0xff]
        %v2254 = vld [vmem:[#allocation9 + $0x1b28] sm:$0xff]
        %v2255 = vld [vmem:[#allocation9 + $0x1b30] sm:$0xff]
        %v2256 = vld [vmem:[#allocation9 + $0x1b38] sm:$0xff]
        %v2257 = vld [vmem:[#allocation9 + $0x1b40] sm:$0xff]
        %v2258 = vld [vmem:[#allocation9 + $0x1b48] sm:$0xff]
        %v2259 = vld [vmem:[#allocation9 + $0x1b50] sm:$0xff]
        %v2260 = vld [vmem:[#allocation9 + $0x1b58] sm:$0xff]
        %v2261 = vld [vmem:[#allocation9 + $0x1b60] sm:$0xff]
        %v2262 = vld [vmem:[#allocation9 + $0x1b68] sm:$0xff]
        %v2263 = vld [vmem:[#allocation9 + $0x1b70] sm:$0xff]
        %v2264 = vld [vmem:[#allocation9 + $0x1b78] sm:$0xff]
        %v2265 = vld [vmem:[#allocation9 + $0x1b80] sm:$0xff]
        %v2266 = vld [vmem:[#allocation9 + $0x1b88] sm:$0xff]
        %v2267 = vld [vmem:[#allocation9 + $0x1b90] sm:$0xff]
        %v2268 = vld [vmem:[#allocation9 + $0x1b98] sm:$0xff]
        %v2269 = vld [vmem:[#allocation9 + $0x1ba0] sm:$0xff]
        %v2270 = vld [vmem:[#allocation9 + $0x1ba8] sm:$0xff]
        %v2271 = vld [vmem:[#allocation9 + $0x1bb0] sm:$0xff]
        %v2272 = vld [vmem:[#allocation9 + $0x1bb8] sm:$0xff]
        %v2273 = vld [vmem:[#allocation9 + $0x1bc0] sm:$0xff]
        %v2274 = vld [vmem:[#allocation9 + $0x1bc8] sm:$0xff]
        %v2275 = vld [vmem:[#allocation9 + $0x1bd0] sm:$0xff]
        %v2276 = vld [vmem:[#allocation9 + $0x1bd8] sm:$0xff]
        %v2277 = vld [vmem:[#allocation9 + $0x1be0] sm:$0xff]
        %v2278 = vld [vmem:[#allocation9 + $0x1be8] sm:$0xff]
        %v2279 = vld [vmem:[#allocation9 + $0x1bf0] sm:$0xff]
        %v2280 = vld [vmem:[#allocation9 + $0x1bf8] sm:$0xff]
        %v2281 = vld [vmem:[#allocation9 + $0x1c00] sm:$0xff]
        %v2282 = vld [vmem:[#allocation9 + $0x1c08] sm:$0xff]
        %v2283 = vld [vmem:[#allocation9 + $0x1c10] sm:$0xff]
        %v2284 = vld [vmem:[#allocation9 + $0x1c18] sm:$0xff]
        %v2285 = vld [vmem:[#allocation9 + $0x1c20] sm:$0xff]
        %v2286 = vld [vmem:[#allocation9 + $0x1c28] sm:$0xff]
        %v2287 = vld [vmem:[#allocation9 + $0x1c30] sm:$0xff]
        %v2288 = vld [vmem:[#allocation9 + $0x1c38] sm:$0xff]
        %v2289 = vld [vmem:[#allocation9 + $0x1c40] sm:$0xff]
        %v2290 = vld [vmem:[#allocation9 + $0x1c48] sm:$0xff]
        %v2291 = vld [vmem:[#allocation9 + $0x1c50] sm:$0xff]
        %v2292 = vld [vmem:[#allocation9 + $0x1c58] sm:$0xff]
        %v2293 = vld [vmem:[#allocation9 + $0x1c60] sm:$0xff]
        %v2294 = vld [vmem:[#allocation9 + $0x1c68] sm:$0xff]
        %v2295 = vld [vmem:[#allocation9 + $0x1c70] sm:$0xff]
        %v2296 = vld [vmem:[#allocation9 + $0x1c78] sm:$0xff]
        %v2297 = vld [vmem:[#allocation9 + $0x1c80] sm:$0xff]
        %v2298 = vld [vmem:[#allocation9 + $0x1c88] sm:$0xff]
        %v2299 = vld [vmem:[#allocation9 + $0x1c90] sm:$0xff]
        %v2300 = vld [vmem:[#allocation9 + $0x1c98] sm:$0xff]
        %v2301 = vld [vmem:[#allocation9 + $0x1ca0] sm:$0xff]
        %v2302 = vld [vmem:[#allocation9 + $0x1ca8] sm:$0xff]
        %v2303 = vld [vmem:[#allocation9 + $0x1cb0] sm:$0xff]
        %v2304 = vld [vmem:[#allocation9 + $0x1cb8] sm:$0xff]
        %v2305 = vld [vmem:[#allocation9 + $0x1cc0] sm:$0xff]
        %v2306 = vld [vmem:[#allocation9 + $0x1cc8] sm:$0xff]
        %v2307 = vld [vmem:[#allocation9 + $0x1cd0] sm:$0xff]
        %v2308 = vld [vmem:[#allocation9 + $0x1cd8] sm:$0xff]
        %v2309 = vld [vmem:[#allocation9 + $0x1ce0] sm:$0xff]
        %v2310 = vld [vmem:[#allocation9 + $0x1ce8] sm:$0xff]
        %v2311 = vld [vmem:[#allocation9 + $0x1cf0] sm:$0xff]
        %v2312 = vld [vmem:[#allocation9 + $0x1cf8] sm:$0xff]
        %v2313 = vld [vmem:[#allocation9 + $0x1d00] sm:$0xff]
        %v2314 = vld [vmem:[#allocation9 + $0x1d08] sm:$0xff]
        %v2315 = vld [vmem:[#allocation9 + $0x1d10] sm:$0xff]
        %v2316 = vld [vmem:[#allocation9 + $0x1d18] sm:$0xff]
        %v2317 = vld [vmem:[#allocation9 + $0x1d20] sm:$0xff]
        %v2318 = vld [vmem:[#allocation9 + $0x1d28] sm:$0xff]
        %v2319 = vld [vmem:[#allocation9 + $0x1d30] sm:$0xff]
        %v2320 = vld [vmem:[#allocation9 + $0x1d38] sm:$0xff]
        %v2321 = vld [vmem:[#allocation9 + $0x1d40] sm:$0xff]
        %v2322 = vld [vmem:[#allocation9 + $0x1d48] sm:$0xff]
        %v2323 = vld [vmem:[#allocation9 + $0x1d50] sm:$0xff]
        %v2324 = vld [vmem:[#allocation9 + $0x1d58] sm:$0xff]
        %v2325 = vld [vmem:[#allocation9 + $0x1d60] sm:$0xff]
        %v2326 = vld [vmem:[#allocation9 + $0x1d68] sm:$0xff]
        %v2327 = vld [vmem:[#allocation9 + $0x1d70] sm:$0xff]
        %v2328 = vld [vmem:[#allocation9 + $0x1d78] sm:$0xff]
        %v2329 = vld [vmem:[#allocation9 + $0x1d80] sm:$0xff]
        %v2330 = vld [vmem:[#allocation9 + $0x1d88] sm:$0xff]
        %v2331 = vld [vmem:[#allocation9 + $0x1d90] sm:$0xff]
        %v2332 = vld [vmem:[#allocation9 + $0x1d98] sm:$0xff]
        %v2333 = vld [vmem:[#allocation9 + $0x1da0] sm:$0xff]
        %v2334 = vld [vmem:[#allocation9 + $0x1da8] sm:$0xff]
        %v2335 = vld [vmem:[#allocation9 + $0x1db0] sm:$0xff]
        %v2336 = vld [vmem:[#allocation9 + $0x1db8] sm:$0xff]
        %v2337 = vld [vmem:[#allocation9 + $0x1dc0] sm:$0xff]
        %v2338 = vld [vmem:[#allocation9 + $0x1dc8] sm:$0xff]
        %v2339 = vld [vmem:[#allocation9 + $0x1dd0] sm:$0xff]
        %v2340 = vld [vmem:[#allocation9 + $0x1dd8] sm:$0xff]
        %v2341 = vld [vmem:[#allocation9 + $0x1de0] sm:$0xff]
        %v2342 = vld [vmem:[#allocation9 + $0x1de8] sm:$0xff]
        %v2343 = vld [vmem:[#allocation9 + $0x1df0] sm:$0xff]
        %v2344 = vld [vmem:[#allocation9 + $0x1df8] sm:$0xff]
        %v2345 = vld [vmem:[#allocation9 + $0x1e00] sm:$0xff]
        %v2346 = vld [vmem:[#allocation9 + $0x1e08] sm:$0xff]
        %v2347 = vld [vmem:[#allocation9 + $0x1e10] sm:$0xff]
        %v2348 = vld [vmem:[#allocation9 + $0x1e18] sm:$0xff]
        %v2349 = vld [vmem:[#allocation9 + $0x1e20] sm:$0xff]
        %v2350 = vld [vmem:[#allocation9 + $0x1e28] sm:$0xff]
        %v2351 = vld [vmem:[#allocation9 + $0x1e30] sm:$0xff]
        %v2352 = vld [vmem:[#allocation9 + $0x1e38] sm:$0xff]
        %v2353 = vld [vmem:[#allocation9 + $0x1e40] sm:$0xff]
        %v2354 = vld [vmem:[#allocation9 + $0x1e48] sm:$0xff]
        %v2355 = vld [vmem:[#allocation9 + $0x1e50] sm:$0xff]
        %v2356 = vld [vmem:[#allocation9 + $0x1e58] sm:$0xff]
        %v2357 = vld [vmem:[#allocation9 + $0x1e60] sm:$0xff]
        %v2358 = vld [vmem:[#allocation9 + $0x1e68] sm:$0xff]
        %v2359 = vld [vmem:[#allocation9 + $0x1e70] sm:$0xff]
        %v2360 = vld [vmem:[#allocation9 + $0x1e78] sm:$0xff]
        %v2361 = vld [vmem:[#allocation9 + $0x1e80] sm:$0xff]
        %v2362 = vld [vmem:[#allocation9 + $0x1e88] sm:$0xff]
        %v2363 = vld [vmem:[#allocation9 + $0x1e90] sm:$0xff]
        %v2364 = vld [vmem:[#allocation9 + $0x1e98] sm:$0xff]
        %v2365 = vld [vmem:[#allocation9 + $0x1ea0] sm:$0xff]
        %v2366 = vld [vmem:[#allocation9 + $0x1ea8] sm:$0xff]
        %v2367 = vld [vmem:[#allocation9 + $0x1eb0] sm:$0xff]
        %v2368 = vld [vmem:[#allocation9 + $0x1eb8] sm:$0xff]
        %v2369 = vld [vmem:[#allocation9 + $0x1ec0] sm:$0xff]
        %v2370 = vld [vmem:[#allocation9 + $0x1ec8] sm:$0xff]
        %v2371 = vld [vmem:[#allocation9 + $0x1ed0] sm:$0xff]
        %v2372 = vld [vmem:[#allocation9 + $0x1ed8] sm:$0xff]
        %v2373 = vld [vmem:[#allocation9 + $0x1ee0] sm:$0xff]
        %v2374 = vld [vmem:[#allocation9 + $0x1ee8] sm:$0xff]
        %v2375 = vld [vmem:[#allocation9 + $0x1ef0] sm:$0xff]
        %v2376 = vld [vmem:[#allocation9 + $0x1ef8] sm:$0xff]
        %v2377 = vld [vmem:[#allocation9 + $0x1f00] sm:$0xff]
        %v2378 = vld [vmem:[#allocation9 + $0x1f08] sm:$0xff]
        %v2379 = vld [vmem:[#allocation9 + $0x1f10] sm:$0xff]
        %v2380 = vld [vmem:[#allocation9 + $0x1f18] sm:$0xff]
        %v2381 = vld [vmem:[#allocation9 + $0x1f20] sm:$0xff]
        %v2382 = vld [vmem:[#allocation9 + $0x1f28] sm:$0xff]
        %v2383 = vld [vmem:[#allocation9 + $0x1f30] sm:$0xff]
        %v2384 = vld [vmem:[#allocation9 + $0x1f38] sm:$0xff]
        %v2385 = vld [vmem:[#allocation9 + $0x1f40] sm:$0xff]
        %v2386 = vld [vmem:[#allocation9 + $0x1f48] sm:$0xff]
        %v2387 = vld [vmem:[#allocation9 + $0x1f50] sm:$0xff]
        %v2388 = vld [vmem:[#allocation9 + $0x1f58] sm:$0xff]
        %v2389 = vld [vmem:[#allocation9 + $0x1f60] sm:$0xff]
        %v2390 = vld [vmem:[#allocation9 + $0x1f68] sm:$0xff]
        %v2391 = vld [vmem:[#allocation9 + $0x1f70] sm:$0xff]
        %v2392 = vld [vmem:[#allocation9 + $0x1f78] sm:$0xff]
        %v2393 = vld [vmem:[#allocation9 + $0x1f80] sm:$0xff]
        %v2394 = vld [vmem:[#allocation9 + $0x1f88] sm:$0xff]
        %v2395 = vld [vmem:[#allocation9 + $0x1f90] sm:$0xff]
        %v2396 = vld [vmem:[#allocation9 + $0x1f98] sm:$0xff]
        %v2397 = vld [vmem:[#allocation9 + $0x1fa0] sm:$0xff]
        %v2398 = vld [vmem:[#allocation9 + $0x1fa8] sm:$0xff]
        %v2399 = vld [vmem:[#allocation9 + $0x1fb0] sm:$0xff]
        %v2400 = vld [vmem:[#allocation9 + $0x1fb8] sm:$0xff]
        %v2401 = vld [vmem:[#allocation9 + $0x1fc0] sm:$0xff]
        %v2402 = vld [vmem:[#allocation9 + $0x1fc8] sm:$0xff]
        %v2403 = vld [vmem:[#allocation9 + $0x1fd0] sm:$0xff]
        %v2404 = vld [vmem:[#allocation9 + $0x1fd8] sm:$0xff]
        %v2405 = vld [vmem:[#allocation9 + $0x1fe0] sm:$0xff]
        %v2406 = vld [vmem:[#allocation9 + $0x1fe8] sm:$0xff]
        %v2407 = vld [vmem:[#allocation9 + $0x1ff0] sm:$0xff]
        %v2408 = vld [vmem:[#allocation9 + $0x1ff8] sm:$0xff]
        %v2409 = vld [vmem:[%s296] sm:$0xff]
        %v2410 = vld [vmem:[%s296 + $0x8] sm:$0xff]
        %v2411 = vld [vmem:[%s296 + $0x10] sm:$0xff]
        %v2412 = vld [vmem:[%s296 + $0x18] sm:$0xff]
        %v2413 = vld [vmem:[%s296 + $0x20] sm:$0xff]
        %v2414 = vld [vmem:[%s296 + $0x28] sm:$0xff]
        %v2415 = vld [vmem:[%s296 + $0x30] sm:$0xff]
        %v2416 = vld [vmem:[%s296 + $0x38] sm:$0xff]
        %v2417 = vld [vmem:[#allocation8] sm:$0xff]
        %v2418 = vld [vmem:[#allocation8 + $0x8] sm:$0xff]
        %v2421 = vperm.slane %v2417, 0
        %v2422 = vperm.slane %v2417, 1
        %v2423 = vperm.slane %v2417, 2
        %v2424 = vperm.slane %v2417, 3
        %v2425 = vperm.slane %v2417, 4
        %v2426 = vperm.slane %v2417, 5
        %v2427 = vperm.slane %v2417, 6
        %v2428 = vperm.slane %v2417, 7
        %v2429 = vperm.slane %v2418, 0
        %v2430 = vperm.slane %v2418, 1
        %v2431 = vperm.slane %v2418, 2
        %v2432 = vperm.slane %v2418, 3
        %v2433 = vperm.slane %v2418, 4
        %v2434 = vperm.slane %v2418, 5
        %v2435 = vperm.slane %v2418, 6
        %v2436 = vperm.slane %v2418, 7
        %2453 = vmatpush.msra.mxu0 %v601
        %2454 = vmatpush.msra.mxu0 %v585
        %2455 = vmatpush.msra.mxu0 %v569
        %2456 = vmatpush.msra.mxu0 %v553
        %2457 = vmatpush.msra.mxu0 %v537
        %2458 = vmatpush.msra.mxu0 %v521
        %2459 = vmatpush.msra.mxu0 %v505
        %2460 = vmatpush.msra.mxu0 %v489
        %2461 = vmatpush.msra.mxu0 %v473
        %2462 = vmatpush.msra.mxu0 %v457
        %2463 = vmatpush.msra.mxu0 %v441
        %2464 = vmatpush.msra.mxu0 %v425
        %2465 = vmatpush.msra.mxu0 %v409
        %2466 = vmatpush.msra.mxu0 %v393
        %2467 = vmatpush.msra.mxu0 %v377
        %2468 = vmatpush.msra.mxu0 %v361
        %2469 = vmatmul.f32.gmra.mxu0 %v2409
        %v2470 = vpop.f32.mrf.mxu0
        %v2471 = vadd.f32 %v2421, %v2470
        %2472 = vmatmul.f32.gmra.mxu0 %v2413
        %v2473 = vpop.f32.mrf.mxu0
        %v2474 = vadd.f32 %v2421, %v2473
        %2475 = vdwg.mxu0
        %2476 = vmatpush.msra.mxu0 %v857
        %2477 = vmatpush.msra.mxu0 %v841
        %2478 = vmatpush.msra.mxu0 %v825
        %2479 = vmatpush.msra.mxu0 %v809
        %2480 = vmatpush.msra.mxu0 %v793
        %2481 = vmatpush.msra.mxu0 %v777
        %2482 = vmatpush.msra.mxu0 %v761
        %2483 = vmatpush.msra.mxu0 %v745
        %2484 = vmatpush.msra.mxu0 %v729
        %2485 = vmatpush.msra.mxu0 %v713
        %2486 = vmatpush.msra.mxu0 %v697
        %2487 = vmatpush.msra.mxu0 %v681
        %2488 = vmatpush.msra.mxu0 %v665
        %2489 = vmatpush.msra.mxu0 %v649
        %2490 = vmatpush.msra.mxu0 %v633
        %2491 = vmatpush.msra.mxu0 %v617
        %2492 = vmatmul.f32.gmra.mxu0 %v2410
        %v2493 = vpop.f32.mrf.mxu0
        %v2494 = vadd.f32 %v2471, %v2493
        %2495 = vmatmul.f32.gmra.mxu0 %v2414
        %v2496 = vpop.f32.mrf.mxu0
        %v2497 = vadd.f32 %v2474, %v2496
        %2498 = vdwg.mxu0
        %2499 = vmatpush.msra.mxu0 %v1113
        %2500 = vmatpush.msra.mxu0 %v1097
        %2501 = vmatpush.msra.mxu0 %v1081
        %2502 = vmatpush.msra.mxu0 %v1065
        %2503 = vmatpush.msra.mxu0 %v1049
        %2504 = vmatpush.msra.mxu0 %v1033
        %2505 = vmatpush.msra.mxu0 %v1017
        %2506 = vmatpush.msra.mxu0 %v1001
        %2507 = vmatpush.msra.mxu0 %v985
        %2508 = vmatpush.msra.mxu0 %v969
        %2509 = vmatpush.msra.mxu0 %v953
        %2510 = vmatpush.msra.mxu0 %v937
        %2511 = vmatpush.msra.mxu0 %v921
        %2512 = vmatpush.msra.mxu0 %v905
        %2513 = vmatpush.msra.mxu0 %v889
        %2514 = vmatpush.msra.mxu0 %v873
        %2515 = vmatmul.f32.gmra.mxu0 %v2411
        %v2516 = vpop.f32.mrf.mxu0
        %v2517 = vadd.f32 %v2494, %v2516
        %2518 = vmatmul.f32.gmra.mxu0 %v2415
        %v2519 = vpop.f32.mrf.mxu0
        %v2520 = vadd.f32 %v2497, %v2519
        %2521 = vdwg.mxu0
        %2522 = vmatpush.msra.mxu0 %v1369
        %2523 = vmatpush.msra.mxu0 %v1353
        %2524 = vmatpush.msra.mxu0 %v1337
        %2525 = vmatpush.msra.mxu0 %v1321
        %2526 = vmatpush.msra.mxu0 %v1305
        %2527 = vmatpush.msra.mxu0 %v1289
        %2528 = vmatpush.msra.mxu0 %v1273
        %2529 = vmatpush.msra.mxu0 %v1257
        %2530 = vmatpush.msra.mxu0 %v1241
        %2531 = vmatpush.msra.mxu0 %v1225
        %2532 = vmatpush.msra.mxu0 %v1209
        %2533 = vmatpush.msra.mxu0 %v1193
        %2534 = vmatpush.msra.mxu0 %v1177
        %2535 = vmatpush.msra.mxu0 %v1161
        %2536 = vmatpush.msra.mxu0 %v1145
        %2537 = vmatpush.msra.mxu0 %v1129
        %2538 = vmatmul.f32.gmra.mxu0 %v2412
        %v2539 = vpop.f32.mrf.mxu0
        %v2540 = vadd.f32 %v2517, %v2539
        %2541 = vmatmul.f32.gmra.mxu0 %v2416
        %v2542 = vpop.f32.mrf.mxu0
        %v2543 = vadd.f32 %v2520, %v2542
        %2544 = vdwg.mxu0
        %2545 = vmatpush.msra.mxu0 %v602
        %2546 = vmatpush.msra.mxu0 %v586
        %2547 = vmatpush.msra.mxu0 %v570
        %2548 = vmatpush.msra.mxu0 %v554
        %2549 = vmatpush.msra.mxu0 %v538
        %2550 = vmatpush.msra.mxu0 %v522
        %2551 = vmatpush.msra.mxu0 %v506
        %2552 = vmatpush.msra.mxu0 %v490
        %2553 = vmatpush.msra.mxu0 %v474
        %2554 = vmatpush.msra.mxu0 %v458
        %2555 = vmatpush.msra.mxu0 %v442
        %2556 = vmatpush.msra.mxu0 %v426
        %2557 = vmatpush.msra.mxu0 %v410
        %2558 = vmatpush.msra.mxu0 %v394
        %2559 = vmatpush.msra.mxu0 %v378
        %2560 = vmatpush.msra.mxu0 %v362
        %2561 = vmatmul.f32.gmra.mxu0 %v2409
        %v2562 = vpop.f32.mrf.mxu0
        %v2563 = vadd.f32 %v2422, %v2562
        %2564 = vmatmul.f32.gmra.mxu0 %v2413
        %v2565 = vpop.f32.mrf.mxu0
        %v2566 = vadd.f32 %v2422, %v2565
        %2567 = vdwg.mxu0
        %2568 = vmatpush.msra.mxu0 %v858
        %2569 = vmatpush.msra.mxu0 %v842
        %2570 = vmatpush.msra.mxu0 %v826
        %2571 = vmatpush.msra.mxu0 %v810
        %2572 = vmatpush.msra.mxu0 %v794
        %2573 = vmatpush.msra.mxu0 %v778
        %2574 = vmatpush.msra.mxu0 %v762
        %2575 = vmatpush.msra.mxu0 %v746
        %2576 = vmatpush.msra.mxu0 %v730
        %2577 = vmatpush.msra.mxu0 %v714
        %2578 = vmatpush.msra.mxu0 %v698
        %2579 = vmatpush.msra.mxu0 %v682
        %2580 = vmatpush.msra.mxu0 %v666
        %2581 = vmatpush.msra.mxu0 %v650
        %2582 = vmatpush.msra.mxu0 %v634
        %2583 = vmatpush.msra.mxu0 %v618
        %2584 = vmatmul.f32.gmra.mxu0 %v2410
        %v2585 = vpop.f32.mrf.mxu0
        %v2586 = vadd.f32 %v2563, %v2585
        %2587 = vmatmul.f32.gmra.mxu0 %v2414
        %v2588 = vpop.f32.mrf.mxu0
        %v2589 = vadd.f32 %v2566, %v2588
        %2590 = vdwg.mxu0
        %2591 = vmatpush.msra.mxu0 %v1114
        %2592 = vmatpush.msra.mxu0 %v1098
        %2593 = vmatpush.msra.mxu0 %v1082
        %2594 = vmatpush.msra.mxu0 %v1066
        %2595 = vmatpush.msra.mxu0 %v1050
        %2596 = vmatpush.msra.mxu0 %v1034
        %2597 = vmatpush.msra.mxu0 %v1018
        %2598 = vmatpush.msra.mxu0 %v1002
        %2599 = vmatpush.msra.mxu0 %v986
        %2600 = vmatpush.msra.mxu0 %v970
        %2601 = vmatpush.msra.mxu0 %v954
        %2602 = vmatpush.msra.mxu0 %v938
        %2603 = vmatpush.msra.mxu0 %v922
        %2604 = vmatpush.msra.mxu0 %v906
        %2605 = vmatpush.msra.mxu0 %v890
        %2606 = vmatpush.msra.mxu0 %v874
        %2607 = vmatmul.f32.gmra.mxu0 %v2411
        %v2608 = vpop.f32.mrf.mxu0
        %v2609 = vadd.f32 %v2586, %v2608
        %2610 = vmatmul.f32.gmra.mxu0 %v2415
        %v2611 = vpop.f32.mrf.mxu0
        %v2612 = vadd.f32 %v2589, %v2611
        %2613 = vdwg.mxu0
        %2614 = vmatpush.msra.mxu0 %v1370
        %2615 = vmatpush.msra.mxu0 %v1354
        %2616 = vmatpush.msra.mxu0 %v1338
        %2617 = vmatpush.msra.mxu0 %v1322
        %2618 = vmatpush.msra.mxu0 %v1306
        %2619 = vmatpush.msra.mxu0 %v1290
        %2620 = vmatpush.msra.mxu0 %v1274
        %2621 = vmatpush.msra.mxu0 %v1258
        %2622 = vmatpush.msra.mxu0 %v1242
        %2623 = vmatpush.msra.mxu0 %v1226
        %2624 = vmatpush.msra.mxu0 %v1210
        %2625 = vmatpush.msra.mxu0 %v1194
        %2626 = vmatpush.msra.mxu0 %v1178
        %2627 = vmatpush.msra.mxu0 %v1162
        %2628 = vmatpush.msra.mxu0 %v1146
        %2629 = vmatpush.msra.mxu0 %v1130
        %2630 = vmatmul.f32.gmra.mxu0 %v2412
        %v2631 = vpop.f32.mrf.mxu0
        %v2632 = vadd.f32 %v2609, %v2631
        %2633 = vmatmul.f32.gmra.mxu0 %v2416
        %v2634 = vpop.f32.mrf.mxu0
        %v2635 = vadd.f32 %v2612, %v2634
        %2636 = vdwg.mxu0
        %2637 = vmatpush.msra.mxu0 %v603
        %2638 = vmatpush.msra.mxu0 %v587
        %2639 = vmatpush.msra.mxu0 %v571
        %2640 = vmatpush.msra.mxu0 %v555
        %2641 = vmatpush.msra.mxu0 %v539
        %2642 = vmatpush.msra.mxu0 %v523
        %2643 = vmatpush.msra.mxu0 %v507
        %2644 = vmatpush.msra.mxu0 %v491
        %2645 = vmatpush.msra.mxu0 %v475
        %2646 = vmatpush.msra.mxu0 %v459
        %2647 = vmatpush.msra.mxu0 %v443
        %2648 = vmatpush.msra.mxu0 %v427
        %2649 = vmatpush.msra.mxu0 %v411
        %2650 = vmatpush.msra.mxu0 %v395
        %2651 = vmatpush.msra.mxu0 %v379
        %2652 = vmatpush.msra.mxu0 %v363
        %2653 = vmatmul.f32.gmra.mxu0 %v2409
        %v2654 = vpop.f32.mrf.mxu0
        %v2655 = vadd.f32 %v2423, %v2654
        %2656 = vmatmul.f32.gmra.mxu0 %v2413
        %v2657 = vpop.f32.mrf.mxu0
        %v2658 = vadd.f32 %v2423, %v2657
        %2659 = vdwg.mxu0
        %2660 = vmatpush.msra.mxu0 %v859
        %2661 = vmatpush.msra.mxu0 %v843
        %2662 = vmatpush.msra.mxu0 %v827
        %2663 = vmatpush.msra.mxu0 %v811
        %2664 = vmatpush.msra.mxu0 %v795
        %2665 = vmatpush.msra.mxu0 %v779
        %2666 = vmatpush.msra.mxu0 %v763
        %2667 = vmatpush.msra.mxu0 %v747
        %2668 = vmatpush.msra.mxu0 %v731
        %2669 = vmatpush.msra.mxu0 %v715
        %2670 = vmatpush.msra.mxu0 %v699
        %2671 = vmatpush.msra.mxu0 %v683
        %2672 = vmatpush.msra.mxu0 %v667
        %2673 = vmatpush.msra.mxu0 %v651
        %2674 = vmatpush.msra.mxu0 %v635
        %2675 = vmatpush.msra.mxu0 %v619
        %2676 = vmatmul.f32.gmra.mxu0 %v2410
        %v2677 = vpop.f32.mrf.mxu0
        %v2678 = vadd.f32 %v2655, %v2677
        %2679 = vmatmul.f32.gmra.mxu0 %v2414
        %v2680 = vpop.f32.mrf.mxu0
        %v2681 = vadd.f32 %v2658, %v2680
        %2682 = vdwg.mxu0
        %2683 = vmatpush.msra.mxu0 %v1115
        %2684 = vmatpush.msra.mxu0 %v1099
        %2685 = vmatpush.msra.mxu0 %v1083
        %2686 = vmatpush.msra.mxu0 %v1067
        %2687 = vmatpush.msra.mxu0 %v1051
        %2688 = vmatpush.msra.mxu0 %v1035
        %2689 = vmatpush.msra.mxu0 %v1019
        %2690 = vmatpush.msra.mxu0 %v1003
        %2691 = vmatpush.msra.mxu0 %v987
        %2692 = vmatpush.msra.mxu0 %v971
        %2693 = vmatpush.msra.mxu0 %v955
        %2694 = vmatpush.msra.mxu0 %v939
        %2695 = vmatpush.msra.mxu0 %v923
        %2696 = vmatpush.msra.mxu0 %v907
        %2697 = vmatpush.msra.mxu0 %v891
        %2698 = vmatpush.msra.mxu0 %v875
        %2699 = vmatmul.f32.gmra.mxu0 %v2411
        %v2700 = vpop.f32.mrf.mxu0
        %v2701 = vadd.f32 %v2678, %v2700
        %2702 = vmatmul.f32.gmra.mxu0 %v2415
        %v2703 = vpop.f32.mrf.mxu0
        %v2704 = vadd.f32 %v2681, %v2703
        %2705 = vdwg.mxu0
        %2706 = vmatpush.msra.mxu0 %v1371
        %2707 = vmatpush.msra.mxu0 %v1355
        %2708 = vmatpush.msra.mxu0 %v1339
        %2709 = vmatpush.msra.mxu0 %v1323
        %2710 = vmatpush.msra.mxu0 %v1307
        %2711 = vmatpush.msra.mxu0 %v1291
        %2712 = vmatpush.msra.mxu0 %v1275
        %2713 = vmatpush.msra.mxu0 %v1259
        %2714 = vmatpush.msra.mxu0 %v1243
        %2715 = vmatpush.msra.mxu0 %v1227
        %2716 = vmatpush.msra.mxu0 %v1211
        %2717 = vmatpush.msra.mxu0 %v1195
        %2718 = vmatpush.msra.mxu0 %v1179
        %2719 = vmatpush.msra.mxu0 %v1163
        %2720 = vmatpush.msra.mxu0 %v1147
        %2721 = vmatpush.msra.mxu0 %v1131
        %2722 = vmatmul.f32.gmra.mxu0 %v2412
        %v2723 = vpop.f32.mrf.mxu0
        %v2724 = vadd.f32 %v2701, %v2723
        %2725 = vmatmul.f32.gmra.mxu0 %v2416
        %v2726 = vpop.f32.mrf.mxu0
        %v2727 = vadd.f32 %v2704, %v2726
        %2728 = vdwg.mxu0
        %2729 = vmatpush.msra.mxu0 %v604
        %2730 = vmatpush.msra.mxu0 %v588
        %2731 = vmatpush.msra.mxu0 %v572
        %2732 = vmatpush.msra.mxu0 %v556
        %2733 = vmatpush.msra.mxu0 %v540
        %2734 = vmatpush.msra.mxu0 %v524
        %2735 = vmatpush.msra.mxu0 %v508
        %2736 = vmatpush.msra.mxu0 %v492
        %2737 = vmatpush.msra.mxu0 %v476
        %2738 = vmatpush.msra.mxu0 %v460
        %2739 = vmatpush.msra.mxu0 %v444
        %2740 = vmatpush.msra.mxu0 %v428
        %2741 = vmatpush.msra.mxu0 %v412
        %2742 = vmatpush.msra.mxu0 %v396
        %2743 = vmatpush.msra.mxu0 %v380
        %2744 = vmatpush.msra.mxu0 %v364
        %2745 = vmatmul.f32.gmra.mxu0 %v2409
        %v2746 = vpop.f32.mrf.mxu0
        %v2747 = vadd.f32 %v2424, %v2746
        %2748 = vmatmul.f32.gmra.mxu0 %v2413
        %v2749 = vpop.f32.mrf.mxu0
        %v2750 = vadd.f32 %v2424, %v2749
        %2751 = vdwg.mxu0
        %2752 = vmatpush.msra.mxu0 %v860
        %2753 = vmatpush.msra.mxu0 %v844
        %2754 = vmatpush.msra.mxu0 %v828
        %2755 = vmatpush.msra.mxu0 %v812
        %2756 = vmatpush.msra.mxu0 %v796
        %2757 = vmatpush.msra.mxu0 %v780
        %2758 = vmatpush.msra.mxu0 %v764
        %2759 = vmatpush.msra.mxu0 %v748
        %2760 = vmatpush.msra.mxu0 %v732
        %2761 = vmatpush.msra.mxu0 %v716
        %2762 = vmatpush.msra.mxu0 %v700
        %2763 = vmatpush.msra.mxu0 %v684
        %2764 = vmatpush.msra.mxu0 %v668
        %2765 = vmatpush.msra.mxu0 %v652
        %2766 = vmatpush.msra.mxu0 %v636
        %2767 = vmatpush.msra.mxu0 %v620
        %2768 = vmatmul.f32.gmra.mxu0 %v2410
        %v2769 = vpop.f32.mrf.mxu0
        %v2770 = vadd.f32 %v2747, %v2769
        %2771 = vmatmul.f32.gmra.mxu0 %v2414
        %v2772 = vpop.f32.mrf.mxu0
        %v2773 = vadd.f32 %v2750, %v2772
        %2774 = vdwg.mxu0
        %2775 = vmatpush.msra.mxu0 %v1116
        %2776 = vmatpush.msra.mxu0 %v1100
        %2777 = vmatpush.msra.mxu0 %v1084
        %2778 = vmatpush.msra.mxu0 %v1068
        %2779 = vmatpush.msra.mxu0 %v1052
        %2780 = vmatpush.msra.mxu0 %v1036
        %2781 = vmatpush.msra.mxu0 %v1020
        %2782 = vmatpush.msra.mxu0 %v1004
        %2783 = vmatpush.msra.mxu0 %v988
        %2784 = vmatpush.msra.mxu0 %v972
        %2785 = vmatpush.msra.mxu0 %v956
        %2786 = vmatpush.msra.mxu0 %v940
        %2787 = vmatpush.msra.mxu0 %v924
        %2788 = vmatpush.msra.mxu0 %v908
        %2789 = vmatpush.msra.mxu0 %v892
        %2790 = vmatpush.msra.mxu0 %v876
        %2791 = vmatmul.f32.gmra.mxu0 %v2411
        %v2792 = vpop.f32.mrf.mxu0
        %v2793 = vadd.f32 %v2770, %v2792
        %2794 = vmatmul.f32.gmra.mxu0 %v2415
        %v2795 = vpop.f32.mrf.mxu0
        %v2796 = vadd.f32 %v2773, %v2795
        %2797 = vdwg.mxu0
        %2798 = vmatpush.msra.mxu0 %v1372
        %2799 = vmatpush.msra.mxu0 %v1356
        %2800 = vmatpush.msra.mxu0 %v1340
        %2801 = vmatpush.msra.mxu0 %v1324
        %2802 = vmatpush.msra.mxu0 %v1308
        %2803 = vmatpush.msra.mxu0 %v1292
        %2804 = vmatpush.msra.mxu0 %v1276
        %2805 = vmatpush.msra.mxu0 %v1260
        %2806 = vmatpush.msra.mxu0 %v1244
        %2807 = vmatpush.msra.mxu0 %v1228
        %2808 = vmatpush.msra.mxu0 %v1212
        %2809 = vmatpush.msra.mxu0 %v1196
        %2810 = vmatpush.msra.mxu0 %v1180
        %2811 = vmatpush.msra.mxu0 %v1164
        %2812 = vmatpush.msra.mxu0 %v1148
        %2813 = vmatpush.msra.mxu0 %v1132
        %2814 = vmatmul.f32.gmra.mxu0 %v2412
        %v2815 = vpop.f32.mrf.mxu0
        %v2816 = vadd.f32 %v2793, %v2815
        %2817 = vmatmul.f32.gmra.mxu0 %v2416
        %v2818 = vpop.f32.mrf.mxu0
        %v2819 = vadd.f32 %v2796, %v2818
        %2820 = vdwg.mxu0
        %2821 = vmatpush.msra.mxu0 %v605
        %2822 = vmatpush.msra.mxu0 %v589
        %2823 = vmatpush.msra.mxu0 %v573
        %2824 = vmatpush.msra.mxu0 %v557
        %2825 = vmatpush.msra.mxu0 %v541
        %2826 = vmatpush.msra.mxu0 %v525
        %2827 = vmatpush.msra.mxu0 %v509
        %2828 = vmatpush.msra.mxu0 %v493
        %2829 = vmatpush.msra.mxu0 %v477
        %2830 = vmatpush.msra.mxu0 %v461
        %2831 = vmatpush.msra.mxu0 %v445
        %2832 = vmatpush.msra.mxu0 %v429
        %2833 = vmatpush.msra.mxu0 %v413
        %2834 = vmatpush.msra.mxu0 %v397
        %2835 = vmatpush.msra.mxu0 %v381
        %2836 = vmatpush.msra.mxu0 %v365
        %2837 = vmatmul.f32.gmra.mxu0 %v2409
        %v2838 = vpop.f32.mrf.mxu0
        %v2839 = vadd.f32 %v2425, %v2838
        %2840 = vmatmul.f32.gmra.mxu0 %v2413
        %v2841 = vpop.f32.mrf.mxu0
        %v2842 = vadd.f32 %v2425, %v2841
        %2843 = vdwg.mxu0
        %2844 = vmatpush.msra.mxu0 %v861
        %2845 = vmatpush.msra.mxu0 %v845
        %2846 = vmatpush.msra.mxu0 %v829
        %2847 = vmatpush.msra.mxu0 %v813
        %2848 = vmatpush.msra.mxu0 %v797
        %2849 = vmatpush.msra.mxu0 %v781
        %2850 = vmatpush.msra.mxu0 %v765
        %2851 = vmatpush.msra.mxu0 %v749
        %2852 = vmatpush.msra.mxu0 %v733
        %2853 = vmatpush.msra.mxu0 %v717
        %2854 = vmatpush.msra.mxu0 %v701
        %2855 = vmatpush.msra.mxu0 %v685
        %2856 = vmatpush.msra.mxu0 %v669
        %2857 = vmatpush.msra.mxu0 %v653
        %2858 = vmatpush.msra.mxu0 %v637
        %2859 = vmatpush.msra.mxu0 %v621
        %2860 = vmatmul.f32.gmra.mxu0 %v2410
        %v2861 = vpop.f32.mrf.mxu0
        %v2862 = vadd.f32 %v2839, %v2861
        %2863 = vmatmul.f32.gmra.mxu0 %v2414
        %v2864 = vpop.f32.mrf.mxu0
        %v2865 = vadd.f32 %v2842, %v2864
        %2866 = vdwg.mxu0
        %2867 = vmatpush.msra.mxu0 %v1117
        %2868 = vmatpush.msra.mxu0 %v1101
        %2869 = vmatpush.msra.mxu0 %v1085
        %2870 = vmatpush.msra.mxu0 %v1069
        %2871 = vmatpush.msra.mxu0 %v1053
        %2872 = vmatpush.msra.mxu0 %v1037
        %2873 = vmatpush.msra.mxu0 %v1021
        %2874 = vmatpush.msra.mxu0 %v1005
        %2875 = vmatpush.msra.mxu0 %v989
        %2876 = vmatpush.msra.mxu0 %v973
        %2877 = vmatpush.msra.mxu0 %v957
        %2878 = vmatpush.msra.mxu0 %v941
        %2879 = vmatpush.msra.mxu0 %v925
        %2880 = vmatpush.msra.mxu0 %v909
        %2881 = vmatpush.msra.mxu0 %v893
        %2882 = vmatpush.msra.mxu0 %v877
        %2883 = vmatmul.f32.gmra.mxu0 %v2411
        %v2884 = vpop.f32.mrf.mxu0
        %v2885 = vadd.f32 %v2862, %v2884
        %2886 = vmatmul.f32.gmra.mxu0 %v2415
        %v2887 = vpop.f32.mrf.mxu0
        %v2888 = vadd.f32 %v2865, %v2887
        %2889 = vdwg.mxu0
        %2890 = vmatpush.msra.mxu0 %v1373
        %2891 = vmatpush.msra.mxu0 %v1357
        %2892 = vmatpush.msra.mxu0 %v1341
        %2893 = vmatpush.msra.mxu0 %v1325
        %2894 = vmatpush.msra.mxu0 %v1309
        %2895 = vmatpush.msra.mxu0 %v1293
        %2896 = vmatpush.msra.mxu0 %v1277
        %2897 = vmatpush.msra.mxu0 %v1261
        %2898 = vmatpush.msra.mxu0 %v1245
        %2899 = vmatpush.msra.mxu0 %v1229
        %2900 = vmatpush.msra.mxu0 %v1213
        %2901 = vmatpush.msra.mxu0 %v1197
        %2902 = vmatpush.msra.mxu0 %v1181
        %2903 = vmatpush.msra.mxu0 %v1165
        %2904 = vmatpush.msra.mxu0 %v1149
        %2905 = vmatpush.msra.mxu0 %v1133
        %2906 = vmatmul.f32.gmra.mxu0 %v2412
        %v2907 = vpop.f32.mrf.mxu0
        %v2908 = vadd.f32 %v2885, %v2907
        %2909 = vmatmul.f32.gmra.mxu0 %v2416
        %v2910 = vpop.f32.mrf.mxu0
        %v2911 = vadd.f32 %v2888, %v2910
        %2912 = vdwg.mxu0
        %2913 = vmatpush.msra.mxu0 %v606
        %2914 = vmatpush.msra.mxu0 %v590
        %2915 = vmatpush.msra.mxu0 %v574
        %2916 = vmatpush.msra.mxu0 %v558
        %2917 = vmatpush.msra.mxu0 %v542
        %2918 = vmatpush.msra.mxu0 %v526
        %2919 = vmatpush.msra.mxu0 %v510
        %2920 = vmatpush.msra.mxu0 %v494
        %2921 = vmatpush.msra.mxu0 %v478
        %2922 = vmatpush.msra.mxu0 %v462
        %2923 = vmatpush.msra.mxu0 %v446
        %2924 = vmatpush.msra.mxu0 %v430
        %2925 = vmatpush.msra.mxu0 %v414
        %2926 = vmatpush.msra.mxu0 %v398
        %2927 = vmatpush.msra.mxu0 %v382
        %2928 = vmatpush.msra.mxu0 %v366
        %2929 = vmatmul.f32.gmra.mxu0 %v2409
        %v2930 = vpop.f32.mrf.mxu0
        %v2931 = vadd.f32 %v2426, %v2930
        %2932 = vmatmul.f32.gmra.mxu0 %v2413
        %v2933 = vpop.f32.mrf.mxu0
        %v2934 = vadd.f32 %v2426, %v2933
        %2935 = vdwg.mxu0
        %2936 = vmatpush.msra.mxu0 %v862
        %2937 = vmatpush.msra.mxu0 %v846
        %2938 = vmatpush.msra.mxu0 %v830
        %2939 = vmatpush.msra.mxu0 %v814
        %2940 = vmatpush.msra.mxu0 %v798
        %2941 = vmatpush.msra.mxu0 %v782
        %2942 = vmatpush.msra.mxu0 %v766
        %2943 = vmatpush.msra.mxu0 %v750
        %2944 = vmatpush.msra.mxu0 %v734
        %2945 = vmatpush.msra.mxu0 %v718
        %2946 = vmatpush.msra.mxu0 %v702
        %2947 = vmatpush.msra.mxu0 %v686
        %2948 = vmatpush.msra.mxu0 %v670
        %2949 = vmatpush.msra.mxu0 %v654
        %2950 = vmatpush.msra.mxu0 %v638
        %2951 = vmatpush.msra.mxu0 %v622
        %2952 = vmatmul.f32.gmra.mxu0 %v2410
        %v2953 = vpop.f32.mrf.mxu0
        %v2954 = vadd.f32 %v2931, %v2953
        %2955 = vmatmul.f32.gmra.mxu0 %v2414
        %v2956 = vpop.f32.mrf.mxu0
        %v2957 = vadd.f32 %v2934, %v2956
        %2958 = vdwg.mxu0
        %2959 = vmatpush.msra.mxu0 %v1118
        %2960 = vmatpush.msra.mxu0 %v1102
        %2961 = vmatpush.msra.mxu0 %v1086
        %2962 = vmatpush.msra.mxu0 %v1070
        %2963 = vmatpush.msra.mxu0 %v1054
        %2964 = vmatpush.msra.mxu0 %v1038
        %2965 = vmatpush.msra.mxu0 %v1022
        %2966 = vmatpush.msra.mxu0 %v1006
        %2967 = vmatpush.msra.mxu0 %v990
        %2968 = vmatpush.msra.mxu0 %v974
        %2969 = vmatpush.msra.mxu0 %v958
        %2970 = vmatpush.msra.mxu0 %v942
        %2971 = vmatpush.msra.mxu0 %v926
        %2972 = vmatpush.msra.mxu0 %v910
        %2973 = vmatpush.msra.mxu0 %v894
        %2974 = vmatpush.msra.mxu0 %v878
        %2975 = vmatmul.f32.gmra.mxu0 %v2411
        %v2976 = vpop.f32.mrf.mxu0
        %v2977 = vadd.f32 %v2954, %v2976
        %2978 = vmatmul.f32.gmra.mxu0 %v2415
        %v2979 = vpop.f32.mrf.mxu0
        %v2980 = vadd.f32 %v2957, %v2979
        %2981 = vdwg.mxu0
        %2982 = vmatpush.msra.mxu0 %v1374
        %2983 = vmatpush.msra.mxu0 %v1358
        %2984 = vmatpush.msra.mxu0 %v1342
        %2985 = vmatpush.msra.mxu0 %v1326
        %2986 = vmatpush.msra.mxu0 %v1310
        %2987 = vmatpush.msra.mxu0 %v1294
        %2988 = vmatpush.msra.mxu0 %v1278
        %2989 = vmatpush.msra.mxu0 %v1262
        %2990 = vmatpush.msra.mxu0 %v1246
        %2991 = vmatpush.msra.mxu0 %v1230
        %2992 = vmatpush.msra.mxu0 %v1214
        %2993 = vmatpush.msra.mxu0 %v1198
        %2994 = vmatpush.msra.mxu0 %v1182
        %2995 = vmatpush.msra.mxu0 %v1166
        %2996 = vmatpush.msra.mxu0 %v1150
        %2997 = vmatpush.msra.mxu0 %v1134
        %2998 = vmatmul.f32.gmra.mxu0 %v2412
        %v2999 = vpop.f32.mrf.mxu0
        %v3000 = vadd.f32 %v2977, %v2999
        %3001 = vmatmul.f32.gmra.mxu0 %v2416
        %v3002 = vpop.f32.mrf.mxu0
        %v3003 = vadd.f32 %v2980, %v3002
        %3004 = vdwg.mxu0
        %3005 = vmatpush.msra.mxu0 %v607
        %3006 = vmatpush.msra.mxu0 %v591
        %3007 = vmatpush.msra.mxu0 %v575
        %3008 = vmatpush.msra.mxu0 %v559
        %3009 = vmatpush.msra.mxu0 %v543
        %3010 = vmatpush.msra.mxu0 %v527
        %3011 = vmatpush.msra.mxu0 %v511
        %3012 = vmatpush.msra.mxu0 %v495
        %3013 = vmatpush.msra.mxu0 %v479
        %3014 = vmatpush.msra.mxu0 %v463
        %3015 = vmatpush.msra.mxu0 %v447
        %3016 = vmatpush.msra.mxu0 %v431
        %3017 = vmatpush.msra.mxu0 %v415
        %3018 = vmatpush.msra.mxu0 %v399
        %3019 = vmatpush.msra.mxu0 %v383
        %3020 = vmatpush.msra.mxu0 %v367
        %3021 = vmatmul.f32.gmra.mxu0 %v2409
        %v3022 = vpop.f32.mrf.mxu0
        %v3023 = vadd.f32 %v2427, %v3022
        %3024 = vmatmul.f32.gmra.mxu0 %v2413
        %v3025 = vpop.f32.mrf.mxu0
        %v3026 = vadd.f32 %v2427, %v3025
        %3027 = vdwg.mxu0
        %3028 = vmatpush.msra.mxu0 %v863
        %3029 = vmatpush.msra.mxu0 %v847
        %3030 = vmatpush.msra.mxu0 %v831
        %3031 = vmatpush.msra.mxu0 %v815
        %3032 = vmatpush.msra.mxu0 %v799
        %3033 = vmatpush.msra.mxu0 %v783
        %3034 = vmatpush.msra.mxu0 %v767
        %3035 = vmatpush.msra.mxu0 %v751
        %3036 = vmatpush.msra.mxu0 %v735
        %3037 = vmatpush.msra.mxu0 %v719
        %3038 = vmatpush.msra.mxu0 %v703
        %3039 = vmatpush.msra.mxu0 %v687
        %3040 = vmatpush.msra.mxu0 %v671
        %3041 = vmatpush.msra.mxu0 %v655
        %3042 = vmatpush.msra.mxu0 %v639
        %3043 = vmatpush.msra.mxu0 %v623
        %3044 = vmatmul.f32.gmra.mxu0 %v2410
        %v3045 = vpop.f32.mrf.mxu0
        %v3046 = vadd.f32 %v3023, %v3045
        %3047 = vmatmul.f32.gmra.mxu0 %v2414
        %v3048 = vpop.f32.mrf.mxu0
        %v3049 = vadd.f32 %v3026, %v3048
        %3050 = vdwg.mxu0
        %3051 = vmatpush.msra.mxu0 %v1119
        %3052 = vmatpush.msra.mxu0 %v1103
        %3053 = vmatpush.msra.mxu0 %v1087
        %3054 = vmatpush.msra.mxu0 %v1071
        %3055 = vmatpush.msra.mxu0 %v1055
        %3056 = vmatpush.msra.mxu0 %v1039
        %3057 = vmatpush.msra.mxu0 %v1023
        %3058 = vmatpush.msra.mxu0 %v1007
        %3059 = vmatpush.msra.mxu0 %v991
        %3060 = vmatpush.msra.mxu0 %v975
        %3061 = vmatpush.msra.mxu0 %v959
        %3062 = vmatpush.msra.mxu0 %v943
        %3063 = vmatpush.msra.mxu0 %v927
        %3064 = vmatpush.msra.mxu0 %v911
        %3065 = vmatpush.msra.mxu0 %v895
        %3066 = vmatpush.msra.mxu0 %v879
        %3067 = vmatmul.f32.gmra.mxu0 %v2411
        %v3068 = vpop.f32.mrf.mxu0
        %v3069 = vadd.f32 %v3046, %v3068
        %3070 = vmatmul.f32.gmra.mxu0 %v2415
        %v3071 = vpop.f32.mrf.mxu0
        %v3072 = vadd.f32 %v3049, %v3071
        %3073 = vdwg.mxu0
        %3074 = vmatpush.msra.mxu0 %v1375
        %3075 = vmatpush.msra.mxu0 %v1359
        %3076 = vmatpush.msra.mxu0 %v1343
        %3077 = vmatpush.msra.mxu0 %v1327
        %3078 = vmatpush.msra.mxu0 %v1311
        %3079 = vmatpush.msra.mxu0 %v1295
        %3080 = vmatpush.msra.mxu0 %v1279
        %3081 = vmatpush.msra.mxu0 %v1263
        %3082 = vmatpush.msra.mxu0 %v1247
        %3083 = vmatpush.msra.mxu0 %v1231
        %3084 = vmatpush.msra.mxu0 %v1215
        %3085 = vmatpush.msra.mxu0 %v1199
        %3086 = vmatpush.msra.mxu0 %v1183
        %3087 = vmatpush.msra.mxu0 %v1167
        %3088 = vmatpush.msra.mxu0 %v1151
        %3089 = vmatpush.msra.mxu0 %v1135
        %3090 = vmatmul.f32.gmra.mxu0 %v2412
        %v3091 = vpop.f32.mrf.mxu0
        %v3092 = vadd.f32 %v3069, %v3091
        %3093 = vmatmul.f32.gmra.mxu0 %v2416
        %v3094 = vpop.f32.mrf.mxu0
        %v3095 = vadd.f32 %v3072, %v3094
        %3096 = vdwg.mxu0
        %3097 = vmatpush.msra.mxu0 %v608
        %3098 = vmatpush.msra.mxu0 %v592
        %3099 = vmatpush.msra.mxu0 %v576
        %3100 = vmatpush.msra.mxu0 %v560
        %3101 = vmatpush.msra.mxu0 %v544
        %3102 = vmatpush.msra.mxu0 %v528
        %3103 = vmatpush.msra.mxu0 %v512
        %3104 = vmatpush.msra.mxu0 %v496
        %3105 = vmatpush.msra.mxu0 %v480
        %3106 = vmatpush.msra.mxu0 %v464
        %3107 = vmatpush.msra.mxu0 %v448
        %3108 = vmatpush.msra.mxu0 %v432
        %3109 = vmatpush.msra.mxu0 %v416
        %3110 = vmatpush.msra.mxu0 %v400
        %3111 = vmatpush.msra.mxu0 %v384
        %3112 = vmatpush.msra.mxu0 %v368
        %3113 = vmatmul.f32.gmra.mxu0 %v2409
        %v3114 = vpop.f32.mrf.mxu0
        %v3115 = vadd.f32 %v2428, %v3114
        %3116 = vmatmul.f32.gmra.mxu0 %v2413
        %v3117 = vpop.f32.mrf.mxu0
        %v3118 = vadd.f32 %v2428, %v3117
        %3119 = vdwg.mxu0
        %3120 = vmatpush.msra.mxu0 %v864
        %3121 = vmatpush.msra.mxu0 %v848
        %3122 = vmatpush.msra.mxu0 %v832
        %3123 = vmatpush.msra.mxu0 %v816
        %3124 = vmatpush.msra.mxu0 %v800
        %3125 = vmatpush.msra.mxu0 %v784
        %3126 = vmatpush.msra.mxu0 %v768
        %3127 = vmatpush.msra.mxu0 %v752
        %3128 = vmatpush.msra.mxu0 %v736
        %3129 = vmatpush.msra.mxu0 %v720
        %3130 = vmatpush.msra.mxu0 %v704
        %3131 = vmatpush.msra.mxu0 %v688
        %3132 = vmatpush.msra.mxu0 %v672
        %3133 = vmatpush.msra.mxu0 %v656
        %3134 = vmatpush.msra.mxu0 %v640
        %3135 = vmatpush.msra.mxu0 %v624
        %3136 = vmatmul.f32.gmra.mxu0 %v2410
        %v3137 = vpop.f32.mrf.mxu0
        %v3138 = vadd.f32 %v3115, %v3137
        %3139 = vmatmul.f32.gmra.mxu0 %v2414
        %v3140 = vpop.f32.mrf.mxu0
        %v3141 = vadd.f32 %v3118, %v3140
        %3142 = vdwg.mxu0
        %3143 = vmatpush.msra.mxu0 %v1120
        %3144 = vmatpush.msra.mxu0 %v1104
        %3145 = vmatpush.msra.mxu0 %v1088
        %3146 = vmatpush.msra.mxu0 %v1072
        %3147 = vmatpush.msra.mxu0 %v1056
        %3148 = vmatpush.msra.mxu0 %v1040
        %3149 = vmatpush.msra.mxu0 %v1024
        %3150 = vmatpush.msra.mxu0 %v1008
        %3151 = vmatpush.msra.mxu0 %v992
        %3152 = vmatpush.msra.mxu0 %v976
        %3153 = vmatpush.msra.mxu0 %v960
        %3154 = vmatpush.msra.mxu0 %v944
        %3155 = vmatpush.msra.mxu0 %v928
        %3156 = vmatpush.msra.mxu0 %v912
        %3157 = vmatpush.msra.mxu0 %v896
        %3158 = vmatpush.msra.mxu0 %v880
        %3159 = vmatmul.f32.gmra.mxu0 %v2411
        %v3160 = vpop.f32.mrf.mxu0
        %v3161 = vadd.f32 %v3138, %v3160
        %3162 = vmatmul.f32.gmra.mxu0 %v2415
        %v3163 = vpop.f32.mrf.mxu0
        %v3164 = vadd.f32 %v3141, %v3163
        %3165 = vdwg.mxu0
        %3166 = vmatpush.msra.mxu0 %v1376
        %3167 = vmatpush.msra.mxu0 %v1360
        %3168 = vmatpush.msra.mxu0 %v1344
        %3169 = vmatpush.msra.mxu0 %v1328
        %3170 = vmatpush.msra.mxu0 %v1312
        %3171 = vmatpush.msra.mxu0 %v1296
        %3172 = vmatpush.msra.mxu0 %v1280
        %3173 = vmatpush.msra.mxu0 %v1264
        %3174 = vmatpush.msra.mxu0 %v1248
        %3175 = vmatpush.msra.mxu0 %v1232
        %3176 = vmatpush.msra.mxu0 %v1216
        %3177 = vmatpush.msra.mxu0 %v1200
        %3178 = vmatpush.msra.mxu0 %v1184
        %3179 = vmatpush.msra.mxu0 %v1168
        %3180 = vmatpush.msra.mxu0 %v1152
        %3181 = vmatpush.msra.mxu0 %v1136
        %3182 = vmatmul.f32.gmra.mxu0 %v2412
        %v3183 = vpop.f32.mrf.mxu0
        %v3184 = vadd.f32 %v3161, %v3183
        %3185 = vmatmul.f32.gmra.mxu0 %v2416
        %v3186 = vpop.f32.mrf.mxu0
        %v3187 = vadd.f32 %v3164, %v3186
        %3188 = vdwg.mxu0
        %3189 = vmatpush.msra.mxu0 %v609
        %3190 = vmatpush.msra.mxu0 %v593
        %3191 = vmatpush.msra.mxu0 %v577
        %3192 = vmatpush.msra.mxu0 %v561
        %3193 = vmatpush.msra.mxu0 %v545
        %3194 = vmatpush.msra.mxu0 %v529
        %3195 = vmatpush.msra.mxu0 %v513
        %3196 = vmatpush.msra.mxu0 %v497
        %3197 = vmatpush.msra.mxu0 %v481
        %3198 = vmatpush.msra.mxu0 %v465
        %3199 = vmatpush.msra.mxu0 %v449
        %3200 = vmatpush.msra.mxu0 %v433
        %3201 = vmatpush.msra.mxu0 %v417
        %3202 = vmatpush.msra.mxu0 %v401
        %3203 = vmatpush.msra.mxu0 %v385
        %3204 = vmatpush.msra.mxu0 %v369
        %3205 = vmatmul.f32.gmra.mxu0 %v2409
        %v3206 = vpop.f32.mrf.mxu0
        %v3207 = vadd.f32 %v2429, %v3206
        %3208 = vmatmul.f32.gmra.mxu0 %v2413
        %v3209 = vpop.f32.mrf.mxu0
        %v3210 = vadd.f32 %v2429, %v3209
        %3211 = vdwg.mxu0
        %3212 = vmatpush.msra.mxu0 %v865
        %3213 = vmatpush.msra.mxu0 %v849
        %3214 = vmatpush.msra.mxu0 %v833
        %3215 = vmatpush.msra.mxu0 %v817
        %3216 = vmatpush.msra.mxu0 %v801
        %3217 = vmatpush.msra.mxu0 %v785
        %3218 = vmatpush.msra.mxu0 %v769
        %3219 = vmatpush.msra.mxu0 %v753
        %3220 = vmatpush.msra.mxu0 %v737
        %3221 = vmatpush.msra.mxu0 %v721
        %3222 = vmatpush.msra.mxu0 %v705
        %3223 = vmatpush.msra.mxu0 %v689
        %3224 = vmatpush.msra.mxu0 %v673
        %3225 = vmatpush.msra.mxu0 %v657
        %3226 = vmatpush.msra.mxu0 %v641
        %3227 = vmatpush.msra.mxu0 %v625
        %3228 = vmatmul.f32.gmra.mxu0 %v2410
        %v3229 = vpop.f32.mrf.mxu0
        %v3230 = vadd.f32 %v3207, %v3229
        %3231 = vmatmul.f32.gmra.mxu0 %v2414
        %v3232 = vpop.f32.mrf.mxu0
        %v3233 = vadd.f32 %v3210, %v3232
        %3234 = vdwg.mxu0
        %3235 = vmatpush.msra.mxu0 %v1121
        %3236 = vmatpush.msra.mxu0 %v1105
        %3237 = vmatpush.msra.mxu0 %v1089
        %3238 = vmatpush.msra.mxu0 %v1073
        %3239 = vmatpush.msra.mxu0 %v1057
        %3240 = vmatpush.msra.mxu0 %v1041
        %3241 = vmatpush.msra.mxu0 %v1025
        %3242 = vmatpush.msra.mxu0 %v1009
        %3243 = vmatpush.msra.mxu0 %v993
        %3244 = vmatpush.msra.mxu0 %v977
        %3245 = vmatpush.msra.mxu0 %v961
        %3246 = vmatpush.msra.mxu0 %v945
        %3247 = vmatpush.msra.mxu0 %v929
        %3248 = vmatpush.msra.mxu0 %v913
        %3249 = vmatpush.msra.mxu0 %v897
        %3250 = vmatpush.msra.mxu0 %v881
        %3251 = vmatmul.f32.gmra.mxu0 %v2411
        %v3252 = vpop.f32.mrf.mxu0
        %v3253 = vadd.f32 %v3230, %v3252
        %3254 = vmatmul.f32.gmra.mxu0 %v2415
        %v3255 = vpop.f32.mrf.mxu0
        %v3256 = vadd.f32 %v3233, %v3255
        %3257 = vdwg.mxu0
        %3258 = vmatpush.msra.mxu0 %v1377
        %3259 = vmatpush.msra.mxu0 %v1361
        %3260 = vmatpush.msra.mxu0 %v1345
        %3261 = vmatpush.msra.mxu0 %v1329
        %3262 = vmatpush.msra.mxu0 %v1313
        %3263 = vmatpush.msra.mxu0 %v1297
        %3264 = vmatpush.msra.mxu0 %v1281
        %3265 = vmatpush.msra.mxu0 %v1265
        %3266 = vmatpush.msra.mxu0 %v1249
        %3267 = vmatpush.msra.mxu0 %v1233
        %3268 = vmatpush.msra.mxu0 %v1217
        %3269 = vmatpush.msra.mxu0 %v1201
        %3270 = vmatpush.msra.mxu0 %v1185
        %3271 = vmatpush.msra.mxu0 %v1169
        %3272 = vmatpush.msra.mxu0 %v1153
        %3273 = vmatpush.msra.mxu0 %v1137
        %3274 = vmatmul.f32.gmra.mxu0 %v2412
        %v3275 = vpop.f32.mrf.mxu0
        %v3276 = vadd.f32 %v3253, %v3275
        %3277 = vmatmul.f32.gmra.mxu0 %v2416
        %v3278 = vpop.f32.mrf.mxu0
        %v3279 = vadd.f32 %v3256, %v3278
        %3280 = vdwg.mxu0
        %3281 = vmatpush.msra.mxu0 %v610
        %3282 = vmatpush.msra.mxu0 %v594
        %3283 = vmatpush.msra.mxu0 %v578
        %3284 = vmatpush.msra.mxu0 %v562
        %3285 = vmatpush.msra.mxu0 %v546
        %3286 = vmatpush.msra.mxu0 %v530
        %3287 = vmatpush.msra.mxu0 %v514
        %3288 = vmatpush.msra.mxu0 %v498
        %3289 = vmatpush.msra.mxu0 %v482
        %3290 = vmatpush.msra.mxu0 %v466
        %3291 = vmatpush.msra.mxu0 %v450
        %3292 = vmatpush.msra.mxu0 %v434
        %3293 = vmatpush.msra.mxu0 %v418
        %3294 = vmatpush.msra.mxu0 %v402
        %3295 = vmatpush.msra.mxu0 %v386
        %3296 = vmatpush.msra.mxu0 %v370
        %3297 = vmatmul.f32.gmra.mxu0 %v2409
        %v3298 = vpop.f32.mrf.mxu0
        %v3299 = vadd.f32 %v2430, %v3298
        %3300 = vmatmul.f32.gmra.mxu0 %v2413
        %v3301 = vpop.f32.mrf.mxu0
        %v3302 = vadd.f32 %v2430, %v3301
        %3303 = vdwg.mxu0
        %3304 = vmatpush.msra.mxu0 %v866
        %3305 = vmatpush.msra.mxu0 %v850
        %3306 = vmatpush.msra.mxu0 %v834
        %3307 = vmatpush.msra.mxu0 %v818
        %3308 = vmatpush.msra.mxu0 %v802
        %3309 = vmatpush.msra.mxu0 %v786
        %3310 = vmatpush.msra.mxu0 %v770
        %3311 = vmatpush.msra.mxu0 %v754
        %3312 = vmatpush.msra.mxu0 %v738
        %3313 = vmatpush.msra.mxu0 %v722
        %3314 = vmatpush.msra.mxu0 %v706
        %3315 = vmatpush.msra.mxu0 %v690
        %3316 = vmatpush.msra.mxu0 %v674
        %3317 = vmatpush.msra.mxu0 %v658
        %3318 = vmatpush.msra.mxu0 %v642
        %3319 = vmatpush.msra.mxu0 %v626
        %3320 = vmatmul.f32.gmra.mxu0 %v2410
        %v3321 = vpop.f32.mrf.mxu0
        %v3322 = vadd.f32 %v3299, %v3321
        %3323 = vmatmul.f32.gmra.mxu0 %v2414
        %v3324 = vpop.f32.mrf.mxu0
        %v3325 = vadd.f32 %v3302, %v3324
        %3326 = vdwg.mxu0
        %3327 = vmatpush.msra.mxu0 %v1122
        %3328 = vmatpush.msra.mxu0 %v1106
        %3329 = vmatpush.msra.mxu0 %v1090
        %3330 = vmatpush.msra.mxu0 %v1074
        %3331 = vmatpush.msra.mxu0 %v1058
        %3332 = vmatpush.msra.mxu0 %v1042
        %3333 = vmatpush.msra.mxu0 %v1026
        %3334 = vmatpush.msra.mxu0 %v1010
        %3335 = vmatpush.msra.mxu0 %v994
        %3336 = vmatpush.msra.mxu0 %v978
        %3337 = vmatpush.msra.mxu0 %v962
        %3338 = vmatpush.msra.mxu0 %v946
        %3339 = vmatpush.msra.mxu0 %v930
        %3340 = vmatpush.msra.mxu0 %v914
        %3341 = vmatpush.msra.mxu0 %v898
        %3342 = vmatpush.msra.mxu0 %v882
        %3343 = vmatmul.f32.gmra.mxu0 %v2411
        %v3344 = vpop.f32.mrf.mxu0
        %v3345 = vadd.f32 %v3322, %v3344
        %3346 = vmatmul.f32.gmra.mxu0 %v2415
        %v3347 = vpop.f32.mrf.mxu0
        %v3348 = vadd.f32 %v3325, %v3347
        %3349 = vdwg.mxu0
        %3350 = vmatpush.msra.mxu0 %v1378
        %3351 = vmatpush.msra.mxu0 %v1362
        %3352 = vmatpush.msra.mxu0 %v1346
        %3353 = vmatpush.msra.mxu0 %v1330
        %3354 = vmatpush.msra.mxu0 %v1314
        %3355 = vmatpush.msra.mxu0 %v1298
        %3356 = vmatpush.msra.mxu0 %v1282
        %3357 = vmatpush.msra.mxu0 %v1266
        %3358 = vmatpush.msra.mxu0 %v1250
        %3359 = vmatpush.msra.mxu0 %v1234
        %3360 = vmatpush.msra.mxu0 %v1218
        %3361 = vmatpush.msra.mxu0 %v1202
        %3362 = vmatpush.msra.mxu0 %v1186
        %3363 = vmatpush.msra.mxu0 %v1170
        %3364 = vmatpush.msra.mxu0 %v1154
        %3365 = vmatpush.msra.mxu0 %v1138
        %3366 = vmatmul.f32.gmra.mxu0 %v2412
        %v3367 = vpop.f32.mrf.mxu0
        %v3368 = vadd.f32 %v3345, %v3367
        %3369 = vmatmul.f32.gmra.mxu0 %v2416
        %v3370 = vpop.f32.mrf.mxu0
        %v3371 = vadd.f32 %v3348, %v3370
        %3372 = vdwg.mxu0
        %3373 = vmatpush.msra.mxu0 %v611
        %3374 = vmatpush.msra.mxu0 %v595
        %3375 = vmatpush.msra.mxu0 %v579
        %3376 = vmatpush.msra.mxu0 %v563
        %3377 = vmatpush.msra.mxu0 %v547
        %3378 = vmatpush.msra.mxu0 %v531
        %3379 = vmatpush.msra.mxu0 %v515
        %3380 = vmatpush.msra.mxu0 %v499
        %3381 = vmatpush.msra.mxu0 %v483
        %3382 = vmatpush.msra.mxu0 %v467
        %3383 = vmatpush.msra.mxu0 %v451
        %3384 = vmatpush.msra.mxu0 %v435
        %3385 = vmatpush.msra.mxu0 %v419
        %3386 = vmatpush.msra.mxu0 %v403
        %3387 = vmatpush.msra.mxu0 %v387
        %3388 = vmatpush.msra.mxu0 %v371
        %3389 = vmatmul.f32.gmra.mxu0 %v2409
        %v3390 = vpop.f32.mrf.mxu0
        %v3391 = vadd.f32 %v2431, %v3390
        %3392 = vmatmul.f32.gmra.mxu0 %v2413
        %v3393 = vpop.f32.mrf.mxu0
        %v3394 = vadd.f32 %v2431, %v3393
        %3395 = vdwg.mxu0
        %3396 = vmatpush.msra.mxu0 %v867
        %3397 = vmatpush.msra.mxu0 %v851
        %3398 = vmatpush.msra.mxu0 %v835
        %3399 = vmatpush.msra.mxu0 %v819
        %3400 = vmatpush.msra.mxu0 %v803
        %3401 = vmatpush.msra.mxu0 %v787
        %3402 = vmatpush.msra.mxu0 %v771
        %3403 = vmatpush.msra.mxu0 %v755
        %3404 = vmatpush.msra.mxu0 %v739
        %3405 = vmatpush.msra.mxu0 %v723
        %3406 = vmatpush.msra.mxu0 %v707
        %3407 = vmatpush.msra.mxu0 %v691
        %3408 = vmatpush.msra.mxu0 %v675
        %3409 = vmatpush.msra.mxu0 %v659
        %3410 = vmatpush.msra.mxu0 %v643
        %3411 = vmatpush.msra.mxu0 %v627
        %3412 = vmatmul.f32.gmra.mxu0 %v2410
        %v3413 = vpop.f32.mrf.mxu0
        %v3414 = vadd.f32 %v3391, %v3413
        %3415 = vmatmul.f32.gmra.mxu0 %v2414
        %v3416 = vpop.f32.mrf.mxu0
        %v3417 = vadd.f32 %v3394, %v3416
        %3418 = vdwg.mxu0
        %3419 = vmatpush.msra.mxu0 %v1123
        %3420 = vmatpush.msra.mxu0 %v1107
        %3421 = vmatpush.msra.mxu0 %v1091
        %3422 = vmatpush.msra.mxu0 %v1075
        %3423 = vmatpush.msra.mxu0 %v1059
        %3424 = vmatpush.msra.mxu0 %v1043
        %3425 = vmatpush.msra.mxu0 %v1027
        %3426 = vmatpush.msra.mxu0 %v1011
        %3427 = vmatpush.msra.mxu0 %v995
        %3428 = vmatpush.msra.mxu0 %v979
        %3429 = vmatpush.msra.mxu0 %v963
        %3430 = vmatpush.msra.mxu0 %v947
        %3431 = vmatpush.msra.mxu0 %v931
        %3432 = vmatpush.msra.mxu0 %v915
        %3433 = vmatpush.msra.mxu0 %v899
        %3434 = vmatpush.msra.mxu0 %v883
        %3435 = vmatmul.f32.gmra.mxu0 %v2411
        %v3436 = vpop.f32.mrf.mxu0
        %v3437 = vadd.f32 %v3414, %v3436
        %3438 = vmatmul.f32.gmra.mxu0 %v2415
        %v3439 = vpop.f32.mrf.mxu0
        %v3440 = vadd.f32 %v3417, %v3439
        %3441 = vdwg.mxu0
        %3442 = vmatpush.msra.mxu0 %v1379
        %3443 = vmatpush.msra.mxu0 %v1363
        %3444 = vmatpush.msra.mxu0 %v1347
        %3445 = vmatpush.msra.mxu0 %v1331
        %3446 = vmatpush.msra.mxu0 %v1315
        %3447 = vmatpush.msra.mxu0 %v1299
        %3448 = vmatpush.msra.mxu0 %v1283
        %3449 = vmatpush.msra.mxu0 %v1267
        %3450 = vmatpush.msra.mxu0 %v1251
        %3451 = vmatpush.msra.mxu0 %v1235
        %3452 = vmatpush.msra.mxu0 %v1219
        %3453 = vmatpush.msra.mxu0 %v1203
        %3454 = vmatpush.msra.mxu0 %v1187
        %3455 = vmatpush.msra.mxu0 %v1171
        %3456 = vmatpush.msra.mxu0 %v1155
        %3457 = vmatpush.msra.mxu0 %v1139
        %3458 = vmatmul.f32.gmra.mxu0 %v2412
        %v3459 = vpop.f32.mrf.mxu0
        %v3460 = vadd.f32 %v3437, %v3459
        %3461 = vmatmul.f32.gmra.mxu0 %v2416
        %v3462 = vpop.f32.mrf.mxu0
        %v3463 = vadd.f32 %v3440, %v3462
        %3464 = vdwg.mxu0
        %3465 = vmatpush.msra.mxu0 %v612
        %3466 = vmatpush.msra.mxu0 %v596
        %3467 = vmatpush.msra.mxu0 %v580
        %3468 = vmatpush.msra.mxu0 %v564
        %3469 = vmatpush.msra.mxu0 %v548
        %3470 = vmatpush.msra.mxu0 %v532
        %3471 = vmatpush.msra.mxu0 %v516
        %3472 = vmatpush.msra.mxu0 %v500
        %3473 = vmatpush.msra.mxu0 %v484
        %3474 = vmatpush.msra.mxu0 %v468
        %3475 = vmatpush.msra.mxu0 %v452
        %3476 = vmatpush.msra.mxu0 %v436
        %3477 = vmatpush.msra.mxu0 %v420
        %3478 = vmatpush.msra.mxu0 %v404
        %3479 = vmatpush.msra.mxu0 %v388
        %3480 = vmatpush.msra.mxu0 %v372
        %3481 = vmatmul.f32.gmra.mxu0 %v2409
        %v3482 = vpop.f32.mrf.mxu0
        %v3483 = vadd.f32 %v2432, %v3482
        %3484 = vmatmul.f32.gmra.mxu0 %v2413
        %v3485 = vpop.f32.mrf.mxu0
        %v3486 = vadd.f32 %v2432, %v3485
        %3487 = vdwg.mxu0
        %3488 = vmatpush.msra.mxu0 %v868
        %3489 = vmatpush.msra.mxu0 %v852
        %3490 = vmatpush.msra.mxu0 %v836
        %3491 = vmatpush.msra.mxu0 %v820
        %3492 = vmatpush.msra.mxu0 %v804
        %3493 = vmatpush.msra.mxu0 %v788
        %3494 = vmatpush.msra.mxu0 %v772
        %3495 = vmatpush.msra.mxu0 %v756
        %3496 = vmatpush.msra.mxu0 %v740
        %3497 = vmatpush.msra.mxu0 %v724
        %3498 = vmatpush.msra.mxu0 %v708
        %3499 = vmatpush.msra.mxu0 %v692
        %3500 = vmatpush.msra.mxu0 %v676
        %3501 = vmatpush.msra.mxu0 %v660
        %3502 = vmatpush.msra.mxu0 %v644
        %3503 = vmatpush.msra.mxu0 %v628
        %3504 = vmatmul.f32.gmra.mxu0 %v2410
        %v3505 = vpop.f32.mrf.mxu0
        %v3506 = vadd.f32 %v3483, %v3505
        %3507 = vmatmul.f32.gmra.mxu0 %v2414
        %v3508 = vpop.f32.mrf.mxu0
        %v3509 = vadd.f32 %v3486, %v3508
        %3510 = vdwg.mxu0
        %3511 = vmatpush.msra.mxu0 %v1124
        %3512 = vmatpush.msra.mxu0 %v1108
        %3513 = vmatpush.msra.mxu0 %v1092
        %3514 = vmatpush.msra.mxu0 %v1076
        %3515 = vmatpush.msra.mxu0 %v1060
        %3516 = vmatpush.msra.mxu0 %v1044
        %3517 = vmatpush.msra.mxu0 %v1028
        %3518 = vmatpush.msra.mxu0 %v1012
        %3519 = vmatpush.msra.mxu0 %v996
        %3520 = vmatpush.msra.mxu0 %v980
        %3521 = vmatpush.msra.mxu0 %v964
        %3522 = vmatpush.msra.mxu0 %v948
        %3523 = vmatpush.msra.mxu0 %v932
        %3524 = vmatpush.msra.mxu0 %v916
        %3525 = vmatpush.msra.mxu0 %v900
        %3526 = vmatpush.msra.mxu0 %v884
        %3527 = vmatmul.f32.gmra.mxu0 %v2411
        %v3528 = vpop.f32.mrf.mxu0
        %v3529 = vadd.f32 %v3506, %v3528
        %3530 = vmatmul.f32.gmra.mxu0 %v2415
        %v3531 = vpop.f32.mrf.mxu0
        %v3532 = vadd.f32 %v3509, %v3531
        %3533 = vdwg.mxu0
        %3534 = vmatpush.msra.mxu0 %v1380
        %3535 = vmatpush.msra.mxu0 %v1364
        %3536 = vmatpush.msra.mxu0 %v1348
        %3537 = vmatpush.msra.mxu0 %v1332
        %3538 = vmatpush.msra.mxu0 %v1316
        %3539 = vmatpush.msra.mxu0 %v1300
        %3540 = vmatpush.msra.mxu0 %v1284
        %3541 = vmatpush.msra.mxu0 %v1268
        %3542 = vmatpush.msra.mxu0 %v1252
        %3543 = vmatpush.msra.mxu0 %v1236
        %3544 = vmatpush.msra.mxu0 %v1220
        %3545 = vmatpush.msra.mxu0 %v1204
        %3546 = vmatpush.msra.mxu0 %v1188
        %3547 = vmatpush.msra.mxu0 %v1172
        %3548 = vmatpush.msra.mxu0 %v1156
        %3549 = vmatpush.msra.mxu0 %v1140
        %3550 = vmatmul.f32.gmra.mxu0 %v2412
        %v3551 = vpop.f32.mrf.mxu0
        %v3552 = vadd.f32 %v3529, %v3551
        %3553 = vmatmul.f32.gmra.mxu0 %v2416
        %v3554 = vpop.f32.mrf.mxu0
        %v3555 = vadd.f32 %v3532, %v3554
        %3556 = vdwg.mxu0
        %3557 = vmatpush.msra.mxu0 %v613
        %3558 = vmatpush.msra.mxu0 %v597
        %3559 = vmatpush.msra.mxu0 %v581
        %3560 = vmatpush.msra.mxu0 %v565
        %3561 = vmatpush.msra.mxu0 %v549
        %3562 = vmatpush.msra.mxu0 %v533
        %3563 = vmatpush.msra.mxu0 %v517
        %3564 = vmatpush.msra.mxu0 %v501
        %3565 = vmatpush.msra.mxu0 %v485
        %3566 = vmatpush.msra.mxu0 %v469
        %3567 = vmatpush.msra.mxu0 %v453
        %3568 = vmatpush.msra.mxu0 %v437
        %3569 = vmatpush.msra.mxu0 %v421
        %3570 = vmatpush.msra.mxu0 %v405
        %3571 = vmatpush.msra.mxu0 %v389
        %3572 = vmatpush.msra.mxu0 %v373
        %3573 = vmatmul.f32.gmra.mxu0 %v2409
        %v3574 = vpop.f32.mrf.mxu0
        %v3575 = vadd.f32 %v2433, %v3574
        %3576 = vmatmul.f32.gmra.mxu0 %v2413
        %v3577 = vpop.f32.mrf.mxu0
        %v3578 = vadd.f32 %v2433, %v3577
        %3579 = vdwg.mxu0
        %3580 = vmatpush.msra.mxu0 %v869
        %3581 = vmatpush.msra.mxu0 %v853
        %3582 = vmatpush.msra.mxu0 %v837
        %3583 = vmatpush.msra.mxu0 %v821
        %3584 = vmatpush.msra.mxu0 %v805
        %3585 = vmatpush.msra.mxu0 %v789
        %3586 = vmatpush.msra.mxu0 %v773
        %3587 = vmatpush.msra.mxu0 %v757
        %3588 = vmatpush.msra.mxu0 %v741
        %3589 = vmatpush.msra.mxu0 %v725
        %3590 = vmatpush.msra.mxu0 %v709
        %3591 = vmatpush.msra.mxu0 %v693
        %3592 = vmatpush.msra.mxu0 %v677
        %3593 = vmatpush.msra.mxu0 %v661
        %3594 = vmatpush.msra.mxu0 %v645
        %3595 = vmatpush.msra.mxu0 %v629
        %3596 = vmatmul.f32.gmra.mxu0 %v2410
        %v3597 = vpop.f32.mrf.mxu0
        %v3598 = vadd.f32 %v3575, %v3597
        %3599 = vmatmul.f32.gmra.mxu0 %v2414
        %v3600 = vpop.f32.mrf.mxu0
        %v3601 = vadd.f32 %v3578, %v3600
        %3602 = vdwg.mxu0
        %3603 = vmatpush.msra.mxu0 %v1125
        %3604 = vmatpush.msra.mxu0 %v1109
        %3605 = vmatpush.msra.mxu0 %v1093
        %3606 = vmatpush.msra.mxu0 %v1077
        %3607 = vmatpush.msra.mxu0 %v1061
        %3608 = vmatpush.msra.mxu0 %v1045
        %3609 = vmatpush.msra.mxu0 %v1029
        %3610 = vmatpush.msra.mxu0 %v1013
        %3611 = vmatpush.msra.mxu0 %v997
        %3612 = vmatpush.msra.mxu0 %v981
        %3613 = vmatpush.msra.mxu0 %v965
        %3614 = vmatpush.msra.mxu0 %v949
        %3615 = vmatpush.msra.mxu0 %v933
        %3616 = vmatpush.msra.mxu0 %v917
        %3617 = vmatpush.msra.mxu0 %v901
        %3618 = vmatpush.msra.mxu0 %v885
        %3619 = vmatmul.f32.gmra.mxu0 %v2411
        %v3620 = vpop.f32.mrf.mxu0
        %v3621 = vadd.f32 %v3598, %v3620
        %3622 = vmatmul.f32.gmra.mxu0 %v2415
        %v3623 = vpop.f32.mrf.mxu0
        %v3624 = vadd.f32 %v3601, %v3623
        %3625 = vdwg.mxu0
        %3626 = vmatpush.msra.mxu0 %v1381
        %3627 = vmatpush.msra.mxu0 %v1365
        %3628 = vmatpush.msra.mxu0 %v1349
        %3629 = vmatpush.msra.mxu0 %v1333
        %3630 = vmatpush.msra.mxu0 %v1317
        %3631 = vmatpush.msra.mxu0 %v1301
        %3632 = vmatpush.msra.mxu0 %v1285
        %3633 = vmatpush.msra.mxu0 %v1269
        %3634 = vmatpush.msra.mxu0 %v1253
        %3635 = vmatpush.msra.mxu0 %v1237
        %3636 = vmatpush.msra.mxu0 %v1221
        %3637 = vmatpush.msra.mxu0 %v1205
        %3638 = vmatpush.msra.mxu0 %v1189
        %3639 = vmatpush.msra.mxu0 %v1173
        %3640 = vmatpush.msra.mxu0 %v1157
        %3641 = vmatpush.msra.mxu0 %v1141
        %3642 = vmatmul.f32.gmra.mxu0 %v2412
        %v3643 = vpop.f32.mrf.mxu0
        %v3644 = vadd.f32 %v3621, %v3643
        %3645 = vmatmul.f32.gmra.mxu0 %v2416
        %v3646 = vpop.f32.mrf.mxu0
        %v3647 = vadd.f32 %v3624, %v3646
        %3648 = vdwg.mxu0
        %3649 = vmatpush.msra.mxu0 %v614
        %3650 = vmatpush.msra.mxu0 %v598
        %3651 = vmatpush.msra.mxu0 %v582
        %3652 = vmatpush.msra.mxu0 %v566
        %3653 = vmatpush.msra.mxu0 %v550
        %3654 = vmatpush.msra.mxu0 %v534
        %3655 = vmatpush.msra.mxu0 %v518
        %3656 = vmatpush.msra.mxu0 %v502
        %3657 = vmatpush.msra.mxu0 %v486
        %3658 = vmatpush.msra.mxu0 %v470
        %3659 = vmatpush.msra.mxu0 %v454
        %3660 = vmatpush.msra.mxu0 %v438
        %3661 = vmatpush.msra.mxu0 %v422
        %3662 = vmatpush.msra.mxu0 %v406
        %3663 = vmatpush.msra.mxu0 %v390
        %3664 = vmatpush.msra.mxu0 %v374
        %3665 = vmatmul.f32.gmra.mxu0 %v2409
        %v3666 = vpop.f32.mrf.mxu0
        %v3667 = vadd.f32 %v2434, %v3666
        %3668 = vmatmul.f32.gmra.mxu0 %v2413
        %v3669 = vpop.f32.mrf.mxu0
        %v3670 = vadd.f32 %v2434, %v3669
        %3671 = vdwg.mxu0
        %3672 = vmatpush.msra.mxu0 %v870
        %3673 = vmatpush.msra.mxu0 %v854
        %3674 = vmatpush.msra.mxu0 %v838
        %3675 = vmatpush.msra.mxu0 %v822
        %3676 = vmatpush.msra.mxu0 %v806
        %3677 = vmatpush.msra.mxu0 %v790
        %3678 = vmatpush.msra.mxu0 %v774
        %3679 = vmatpush.msra.mxu0 %v758
        %3680 = vmatpush.msra.mxu0 %v742
        %3681 = vmatpush.msra.mxu0 %v726
        %3682 = vmatpush.msra.mxu0 %v710
        %3683 = vmatpush.msra.mxu0 %v694
        %3684 = vmatpush.msra.mxu0 %v678
        %3685 = vmatpush.msra.mxu0 %v662
        %3686 = vmatpush.msra.mxu0 %v646
        %3687 = vmatpush.msra.mxu0 %v630
        %3688 = vmatmul.f32.gmra.mxu0 %v2410
        %v3689 = vpop.f32.mrf.mxu0
        %v3690 = vadd.f32 %v3667, %v3689
        %3691 = vmatmul.f32.gmra.mxu0 %v2414
        %v3692 = vpop.f32.mrf.mxu0
        %v3693 = vadd.f32 %v3670, %v3692
        %3694 = vdwg.mxu0
        %3695 = vmatpush.msra.mxu0 %v1126
        %3696 = vmatpush.msra.mxu0 %v1110
        %3697 = vmatpush.msra.mxu0 %v1094
        %3698 = vmatpush.msra.mxu0 %v1078
        %3699 = vmatpush.msra.mxu0 %v1062
        %3700 = vmatpush.msra.mxu0 %v1046
        %3701 = vmatpush.msra.mxu0 %v1030
        %3702 = vmatpush.msra.mxu0 %v1014
        %3703 = vmatpush.msra.mxu0 %v998
        %3704 = vmatpush.msra.mxu0 %v982
        %3705 = vmatpush.msra.mxu0 %v966
        %3706 = vmatpush.msra.mxu0 %v950
        %3707 = vmatpush.msra.mxu0 %v934
        %3708 = vmatpush.msra.mxu0 %v918
        %3709 = vmatpush.msra.mxu0 %v902
        %3710 = vmatpush.msra.mxu0 %v886
        %3711 = vmatmul.f32.gmra.mxu0 %v2411
        %v3712 = vpop.f32.mrf.mxu0
        %v3713 = vadd.f32 %v3690, %v3712
        %3714 = vmatmul.f32.gmra.mxu0 %v2415
        %v3715 = vpop.f32.mrf.mxu0
        %v3716 = vadd.f32 %v3693, %v3715
        %3717 = vdwg.mxu0
        %3718 = vmatpush.msra.mxu0 %v1382
        %3719 = vmatpush.msra.mxu0 %v1366
        %3720 = vmatpush.msra.mxu0 %v1350
        %3721 = vmatpush.msra.mxu0 %v1334
        %3722 = vmatpush.msra.mxu0 %v1318
        %3723 = vmatpush.msra.mxu0 %v1302
        %3724 = vmatpush.msra.mxu0 %v1286
        %3725 = vmatpush.msra.mxu0 %v1270
        %3726 = vmatpush.msra.mxu0 %v1254
        %3727 = vmatpush.msra.mxu0 %v1238
        %3728 = vmatpush.msra.mxu0 %v1222
        %3729 = vmatpush.msra.mxu0 %v1206
        %3730 = vmatpush.msra.mxu0 %v1190
        %3731 = vmatpush.msra.mxu0 %v1174
        %3732 = vmatpush.msra.mxu0 %v1158
        %3733 = vmatpush.msra.mxu0 %v1142
        %3734 = vmatmul.f32.gmra.mxu0 %v2412
        %v3735 = vpop.f32.mrf.mxu0
        %v3736 = vadd.f32 %v3713, %v3735
        %3737 = vmatmul.f32.gmra.mxu0 %v2416
        %v3738 = vpop.f32.mrf.mxu0
        %v3739 = vadd.f32 %v3716, %v3738
        %3740 = vdwg.mxu0
        %3741 = vmatpush.msra.mxu0 %v615
        %3742 = vmatpush.msra.mxu0 %v599
        %3743 = vmatpush.msra.mxu0 %v583
        %3744 = vmatpush.msra.mxu0 %v567
        %3745 = vmatpush.msra.mxu0 %v551
        %3746 = vmatpush.msra.mxu0 %v535
        %3747 = vmatpush.msra.mxu0 %v519
        %3748 = vmatpush.msra.mxu0 %v503
        %3749 = vmatpush.msra.mxu0 %v487
        %3750 = vmatpush.msra.mxu0 %v471
        %3751 = vmatpush.msra.mxu0 %v455
        %3752 = vmatpush.msra.mxu0 %v439
        %3753 = vmatpush.msra.mxu0 %v423
        %3754 = vmatpush.msra.mxu0 %v407
        %3755 = vmatpush.msra.mxu0 %v391
        %3756 = vmatpush.msra.mxu0 %v375
        %3757 = vmatmul.f32.gmra.mxu0 %v2409
        %v3758 = vpop.f32.mrf.mxu0
        %v3759 = vadd.f32 %v2435, %v3758
        %3760 = vmatmul.f32.gmra.mxu0 %v2413
        %v3761 = vpop.f32.mrf.mxu0
        %v3762 = vadd.f32 %v2435, %v3761
        %3763 = vdwg.mxu0
        %3764 = vmatpush.msra.mxu0 %v871
        %3765 = vmatpush.msra.mxu0 %v855
        %3766 = vmatpush.msra.mxu0 %v839
        %3767 = vmatpush.msra.mxu0 %v823
        %3768 = vmatpush.msra.mxu0 %v807
        %3769 = vmatpush.msra.mxu0 %v791
        %3770 = vmatpush.msra.mxu0 %v775
        %3771 = vmatpush.msra.mxu0 %v759
        %3772 = vmatpush.msra.mxu0 %v743
        %3773 = vmatpush.msra.mxu0 %v727
        %3774 = vmatpush.msra.mxu0 %v711
        %3775 = vmatpush.msra.mxu0 %v695
        %3776 = vmatpush.msra.mxu0 %v679
        %3777 = vmatpush.msra.mxu0 %v663
        %3778 = vmatpush.msra.mxu0 %v647
        %3779 = vmatpush.msra.mxu0 %v631
        %3780 = vmatmul.f32.gmra.mxu0 %v2410
        %v3781 = vpop.f32.mrf.mxu0
        %v3782 = vadd.f32 %v3759, %v3781
        %3783 = vmatmul.f32.gmra.mxu0 %v2414
        %v3784 = vpop.f32.mrf.mxu0
        %v3785 = vadd.f32 %v3762, %v3784
        %3786 = vdwg.mxu0
        %3787 = vmatpush.msra.mxu0 %v1127
        %3788 = vmatpush.msra.mxu0 %v1111
        %3789 = vmatpush.msra.mxu0 %v1095
        %3790 = vmatpush.msra.mxu0 %v1079
        %3791 = vmatpush.msra.mxu0 %v1063
        %3792 = vmatpush.msra.mxu0 %v1047
        %3793 = vmatpush.msra.mxu0 %v1031
        %3794 = vmatpush.msra.mxu0 %v1015
        %3795 = vmatpush.msra.mxu0 %v999
        %3796 = vmatpush.msra.mxu0 %v983
        %3797 = vmatpush.msra.mxu0 %v967
        %3798 = vmatpush.msra.mxu0 %v951
        %3799 = vmatpush.msra.mxu0 %v935
        %3800 = vmatpush.msra.mxu0 %v919
        %3801 = vmatpush.msra.mxu0 %v903
        %3802 = vmatpush.msra.mxu0 %v887
        %3803 = vmatmul.f32.gmra.mxu0 %v2411
        %v3804 = vpop.f32.mrf.mxu0
        %v3805 = vadd.f32 %v3782, %v3804
        %3806 = vmatmul.f32.gmra.mxu0 %v2415
        %v3807 = vpop.f32.mrf.mxu0
        %v3808 = vadd.f32 %v3785, %v3807
        %3809 = vdwg.mxu0
        %3810 = vmatpush.msra.mxu0 %v1383
        %3811 = vmatpush.msra.mxu0 %v1367
        %3812 = vmatpush.msra.mxu0 %v1351
        %3813 = vmatpush.msra.mxu0 %v1335
        %3814 = vmatpush.msra.mxu0 %v1319
        %3815 = vmatpush.msra.mxu0 %v1303
        %3816 = vmatpush.msra.mxu0 %v1287
        %3817 = vmatpush.msra.mxu0 %v1271
        %3818 = vmatpush.msra.mxu0 %v1255
        %3819 = vmatpush.msra.mxu0 %v1239
        %3820 = vmatpush.msra.mxu0 %v1223
        %3821 = vmatpush.msra.mxu0 %v1207
        %3822 = vmatpush.msra.mxu0 %v1191
        %3823 = vmatpush.msra.mxu0 %v1175
        %3824 = vmatpush.msra.mxu0 %v1159
        %3825 = vmatpush.msra.mxu0 %v1143
        %3826 = vmatmul.f32.gmra.mxu0 %v2412
        %v3827 = vpop.f32.mrf.mxu0
        %v3828 = vadd.f32 %v3805, %v3827
        %3829 = vmatmul.f32.gmra.mxu0 %v2416
        %v3830 = vpop.f32.mrf.mxu0
        %v3831 = vadd.f32 %v3808, %v3830
        %3832 = vdwg.mxu0
        %3833 = vmatpush.msra.mxu0 %v616
        %3834 = vmatpush.msra.mxu0 %v600
        %3835 = vmatpush.msra.mxu0 %v584
        %3836 = vmatpush.msra.mxu0 %v568
        %3837 = vmatpush.msra.mxu0 %v552
        %3838 = vmatpush.msra.mxu0 %v536
        %3839 = vmatpush.msra.mxu0 %v520
        %3840 = vmatpush.msra.mxu0 %v504
        %3841 = vmatpush.msra.mxu0 %v488
        %3842 = vmatpush.msra.mxu0 %v472
        %3843 = vmatpush.msra.mxu0 %v456
        %3844 = vmatpush.msra.mxu0 %v440
        %3845 = vmatpush.msra.mxu0 %v424
        %3846 = vmatpush.msra.mxu0 %v408
        %3847 = vmatpush.msra.mxu0 %v392
        %3848 = vmatpush.msra.mxu0 %v376
        %3849 = vmatmul.f32.gmra.mxu0 %v2409
        %v3850 = vpop.f32.mrf.mxu0
        %v3851 = vadd.f32 %v2436, %v3850
        %3852 = vmatmul.f32.gmra.mxu0 %v2413
        %v3853 = vpop.f32.mrf.mxu0
        %v3854 = vadd.f32 %v2436, %v3853
        %3855 = vdwg.mxu0
        %3856 = vmatpush.msra.mxu0 %v872
        %3857 = vmatpush.msra.mxu0 %v856
        %3858 = vmatpush.msra.mxu0 %v840
        %3859 = vmatpush.msra.mxu0 %v824
        %3860 = vmatpush.msra.mxu0 %v808
        %3861 = vmatpush.msra.mxu0 %v792
        %3862 = vmatpush.msra.mxu0 %v776
        %3863 = vmatpush.msra.mxu0 %v760
        %3864 = vmatpush.msra.mxu0 %v744
        %3865 = vmatpush.msra.mxu0 %v728
        %3866 = vmatpush.msra.mxu0 %v712
        %3867 = vmatpush.msra.mxu0 %v696
        %3868 = vmatpush.msra.mxu0 %v680
        %3869 = vmatpush.msra.mxu0 %v664
        %3870 = vmatpush.msra.mxu0 %v648
        %3871 = vmatpush.msra.mxu0 %v632
        %3872 = vmatmul.f32.gmra.mxu0 %v2410
        %v3873 = vpop.f32.mrf.mxu0
        %v3874 = vadd.f32 %v3851, %v3873
        %3875 = vmatmul.f32.gmra.mxu0 %v2414
        %v3876 = vpop.f32.mrf.mxu0
        %v3877 = vadd.f32 %v3854, %v3876
        %3878 = vdwg.mxu0
        %3879 = vmatpush.msra.mxu0 %v1128
        %3880 = vmatpush.msra.mxu0 %v1112
        %3881 = vmatpush.msra.mxu0 %v1096
        %3882 = vmatpush.msra.mxu0 %v1080
        %3883 = vmatpush.msra.mxu0 %v1064
        %3884 = vmatpush.msra.mxu0 %v1048
        %3885 = vmatpush.msra.mxu0 %v1032
        %3886 = vmatpush.msra.mxu0 %v1016
        %3887 = vmatpush.msra.mxu0 %v1000
        %3888 = vmatpush.msra.mxu0 %v984
        %3889 = vmatpush.msra.mxu0 %v968
        %3890 = vmatpush.msra.mxu0 %v952
        %3891 = vmatpush.msra.mxu0 %v936
        %3892 = vmatpush.msra.mxu0 %v920
        %3893 = vmatpush.msra.mxu0 %v904
        %3894 = vmatpush.msra.mxu0 %v888
        %3895 = vmatmul.f32.gmra.mxu0 %v2411
        %v3896 = vpop.f32.mrf.mxu0
        %v3897 = vadd.f32 %v3874, %v3896
        %3898 = vmatmul.f32.gmra.mxu0 %v2415
        %v3899 = vpop.f32.mrf.mxu0
        %v3900 = vadd.f32 %v3877, %v3899
        %3901 = vdwg.mxu0
        %3902 = vmatpush.msra.mxu0 %v1384
        %3903 = vmatpush.msra.mxu0 %v1368
        %3904 = vmatpush.msra.mxu0 %v1352
        %3905 = vmatpush.msra.mxu0 %v1336
        %3906 = vmatpush.msra.mxu0 %v1320
        %3907 = vmatpush.msra.mxu0 %v1304
        %3908 = vmatpush.msra.mxu0 %v1288
        %3909 = vmatpush.msra.mxu0 %v1272
        %3910 = vmatpush.msra.mxu0 %v1256
        %3911 = vmatpush.msra.mxu0 %v1240
        %3912 = vmatpush.msra.mxu0 %v1224
        %3913 = vmatpush.msra.mxu0 %v1208
        %3914 = vmatpush.msra.mxu0 %v1192
        %3915 = vmatpush.msra.mxu0 %v1176
        %3916 = vmatpush.msra.mxu0 %v1160
        %3917 = vmatpush.msra.mxu0 %v1144
        %3918 = vmatmul.f32.gmra.mxu0 %v2412
        %v3919 = vpop.f32.mrf.mxu0
        %v3920 = vadd.f32 %v3897, %v3919
        %3921 = vmatmul.f32.gmra.mxu0 %v2416
        %v3922 = vpop.f32.mrf.mxu0
        %v3923 = vadd.f32 %v3900, %v3922
        %3924 = vdwg.mxu0
        %v3925 = vmul.f32 %v2540, 0.5
        %v3926 = vmul.f32 %v2632, 0.5
        %v3927 = vmul.f32 %v2724, 0.5
        %v3928 = vmul.f32 %v2816, 0.5
        %v3929 = vmul.f32 %v2908, 0.5
        %v3930 = vmul.f32 %v3000, 0.5
        %v3931 = vmul.f32 %v3092, 0.5
        %v3932 = vmul.f32 %v3184, 0.5
        %v3933 = vmul.f32 %v3276, 0.5
        %v3934 = vmul.f32 %v3368, 0.5
        %v3935 = vmul.f32 %v3460, 0.5
        %v3936 = vmul.f32 %v3552, 0.5
        %v3937 = vmul.f32 %v3644, 0.5
        %v3938 = vmul.f32 %v3736, 0.5
        %v3939 = vmul.f32 %v3828, 0.5
        %v3940 = vmul.f32 %v3920, 0.5
        %v3941 = vmul.f32 %v2543, 0.5
        %v3942 = vmul.f32 %v2635, 0.5
        %v3943 = vmul.f32 %v2727, 0.5
        %v3944 = vmul.f32 %v2819, 0.5
        %v3945 = vmul.f32 %v2911, 0.5
        %v3946 = vmul.f32 %v3003, 0.5
        %v3947 = vmul.f32 %v3095, 0.5
        %v3948 = vmul.f32 %v3187, 0.5
        %v3949 = vmul.f32 %v3279, 0.5
        %v3950 = vmul.f32 %v3371, 0.5
        %v3951 = vmul.f32 %v3463, 0.5
        %v3952 = vmul.f32 %v3555, 0.5
        %v3953 = vmul.f32 %v3647, 0.5
        %v3954 = vmul.f32 %v3739, 0.5
        %v3955 = vmul.f32 %v3831, 0.5
        %v3956 = vmul.f32 %v3923, 0.5
        %v3957 = vmul.f32 %v2540, 0.70710677
        %v3958 = vmul.f32 %v2632, 0.70710677
        %v3959 = vmul.f32 %v2724, 0.70710677
        %v3960 = vmul.f32 %v2816, 0.70710677
        %v3961 = vmul.f32 %v2908, 0.70710677
        %v3962 = vmul.f32 %v3000, 0.70710677
        %v3963 = vmul.f32 %v3092, 0.70710677
        %v3964 = vmul.f32 %v3184, 0.70710677
        %v3965 = vmul.f32 %v3276, 0.70710677
        %v3966 = vmul.f32 %v3368, 0.70710677
        %v3967 = vmul.f32 %v3460, 0.70710677
        %v3968 = vmul.f32 %v3552, 0.70710677
        %v3969 = vmul.f32 %v3644, 0.70710677
        %v3970 = vmul.f32 %v3736, 0.70710677
        %v3971 = vmul.f32 %v3828, 0.70710677
        %v3972 = vmul.f32 %v3920, 0.70710677
        %v3973 = vmul.f32 %v2543, 0.70710677
        %v3974 = vmul.f32 %v2635, 0.70710677
        %v3975 = vmul.f32 %v2727, 0.70710677
        %v3976 = vmul.f32 %v2819, 0.70710677
        %v3977 = vmul.f32 %v2911, 0.70710677
        %v3978 = vmul.f32 %v3003, 0.70710677
        %v3979 = vmul.f32 %v3095, 0.70710677
        %v3980 = vmul.f32 %v3187, 0.70710677
        %v3981 = vmul.f32 %v3279, 0.70710677
        %v3982 = vmul.f32 %v3371, 0.70710677
        %v3983 = vmul.f32 %v3463, 0.70710677
        %v3984 = vmul.f32 %v3555, 0.70710677
        %v3985 = vmul.f32 %v3647, 0.70710677
        %v3986 = vmul.f32 %v3739, 0.70710677
        %v3987 = vmul.f32 %v3831, 0.70710677
        %v3988 = vmul.f32 %v3923, 0.70710677
        %v3989 = vmul.f32 %v3957, %v3957
        %v3990 = vmin.f32 16.0, %v3989
        %v3991 = vmul.f32 %v3990, 2.1237322e-06
        %v3992 = vadd.f32 %v3991, 0.00028619796
        %v3993 = vmul.f32 %v3990, %v3992
        %v3994 = vadd.f32 %v3993, 0.0036580483
        %v3995 = vmul.f32 %v3990, %v3994
        %v3996 = vadd.f32 %v3995, 0.05243302
        %v3997 = vmul.f32 %v3990, %v3996
        %v3998 = vadd.f32 %v3997, 0.18741608
        %v3999 = vmul.f32 %v3990, %v3998
        %v4000 = vadd.f32 %v3999, 1.1283791
        %v4001 = vmul.f32 %v3957, %v4000
        %v4002 = vmul.f32 %v3990, 3.8918573e-05
        %v4003 = vadd.f32 %v4002, 0.001143296
        %v4004 = vmul.f32 %v3990, %v4003
        %v4005 = vadd.f32 %v4004, 0.014752088
        %v4006 = vmul.f32 %v3990, %v4005
        %v4007 = vadd.f32 %v4006, 0.112945676
        %v4008 = vmul.f32 %v3990, %v4007
        %v4009 = vadd.f32 %v4008, 0.4994258
        %v4010 = vmul.f32 %v3990, %v4009
        %v4011 = vadd.f32 %v4010, 1.0
        %v4012 = vrcp.pop %v4011
        %v4013 = vmul.f32 %v4011, %v4012
        %v4014 = vsub.f32 1.0, %v4013
        %v4015 = vmul.f32 %v4012, %v4014
        %v4016 = vadd.f32 %v4012, %v4015
        %vm4017 = vweird.f32 %v4011
        %vm4018 = vweird.f32 %v4012
        %vm4019 = vmor %vm4017, %vm4018
        %v4020 = vsel %vm4019, %v4012, %v4016
        %v4021 = vand.u32 2147483647, %v4011
        %vm4022 = vcmp.eq.f32.partialorder %v4021, 8.507059e+37
        %v4023 = vand.u32 %v4011, 2147483648
        %v4024 = vor.u32 1.1754944e-38, %v4023
        %v4025 = vsel %vm4022, %v4024, %v4020
        %v4026 = vmul.f32 %v4001, %v4025
        %v4027 = vmin.f32 %v4026, 1.0
        %v4028 = vmax.f32 %v4027, -1.0
        %v4029 = vmul.f32 %v3958, %v3958
        %v4030 = vmin.f32 16.0, %v4029
        %v4031 = vmul.f32 %v4030, 2.1237322e-06
        %v4032 = vadd.f32 %v4031, 0.00028619796
        %v4033 = vmul.f32 %v4030, %v4032
        %v4034 = vadd.f32 %v4033, 0.0036580483
        %v4035 = vmul.f32 %v4030, %v4034
        %v4036 = vadd.f32 %v4035, 0.05243302
        %v4037 = vmul.f32 %v4030, %v4036
        %v4038 = vadd.f32 %v4037, 0.18741608
        %v4039 = vmul.f32 %v4030, %v4038
        %v4040 = vadd.f32 %v4039, 1.1283791
        %v4041 = vmul.f32 %v3958, %v4040
        %v4042 = vmul.f32 %v4030, 3.8918573e-05
        %v4043 = vadd.f32 %v4042, 0.001143296
        %v4044 = vmul.f32 %v4030, %v4043
        %v4045 = vadd.f32 %v4044, 0.014752088
        %v4046 = vmul.f32 %v4030, %v4045
        %v4047 = vadd.f32 %v4046, 0.112945676
        %v4048 = vmul.f32 %v4030, %v4047
        %v4049 = vadd.f32 %v4048, 0.4994258
        %v4050 = vmul.f32 %v4030, %v4049
        %v4051 = vadd.f32 %v4050, 1.0
        %v4052 = vrcp.pop %v4051
        %v4053 = vmul.f32 %v4051, %v4052
        %v4054 = vsub.f32 1.0, %v4053
        %v4055 = vmul.f32 %v4052, %v4054
        %v4056 = vadd.f32 %v4052, %v4055
        %vm4057 = vweird.f32 %v4051
        %vm4058 = vweird.f32 %v4052
        %vm4059 = vmor %vm4057, %vm4058
        %v4060 = vsel %vm4059, %v4052, %v4056
        %v4061 = vand.u32 2147483647, %v4051
        %vm4062 = vcmp.eq.f32.partialorder %v4061, 8.507059e+37
        %v4063 = vand.u32 %v4051, 2147483648
        %v4064 = vor.u32 1.1754944e-38, %v4063
        %v4065 = vsel %vm4062, %v4064, %v4060
        %v4066 = vmul.f32 %v4041, %v4065
        %v4067 = vmin.f32 %v4066, 1.0
        %v4068 = vmax.f32 %v4067, -1.0
        %v4069 = vmul.f32 %v3959, %v3959
        %v4070 = vmin.f32 16.0, %v4069
        %v4071 = vmul.f32 %v4070, 2.1237322e-06
        %v4072 = vadd.f32 %v4071, 0.00028619796
        %v4073 = vmul.f32 %v4070, %v4072
        %v4074 = vadd.f32 %v4073, 0.0036580483
        %v4075 = vmul.f32 %v4070, %v4074
        %v4076 = vadd.f32 %v4075, 0.05243302
        %v4077 = vmul.f32 %v4070, %v4076
        %v4078 = vadd.f32 %v4077, 0.18741608
        %v4079 = vmul.f32 %v4070, %v4078
        %v4080 = vadd.f32 %v4079, 1.1283791
        %v4081 = vmul.f32 %v3959, %v4080
        %v4082 = vmul.f32 %v4070, 3.8918573e-05
        %v4083 = vadd.f32 %v4082, 0.001143296
        %v4084 = vmul.f32 %v4070, %v4083
        %v4085 = vadd.f32 %v4084, 0.014752088
        %v4086 = vmul.f32 %v4070, %v4085
        %v4087 = vadd.f32 %v4086, 0.112945676
        %v4088 = vmul.f32 %v4070, %v4087
        %v4089 = vadd.f32 %v4088, 0.4994258
        %v4090 = vmul.f32 %v4070, %v4089
        %v4091 = vadd.f32 %v4090, 1.0
        %v4092 = vrcp.pop %v4091
        %v4093 = vmul.f32 %v4091, %v4092
        %v4094 = vsub.f32 1.0, %v4093
        %v4095 = vmul.f32 %v4092, %v4094
        %v4096 = vadd.f32 %v4092, %v4095
        %vm4097 = vweird.f32 %v4091
        %vm4098 = vweird.f32 %v4092
        %vm4099 = vmor %vm4097, %vm4098
        %v4100 = vsel %vm4099, %v4092, %v4096
        %v4101 = vand.u32 2147483647, %v4091
        %vm4102 = vcmp.eq.f32.partialorder %v4101, 8.507059e+37
        %v4103 = vand.u32 %v4091, 2147483648
        %v4104 = vor.u32 1.1754944e-38, %v4103
        %v4105 = vsel %vm4102, %v4104, %v4100
        %v4106 = vmul.f32 %v4081, %v4105
        %v4107 = vmin.f32 %v4106, 1.0
        %v4108 = vmax.f32 %v4107, -1.0
        %v4109 = vmul.f32 %v3960, %v3960
        %v4110 = vmin.f32 16.0, %v4109
        %v4111 = vmul.f32 %v4110, 2.1237322e-06
        %v4112 = vadd.f32 %v4111, 0.00028619796
        %v4113 = vmul.f32 %v4110, %v4112
        %v4114 = vadd.f32 %v4113, 0.0036580483
        %v4115 = vmul.f32 %v4110, %v4114
        %v4116 = vadd.f32 %v4115, 0.05243302
        %v4117 = vmul.f32 %v4110, %v4116
        %v4118 = vadd.f32 %v4117, 0.18741608
        %v4119 = vmul.f32 %v4110, %v4118
        %v4120 = vadd.f32 %v4119, 1.1283791
        %v4121 = vmul.f32 %v3960, %v4120
        %v4122 = vmul.f32 %v4110, 3.8918573e-05
        %v4123 = vadd.f32 %v4122, 0.001143296
        %v4124 = vmul.f32 %v4110, %v4123
        %v4125 = vadd.f32 %v4124, 0.014752088
        %v4126 = vmul.f32 %v4110, %v4125
        %v4127 = vadd.f32 %v4126, 0.112945676
        %v4128 = vmul.f32 %v4110, %v4127
        %v4129 = vadd.f32 %v4128, 0.4994258
        %v4130 = vmul.f32 %v4110, %v4129
        %v4131 = vadd.f32 %v4130, 1.0
        %v4132 = vrcp.pop %v4131
        %v4133 = vmul.f32 %v4131, %v4132
        %v4134 = vsub.f32 1.0, %v4133
        %v4135 = vmul.f32 %v4132, %v4134
        %v4136 = vadd.f32 %v4132, %v4135
        %vm4137 = vweird.f32 %v4131
        %vm4138 = vweird.f32 %v4132
        %vm4139 = vmor %vm4137, %vm4138
        %v4140 = vsel %vm4139, %v4132, %v4136
        %v4141 = vand.u32 2147483647, %v4131
        %vm4142 = vcmp.eq.f32.partialorder %v4141, 8.507059e+37
        %v4143 = vand.u32 %v4131, 2147483648
        %v4144 = vor.u32 1.1754944e-38, %v4143
        %v4145 = vsel %vm4142, %v4144, %v4140
        %v4146 = vmul.f32 %v4121, %v4145
        %v4147 = vmin.f32 %v4146, 1.0
        %v4148 = vmax.f32 %v4147, -1.0
        %v4149 = vmul.f32 %v3961, %v3961
        %v4150 = vmin.f32 16.0, %v4149
        %v4151 = vmul.f32 %v4150, 2.1237322e-06
        %v4152 = vadd.f32 %v4151, 0.00028619796
        %v4153 = vmul.f32 %v4150, %v4152
        %v4154 = vadd.f32 %v4153, 0.0036580483
        %v4155 = vmul.f32 %v4150, %v4154
        %v4156 = vadd.f32 %v4155, 0.05243302
        %v4157 = vmul.f32 %v4150, %v4156
        %v4158 = vadd.f32 %v4157, 0.18741608
        %v4159 = vmul.f32 %v4150, %v4158
        %v4160 = vadd.f32 %v4159, 1.1283791
        %v4161 = vmul.f32 %v3961, %v4160
        %v4162 = vmul.f32 %v4150, 3.8918573e-05
        %v4163 = vadd.f32 %v4162, 0.001143296
        %v4164 = vmul.f32 %v4150, %v4163
        %v4165 = vadd.f32 %v4164, 0.014752088
        %v4166 = vmul.f32 %v4150, %v4165
        %v4167 = vadd.f32 %v4166, 0.112945676
        %v4168 = vmul.f32 %v4150, %v4167
        %v4169 = vadd.f32 %v4168, 0.4994258
        %v4170 = vmul.f32 %v4150, %v4169
        %v4171 = vadd.f32 %v4170, 1.0
        %v4172 = vrcp.pop %v4171
        %v4173 = vmul.f32 %v4171, %v4172
        %v4174 = vsub.f32 1.0, %v4173
        %v4175 = vmul.f32 %v4172, %v4174
        %v4176 = vadd.f32 %v4172, %v4175
        %vm4177 = vweird.f32 %v4171
        %vm4178 = vweird.f32 %v4172
        %vm4179 = vmor %vm4177, %vm4178
        %v4180 = vsel %vm4179, %v4172, %v4176
        %v4181 = vand.u32 2147483647, %v4171
        %vm4182 = vcmp.eq.f32.partialorder %v4181, 8.507059e+37
        %v4183 = vand.u32 %v4171, 2147483648
        %v4184 = vor.u32 1.1754944e-38, %v4183
        %v4185 = vsel %vm4182, %v4184, %v4180
        %v4186 = vmul.f32 %v4161, %v4185
        %v4187 = vmin.f32 %v4186, 1.0
        %v4188 = vmax.f32 %v4187, -1.0
        %v4189 = vmul.f32 %v3962, %v3962
        %v4190 = vmin.f32 16.0, %v4189
        %v4191 = vmul.f32 %v4190, 2.1237322e-06
        %v4192 = vadd.f32 %v4191, 0.00028619796
        %v4193 = vmul.f32 %v4190, %v4192
        %v4194 = vadd.f32 %v4193, 0.0036580483
        %v4195 = vmul.f32 %v4190, %v4194
        %v4196 = vadd.f32 %v4195, 0.05243302
        %v4197 = vmul.f32 %v4190, %v4196
        %v4198 = vadd.f32 %v4197, 0.18741608
        %v4199 = vmul.f32 %v4190, %v4198
        %v4200 = vadd.f32 %v4199, 1.1283791
        %v4201 = vmul.f32 %v3962, %v4200
        %v4202 = vmul.f32 %v4190, 3.8918573e-05
        %v4203 = vadd.f32 %v4202, 0.001143296
        %v4204 = vmul.f32 %v4190, %v4203
        %v4205 = vadd.f32 %v4204, 0.014752088
        %v4206 = vmul.f32 %v4190, %v4205
        %v4207 = vadd.f32 %v4206, 0.112945676
        %v4208 = vmul.f32 %v4190, %v4207
        %v4209 = vadd.f32 %v4208, 0.4994258
        %v4210 = vmul.f32 %v4190, %v4209
        %v4211 = vadd.f32 %v4210, 1.0
        %v4212 = vrcp.pop %v4211
        %v4213 = vmul.f32 %v4211, %v4212
        %v4214 = vsub.f32 1.0, %v4213
        %v4215 = vmul.f32 %v4212, %v4214
        %v4216 = vadd.f32 %v4212, %v4215
        %vm4217 = vweird.f32 %v4211
        %vm4218 = vweird.f32 %v4212
        %vm4219 = vmor %vm4217, %vm4218
        %v4220 = vsel %vm4219, %v4212, %v4216
        %v4221 = vand.u32 2147483647, %v4211
        %vm4222 = vcmp.eq.f32.partialorder %v4221, 8.507059e+37
        %v4223 = vand.u32 %v4211, 2147483648
        %v4224 = vor.u32 1.1754944e-38, %v4223
        %v4225 = vsel %vm4222, %v4224, %v4220
        %v4226 = vmul.f32 %v4201, %v4225
        %v4227 = vmin.f32 %v4226, 1.0
        %v4228 = vmax.f32 %v4227, -1.0
        %v4229 = vmul.f32 %v3963, %v3963
        %v4230 = vmin.f32 16.0, %v4229
        %v4231 = vmul.f32 %v4230, 2.1237322e-06
        %v4232 = vadd.f32 %v4231, 0.00028619796
        %v4233 = vmul.f32 %v4230, %v4232
        %v4234 = vadd.f32 %v4233, 0.0036580483
        %v4235 = vmul.f32 %v4230, %v4234
        %v4236 = vadd.f32 %v4235, 0.05243302
        %v4237 = vmul.f32 %v4230, %v4236
        %v4238 = vadd.f32 %v4237, 0.18741608
        %v4239 = vmul.f32 %v4230, %v4238
        %v4240 = vadd.f32 %v4239, 1.1283791
        %v4241 = vmul.f32 %v3963, %v4240
        %v4242 = vmul.f32 %v4230, 3.8918573e-05
        %v4243 = vadd.f32 %v4242, 0.001143296
        %v4244 = vmul.f32 %v4230, %v4243
        %v4245 = vadd.f32 %v4244, 0.014752088
        %v4246 = vmul.f32 %v4230, %v4245
        %v4247 = vadd.f32 %v4246, 0.112945676
        %v4248 = vmul.f32 %v4230, %v4247
        %v4249 = vadd.f32 %v4248, 0.4994258
        %v4250 = vmul.f32 %v4230, %v4249
        %v4251 = vadd.f32 %v4250, 1.0
        %v4252 = vrcp.pop %v4251
        %v4253 = vmul.f32 %v4251, %v4252
        %v4254 = vsub.f32 1.0, %v4253
        %v4255 = vmul.f32 %v4252, %v4254
        %v4256 = vadd.f32 %v4252, %v4255
        %vm4257 = vweird.f32 %v4251
        %vm4258 = vweird.f32 %v4252
        %vm4259 = vmor %vm4257, %vm4258
        %v4260 = vsel %vm4259, %v4252, %v4256
        %v4261 = vand.u32 2147483647, %v4251
        %vm4262 = vcmp.eq.f32.partialorder %v4261, 8.507059e+37
        %v4263 = vand.u32 %v4251, 2147483648
        %v4264 = vor.u32 1.1754944e-38, %v4263
        %v4265 = vsel %vm4262, %v4264, %v4260
        %v4266 = vmul.f32 %v4241, %v4265
        %v4267 = vmin.f32 %v4266, 1.0
        %v4268 = vmax.f32 %v4267, -1.0
        %v4269 = vmul.f32 %v3964, %v3964
        %v4270 = vmin.f32 16.0, %v4269
        %v4271 = vmul.f32 %v4270, 2.1237322e-06
        %v4272 = vadd.f32 %v4271, 0.00028619796
        %v4273 = vmul.f32 %v4270, %v4272
        %v4274 = vadd.f32 %v4273, 0.0036580483
        %v4275 = vmul.f32 %v4270, %v4274
        %v4276 = vadd.f32 %v4275, 0.05243302
        %v4277 = vmul.f32 %v4270, %v4276
        %v4278 = vadd.f32 %v4277, 0.18741608
        %v4279 = vmul.f32 %v4270, %v4278
        %v4280 = vadd.f32 %v4279, 1.1283791
        %v4281 = vmul.f32 %v3964, %v4280
        %v4282 = vmul.f32 %v4270, 3.8918573e-05
        %v4283 = vadd.f32 %v4282, 0.001143296
        %v4284 = vmul.f32 %v4270, %v4283
        %v4285 = vadd.f32 %v4284, 0.014752088
        %v4286 = vmul.f32 %v4270, %v4285
        %v4287 = vadd.f32 %v4286, 0.112945676
        %v4288 = vmul.f32 %v4270, %v4287
        %v4289 = vadd.f32 %v4288, 0.4994258
        %v4290 = vmul.f32 %v4270, %v4289
        %v4291 = vadd.f32 %v4290, 1.0
        %v4292 = vrcp.pop %v4291
        %v4293 = vmul.f32 %v4291, %v4292
        %v4294 = vsub.f32 1.0, %v4293
        %v4295 = vmul.f32 %v4292, %v4294
        %v4296 = vadd.f32 %v4292, %v4295
        %vm4297 = vweird.f32 %v4291
        %vm4298 = vweird.f32 %v4292
        %vm4299 = vmor %vm4297, %vm4298
        %v4300 = vsel %vm4299, %v4292, %v4296
        %v4301 = vand.u32 2147483647, %v4291
        %vm4302 = vcmp.eq.f32.partialorder %v4301, 8.507059e+37
        %v4303 = vand.u32 %v4291, 2147483648
        %v4304 = vor.u32 1.1754944e-38, %v4303
        %v4305 = vsel %vm4302, %v4304, %v4300
        %v4306 = vmul.f32 %v4281, %v4305
        %v4307 = vmin.f32 %v4306, 1.0
        %v4308 = vmax.f32 %v4307, -1.0
        %v4309 = vmul.f32 %v3965, %v3965
        %v4310 = vmin.f32 16.0, %v4309
        %v4311 = vmul.f32 %v4310, 2.1237322e-06
        %v4312 = vadd.f32 %v4311, 0.00028619796
        %v4313 = vmul.f32 %v4310, %v4312
        %v4314 = vadd.f32 %v4313, 0.0036580483
        %v4315 = vmul.f32 %v4310, %v4314
        %v4316 = vadd.f32 %v4315, 0.05243302
        %v4317 = vmul.f32 %v4310, %v4316
        %v4318 = vadd.f32 %v4317, 0.18741608
        %v4319 = vmul.f32 %v4310, %v4318
        %v4320 = vadd.f32 %v4319, 1.1283791
        %v4321 = vmul.f32 %v3965, %v4320
        %v4322 = vmul.f32 %v4310, 3.8918573e-05
        %v4323 = vadd.f32 %v4322, 0.001143296
        %v4324 = vmul.f32 %v4310, %v4323
        %v4325 = vadd.f32 %v4324, 0.014752088
        %v4326 = vmul.f32 %v4310, %v4325
        %v4327 = vadd.f32 %v4326, 0.112945676
        %v4328 = vmul.f32 %v4310, %v4327
        %v4329 = vadd.f32 %v4328, 0.4994258
        %v4330 = vmul.f32 %v4310, %v4329
        %v4331 = vadd.f32 %v4330, 1.0
        %v4332 = vrcp.pop %v4331
        %v4333 = vmul.f32 %v4331, %v4332
        %v4334 = vsub.f32 1.0, %v4333
        %v4335 = vmul.f32 %v4332, %v4334
        %v4336 = vadd.f32 %v4332, %v4335
        %vm4337 = vweird.f32 %v4331
        %vm4338 = vweird.f32 %v4332
        %vm4339 = vmor %vm4337, %vm4338
        %v4340 = vsel %vm4339, %v4332, %v4336
        %v4341 = vand.u32 2147483647, %v4331
        %vm4342 = vcmp.eq.f32.partialorder %v4341, 8.507059e+37
        %v4343 = vand.u32 %v4331, 2147483648
        %v4344 = vor.u32 1.1754944e-38, %v4343
        %v4345 = vsel %vm4342, %v4344, %v4340
        %v4346 = vmul.f32 %v4321, %v4345
        %v4347 = vmin.f32 %v4346, 1.0
        %v4348 = vmax.f32 %v4347, -1.0
        %v4349 = vmul.f32 %v3966, %v3966
        %v4350 = vmin.f32 16.0, %v4349
        %v4351 = vmul.f32 %v4350, 2.1237322e-06
        %v4352 = vadd.f32 %v4351, 0.00028619796
        %v4353 = vmul.f32 %v4350, %v4352
        %v4354 = vadd.f32 %v4353, 0.0036580483
        %v4355 = vmul.f32 %v4350, %v4354
        %v4356 = vadd.f32 %v4355, 0.05243302
        %v4357 = vmul.f32 %v4350, %v4356
        %v4358 = vadd.f32 %v4357, 0.18741608
        %v4359 = vmul.f32 %v4350, %v4358
        %v4360 = vadd.f32 %v4359, 1.1283791
        %v4361 = vmul.f32 %v3966, %v4360
        %v4362 = vmul.f32 %v4350, 3.8918573e-05
        %v4363 = vadd.f32 %v4362, 0.001143296
        %v4364 = vmul.f32 %v4350, %v4363
        %v4365 = vadd.f32 %v4364, 0.014752088
        %v4366 = vmul.f32 %v4350, %v4365
        %v4367 = vadd.f32 %v4366, 0.112945676
        %v4368 = vmul.f32 %v4350, %v4367
        %v4369 = vadd.f32 %v4368, 0.4994258
        %v4370 = vmul.f32 %v4350, %v4369
        %v4371 = vadd.f32 %v4370, 1.0
        %v4372 = vrcp.pop %v4371
        %v4373 = vmul.f32 %v4371, %v4372
        %v4374 = vsub.f32 1.0, %v4373
        %v4375 = vmul.f32 %v4372, %v4374
        %v4376 = vadd.f32 %v4372, %v4375
        %vm4377 = vweird.f32 %v4371
        %vm4378 = vweird.f32 %v4372
        %vm4379 = vmor %vm4377, %vm4378
        %v4380 = vsel %vm4379, %v4372, %v4376
        %v4381 = vand.u32 2147483647, %v4371
        %vm4382 = vcmp.eq.f32.partialorder %v4381, 8.507059e+37
        %v4383 = vand.u32 %v4371, 2147483648
        %v4384 = vor.u32 1.1754944e-38, %v4383
        %v4385 = vsel %vm4382, %v4384, %v4380
        %v4386 = vmul.f32 %v4361, %v4385
        %v4387 = vmin.f32 %v4386, 1.0
        %v4388 = vmax.f32 %v4387, -1.0
        %v4389 = vmul.f32 %v3967, %v3967
        %v4390 = vmin.f32 16.0, %v4389
        %v4391 = vmul.f32 %v4390, 2.1237322e-06
        %v4392 = vadd.f32 %v4391, 0.00028619796
        %v4393 = vmul.f32 %v4390, %v4392
        %v4394 = vadd.f32 %v4393, 0.0036580483
        %v4395 = vmul.f32 %v4390, %v4394
        %v4396 = vadd.f32 %v4395, 0.05243302
        %v4397 = vmul.f32 %v4390, %v4396
        %v4398 = vadd.f32 %v4397, 0.18741608
        %v4399 = vmul.f32 %v4390, %v4398
        %v4400 = vadd.f32 %v4399, 1.1283791
        %v4401 = vmul.f32 %v3967, %v4400
        %v4402 = vmul.f32 %v4390, 3.8918573e-05
        %v4403 = vadd.f32 %v4402, 0.001143296
        %v4404 = vmul.f32 %v4390, %v4403
        %v4405 = vadd.f32 %v4404, 0.014752088
        %v4406 = vmul.f32 %v4390, %v4405
        %v4407 = vadd.f32 %v4406, 0.112945676
        %v4408 = vmul.f32 %v4390, %v4407
        %v4409 = vadd.f32 %v4408, 0.4994258
        %v4410 = vmul.f32 %v4390, %v4409
        %v4411 = vadd.f32 %v4410, 1.0
        %v4412 = vrcp.pop %v4411
        %v4413 = vmul.f32 %v4411, %v4412
        %v4414 = vsub.f32 1.0, %v4413
        %v4415 = vmul.f32 %v4412, %v4414
        %v4416 = vadd.f32 %v4412, %v4415
        %vm4417 = vweird.f32 %v4411
        %vm4418 = vweird.f32 %v4412
        %vm4419 = vmor %vm4417, %vm4418
        %v4420 = vsel %vm4419, %v4412, %v4416
        %v4421 = vand.u32 2147483647, %v4411
        %vm4422 = vcmp.eq.f32.partialorder %v4421, 8.507059e+37
        %v4423 = vand.u32 %v4411, 2147483648
        %v4424 = vor.u32 1.1754944e-38, %v4423
        %v4425 = vsel %vm4422, %v4424, %v4420
        %v4426 = vmul.f32 %v4401, %v4425
        %v4427 = vmin.f32 %v4426, 1.0
        %v4428 = vmax.f32 %v4427, -1.0
        %v4429 = vmul.f32 %v3968, %v3968
        %v4430 = vmin.f32 16.0, %v4429
        %v4431 = vmul.f32 %v4430, 2.1237322e-06
        %v4432 = vadd.f32 %v4431, 0.00028619796
        %v4433 = vmul.f32 %v4430, %v4432
        %v4434 = vadd.f32 %v4433, 0.0036580483
        %v4435 = vmul.f32 %v4430, %v4434
        %v4436 = vadd.f32 %v4435, 0.05243302
        %v4437 = vmul.f32 %v4430, %v4436
        %v4438 = vadd.f32 %v4437, 0.18741608
        %v4439 = vmul.f32 %v4430, %v4438
        %v4440 = vadd.f32 %v4439, 1.1283791
        %v4441 = vmul.f32 %v3968, %v4440
        %v4442 = vmul.f32 %v4430, 3.8918573e-05
        %v4443 = vadd.f32 %v4442, 0.001143296
        %v4444 = vmul.f32 %v4430, %v4443
        %v4445 = vadd.f32 %v4444, 0.014752088
        %v4446 = vmul.f32 %v4430, %v4445
        %v4447 = vadd.f32 %v4446, 0.112945676
        %v4448 = vmul.f32 %v4430, %v4447
        %v4449 = vadd.f32 %v4448, 0.4994258
        %v4450 = vmul.f32 %v4430, %v4449
        %v4451 = vadd.f32 %v4450, 1.0
        %v4452 = vrcp.pop %v4451
        %v4453 = vmul.f32 %v4451, %v4452
        %v4454 = vsub.f32 1.0, %v4453
        %v4455 = vmul.f32 %v4452, %v4454
        %v4456 = vadd.f32 %v4452, %v4455
        %vm4457 = vweird.f32 %v4451
        %vm4458 = vweird.f32 %v4452
        %vm4459 = vmor %vm4457, %vm4458
        %v4460 = vsel %vm4459, %v4452, %v4456
        %v4461 = vand.u32 2147483647, %v4451
        %vm4462 = vcmp.eq.f32.partialorder %v4461, 8.507059e+37
        %v4463 = vand.u32 %v4451, 2147483648
        %v4464 = vor.u32 1.1754944e-38, %v4463
        %v4465 = vsel %vm4462, %v4464, %v4460
        %v4466 = vmul.f32 %v4441, %v4465
        %v4467 = vmin.f32 %v4466, 1.0
        %v4468 = vmax.f32 %v4467, -1.0
        %v4469 = vmul.f32 %v3969, %v3969
        %v4470 = vmin.f32 16.0, %v4469
        %v4471 = vmul.f32 %v4470, 2.1237322e-06
        %v4472 = vadd.f32 %v4471, 0.00028619796
        %v4473 = vmul.f32 %v4470, %v4472
        %v4474 = vadd.f32 %v4473, 0.0036580483
        %v4475 = vmul.f32 %v4470, %v4474
        %v4476 = vadd.f32 %v4475, 0.05243302
        %v4477 = vmul.f32 %v4470, %v4476
        %v4478 = vadd.f32 %v4477, 0.18741608
        %v4479 = vmul.f32 %v4470, %v4478
        %v4480 = vadd.f32 %v4479, 1.1283791
        %v4481 = vmul.f32 %v3969, %v4480
        %v4482 = vmul.f32 %v4470, 3.8918573e-05
        %v4483 = vadd.f32 %v4482, 0.001143296
        %v4484 = vmul.f32 %v4470, %v4483
        %v4485 = vadd.f32 %v4484, 0.014752088
        %v4486 = vmul.f32 %v4470, %v4485
        %v4487 = vadd.f32 %v4486, 0.112945676
        %v4488 = vmul.f32 %v4470, %v4487
        %v4489 = vadd.f32 %v4488, 0.4994258
        %v4490 = vmul.f32 %v4470, %v4489
        %v4491 = vadd.f32 %v4490, 1.0
        %v4492 = vrcp.pop %v4491
        %v4493 = vmul.f32 %v4491, %v4492
        %v4494 = vsub.f32 1.0, %v4493
        %v4495 = vmul.f32 %v4492, %v4494
        %v4496 = vadd.f32 %v4492, %v4495
        %vm4497 = vweird.f32 %v4491
        %vm4498 = vweird.f32 %v4492
        %vm4499 = vmor %vm4497, %vm4498
        %v4500 = vsel %vm4499, %v4492, %v4496
        %v4501 = vand.u32 2147483647, %v4491
        %vm4502 = vcmp.eq.f32.partialorder %v4501, 8.507059e+37
        %v4503 = vand.u32 %v4491, 2147483648
        %v4504 = vor.u32 1.1754944e-38, %v4503
        %v4505 = vsel %vm4502, %v4504, %v4500
        %v4506 = vmul.f32 %v4481, %v4505
        %v4507 = vmin.f32 %v4506, 1.0
        %v4508 = vmax.f32 %v4507, -1.0
        %v4509 = vmul.f32 %v3970, %v3970
        %v4510 = vmin.f32 16.0, %v4509
        %v4511 = vmul.f32 %v4510, 2.1237322e-06
        %v4512 = vadd.f32 %v4511, 0.00028619796
        %v4513 = vmul.f32 %v4510, %v4512
        %v4514 = vadd.f32 %v4513, 0.0036580483
        %v4515 = vmul.f32 %v4510, %v4514
        %v4516 = vadd.f32 %v4515, 0.05243302
        %v4517 = vmul.f32 %v4510, %v4516
        %v4518 = vadd.f32 %v4517, 0.18741608
        %v4519 = vmul.f32 %v4510, %v4518
        %v4520 = vadd.f32 %v4519, 1.1283791
        %v4521 = vmul.f32 %v3970, %v4520
        %v4522 = vmul.f32 %v4510, 3.8918573e-05
        %v4523 = vadd.f32 %v4522, 0.001143296
        %v4524 = vmul.f32 %v4510, %v4523
        %v4525 = vadd.f32 %v4524, 0.014752088
        %v4526 = vmul.f32 %v4510, %v4525
        %v4527 = vadd.f32 %v4526, 0.112945676
        %v4528 = vmul.f32 %v4510, %v4527
        %v4529 = vadd.f32 %v4528, 0.4994258
        %v4530 = vmul.f32 %v4510, %v4529
        %v4531 = vadd.f32 %v4530, 1.0
        %v4532 = vrcp.pop %v4531
        %v4533 = vmul.f32 %v4531, %v4532
        %v4534 = vsub.f32 1.0, %v4533
        %v4535 = vmul.f32 %v4532, %v4534
        %v4536 = vadd.f32 %v4532, %v4535
        %vm4537 = vweird.f32 %v4531
        %vm4538 = vweird.f32 %v4532
        %vm4539 = vmor %vm4537, %vm4538
        %v4540 = vsel %vm4539, %v4532, %v4536
        %v4541 = vand.u32 2147483647, %v4531
        %vm4542 = vcmp.eq.f32.partialorder %v4541, 8.507059e+37
        %v4543 = vand.u32 %v4531, 2147483648
        %v4544 = vor.u32 1.1754944e-38, %v4543
        %v4545 = vsel %vm4542, %v4544, %v4540
        %v4546 = vmul.f32 %v4521, %v4545
        %v4547 = vmin.f32 %v4546, 1.0
        %v4548 = vmax.f32 %v4547, -1.0
        %v4549 = vmul.f32 %v3971, %v3971
        %v4550 = vmin.f32 16.0, %v4549
        %v4551 = vmul.f32 %v4550, 2.1237322e-06
        %v4552 = vadd.f32 %v4551, 0.00028619796
        %v4553 = vmul.f32 %v4550, %v4552
        %v4554 = vadd.f32 %v4553, 0.0036580483
        %v4555 = vmul.f32 %v4550, %v4554
        %v4556 = vadd.f32 %v4555, 0.05243302
        %v4557 = vmul.f32 %v4550, %v4556
        %v4558 = vadd.f32 %v4557, 0.18741608
        %v4559 = vmul.f32 %v4550, %v4558
        %v4560 = vadd.f32 %v4559, 1.1283791
        %v4561 = vmul.f32 %v3971, %v4560
        %v4562 = vmul.f32 %v4550, 3.8918573e-05
        %v4563 = vadd.f32 %v4562, 0.001143296
        %v4564 = vmul.f32 %v4550, %v4563
        %v4565 = vadd.f32 %v4564, 0.014752088
        %v4566 = vmul.f32 %v4550, %v4565
        %v4567 = vadd.f32 %v4566, 0.112945676
        %v4568 = vmul.f32 %v4550, %v4567
        %v4569 = vadd.f32 %v4568, 0.4994258
        %v4570 = vmul.f32 %v4550, %v4569
        %v4571 = vadd.f32 %v4570, 1.0
        %v4572 = vrcp.pop %v4571
        %v4573 = vmul.f32 %v4571, %v4572
        %v4574 = vsub.f32 1.0, %v4573
        %v4575 = vmul.f32 %v4572, %v4574
        %v4576 = vadd.f32 %v4572, %v4575
        %vm4577 = vweird.f32 %v4571
        %vm4578 = vweird.f32 %v4572
        %vm4579 = vmor %vm4577, %vm4578
        %v4580 = vsel %vm4579, %v4572, %v4576
        %v4581 = vand.u32 2147483647, %v4571
        %vm4582 = vcmp.eq.f32.partialorder %v4581, 8.507059e+37
        %v4583 = vand.u32 %v4571, 2147483648
        %v4584 = vor.u32 1.1754944e-38, %v4583
        %v4585 = vsel %vm4582, %v4584, %v4580
        %v4586 = vmul.f32 %v4561, %v4585
        %v4587 = vmin.f32 %v4586, 1.0
        %v4588 = vmax.f32 %v4587, -1.0
        %v4589 = vmul.f32 %v3972, %v3972
        %v4590 = vmin.f32 16.0, %v4589
        %v4591 = vmul.f32 %v4590, 2.1237322e-06
        %v4592 = vadd.f32 %v4591, 0.00028619796
        %v4593 = vmul.f32 %v4590, %v4592
        %v4594 = vadd.f32 %v4593, 0.0036580483
        %v4595 = vmul.f32 %v4590, %v4594
        %v4596 = vadd.f32 %v4595, 0.05243302
        %v4597 = vmul.f32 %v4590, %v4596
        %v4598 = vadd.f32 %v4597, 0.18741608
        %v4599 = vmul.f32 %v4590, %v4598
        %v4600 = vadd.f32 %v4599, 1.1283791
        %v4601 = vmul.f32 %v3972, %v4600
        %v4602 = vmul.f32 %v4590, 3.8918573e-05
        %v4603 = vadd.f32 %v4602, 0.001143296
        %v4604 = vmul.f32 %v4590, %v4603
        %v4605 = vadd.f32 %v4604, 0.014752088
        %v4606 = vmul.f32 %v4590, %v4605
        %v4607 = vadd.f32 %v4606, 0.112945676
        %v4608 = vmul.f32 %v4590, %v4607
        %v4609 = vadd.f32 %v4608, 0.4994258
        %v4610 = vmul.f32 %v4590, %v4609
        %v4611 = vadd.f32 %v4610, 1.0
        %v4612 = vrcp.pop %v4611
        %v4613 = vmul.f32 %v4611, %v4612
        %v4614 = vsub.f32 1.0, %v4613
        %v4615 = vmul.f32 %v4612, %v4614
        %v4616 = vadd.f32 %v4612, %v4615
        %vm4617 = vweird.f32 %v4611
        %vm4618 = vweird.f32 %v4612
        %vm4619 = vmor %vm4617, %vm4618
        %v4620 = vsel %vm4619, %v4612, %v4616
        %v4621 = vand.u32 2147483647, %v4611
        %vm4622 = vcmp.eq.f32.partialorder %v4621, 8.507059e+37
        %v4623 = vand.u32 %v4611, 2147483648
        %v4624 = vor.u32 1.1754944e-38, %v4623
        %v4625 = vsel %vm4622, %v4624, %v4620
        %v4626 = vmul.f32 %v4601, %v4625
        %v4627 = vmin.f32 %v4626, 1.0
        %v4628 = vmax.f32 %v4627, -1.0
        %v4629 = vmul.f32 %v3973, %v3973
        %v4630 = vmin.f32 16.0, %v4629
        %v4631 = vmul.f32 %v4630, 2.1237322e-06
        %v4632 = vadd.f32 %v4631, 0.00028619796
        %v4633 = vmul.f32 %v4630, %v4632
        %v4634 = vadd.f32 %v4633, 0.0036580483
        %v4635 = vmul.f32 %v4630, %v4634
        %v4636 = vadd.f32 %v4635, 0.05243302
        %v4637 = vmul.f32 %v4630, %v4636
        %v4638 = vadd.f32 %v4637, 0.18741608
        %v4639 = vmul.f32 %v4630, %v4638
        %v4640 = vadd.f32 %v4639, 1.1283791
        %v4641 = vmul.f32 %v3973, %v4640
        %v4642 = vmul.f32 %v4630, 3.8918573e-05
        %v4643 = vadd.f32 %v4642, 0.001143296
        %v4644 = vmul.f32 %v4630, %v4643
        %v4645 = vadd.f32 %v4644, 0.014752088
        %v4646 = vmul.f32 %v4630, %v4645
        %v4647 = vadd.f32 %v4646, 0.112945676
        %v4648 = vmul.f32 %v4630, %v4647
        %v4649 = vadd.f32 %v4648, 0.4994258
        %v4650 = vmul.f32 %v4630, %v4649
        %v4651 = vadd.f32 %v4650, 1.0
        %v4652 = vrcp.pop %v4651
        %v4653 = vmul.f32 %v4651, %v4652
        %v4654 = vsub.f32 1.0, %v4653
        %v4655 = vmul.f32 %v4652, %v4654
        %v4656 = vadd.f32 %v4652, %v4655
        %vm4657 = vweird.f32 %v4651
        %vm4658 = vweird.f32 %v4652
        %vm4659 = vmor %vm4657, %vm4658
        %v4660 = vsel %vm4659, %v4652, %v4656
        %v4661 = vand.u32 2147483647, %v4651
        %vm4662 = vcmp.eq.f32.partialorder %v4661, 8.507059e+37
        %v4663 = vand.u32 %v4651, 2147483648
        %v4664 = vor.u32 1.1754944e-38, %v4663
        %v4665 = vsel %vm4662, %v4664, %v4660
        %v4666 = vmul.f32 %v4641, %v4665
        %v4667 = vmin.f32 %v4666, 1.0
        %v4668 = vmax.f32 %v4667, -1.0
        %v4669 = vmul.f32 %v3974, %v3974
        %v4670 = vmin.f32 16.0, %v4669
        %v4671 = vmul.f32 %v4670, 2.1237322e-06
        %v4672 = vadd.f32 %v4671, 0.00028619796
        %v4673 = vmul.f32 %v4670, %v4672
        %v4674 = vadd.f32 %v4673, 0.0036580483
        %v4675 = vmul.f32 %v4670, %v4674
        %v4676 = vadd.f32 %v4675, 0.05243302
        %v4677 = vmul.f32 %v4670, %v4676
        %v4678 = vadd.f32 %v4677, 0.18741608
        %v4679 = vmul.f32 %v4670, %v4678
        %v4680 = vadd.f32 %v4679, 1.1283791
        %v4681 = vmul.f32 %v3974, %v4680
        %v4682 = vmul.f32 %v4670, 3.8918573e-05
        %v4683 = vadd.f32 %v4682, 0.001143296
        %v4684 = vmul.f32 %v4670, %v4683
        %v4685 = vadd.f32 %v4684, 0.014752088
        %v4686 = vmul.f32 %v4670, %v4685
        %v4687 = vadd.f32 %v4686, 0.112945676
        %v4688 = vmul.f32 %v4670, %v4687
        %v4689 = vadd.f32 %v4688, 0.4994258
        %v4690 = vmul.f32 %v4670, %v4689
        %v4691 = vadd.f32 %v4690, 1.0
        %v4692 = vrcp.pop %v4691
        %v4693 = vmul.f32 %v4691, %v4692
        %v4694 = vsub.f32 1.0, %v4693
        %v4695 = vmul.f32 %v4692, %v4694
        %v4696 = vadd.f32 %v4692, %v4695
        %vm4697 = vweird.f32 %v4691
        %vm4698 = vweird.f32 %v4692
        %vm4699 = vmor %vm4697, %vm4698
        %v4700 = vsel %vm4699, %v4692, %v4696
        %v4701 = vand.u32 2147483647, %v4691
        %vm4702 = vcmp.eq.f32.partialorder %v4701, 8.507059e+37
        %v4703 = vand.u32 %v4691, 2147483648
        %v4704 = vor.u32 1.1754944e-38, %v4703
        %v4705 = vsel %vm4702, %v4704, %v4700
        %v4706 = vmul.f32 %v4681, %v4705
        %v4707 = vmin.f32 %v4706, 1.0
        %v4708 = vmax.f32 %v4707, -1.0
        %v4709 = vmul.f32 %v3975, %v3975
        %v4710 = vmin.f32 16.0, %v4709
        %v4711 = vmul.f32 %v4710, 2.1237322e-06
        %v4712 = vadd.f32 %v4711, 0.00028619796
        %v4713 = vmul.f32 %v4710, %v4712
        %v4714 = vadd.f32 %v4713, 0.0036580483
        %v4715 = vmul.f32 %v4710, %v4714
        %v4716 = vadd.f32 %v4715, 0.05243302
        %v4717 = vmul.f32 %v4710, %v4716
        %v4718 = vadd.f32 %v4717, 0.18741608
        %v4719 = vmul.f32 %v4710, %v4718
        %v4720 = vadd.f32 %v4719, 1.1283791
        %v4721 = vmul.f32 %v3975, %v4720
        %v4722 = vmul.f32 %v4710, 3.8918573e-05
        %v4723 = vadd.f32 %v4722, 0.001143296
        %v4724 = vmul.f32 %v4710, %v4723
        %v4725 = vadd.f32 %v4724, 0.014752088
        %v4726 = vmul.f32 %v4710, %v4725
        %v4727 = vadd.f32 %v4726, 0.112945676
        %v4728 = vmul.f32 %v4710, %v4727
        %v4729 = vadd.f32 %v4728, 0.4994258
        %v4730 = vmul.f32 %v4710, %v4729
        %v4731 = vadd.f32 %v4730, 1.0
        %v4732 = vrcp.pop %v4731
        %v4733 = vmul.f32 %v4731, %v4732
        %v4734 = vsub.f32 1.0, %v4733
        %v4735 = vmul.f32 %v4732, %v4734
        %v4736 = vadd.f32 %v4732, %v4735
        %vm4737 = vweird.f32 %v4731
        %vm4738 = vweird.f32 %v4732
        %vm4739 = vmor %vm4737, %vm4738
        %v4740 = vsel %vm4739, %v4732, %v4736
        %v4741 = vand.u32 2147483647, %v4731
        %vm4742 = vcmp.eq.f32.partialorder %v4741, 8.507059e+37
        %v4743 = vand.u32 %v4731, 2147483648
        %v4744 = vor.u32 1.1754944e-38, %v4743
        %v4745 = vsel %vm4742, %v4744, %v4740
        %v4746 = vmul.f32 %v4721, %v4745
        %v4747 = vmin.f32 %v4746, 1.0
        %v4748 = vmax.f32 %v4747, -1.0
        %v4749 = vmul.f32 %v3976, %v3976
        %v4750 = vmin.f32 16.0, %v4749
        %v4751 = vmul.f32 %v4750, 2.1237322e-06
        %v4752 = vadd.f32 %v4751, 0.00028619796
        %v4753 = vmul.f32 %v4750, %v4752
        %v4754 = vadd.f32 %v4753, 0.0036580483
        %v4755 = vmul.f32 %v4750, %v4754
        %v4756 = vadd.f32 %v4755, 0.05243302
        %v4757 = vmul.f32 %v4750, %v4756
        %v4758 = vadd.f32 %v4757, 0.18741608
        %v4759 = vmul.f32 %v4750, %v4758
        %v4760 = vadd.f32 %v4759, 1.1283791
        %v4761 = vmul.f32 %v3976, %v4760
        %v4762 = vmul.f32 %v4750, 3.8918573e-05
        %v4763 = vadd.f32 %v4762, 0.001143296
        %v4764 = vmul.f32 %v4750, %v4763
        %v4765 = vadd.f32 %v4764, 0.014752088
        %v4766 = vmul.f32 %v4750, %v4765
        %v4767 = vadd.f32 %v4766, 0.112945676
        %v4768 = vmul.f32 %v4750, %v4767
        %v4769 = vadd.f32 %v4768, 0.4994258
        %v4770 = vmul.f32 %v4750, %v4769
        %v4771 = vadd.f32 %v4770, 1.0
        %v4772 = vrcp.pop %v4771
        %v4773 = vmul.f32 %v4771, %v4772
        %v4774 = vsub.f32 1.0, %v4773
        %v4775 = vmul.f32 %v4772, %v4774
        %v4776 = vadd.f32 %v4772, %v4775
        %vm4777 = vweird.f32 %v4771
        %vm4778 = vweird.f32 %v4772
        %vm4779 = vmor %vm4777, %vm4778
        %v4780 = vsel %vm4779, %v4772, %v4776
        %v4781 = vand.u32 2147483647, %v4771
        %vm4782 = vcmp.eq.f32.partialorder %v4781, 8.507059e+37
        %v4783 = vand.u32 %v4771, 2147483648
        %v4784 = vor.u32 1.1754944e-38, %v4783
        %v4785 = vsel %vm4782, %v4784, %v4780
        %v4786 = vmul.f32 %v4761, %v4785
        %v4787 = vmin.f32 %v4786, 1.0
        %v4788 = vmax.f32 %v4787, -1.0
        %v4789 = vmul.f32 %v3977, %v3977
        %v4790 = vmin.f32 16.0, %v4789
        %v4791 = vmul.f32 %v4790, 2.1237322e-06
        %v4792 = vadd.f32 %v4791, 0.00028619796
        %v4793 = vmul.f32 %v4790, %v4792
        %v4794 = vadd.f32 %v4793, 0.0036580483
        %v4795 = vmul.f32 %v4790, %v4794
        %v4796 = vadd.f32 %v4795, 0.05243302
        %v4797 = vmul.f32 %v4790, %v4796
        %v4798 = vadd.f32 %v4797, 0.18741608
        %v4799 = vmul.f32 %v4790, %v4798
        %v4800 = vadd.f32 %v4799, 1.1283791
        %v4801 = vmul.f32 %v3977, %v4800
        %v4802 = vmul.f32 %v4790, 3.8918573e-05
        %v4803 = vadd.f32 %v4802, 0.001143296
        %v4804 = vmul.f32 %v4790, %v4803
        %v4805 = vadd.f32 %v4804, 0.014752088
        %v4806 = vmul.f32 %v4790, %v4805
        %v4807 = vadd.f32 %v4806, 0.112945676
        %v4808 = vmul.f32 %v4790, %v4807
        %v4809 = vadd.f32 %v4808, 0.4994258
        %v4810 = vmul.f32 %v4790, %v4809
        %v4811 = vadd.f32 %v4810, 1.0
        %v4812 = vrcp.pop %v4811
        %v4813 = vmul.f32 %v4811, %v4812
        %v4814 = vsub.f32 1.0, %v4813
        %v4815 = vmul.f32 %v4812, %v4814
        %v4816 = vadd.f32 %v4812, %v4815
        %vm4817 = vweird.f32 %v4811
        %vm4818 = vweird.f32 %v4812
        %vm4819 = vmor %vm4817, %vm4818
        %v4820 = vsel %vm4819, %v4812, %v4816
        %v4821 = vand.u32 2147483647, %v4811
        %vm4822 = vcmp.eq.f32.partialorder %v4821, 8.507059e+37
        %v4823 = vand.u32 %v4811, 2147483648
        %v4824 = vor.u32 1.1754944e-38, %v4823
        %v4825 = vsel %vm4822, %v4824, %v4820
        %v4826 = vmul.f32 %v4801, %v4825
        %v4827 = vmin.f32 %v4826, 1.0
        %v4828 = vmax.f32 %v4827, -1.0
        %v4829 = vmul.f32 %v3978, %v3978
        %v4830 = vmin.f32 16.0, %v4829
        %v4831 = vmul.f32 %v4830, 2.1237322e-06
        %v4832 = vadd.f32 %v4831, 0.00028619796
        %v4833 = vmul.f32 %v4830, %v4832
        %v4834 = vadd.f32 %v4833, 0.0036580483
        %v4835 = vmul.f32 %v4830, %v4834
        %v4836 = vadd.f32 %v4835, 0.05243302
        %v4837 = vmul.f32 %v4830, %v4836
        %v4838 = vadd.f32 %v4837, 0.18741608
        %v4839 = vmul.f32 %v4830, %v4838
        %v4840 = vadd.f32 %v4839, 1.1283791
        %v4841 = vmul.f32 %v3978, %v4840
        %v4842 = vmul.f32 %v4830, 3.8918573e-05
        %v4843 = vadd.f32 %v4842, 0.001143296
        %v4844 = vmul.f32 %v4830, %v4843
        %v4845 = vadd.f32 %v4844, 0.014752088
        %v4846 = vmul.f32 %v4830, %v4845
        %v4847 = vadd.f32 %v4846, 0.112945676
        %v4848 = vmul.f32 %v4830, %v4847
        %v4849 = vadd.f32 %v4848, 0.4994258
        %v4850 = vmul.f32 %v4830, %v4849
        %v4851 = vadd.f32 %v4850, 1.0
        %v4852 = vrcp.pop %v4851
        %v4853 = vmul.f32 %v4851, %v4852
        %v4854 = vsub.f32 1.0, %v4853
        %v4855 = vmul.f32 %v4852, %v4854
        %v4856 = vadd.f32 %v4852, %v4855
        %vm4857 = vweird.f32 %v4851
        %vm4858 = vweird.f32 %v4852
        %vm4859 = vmor %vm4857, %vm4858
        %v4860 = vsel %vm4859, %v4852, %v4856
        %v4861 = vand.u32 2147483647, %v4851
        %vm4862 = vcmp.eq.f32.partialorder %v4861, 8.507059e+37
        %v4863 = vand.u32 %v4851, 2147483648
        %v4864 = vor.u32 1.1754944e-38, %v4863
        %v4865 = vsel %vm4862, %v4864, %v4860
        %v4866 = vmul.f32 %v4841, %v4865
        %v4867 = vmin.f32 %v4866, 1.0
        %v4868 = vmax.f32 %v4867, -1.0
        %v4869 = vmul.f32 %v3979, %v3979
        %v4870 = vmin.f32 16.0, %v4869
        %v4871 = vmul.f32 %v4870, 2.1237322e-06
        %v4872 = vadd.f32 %v4871, 0.00028619796
        %v4873 = vmul.f32 %v4870, %v4872
        %v4874 = vadd.f32 %v4873, 0.0036580483
        %v4875 = vmul.f32 %v4870, %v4874
        %v4876 = vadd.f32 %v4875, 0.05243302
        %v4877 = vmul.f32 %v4870, %v4876
        %v4878 = vadd.f32 %v4877, 0.18741608
        %v4879 = vmul.f32 %v4870, %v4878
        %v4880 = vadd.f32 %v4879, 1.1283791
        %v4881 = vmul.f32 %v3979, %v4880
        %v4882 = vmul.f32 %v4870, 3.8918573e-05
        %v4883 = vadd.f32 %v4882, 0.001143296
        %v4884 = vmul.f32 %v4870, %v4883
        %v4885 = vadd.f32 %v4884, 0.014752088
        %v4886 = vmul.f32 %v4870, %v4885
        %v4887 = vadd.f32 %v4886, 0.112945676
        %v4888 = vmul.f32 %v4870, %v4887
        %v4889 = vadd.f32 %v4888, 0.4994258
        %v4890 = vmul.f32 %v4870, %v4889
        %v4891 = vadd.f32 %v4890, 1.0
        %v4892 = vrcp.pop %v4891
        %v4893 = vmul.f32 %v4891, %v4892
        %v4894 = vsub.f32 1.0, %v4893
        %v4895 = vmul.f32 %v4892, %v4894
        %v4896 = vadd.f32 %v4892, %v4895
        %vm4897 = vweird.f32 %v4891
        %vm4898 = vweird.f32 %v4892
        %vm4899 = vmor %vm4897, %vm4898
        %v4900 = vsel %vm4899, %v4892, %v4896
        %v4901 = vand.u32 2147483647, %v4891
        %vm4902 = vcmp.eq.f32.partialorder %v4901, 8.507059e+37
        %v4903 = vand.u32 %v4891, 2147483648
        %v4904 = vor.u32 1.1754944e-38, %v4903
        %v4905 = vsel %vm4902, %v4904, %v4900
        %v4906 = vmul.f32 %v4881, %v4905
        %v4907 = vmin.f32 %v4906, 1.0
        %v4908 = vmax.f32 %v4907, -1.0
        %v4909 = vmul.f32 %v3980, %v3980
        %v4910 = vmin.f32 16.0, %v4909
        %v4911 = vmul.f32 %v4910, 2.1237322e-06
        %v4912 = vadd.f32 %v4911, 0.00028619796
        %v4913 = vmul.f32 %v4910, %v4912
        %v4914 = vadd.f32 %v4913, 0.0036580483
        %v4915 = vmul.f32 %v4910, %v4914
        %v4916 = vadd.f32 %v4915, 0.05243302
        %v4917 = vmul.f32 %v4910, %v4916
        %v4918 = vadd.f32 %v4917, 0.18741608
        %v4919 = vmul.f32 %v4910, %v4918
        %v4920 = vadd.f32 %v4919, 1.1283791
        %v4921 = vmul.f32 %v3980, %v4920
        %v4922 = vmul.f32 %v4910, 3.8918573e-05
        %v4923 = vadd.f32 %v4922, 0.001143296
        %v4924 = vmul.f32 %v4910, %v4923
        %v4925 = vadd.f32 %v4924, 0.014752088
        %v4926 = vmul.f32 %v4910, %v4925
        %v4927 = vadd.f32 %v4926, 0.112945676
        %v4928 = vmul.f32 %v4910, %v4927
        %v4929 = vadd.f32 %v4928, 0.4994258
        %v4930 = vmul.f32 %v4910, %v4929
        %v4931 = vadd.f32 %v4930, 1.0
        %v4932 = vrcp.pop %v4931
        %v4933 = vmul.f32 %v4931, %v4932
        %v4934 = vsub.f32 1.0, %v4933
        %v4935 = vmul.f32 %v4932, %v4934
        %v4936 = vadd.f32 %v4932, %v4935
        %vm4937 = vweird.f32 %v4931
        %vm4938 = vweird.f32 %v4932
        %vm4939 = vmor %vm4937, %vm4938
        %v4940 = vsel %vm4939, %v4932, %v4936
        %v4941 = vand.u32 2147483647, %v4931
        %vm4942 = vcmp.eq.f32.partialorder %v4941, 8.507059e+37
        %v4943 = vand.u32 %v4931, 2147483648
        %v4944 = vor.u32 1.1754944e-38, %v4943
        %v4945 = vsel %vm4942, %v4944, %v4940
        %v4946 = vmul.f32 %v4921, %v4945
        %v4947 = vmin.f32 %v4946, 1.0
        %v4948 = vmax.f32 %v4947, -1.0
        %v4949 = vmul.f32 %v3981, %v3981
        %v4950 = vmin.f32 16.0, %v4949
        %v4951 = vmul.f32 %v4950, 2.1237322e-06
        %v4952 = vadd.f32 %v4951, 0.00028619796
        %v4953 = vmul.f32 %v4950, %v4952
        %v4954 = vadd.f32 %v4953, 0.0036580483
        %v4955 = vmul.f32 %v4950, %v4954
        %v4956 = vadd.f32 %v4955, 0.05243302
        %v4957 = vmul.f32 %v4950, %v4956
        %v4958 = vadd.f32 %v4957, 0.18741608
        %v4959 = vmul.f32 %v4950, %v4958
        %v4960 = vadd.f32 %v4959, 1.1283791
        %v4961 = vmul.f32 %v3981, %v4960
        %v4962 = vmul.f32 %v4950, 3.8918573e-05
        %v4963 = vadd.f32 %v4962, 0.001143296
        %v4964 = vmul.f32 %v4950, %v4963
        %v4965 = vadd.f32 %v4964, 0.014752088
        %v4966 = vmul.f32 %v4950, %v4965
        %v4967 = vadd.f32 %v4966, 0.112945676
        %v4968 = vmul.f32 %v4950, %v4967
        %v4969 = vadd.f32 %v4968, 0.4994258
        %v4970 = vmul.f32 %v4950, %v4969
        %v4971 = vadd.f32 %v4970, 1.0
        %v4972 = vrcp.pop %v4971
        %v4973 = vmul.f32 %v4971, %v4972
        %v4974 = vsub.f32 1.0, %v4973
        %v4975 = vmul.f32 %v4972, %v4974
        %v4976 = vadd.f32 %v4972, %v4975
        %vm4977 = vweird.f32 %v4971
        %vm4978 = vweird.f32 %v4972
        %vm4979 = vmor %vm4977, %vm4978
        %v4980 = vsel %vm4979, %v4972, %v4976
        %v4981 = vand.u32 2147483647, %v4971
        %vm4982 = vcmp.eq.f32.partialorder %v4981, 8.507059e+37
        %v4983 = vand.u32 %v4971, 2147483648
        %v4984 = vor.u32 1.1754944e-38, %v4983
        %v4985 = vsel %vm4982, %v4984, %v4980
        %v4986 = vmul.f32 %v4961, %v4985
        %v4987 = vmin.f32 %v4986, 1.0
        %v4988 = vmax.f32 %v4987, -1.0
        %v4989 = vmul.f32 %v3982, %v3982
        %v4990 = vmin.f32 16.0, %v4989
        %v4991 = vmul.f32 %v4990, 2.1237322e-06
        %v4992 = vadd.f32 %v4991, 0.00028619796
        %v4993 = vmul.f32 %v4990, %v4992
        %v4994 = vadd.f32 %v4993, 0.0036580483
        %v4995 = vmul.f32 %v4990, %v4994
        %v4996 = vadd.f32 %v4995, 0.05243302
        %v4997 = vmul.f32 %v4990, %v4996
        %v4998 = vadd.f32 %v4997, 0.18741608
        %v4999 = vmul.f32 %v4990, %v4998
        %v5000 = vadd.f32 %v4999, 1.1283791
        %v5001 = vmul.f32 %v3982, %v5000
        %v5002 = vmul.f32 %v4990, 3.8918573e-05
        %v5003 = vadd.f32 %v5002, 0.001143296
        %v5004 = vmul.f32 %v4990, %v5003
        %v5005 = vadd.f32 %v5004, 0.014752088
        %v5006 = vmul.f32 %v4990, %v5005
        %v5007 = vadd.f32 %v5006, 0.112945676
        %v5008 = vmul.f32 %v4990, %v5007
        %v5009 = vadd.f32 %v5008, 0.4994258
        %v5010 = vmul.f32 %v4990, %v5009
        %v5011 = vadd.f32 %v5010, 1.0
        %v5012 = vrcp.pop %v5011
        %v5013 = vmul.f32 %v5011, %v5012
        %v5014 = vsub.f32 1.0, %v5013
        %v5015 = vmul.f32 %v5012, %v5014
        %v5016 = vadd.f32 %v5012, %v5015
        %vm5017 = vweird.f32 %v5011
        %vm5018 = vweird.f32 %v5012
        %vm5019 = vmor %vm5017, %vm5018
        %v5020 = vsel %vm5019, %v5012, %v5016
        %v5021 = vand.u32 2147483647, %v5011
        %vm5022 = vcmp.eq.f32.partialorder %v5021, 8.507059e+37
        %v5023 = vand.u32 %v5011, 2147483648
        %v5024 = vor.u32 1.1754944e-38, %v5023
        %v5025 = vsel %vm5022, %v5024, %v5020
        %v5026 = vmul.f32 %v5001, %v5025
        %v5027 = vmin.f32 %v5026, 1.0
        %v5028 = vmax.f32 %v5027, -1.0
        %v5029 = vmul.f32 %v3983, %v3983
        %v5030 = vmin.f32 16.0, %v5029
        %v5031 = vmul.f32 %v5030, 2.1237322e-06
        %v5032 = vadd.f32 %v5031, 0.00028619796
        %v5033 = vmul.f32 %v5030, %v5032
        %v5034 = vadd.f32 %v5033, 0.0036580483
        %v5035 = vmul.f32 %v5030, %v5034
        %v5036 = vadd.f32 %v5035, 0.05243302
        %v5037 = vmul.f32 %v5030, %v5036
        %v5038 = vadd.f32 %v5037, 0.18741608
        %v5039 = vmul.f32 %v5030, %v5038
        %v5040 = vadd.f32 %v5039, 1.1283791
        %v5041 = vmul.f32 %v3983, %v5040
        %v5042 = vmul.f32 %v5030, 3.8918573e-05
        %v5043 = vadd.f32 %v5042, 0.001143296
        %v5044 = vmul.f32 %v5030, %v5043
        %v5045 = vadd.f32 %v5044, 0.014752088
        %v5046 = vmul.f32 %v5030, %v5045
        %v5047 = vadd.f32 %v5046, 0.112945676
        %v5048 = vmul.f32 %v5030, %v5047
        %v5049 = vadd.f32 %v5048, 0.4994258
        %v5050 = vmul.f32 %v5030, %v5049
        %v5051 = vadd.f32 %v5050, 1.0
        %v5052 = vrcp.pop %v5051
        %v5053 = vmul.f32 %v5051, %v5052
        %v5054 = vsub.f32 1.0, %v5053
        %v5055 = vmul.f32 %v5052, %v5054
        %v5056 = vadd.f32 %v5052, %v5055
        %vm5057 = vweird.f32 %v5051
        %vm5058 = vweird.f32 %v5052
        %vm5059 = vmor %vm5057, %vm5058
        %v5060 = vsel %vm5059, %v5052, %v5056
        %v5061 = vand.u32 2147483647, %v5051
        %vm5062 = vcmp.eq.f32.partialorder %v5061, 8.507059e+37
        %v5063 = vand.u32 %v5051, 2147483648
        %v5064 = vor.u32 1.1754944e-38, %v5063
        %v5065 = vsel %vm5062, %v5064, %v5060
        %v5066 = vmul.f32 %v5041, %v5065
        %v5067 = vmin.f32 %v5066, 1.0
        %v5068 = vmax.f32 %v5067, -1.0
        %v5069 = vmul.f32 %v3984, %v3984
        %v5070 = vmin.f32 16.0, %v5069
        %v5071 = vmul.f32 %v5070, 2.1237322e-06
        %v5072 = vadd.f32 %v5071, 0.00028619796
        %v5073 = vmul.f32 %v5070, %v5072
        %v5074 = vadd.f32 %v5073, 0.0036580483
        %v5075 = vmul.f32 %v5070, %v5074
        %v5076 = vadd.f32 %v5075, 0.05243302
        %v5077 = vmul.f32 %v5070, %v5076
        %v5078 = vadd.f32 %v5077, 0.18741608
        %v5079 = vmul.f32 %v5070, %v5078
        %v5080 = vadd.f32 %v5079, 1.1283791
        %v5081 = vmul.f32 %v3984, %v5080
        %v5082 = vmul.f32 %v5070, 3.8918573e-05
        %v5083 = vadd.f32 %v5082, 0.001143296
        %v5084 = vmul.f32 %v5070, %v5083
        %v5085 = vadd.f32 %v5084, 0.014752088
        %v5086 = vmul.f32 %v5070, %v5085
        %v5087 = vadd.f32 %v5086, 0.112945676
        %v5088 = vmul.f32 %v5070, %v5087
        %v5089 = vadd.f32 %v5088, 0.4994258
        %v5090 = vmul.f32 %v5070, %v5089
        %v5091 = vadd.f32 %v5090, 1.0
        %v5092 = vrcp.pop %v5091
        %v5093 = vmul.f32 %v5091, %v5092
        %v5094 = vsub.f32 1.0, %v5093
        %v5095 = vmul.f32 %v5092, %v5094
        %v5096 = vadd.f32 %v5092, %v5095
        %vm5097 = vweird.f32 %v5091
        %vm5098 = vweird.f32 %v5092
        %vm5099 = vmor %vm5097, %vm5098
        %v5100 = vsel %vm5099, %v5092, %v5096
        %v5101 = vand.u32 2147483647, %v5091
        %vm5102 = vcmp.eq.f32.partialorder %v5101, 8.507059e+37
        %v5103 = vand.u32 %v5091, 2147483648
        %v5104 = vor.u32 1.1754944e-38, %v5103
        %v5105 = vsel %vm5102, %v5104, %v5100
        %v5106 = vmul.f32 %v5081, %v5105
        %v5107 = vmin.f32 %v5106, 1.0
        %v5108 = vmax.f32 %v5107, -1.0
        %v5109 = vmul.f32 %v3985, %v3985
        %v5110 = vmin.f32 16.0, %v5109
        %v5111 = vmul.f32 %v5110, 2.1237322e-06
        %v5112 = vadd.f32 %v5111, 0.00028619796
        %v5113 = vmul.f32 %v5110, %v5112
        %v5114 = vadd.f32 %v5113, 0.0036580483
        %v5115 = vmul.f32 %v5110, %v5114
        %v5116 = vadd.f32 %v5115, 0.05243302
        %v5117 = vmul.f32 %v5110, %v5116
        %v5118 = vadd.f32 %v5117, 0.18741608
        %v5119 = vmul.f32 %v5110, %v5118
        %v5120 = vadd.f32 %v5119, 1.1283791
        %v5121 = vmul.f32 %v3985, %v5120
        %v5122 = vmul.f32 %v5110, 3.8918573e-05
        %v5123 = vadd.f32 %v5122, 0.001143296
        %v5124 = vmul.f32 %v5110, %v5123
        %v5125 = vadd.f32 %v5124, 0.014752088
        %v5126 = vmul.f32 %v5110, %v5125
        %v5127 = vadd.f32 %v5126, 0.112945676
        %v5128 = vmul.f32 %v5110, %v5127
        %v5129 = vadd.f32 %v5128, 0.4994258
        %v5130 = vmul.f32 %v5110, %v5129
        %v5131 = vadd.f32 %v5130, 1.0
        %v5132 = vrcp.pop %v5131
        %v5133 = vmul.f32 %v5131, %v5132
        %v5134 = vsub.f32 1.0, %v5133
        %v5135 = vmul.f32 %v5132, %v5134
        %v5136 = vadd.f32 %v5132, %v5135
        %vm5137 = vweird.f32 %v5131
        %vm5138 = vweird.f32 %v5132
        %vm5139 = vmor %vm5137, %vm5138
        %v5140 = vsel %vm5139, %v5132, %v5136
        %v5141 = vand.u32 2147483647, %v5131
        %vm5142 = vcmp.eq.f32.partialorder %v5141, 8.507059e+37
        %v5143 = vand.u32 %v5131, 2147483648
        %v5144 = vor.u32 1.1754944e-38, %v5143
        %v5145 = vsel %vm5142, %v5144, %v5140
        %v5146 = vmul.f32 %v5121, %v5145
        %v5147 = vmin.f32 %v5146, 1.0
        %v5148 = vmax.f32 %v5147, -1.0
        %v5149 = vmul.f32 %v3986, %v3986
        %v5150 = vmin.f32 16.0, %v5149
        %v5151 = vmul.f32 %v5150, 2.1237322e-06
        %v5152 = vadd.f32 %v5151, 0.00028619796
        %v5153 = vmul.f32 %v5150, %v5152
        %v5154 = vadd.f32 %v5153, 0.0036580483
        %v5155 = vmul.f32 %v5150, %v5154
        %v5156 = vadd.f32 %v5155, 0.05243302
        %v5157 = vmul.f32 %v5150, %v5156
        %v5158 = vadd.f32 %v5157, 0.18741608
        %v5159 = vmul.f32 %v5150, %v5158
        %v5160 = vadd.f32 %v5159, 1.1283791
        %v5161 = vmul.f32 %v3986, %v5160
        %v5162 = vmul.f32 %v5150, 3.8918573e-05
        %v5163 = vadd.f32 %v5162, 0.001143296
        %v5164 = vmul.f32 %v5150, %v5163
        %v5165 = vadd.f32 %v5164, 0.014752088
        %v5166 = vmul.f32 %v5150, %v5165
        %v5167 = vadd.f32 %v5166, 0.112945676
        %v5168 = vmul.f32 %v5150, %v5167
        %v5169 = vadd.f32 %v5168, 0.4994258
        %v5170 = vmul.f32 %v5150, %v5169
        %v5171 = vadd.f32 %v5170, 1.0
        %v5172 = vrcp.pop %v5171
        %v5173 = vmul.f32 %v5171, %v5172
        %v5174 = vsub.f32 1.0, %v5173
        %v5175 = vmul.f32 %v5172, %v5174
        %v5176 = vadd.f32 %v5172, %v5175
        %vm5177 = vweird.f32 %v5171
        %vm5178 = vweird.f32 %v5172
        %vm5179 = vmor %vm5177, %vm5178
        %v5180 = vsel %vm5179, %v5172, %v5176
        %v5181 = vand.u32 2147483647, %v5171
        %vm5182 = vcmp.eq.f32.partialorder %v5181, 8.507059e+37
        %v5183 = vand.u32 %v5171, 2147483648
        %v5184 = vor.u32 1.1754944e-38, %v5183
        %v5185 = vsel %vm5182, %v5184, %v5180
        %v5186 = vmul.f32 %v5161, %v5185
        %v5187 = vmin.f32 %v5186, 1.0
        %v5188 = vmax.f32 %v5187, -1.0
        %v5189 = vmul.f32 %v3987, %v3987
        %v5190 = vmin.f32 16.0, %v5189
        %v5191 = vmul.f32 %v5190, 2.1237322e-06
        %v5192 = vadd.f32 %v5191, 0.00028619796
        %v5193 = vmul.f32 %v5190, %v5192
        %v5194 = vadd.f32 %v5193, 0.0036580483
        %v5195 = vmul.f32 %v5190, %v5194
        %v5196 = vadd.f32 %v5195, 0.05243302
        %v5197 = vmul.f32 %v5190, %v5196
        %v5198 = vadd.f32 %v5197, 0.18741608
        %v5199 = vmul.f32 %v5190, %v5198
        %v5200 = vadd.f32 %v5199, 1.1283791
        %v5201 = vmul.f32 %v3987, %v5200
        %v5202 = vmul.f32 %v5190, 3.8918573e-05
        %v5203 = vadd.f32 %v5202, 0.001143296
        %v5204 = vmul.f32 %v5190, %v5203
        %v5205 = vadd.f32 %v5204, 0.014752088
        %v5206 = vmul.f32 %v5190, %v5205
        %v5207 = vadd.f32 %v5206, 0.112945676
        %v5208 = vmul.f32 %v5190, %v5207
        %v5209 = vadd.f32 %v5208, 0.4994258
        %v5210 = vmul.f32 %v5190, %v5209
        %v5211 = vadd.f32 %v5210, 1.0
        %v5212 = vrcp.pop %v5211
        %v5213 = vmul.f32 %v5211, %v5212
        %v5214 = vsub.f32 1.0, %v5213
        %v5215 = vmul.f32 %v5212, %v5214
        %v5216 = vadd.f32 %v5212, %v5215
        %vm5217 = vweird.f32 %v5211
        %vm5218 = vweird.f32 %v5212
        %vm5219 = vmor %vm5217, %vm5218
        %v5220 = vsel %vm5219, %v5212, %v5216
        %v5221 = vand.u32 2147483647, %v5211
        %vm5222 = vcmp.eq.f32.partialorder %v5221, 8.507059e+37
        %v5223 = vand.u32 %v5211, 2147483648
        %v5224 = vor.u32 1.1754944e-38, %v5223
        %v5225 = vsel %vm5222, %v5224, %v5220
        %v5226 = vmul.f32 %v5201, %v5225
        %v5227 = vmin.f32 %v5226, 1.0
        %v5228 = vmax.f32 %v5227, -1.0
        %v5229 = vmul.f32 %v3988, %v3988
        %v5230 = vmin.f32 16.0, %v5229
        %v5231 = vmul.f32 %v5230, 2.1237322e-06
        %v5232 = vadd.f32 %v5231, 0.00028619796
        %v5233 = vmul.f32 %v5230, %v5232
        %v5234 = vadd.f32 %v5233, 0.0036580483
        %v5235 = vmul.f32 %v5230, %v5234
        %v5236 = vadd.f32 %v5235, 0.05243302
        %v5237 = vmul.f32 %v5230, %v5236
        %v5238 = vadd.f32 %v5237, 0.18741608
        %v5239 = vmul.f32 %v5230, %v5238
        %v5240 = vadd.f32 %v5239, 1.1283791
        %v5241 = vmul.f32 %v3988, %v5240
        %v5242 = vmul.f32 %v5230, 3.8918573e-05
        %v5243 = vadd.f32 %v5242, 0.001143296
        %v5244 = vmul.f32 %v5230, %v5243
        %v5245 = vadd.f32 %v5244, 0.014752088
        %v5246 = vmul.f32 %v5230, %v5245
        %v5247 = vadd.f32 %v5246, 0.112945676
        %v5248 = vmul.f32 %v5230, %v5247
        %v5249 = vadd.f32 %v5248, 0.4994258
        %v5250 = vmul.f32 %v5230, %v5249
        %v5251 = vadd.f32 %v5250, 1.0
        %v5252 = vrcp.pop %v5251
        %v5253 = vmul.f32 %v5251, %v5252
        %v5254 = vsub.f32 1.0, %v5253
        %v5255 = vmul.f32 %v5252, %v5254
        %v5256 = vadd.f32 %v5252, %v5255
        %vm5257 = vweird.f32 %v5251
        %vm5258 = vweird.f32 %v5252
        %vm5259 = vmor %vm5257, %vm5258
        %v5260 = vsel %vm5259, %v5252, %v5256
        %v5261 = vand.u32 2147483647, %v5251
        %vm5262 = vcmp.eq.f32.partialorder %v5261, 8.507059e+37
        %v5263 = vand.u32 %v5251, 2147483648
        %v5264 = vor.u32 1.1754944e-38, %v5263
        %v5265 = vsel %vm5262, %v5264, %v5260
        %v5266 = vmul.f32 %v5241, %v5265
        %v5267 = vmin.f32 %v5266, 1.0
        %v5268 = vmax.f32 %v5267, -1.0
        %v5269 = vadd.f32 %v4028, 1.0
        %v5270 = vadd.f32 %v4068, 1.0
        %v5271 = vadd.f32 %v4108, 1.0
        %v5272 = vadd.f32 %v4148, 1.0
        %v5273 = vadd.f32 %v4188, 1.0
        %v5274 = vadd.f32 %v4228, 1.0
        %v5275 = vadd.f32 %v4268, 1.0
        %v5276 = vadd.f32 %v4308, 1.0
        %v5277 = vadd.f32 %v4348, 1.0
        %v5278 = vadd.f32 %v4388, 1.0
        %v5279 = vadd.f32 %v4428, 1.0
        %v5280 = vadd.f32 %v4468, 1.0
        %v5281 = vadd.f32 %v4508, 1.0
        %v5282 = vadd.f32 %v4548, 1.0
        %v5283 = vadd.f32 %v4588, 1.0
        %v5284 = vadd.f32 %v4628, 1.0
        %v5285 = vadd.f32 %v4668, 1.0
        %v5286 = vadd.f32 %v4708, 1.0
        %v5287 = vadd.f32 %v4748, 1.0
        %v5288 = vadd.f32 %v4788, 1.0
        %v5289 = vadd.f32 %v4828, 1.0
        %v5290 = vadd.f32 %v4868, 1.0
        %v5291 = vadd.f32 %v4908, 1.0
        %v5292 = vadd.f32 %v4948, 1.0
        %v5293 = vadd.f32 %v4988, 1.0
        %v5294 = vadd.f32 %v5028, 1.0
        %v5295 = vadd.f32 %v5068, 1.0
        %v5296 = vadd.f32 %v5108, 1.0
        %v5297 = vadd.f32 %v5148, 1.0
        %v5298 = vadd.f32 %v5188, 1.0
        %v5299 = vadd.f32 %v5228, 1.0
        %v5300 = vadd.f32 %v5268, 1.0
        %v5301 = vmul.f32 %v3925, %v5269
        %v5302 = vmul.f32 %v3926, %v5270
        %v5303 = vmul.f32 %v3927, %v5271
        %v5304 = vmul.f32 %v3928, %v5272
        %v5305 = vmul.f32 %v3929, %v5273
        %v5306 = vmul.f32 %v3930, %v5274
        %v5307 = vmul.f32 %v3931, %v5275
        %v5308 = vmul.f32 %v3932, %v5276
        %v5309 = vmul.f32 %v3933, %v5277
        %v5310 = vmul.f32 %v3934, %v5278
        %v5311 = vmul.f32 %v3935, %v5279
        %v5312 = vmul.f32 %v3936, %v5280
        %v5313 = vmul.f32 %v3937, %v5281
        %v5314 = vmul.f32 %v3938, %v5282
        %v5315 = vmul.f32 %v3939, %v5283
        %v5316 = vmul.f32 %v3940, %v5284
        %v5317 = vmul.f32 %v3941, %v5285
        %v5318 = vmul.f32 %v3942, %v5286
        %v5319 = vmul.f32 %v3943, %v5287
        %v5320 = vmul.f32 %v3944, %v5288
        %v5321 = vmul.f32 %v3945, %v5289
        %v5322 = vmul.f32 %v3946, %v5290
        %v5323 = vmul.f32 %v3947, %v5291
        %v5324 = vmul.f32 %v3948, %v5292
        %v5325 = vmul.f32 %v3949, %v5293
        %v5326 = vmul.f32 %v3950, %v5294
        %v5327 = vmul.f32 %v3951, %v5295
        %v5328 = vmul.f32 %v3952, %v5296
        %v5329 = vmul.f32 %v3953, %v5297
        %v5330 = vmul.f32 %v3954, %v5298
        %v5331 = vmul.f32 %v3955, %v5299
        %v5332 = vmul.f32 %v3956, %v5300
        %v5333 = vld [vmem:[#allocation2] sm:$0xff]
        %v5334 = vld [vmem:[#allocation2 + $0x8] sm:$0xff]
        %v5335 = vld [vmem:[#allocation2 + $0x10] sm:$0xff]
        %v5336 = vld [vmem:[#allocation2 + $0x18] sm:$0xff]
        %v5337 = vld [vmem:[#allocation2 + $0x20] sm:$0xff]
        %v5338 = vld [vmem:[#allocation2 + $0x28] sm:$0xff]
        %v5339 = vld [vmem:[#allocation2 + $0x30] sm:$0xff]
        %v5340 = vld [vmem:[#allocation2 + $0x38] sm:$0xff]
        %5341 = vmatpush.msra.mxu0 %v1445
        %5342 = vmatpush.msra.mxu0 %v1441
        %5343 = vmatpush.msra.mxu0 %v1437
        %5344 = vmatpush.msra.mxu0 %v1433
        %5345 = vmatpush.msra.mxu0 %v1429
        %5346 = vmatpush.msra.mxu0 %v1425
        %5347 = vmatpush.msra.mxu0 %v1421
        %5348 = vmatpush.msra.mxu0 %v1417
        %5349 = vmatpush.msra.mxu0 %v1413
        %5350 = vmatpush.msra.mxu0 %v1409
        %5351 = vmatpush.msra.mxu0 %v1405
        %5352 = vmatpush.msra.mxu0 %v1401
        %5353 = vmatpush.msra.mxu0 %v1397
        %5354 = vmatpush.msra.mxu0 %v1393
        %5355 = vmatpush.msra.mxu0 %v1389
        %5356 = vmatpush.msra.mxu0 %v1385
        %5357 = vmatmul.f32.gmra.mxu0 %v5301
        %v5358 = vpop.f32.mrf.mxu0
        %v5359 = vadd.f32 0.0, %v5358
        %5360 = vmatmul.f32.gmra.mxu0 %v5317
        %v5361 = vpop.f32.mrf.mxu0
        %v5362 = vadd.f32 0.0, %v5361
        %5363 = vdwg.mxu0
        %5364 = vmatpush.msra.mxu0 %v1509
        %5365 = vmatpush.msra.mxu0 %v1505
        %5366 = vmatpush.msra.mxu0 %v1501
        %5367 = vmatpush.msra.mxu0 %v1497
        %5368 = vmatpush.msra.mxu0 %v1493
        %5369 = vmatpush.msra.mxu0 %v1489
        %5370 = vmatpush.msra.mxu0 %v1485
        %5371 = vmatpush.msra.mxu0 %v1481
        %5372 = vmatpush.msra.mxu0 %v1477
        %5373 = vmatpush.msra.mxu0 %v1473
        %5374 = vmatpush.msra.mxu0 %v1469
        %5375 = vmatpush.msra.mxu0 %v1465
        %5376 = vmatpush.msra.mxu0 %v1461
        %5377 = vmatpush.msra.mxu0 %v1457
        %5378 = vmatpush.msra.mxu0 %v1453
        %5379 = vmatpush.msra.mxu0 %v1449
        %5380 = vmatmul.f32.gmra.mxu0 %v5302
        %v5381 = vpop.f32.mrf.mxu0
        %v5382 = vadd.f32 %v5359, %v5381
        %5383 = vmatmul.f32.gmra.mxu0 %v5318
        %v5384 = vpop.f32.mrf.mxu0
        %v5385 = vadd.f32 %v5362, %v5384
        %5386 = vdwg.mxu0
        %5387 = vmatpush.msra.mxu0 %v1573
        %5388 = vmatpush.msra.mxu0 %v1569
        %5389 = vmatpush.msra.mxu0 %v1565
        %5390 = vmatpush.msra.mxu0 %v1561
        %5391 = vmatpush.msra.mxu0 %v1557
        %5392 = vmatpush.msra.mxu0 %v1553
        %5393 = vmatpush.msra.mxu0 %v1549
        %5394 = vmatpush.msra.mxu0 %v1545
        %5395 = vmatpush.msra.mxu0 %v1541
        %5396 = vmatpush.msra.mxu0 %v1537
        %5397 = vmatpush.msra.mxu0 %v1533
        %5398 = vmatpush.msra.mxu0 %v1529
        %5399 = vmatpush.msra.mxu0 %v1525
        %5400 = vmatpush.msra.mxu0 %v1521
        %5401 = vmatpush.msra.mxu0 %v1517
        %5402 = vmatpush.msra.mxu0 %v1513
        %5403 = vmatmul.f32.gmra.mxu0 %v5303
        %v5404 = vpop.f32.mrf.mxu0
        %v5405 = vadd.f32 %v5382, %v5404
        %5406 = vmatmul.f32.gmra.mxu0 %v5319
        %v5407 = vpop.f32.mrf.mxu0
        %v5408 = vadd.f32 %v5385, %v5407
        %5409 = vdwg.mxu0
        %5410 = vmatpush.msra.mxu0 %v1637
        %5411 = vmatpush.msra.mxu0 %v1633
        %5412 = vmatpush.msra.mxu0 %v1629
        %5413 = vmatpush.msra.mxu0 %v1625
        %5414 = vmatpush.msra.mxu0 %v1621
        %5415 = vmatpush.msra.mxu0 %v1617
        %5416 = vmatpush.msra.mxu0 %v1613
        %5417 = vmatpush.msra.mxu0 %v1609
        %5418 = vmatpush.msra.mxu0 %v1605
        %5419 = vmatpush.msra.mxu0 %v1601
        %5420 = vmatpush.msra.mxu0 %v1597
        %5421 = vmatpush.msra.mxu0 %v1593
        %5422 = vmatpush.msra.mxu0 %v1589
        %5423 = vmatpush.msra.mxu0 %v1585
        %5424 = vmatpush.msra.mxu0 %v1581
        %5425 = vmatpush.msra.mxu0 %v1577
        %5426 = vmatmul.f32.gmra.mxu0 %v5304
        %v5427 = vpop.f32.mrf.mxu0
        %v5428 = vadd.f32 %v5405, %v5427
        %5429 = vmatmul.f32.gmra.mxu0 %v5320
        %v5430 = vpop.f32.mrf.mxu0
        %v5431 = vadd.f32 %v5408, %v5430
        %5432 = vdwg.mxu0
        %5433 = vmatpush.msra.mxu0 %v1701
        %5434 = vmatpush.msra.mxu0 %v1697
        %5435 = vmatpush.msra.mxu0 %v1693
        %5436 = vmatpush.msra.mxu0 %v1689
        %5437 = vmatpush.msra.mxu0 %v1685
        %5438 = vmatpush.msra.mxu0 %v1681
        %5439 = vmatpush.msra.mxu0 %v1677
        %5440 = vmatpush.msra.mxu0 %v1673
        %5441 = vmatpush.msra.mxu0 %v1669
        %5442 = vmatpush.msra.mxu0 %v1665
        %5443 = vmatpush.msra.mxu0 %v1661
        %5444 = vmatpush.msra.mxu0 %v1657
        %5445 = vmatpush.msra.mxu0 %v1653
        %5446 = vmatpush.msra.mxu0 %v1649
        %5447 = vmatpush.msra.mxu0 %v1645
        %5448 = vmatpush.msra.mxu0 %v1641
        %5449 = vmatmul.f32.gmra.mxu0 %v5305
        %v5450 = vpop.f32.mrf.mxu0
        %v5451 = vadd.f32 %v5428, %v5450
        %5452 = vmatmul.f32.gmra.mxu0 %v5321
        %v5453 = vpop.f32.mrf.mxu0
        %v5454 = vadd.f32 %v5431, %v5453
        %5455 = vdwg.mxu0
        %5456 = vmatpush.msra.mxu0 %v1765
        %5457 = vmatpush.msra.mxu0 %v1761
        %5458 = vmatpush.msra.mxu0 %v1757
        %5459 = vmatpush.msra.mxu0 %v1753
        %5460 = vmatpush.msra.mxu0 %v1749
        %5461 = vmatpush.msra.mxu0 %v1745
        %5462 = vmatpush.msra.mxu0 %v1741
        %5463 = vmatpush.msra.mxu0 %v1737
        %5464 = vmatpush.msra.mxu0 %v1733
        %5465 = vmatpush.msra.mxu0 %v1729
        %5466 = vmatpush.msra.mxu0 %v1725
        %5467 = vmatpush.msra.mxu0 %v1721
        %5468 = vmatpush.msra.mxu0 %v1717
        %5469 = vmatpush.msra.mxu0 %v1713
        %5470 = vmatpush.msra.mxu0 %v1709
        %5471 = vmatpush.msra.mxu0 %v1705
        %5472 = vmatmul.f32.gmra.mxu0 %v5306
        %v5473 = vpop.f32.mrf.mxu0
        %v5474 = vadd.f32 %v5451, %v5473
        %5475 = vmatmul.f32.gmra.mxu0 %v5322
        %v5476 = vpop.f32.mrf.mxu0
        %v5477 = vadd.f32 %v5454, %v5476
        %5478 = vdwg.mxu0
        %5479 = vmatpush.msra.mxu0 %v1829
        %5480 = vmatpush.msra.mxu0 %v1825
        %5481 = vmatpush.msra.mxu0 %v1821
        %5482 = vmatpush.msra.mxu0 %v1817
        %5483 = vmatpush.msra.mxu0 %v1813
        %5484 = vmatpush.msra.mxu0 %v1809
        %5485 = vmatpush.msra.mxu0 %v1805
        %5486 = vmatpush.msra.mxu0 %v1801
        %5487 = vmatpush.msra.mxu0 %v1797
        %5488 = vmatpush.msra.mxu0 %v1793
        %5489 = vmatpush.msra.mxu0 %v1789
        %5490 = vmatpush.msra.mxu0 %v1785
        %5491 = vmatpush.msra.mxu0 %v1781
        %5492 = vmatpush.msra.mxu0 %v1777
        %5493 = vmatpush.msra.mxu0 %v1773
        %5494 = vmatpush.msra.mxu0 %v1769
        %5495 = vmatmul.f32.gmra.mxu0 %v5307
        %v5496 = vpop.f32.mrf.mxu0
        %v5497 = vadd.f32 %v5474, %v5496
        %5498 = vmatmul.f32.gmra.mxu0 %v5323
        %v5499 = vpop.f32.mrf.mxu0
        %v5500 = vadd.f32 %v5477, %v5499
        %5501 = vdwg.mxu0
        %5502 = vmatpush.msra.mxu0 %v1893
        %5503 = vmatpush.msra.mxu0 %v1889
        %5504 = vmatpush.msra.mxu0 %v1885
        %5505 = vmatpush.msra.mxu0 %v1881
        %5506 = vmatpush.msra.mxu0 %v1877
        %5507 = vmatpush.msra.mxu0 %v1873
        %5508 = vmatpush.msra.mxu0 %v1869
        %5509 = vmatpush.msra.mxu0 %v1865
        %5510 = vmatpush.msra.mxu0 %v1861
        %5511 = vmatpush.msra.mxu0 %v1857
        %5512 = vmatpush.msra.mxu0 %v1853
        %5513 = vmatpush.msra.mxu0 %v1849
        %5514 = vmatpush.msra.mxu0 %v1845
        %5515 = vmatpush.msra.mxu0 %v1841
        %5516 = vmatpush.msra.mxu0 %v1837
        %5517 = vmatpush.msra.mxu0 %v1833
        %5518 = vmatmul.f32.gmra.mxu0 %v5308
        %v5519 = vpop.f32.mrf.mxu0
        %v5520 = vadd.f32 %v5497, %v5519
        %5521 = vmatmul.f32.gmra.mxu0 %v5324
        %v5522 = vpop.f32.mrf.mxu0
        %v5523 = vadd.f32 %v5500, %v5522
        %5524 = vdwg.mxu0
        %5525 = vmatpush.msra.mxu0 %v1957
        %5526 = vmatpush.msra.mxu0 %v1953
        %5527 = vmatpush.msra.mxu0 %v1949
        %5528 = vmatpush.msra.mxu0 %v1945
        %5529 = vmatpush.msra.mxu0 %v1941
        %5530 = vmatpush.msra.mxu0 %v1937
        %5531 = vmatpush.msra.mxu0 %v1933
        %5532 = vmatpush.msra.mxu0 %v1929
        %5533 = vmatpush.msra.mxu0 %v1925
        %5534 = vmatpush.msra.mxu0 %v1921
        %5535 = vmatpush.msra.mxu0 %v1917
        %5536 = vmatpush.msra.mxu0 %v1913
        %5537 = vmatpush.msra.mxu0 %v1909
        %5538 = vmatpush.msra.mxu0 %v1905
        %5539 = vmatpush.msra.mxu0 %v1901
        %5540 = vmatpush.msra.mxu0 %v1897
        %5541 = vmatmul.f32.gmra.mxu0 %v5309
        %v5542 = vpop.f32.mrf.mxu0
        %v5543 = vadd.f32 %v5520, %v5542
        %5544 = vmatmul.f32.gmra.mxu0 %v5325
        %v5545 = vpop.f32.mrf.mxu0
        %v5546 = vadd.f32 %v5523, %v5545
        %5547 = vdwg.mxu0
        %5548 = vmatpush.msra.mxu0 %v2021
        %5549 = vmatpush.msra.mxu0 %v2017
        %5550 = vmatpush.msra.mxu0 %v2013
        %5551 = vmatpush.msra.mxu0 %v2009
        %5552 = vmatpush.msra.mxu0 %v2005
        %5553 = vmatpush.msra.mxu0 %v2001
        %5554 = vmatpush.msra.mxu0 %v1997
        %5555 = vmatpush.msra.mxu0 %v1993
        %5556 = vmatpush.msra.mxu0 %v1989
        %5557 = vmatpush.msra.mxu0 %v1985
        %5558 = vmatpush.msra.mxu0 %v1981
        %5559 = vmatpush.msra.mxu0 %v1977
        %5560 = vmatpush.msra.mxu0 %v1973
        %5561 = vmatpush.msra.mxu0 %v1969
        %5562 = vmatpush.msra.mxu0 %v1965
        %5563 = vmatpush.msra.mxu0 %v1961
        %5564 = vmatmul.f32.gmra.mxu0 %v5310
        %v5565 = vpop.f32.mrf.mxu0
        %v5566 = vadd.f32 %v5543, %v5565
        %5567 = vmatmul.f32.gmra.mxu0 %v5326
        %v5568 = vpop.f32.mrf.mxu0
        %v5569 = vadd.f32 %v5546, %v5568
        %5570 = vdwg.mxu0
        %5571 = vmatpush.msra.mxu0 %v2085
        %5572 = vmatpush.msra.mxu0 %v2081
        %5573 = vmatpush.msra.mxu0 %v2077
        %5574 = vmatpush.msra.mxu0 %v2073
        %5575 = vmatpush.msra.mxu0 %v2069
        %5576 = vmatpush.msra.mxu0 %v2065
        %5577 = vmatpush.msra.mxu0 %v2061
        %5578 = vmatpush.msra.mxu0 %v2057
        %5579 = vmatpush.msra.mxu0 %v2053
        %5580 = vmatpush.msra.mxu0 %v2049
        %5581 = vmatpush.msra.mxu0 %v2045
        %5582 = vmatpush.msra.mxu0 %v2041
        %5583 = vmatpush.msra.mxu0 %v2037
        %5584 = vmatpush.msra.mxu0 %v2033
        %5585 = vmatpush.msra.mxu0 %v2029
        %5586 = vmatpush.msra.mxu0 %v2025
        %5587 = vmatmul.f32.gmra.mxu0 %v5311
        %v5588 = vpop.f32.mrf.mxu0
        %v5589 = vadd.f32 %v5566, %v5588
        %5590 = vmatmul.f32.gmra.mxu0 %v5327
        %v5591 = vpop.f32.mrf.mxu0
        %v5592 = vadd.f32 %v5569, %v5591
        %5593 = vdwg.mxu0
        %5594 = vmatpush.msra.mxu0 %v2149
        %5595 = vmatpush.msra.mxu0 %v2145
        %5596 = vmatpush.msra.mxu0 %v2141
        %5597 = vmatpush.msra.mxu0 %v2137
        %5598 = vmatpush.msra.mxu0 %v2133
        %5599 = vmatpush.msra.mxu0 %v2129
        %5600 = vmatpush.msra.mxu0 %v2125
        %5601 = vmatpush.msra.mxu0 %v2121
        %5602 = vmatpush.msra.mxu0 %v2117
        %5603 = vmatpush.msra.mxu0 %v2113
        %5604 = vmatpush.msra.mxu0 %v2109
        %5605 = vmatpush.msra.mxu0 %v2105
        %5606 = vmatpush.msra.mxu0 %v2101
        %5607 = vmatpush.msra.mxu0 %v2097
        %5608 = vmatpush.msra.mxu0 %v2093
        %5609 = vmatpush.msra.mxu0 %v2089
        %5610 = vmatmul.f32.gmra.mxu0 %v5312
        %v5611 = vpop.f32.mrf.mxu0
        %v5612 = vadd.f32 %v5589, %v5611
        %5613 = vmatmul.f32.gmra.mxu0 %v5328
        %v5614 = vpop.f32.mrf.mxu0
        %v5615 = vadd.f32 %v5592, %v5614
        %5616 = vdwg.mxu0
        %5617 = vmatpush.msra.mxu0 %v2213
        %5618 = vmatpush.msra.mxu0 %v2209
        %5619 = vmatpush.msra.mxu0 %v2205
        %5620 = vmatpush.msra.mxu0 %v2201
        %5621 = vmatpush.msra.mxu0 %v2197
        %5622 = vmatpush.msra.mxu0 %v2193
        %5623 = vmatpush.msra.mxu0 %v2189
        %5624 = vmatpush.msra.mxu0 %v2185
        %5625 = vmatpush.msra.mxu0 %v2181
        %5626 = vmatpush.msra.mxu0 %v2177
        %5627 = vmatpush.msra.mxu0 %v2173
        %5628 = vmatpush.msra.mxu0 %v2169
        %5629 = vmatpush.msra.mxu0 %v2165
        %5630 = vmatpush.msra.mxu0 %v2161
        %5631 = vmatpush.msra.mxu0 %v2157
        %5632 = vmatpush.msra.mxu0 %v2153
        %5633 = vmatmul.f32.gmra.mxu0 %v5313
        %v5634 = vpop.f32.mrf.mxu0
        %v5635 = vadd.f32 %v5612, %v5634
        %5636 = vmatmul.f32.gmra.mxu0 %v5329
        %v5637 = vpop.f32.mrf.mxu0
        %v5638 = vadd.f32 %v5615, %v5637
        %5639 = vdwg.mxu0
        %5640 = vmatpush.msra.mxu0 %v2277
        %5641 = vmatpush.msra.mxu0 %v2273
        %5642 = vmatpush.msra.mxu0 %v2269
        %5643 = vmatpush.msra.mxu0 %v2265
        %5644 = vmatpush.msra.mxu0 %v2261
        %5645 = vmatpush.msra.mxu0 %v2257
        %5646 = vmatpush.msra.mxu0 %v2253
        %5647 = vmatpush.msra.mxu0 %v2249
        %5648 = vmatpush.msra.mxu0 %v2245
        %5649 = vmatpush.msra.mxu0 %v2241
        %5650 = vmatpush.msra.mxu0 %v2237
        %5651 = vmatpush.msra.mxu0 %v2233
        %5652 = vmatpush.msra.mxu0 %v2229
        %5653 = vmatpush.msra.mxu0 %v2225
        %5654 = vmatpush.msra.mxu0 %v2221
        %5655 = vmatpush.msra.mxu0 %v2217
        %5656 = vmatmul.f32.gmra.mxu0 %v5314
        %v5657 = vpop.f32.mrf.mxu0
        %v5658 = vadd.f32 %v5635, %v5657
        %5659 = vmatmul.f32.gmra.mxu0 %v5330
        %v5660 = vpop.f32.mrf.mxu0
        %v5661 = vadd.f32 %v5638, %v5660
        %5662 = vdwg.mxu0
        %5663 = vmatpush.msra.mxu0 %v2341
        %5664 = vmatpush.msra.mxu0 %v2337
        %5665 = vmatpush.msra.mxu0 %v2333
        %5666 = vmatpush.msra.mxu0 %v2329
        %5667 = vmatpush.msra.mxu0 %v2325
        %5668 = vmatpush.msra.mxu0 %v2321
        %5669 = vmatpush.msra.mxu0 %v2317
        %5670 = vmatpush.msra.mxu0 %v2313
        %5671 = vmatpush.msra.mxu0 %v2309
        %5672 = vmatpush.msra.mxu0 %v2305
        %5673 = vmatpush.msra.mxu0 %v2301
        %5674 = vmatpush.msra.mxu0 %v2297
        %5675 = vmatpush.msra.mxu0 %v2293
        %5676 = vmatpush.msra.mxu0 %v2289
        %5677 = vmatpush.msra.mxu0 %v2285
        %5678 = vmatpush.msra.mxu0 %v2281
        %5679 = vmatmul.f32.gmra.mxu0 %v5315
        %v5680 = vpop.f32.mrf.mxu0
        %v5681 = vadd.f32 %v5658, %v5680
        %5682 = vmatmul.f32.gmra.mxu0 %v5331
        %v5683 = vpop.f32.mrf.mxu0
        %v5684 = vadd.f32 %v5661, %v5683
        %5685 = vdwg.mxu0
        %5686 = vmatpush.msra.mxu0 %v2405
        %5687 = vmatpush.msra.mxu0 %v2401
        %5688 = vmatpush.msra.mxu0 %v2397
        %5689 = vmatpush.msra.mxu0 %v2393
        %5690 = vmatpush.msra.mxu0 %v2389
        %5691 = vmatpush.msra.mxu0 %v2385
        %5692 = vmatpush.msra.mxu0 %v2381
        %5693 = vmatpush.msra.mxu0 %v2377
        %5694 = vmatpush.msra.mxu0 %v2373
        %5695 = vmatpush.msra.mxu0 %v2369
        %5696 = vmatpush.msra.mxu0 %v2365
        %5697 = vmatpush.msra.mxu0 %v2361
        %5698 = vmatpush.msra.mxu0 %v2357
        %5699 = vmatpush.msra.mxu0 %v2353
        %5700 = vmatpush.msra.mxu0 %v2349
        %5701 = vmatpush.msra.mxu0 %v2345
        %5702 = vmatmul.f32.gmra.mxu0 %v5316
        %v5703 = vpop.f32.mrf.mxu0
        %v5704 = vadd.f32 %v5681, %v5703
        %5705 = vmatmul.f32.gmra.mxu0 %v5332
        %v5706 = vpop.f32.mrf.mxu0
        %v5707 = vadd.f32 %v5684, %v5706
        %5708 = vdwg.mxu0
        %5709 = vmatpush.msra.mxu0 %v1446
        %5710 = vmatpush.msra.mxu0 %v1442
        %5711 = vmatpush.msra.mxu0 %v1438
        %5712 = vmatpush.msra.mxu0 %v1434
        %5713 = vmatpush.msra.mxu0 %v1430
        %5714 = vmatpush.msra.mxu0 %v1426
        %5715 = vmatpush.msra.mxu0 %v1422
        %5716 = vmatpush.msra.mxu0 %v1418
        %5717 = vmatpush.msra.mxu0 %v1414
        %5718 = vmatpush.msra.mxu0 %v1410
        %5719 = vmatpush.msra.mxu0 %v1406
        %5720 = vmatpush.msra.mxu0 %v1402
        %5721 = vmatpush.msra.mxu0 %v1398
        %5722 = vmatpush.msra.mxu0 %v1394
        %5723 = vmatpush.msra.mxu0 %v1390
        %5724 = vmatpush.msra.mxu0 %v1386
        %5725 = vmatmul.f32.gmra.mxu0 %v5301
        %v5726 = vpop.f32.mrf.mxu0
        %v5727 = vadd.f32 0.0, %v5726
        %5728 = vmatmul.f32.gmra.mxu0 %v5317
        %v5729 = vpop.f32.mrf.mxu0
        %v5730 = vadd.f32 0.0, %v5729
        %5731 = vdwg.mxu0
        %5732 = vmatpush.msra.mxu0 %v1510
        %5733 = vmatpush.msra.mxu0 %v1506
        %5734 = vmatpush.msra.mxu0 %v1502
        %5735 = vmatpush.msra.mxu0 %v1498
        %5736 = vmatpush.msra.mxu0 %v1494
        %5737 = vmatpush.msra.mxu0 %v1490
        %5738 = vmatpush.msra.mxu0 %v1486
        %5739 = vmatpush.msra.mxu0 %v1482
        %5740 = vmatpush.msra.mxu0 %v1478
        %5741 = vmatpush.msra.mxu0 %v1474
        %5742 = vmatpush.msra.mxu0 %v1470
        %5743 = vmatpush.msra.mxu0 %v1466
        %5744 = vmatpush.msra.mxu0 %v1462
        %5745 = vmatpush.msra.mxu0 %v1458
        %5746 = vmatpush.msra.mxu0 %v1454
        %5747 = vmatpush.msra.mxu0 %v1450
        %5748 = vmatmul.f32.gmra.mxu0 %v5302
        %v5749 = vpop.f32.mrf.mxu0
        %v5750 = vadd.f32 %v5727, %v5749
        %5751 = vmatmul.f32.gmra.mxu0 %v5318
        %v5752 = vpop.f32.mrf.mxu0
        %v5753 = vadd.f32 %v5730, %v5752
        %5754 = vdwg.mxu0
        %5755 = vmatpush.msra.mxu0 %v1574
        %5756 = vmatpush.msra.mxu0 %v1570
        %5757 = vmatpush.msra.mxu0 %v1566
        %5758 = vmatpush.msra.mxu0 %v1562
        %5759 = vmatpush.msra.mxu0 %v1558
        %5760 = vmatpush.msra.mxu0 %v1554
        %5761 = vmatpush.msra.mxu0 %v1550
        %5762 = vmatpush.msra.mxu0 %v1546
        %5763 = vmatpush.msra.mxu0 %v1542
        %5764 = vmatpush.msra.mxu0 %v1538
        %5765 = vmatpush.msra.mxu0 %v1534
        %5766 = vmatpush.msra.mxu0 %v1530
        %5767 = vmatpush.msra.mxu0 %v1526
        %5768 = vmatpush.msra.mxu0 %v1522
        %5769 = vmatpush.msra.mxu0 %v1518
        %5770 = vmatpush.msra.mxu0 %v1514
        %5771 = vmatmul.f32.gmra.mxu0 %v5303
        %v5772 = vpop.f32.mrf.mxu0
        %v5773 = vadd.f32 %v5750, %v5772
        %5774 = vmatmul.f32.gmra.mxu0 %v5319
        %v5775 = vpop.f32.mrf.mxu0
        %v5776 = vadd.f32 %v5753, %v5775
        %5777 = vdwg.mxu0
        %5778 = vmatpush.msra.mxu0 %v1638
        %5779 = vmatpush.msra.mxu0 %v1634
        %5780 = vmatpush.msra.mxu0 %v1630
        %5781 = vmatpush.msra.mxu0 %v1626
        %5782 = vmatpush.msra.mxu0 %v1622
        %5783 = vmatpush.msra.mxu0 %v1618
        %5784 = vmatpush.msra.mxu0 %v1614
        %5785 = vmatpush.msra.mxu0 %v1610
        %5786 = vmatpush.msra.mxu0 %v1606
        %5787 = vmatpush.msra.mxu0 %v1602
        %5788 = vmatpush.msra.mxu0 %v1598
        %5789 = vmatpush.msra.mxu0 %v1594
        %5790 = vmatpush.msra.mxu0 %v1590
        %5791 = vmatpush.msra.mxu0 %v1586
        %5792 = vmatpush.msra.mxu0 %v1582
        %5793 = vmatpush.msra.mxu0 %v1578
        %5794 = vmatmul.f32.gmra.mxu0 %v5304
        %v5795 = vpop.f32.mrf.mxu0
        %v5796 = vadd.f32 %v5773, %v5795
        %5797 = vmatmul.f32.gmra.mxu0 %v5320
        %v5798 = vpop.f32.mrf.mxu0
        %v5799 = vadd.f32 %v5776, %v5798
        %5800 = vdwg.mxu0
        %5801 = vmatpush.msra.mxu0 %v1702
        %5802 = vmatpush.msra.mxu0 %v1698
        %5803 = vmatpush.msra.mxu0 %v1694
        %5804 = vmatpush.msra.mxu0 %v1690
        %5805 = vmatpush.msra.mxu0 %v1686
        %5806 = vmatpush.msra.mxu0 %v1682
        %5807 = vmatpush.msra.mxu0 %v1678
        %5808 = vmatpush.msra.mxu0 %v1674
        %5809 = vmatpush.msra.mxu0 %v1670
        %5810 = vmatpush.msra.mxu0 %v1666
        %5811 = vmatpush.msra.mxu0 %v1662
        %5812 = vmatpush.msra.mxu0 %v1658
        %5813 = vmatpush.msra.mxu0 %v1654
        %5814 = vmatpush.msra.mxu0 %v1650
        %5815 = vmatpush.msra.mxu0 %v1646
        %5816 = vmatpush.msra.mxu0 %v1642
        %5817 = vmatmul.f32.gmra.mxu0 %v5305
        %v5818 = vpop.f32.mrf.mxu0
        %v5819 = vadd.f32 %v5796, %v5818
        %5820 = vmatmul.f32.gmra.mxu0 %v5321
        %v5821 = vpop.f32.mrf.mxu0
        %v5822 = vadd.f32 %v5799, %v5821
        %5823 = vdwg.mxu0
        %5824 = vmatpush.msra.mxu0 %v1766
        %5825 = vmatpush.msra.mxu0 %v1762
        %5826 = vmatpush.msra.mxu0 %v1758
        %5827 = vmatpush.msra.mxu0 %v1754
        %5828 = vmatpush.msra.mxu0 %v1750
        %5829 = vmatpush.msra.mxu0 %v1746
        %5830 = vmatpush.msra.mxu0 %v1742
        %5831 = vmatpush.msra.mxu0 %v1738
        %5832 = vmatpush.msra.mxu0 %v1734
        %5833 = vmatpush.msra.mxu0 %v1730
        %5834 = vmatpush.msra.mxu0 %v1726
        %5835 = vmatpush.msra.mxu0 %v1722
        %5836 = vmatpush.msra.mxu0 %v1718
        %5837 = vmatpush.msra.mxu0 %v1714
        %5838 = vmatpush.msra.mxu0 %v1710
        %5839 = vmatpush.msra.mxu0 %v1706
        %5840 = vmatmul.f32.gmra.mxu0 %v5306
        %v5841 = vpop.f32.mrf.mxu0
        %v5842 = vadd.f32 %v5819, %v5841
        %5843 = vmatmul.f32.gmra.mxu0 %v5322
        %v5844 = vpop.f32.mrf.mxu0
        %v5845 = vadd.f32 %v5822, %v5844
        %5846 = vdwg.mxu0
        %5847 = vmatpush.msra.mxu0 %v1830
        %5848 = vmatpush.msra.mxu0 %v1826
        %5849 = vmatpush.msra.mxu0 %v1822
        %5850 = vmatpush.msra.mxu0 %v1818
        %5851 = vmatpush.msra.mxu0 %v1814
        %5852 = vmatpush.msra.mxu0 %v1810
        %5853 = vmatpush.msra.mxu0 %v1806
        %5854 = vmatpush.msra.mxu0 %v1802
        %5855 = vmatpush.msra.mxu0 %v1798
        %5856 = vmatpush.msra.mxu0 %v1794
        %5857 = vmatpush.msra.mxu0 %v1790
        %5858 = vmatpush.msra.mxu0 %v1786
        %5859 = vmatpush.msra.mxu0 %v1782
        %5860 = vmatpush.msra.mxu0 %v1778
        %5861 = vmatpush.msra.mxu0 %v1774
        %5862 = vmatpush.msra.mxu0 %v1770
        %5863 = vmatmul.f32.gmra.mxu0 %v5307
        %v5864 = vpop.f32.mrf.mxu0
        %v5865 = vadd.f32 %v5842, %v5864
        %5866 = vmatmul.f32.gmra.mxu0 %v5323
        %v5867 = vpop.f32.mrf.mxu0
        %v5868 = vadd.f32 %v5845, %v5867
        %5869 = vdwg.mxu0
        %5870 = vmatpush.msra.mxu0 %v1894
        %5871 = vmatpush.msra.mxu0 %v1890
        %5872 = vmatpush.msra.mxu0 %v1886
        %5873 = vmatpush.msra.mxu0 %v1882
        %5874 = vmatpush.msra.mxu0 %v1878
        %5875 = vmatpush.msra.mxu0 %v1874
        %5876 = vmatpush.msra.mxu0 %v1870
        %5877 = vmatpush.msra.mxu0 %v1866
        %5878 = vmatpush.msra.mxu0 %v1862
        %5879 = vmatpush.msra.mxu0 %v1858
        %5880 = vmatpush.msra.mxu0 %v1854
        %5881 = vmatpush.msra.mxu0 %v1850
        %5882 = vmatpush.msra.mxu0 %v1846
        %5883 = vmatpush.msra.mxu0 %v1842
        %5884 = vmatpush.msra.mxu0 %v1838
        %5885 = vmatpush.msra.mxu0 %v1834
        %5886 = vmatmul.f32.gmra.mxu0 %v5308
        %v5887 = vpop.f32.mrf.mxu0
        %v5888 = vadd.f32 %v5865, %v5887
        %5889 = vmatmul.f32.gmra.mxu0 %v5324
        %v5890 = vpop.f32.mrf.mxu0
        %v5891 = vadd.f32 %v5868, %v5890
        %5892 = vdwg.mxu0
        %5893 = vmatpush.msra.mxu0 %v1958
        %5894 = vmatpush.msra.mxu0 %v1954
        %5895 = vmatpush.msra.mxu0 %v1950
        %5896 = vmatpush.msra.mxu0 %v1946
        %5897 = vmatpush.msra.mxu0 %v1942
        %5898 = vmatpush.msra.mxu0 %v1938
        %5899 = vmatpush.msra.mxu0 %v1934
        %5900 = vmatpush.msra.mxu0 %v1930
        %5901 = vmatpush.msra.mxu0 %v1926
        %5902 = vmatpush.msra.mxu0 %v1922
        %5903 = vmatpush.msra.mxu0 %v1918
        %5904 = vmatpush.msra.mxu0 %v1914
        %5905 = vmatpush.msra.mxu0 %v1910
        %5906 = vmatpush.msra.mxu0 %v1906
        %5907 = vmatpush.msra.mxu0 %v1902
        %5908 = vmatpush.msra.mxu0 %v1898
        %5909 = vmatmul.f32.gmra.mxu0 %v5309
        %v5910 = vpop.f32.mrf.mxu0
        %v5911 = vadd.f32 %v5888, %v5910
        %5912 = vmatmul.f32.gmra.mxu0 %v5325
        %v5913 = vpop.f32.mrf.mxu0
        %v5914 = vadd.f32 %v5891, %v5913
        %5915 = vdwg.mxu0
        %5916 = vmatpush.msra.mxu0 %v2022
        %5917 = vmatpush.msra.mxu0 %v2018
        %5918 = vmatpush.msra.mxu0 %v2014
        %5919 = vmatpush.msra.mxu0 %v2010
        %5920 = vmatpush.msra.mxu0 %v2006
        %5921 = vmatpush.msra.mxu0 %v2002
        %5922 = vmatpush.msra.mxu0 %v1998
        %5923 = vmatpush.msra.mxu0 %v1994
        %5924 = vmatpush.msra.mxu0 %v1990
        %5925 = vmatpush.msra.mxu0 %v1986
        %5926 = vmatpush.msra.mxu0 %v1982
        %5927 = vmatpush.msra.mxu0 %v1978
        %5928 = vmatpush.msra.mxu0 %v1974
        %5929 = vmatpush.msra.mxu0 %v1970
        %5930 = vmatpush.msra.mxu0 %v1966
        %5931 = vmatpush.msra.mxu0 %v1962
        %5932 = vmatmul.f32.gmra.mxu0 %v5310
        %v5933 = vpop.f32.mrf.mxu0
        %v5934 = vadd.f32 %v5911, %v5933
        %5935 = vmatmul.f32.gmra.mxu0 %v5326
        %v5936 = vpop.f32.mrf.mxu0
        %v5937 = vadd.f32 %v5914, %v5936
        %5938 = vdwg.mxu0
        %5939 = vmatpush.msra.mxu0 %v2086
        %5940 = vmatpush.msra.mxu0 %v2082
        %5941 = vmatpush.msra.mxu0 %v2078
        %5942 = vmatpush.msra.mxu0 %v2074
        %5943 = vmatpush.msra.mxu0 %v2070
        %5944 = vmatpush.msra.mxu0 %v2066
        %5945 = vmatpush.msra.mxu0 %v2062
        %5946 = vmatpush.msra.mxu0 %v2058
        %5947 = vmatpush.msra.mxu0 %v2054
        %5948 = vmatpush.msra.mxu0 %v2050
        %5949 = vmatpush.msra.mxu0 %v2046
        %5950 = vmatpush.msra.mxu0 %v2042
        %5951 = vmatpush.msra.mxu0 %v2038
        %5952 = vmatpush.msra.mxu0 %v2034
        %5953 = vmatpush.msra.mxu0 %v2030
        %5954 = vmatpush.msra.mxu0 %v2026
        %5955 = vmatmul.f32.gmra.mxu0 %v5311
        %v5956 = vpop.f32.mrf.mxu0
        %v5957 = vadd.f32 %v5934, %v5956
        %5958 = vmatmul.f32.gmra.mxu0 %v5327
        %v5959 = vpop.f32.mrf.mxu0
        %v5960 = vadd.f32 %v5937, %v5959
        %5961 = vdwg.mxu0
        %5962 = vmatpush.msra.mxu0 %v2150
        %5963 = vmatpush.msra.mxu0 %v2146
        %5964 = vmatpush.msra.mxu0 %v2142
        %5965 = vmatpush.msra.mxu0 %v2138
        %5966 = vmatpush.msra.mxu0 %v2134
        %5967 = vmatpush.msra.mxu0 %v2130
        %5968 = vmatpush.msra.mxu0 %v2126
        %5969 = vmatpush.msra.mxu0 %v2122
        %5970 = vmatpush.msra.mxu0 %v2118
        %5971 = vmatpush.msra.mxu0 %v2114
        %5972 = vmatpush.msra.mxu0 %v2110
        %5973 = vmatpush.msra.mxu0 %v2106
        %5974 = vmatpush.msra.mxu0 %v2102
        %5975 = vmatpush.msra.mxu0 %v2098
        %5976 = vmatpush.msra.mxu0 %v2094
        %5977 = vmatpush.msra.mxu0 %v2090
        %5978 = vmatmul.f32.gmra.mxu0 %v5312
        %v5979 = vpop.f32.mrf.mxu0
        %v5980 = vadd.f32 %v5957, %v5979
        %5981 = vmatmul.f32.gmra.mxu0 %v5328
        %v5982 = vpop.f32.mrf.mxu0
        %v5983 = vadd.f32 %v5960, %v5982
        %5984 = vdwg.mxu0
        %5985 = vmatpush.msra.mxu0 %v2214
        %5986 = vmatpush.msra.mxu0 %v2210
        %5987 = vmatpush.msra.mxu0 %v2206
        %5988 = vmatpush.msra.mxu0 %v2202
        %5989 = vmatpush.msra.mxu0 %v2198
        %5990 = vmatpush.msra.mxu0 %v2194
        %5991 = vmatpush.msra.mxu0 %v2190
        %5992 = vmatpush.msra.mxu0 %v2186
        %5993 = vmatpush.msra.mxu0 %v2182
        %5994 = vmatpush.msra.mxu0 %v2178
        %5995 = vmatpush.msra.mxu0 %v2174
        %5996 = vmatpush.msra.mxu0 %v2170
        %5997 = vmatpush.msra.mxu0 %v2166
        %5998 = vmatpush.msra.mxu0 %v2162
        %5999 = vmatpush.msra.mxu0 %v2158
        %6000 = vmatpush.msra.mxu0 %v2154
        %6001 = vmatmul.f32.gmra.mxu0 %v5313
        %v6002 = vpop.f32.mrf.mxu0
        %v6003 = vadd.f32 %v5980, %v6002
        %6004 = vmatmul.f32.gmra.mxu0 %v5329
        %v6005 = vpop.f32.mrf.mxu0
        %v6006 = vadd.f32 %v5983, %v6005
        %6007 = vdwg.mxu0
        %6008 = vmatpush.msra.mxu0 %v2278
        %6009 = vmatpush.msra.mxu0 %v2274
        %6010 = vmatpush.msra.mxu0 %v2270
        %6011 = vmatpush.msra.mxu0 %v2266
        %6012 = vmatpush.msra.mxu0 %v2262
        %6013 = vmatpush.msra.mxu0 %v2258
        %6014 = vmatpush.msra.mxu0 %v2254
        %6015 = vmatpush.msra.mxu0 %v2250
        %6016 = vmatpush.msra.mxu0 %v2246
        %6017 = vmatpush.msra.mxu0 %v2242
        %6018 = vmatpush.msra.mxu0 %v2238
        %6019 = vmatpush.msra.mxu0 %v2234
        %6020 = vmatpush.msra.mxu0 %v2230
        %6021 = vmatpush.msra.mxu0 %v2226
        %6022 = vmatpush.msra.mxu0 %v2222
        %6023 = vmatpush.msra.mxu0 %v2218
        %6024 = vmatmul.f32.gmra.mxu0 %v5314
        %v6025 = vpop.f32.mrf.mxu0
        %v6026 = vadd.f32 %v6003, %v6025
        %6027 = vmatmul.f32.gmra.mxu0 %v5330
        %v6028 = vpop.f32.mrf.mxu0
        %v6029 = vadd.f32 %v6006, %v6028
        %6030 = vdwg.mxu0
        %6031 = vmatpush.msra.mxu0 %v2342
        %6032 = vmatpush.msra.mxu0 %v2338
        %6033 = vmatpush.msra.mxu0 %v2334
        %6034 = vmatpush.msra.mxu0 %v2330
        %6035 = vmatpush.msra.mxu0 %v2326
        %6036 = vmatpush.msra.mxu0 %v2322
        %6037 = vmatpush.msra.mxu0 %v2318
        %6038 = vmatpush.msra.mxu0 %v2314
        %6039 = vmatpush.msra.mxu0 %v2310
        %6040 = vmatpush.msra.mxu0 %v2306
        %6041 = vmatpush.msra.mxu0 %v2302
        %6042 = vmatpush.msra.mxu0 %v2298
        %6043 = vmatpush.msra.mxu0 %v2294
        %6044 = vmatpush.msra.mxu0 %v2290
        %6045 = vmatpush.msra.mxu0 %v2286
        %6046 = vmatpush.msra.mxu0 %v2282
        %6047 = vmatmul.f32.gmra.mxu0 %v5315
        %v6048 = vpop.f32.mrf.mxu0
        %v6049 = vadd.f32 %v6026, %v6048
        %6050 = vmatmul.f32.gmra.mxu0 %v5331
        %v6051 = vpop.f32.mrf.mxu0
        %v6052 = vadd.f32 %v6029, %v6051
        %6053 = vdwg.mxu0
        %6054 = vmatpush.msra.mxu0 %v2406
        %6055 = vmatpush.msra.mxu0 %v2402
        %6056 = vmatpush.msra.mxu0 %v2398
        %6057 = vmatpush.msra.mxu0 %v2394
        %6058 = vmatpush.msra.mxu0 %v2390
        %6059 = vmatpush.msra.mxu0 %v2386
        %6060 = vmatpush.msra.mxu0 %v2382
        %6061 = vmatpush.msra.mxu0 %v2378
        %6062 = vmatpush.msra.mxu0 %v2374
        %6063 = vmatpush.msra.mxu0 %v2370
        %6064 = vmatpush.msra.mxu0 %v2366
        %6065 = vmatpush.msra.mxu0 %v2362
        %6066 = vmatpush.msra.mxu0 %v2358
        %6067 = vmatpush.msra.mxu0 %v2354
        %6068 = vmatpush.msra.mxu0 %v2350
        %6069 = vmatpush.msra.mxu0 %v2346
        %6070 = vmatmul.f32.gmra.mxu0 %v5316
        %v6071 = vpop.f32.mrf.mxu0
        %v6072 = vadd.f32 %v6049, %v6071
        %6073 = vmatmul.f32.gmra.mxu0 %v5332
        %v6074 = vpop.f32.mrf.mxu0
        %v6075 = vadd.f32 %v6052, %v6074
        %6076 = vdwg.mxu0
        %6077 = vmatpush.msra.mxu0 %v1447
        %6078 = vmatpush.msra.mxu0 %v1443
        %6079 = vmatpush.msra.mxu0 %v1439
        %6080 = vmatpush.msra.mxu0 %v1435
        %6081 = vmatpush.msra.mxu0 %v1431
        %6082 = vmatpush.msra.mxu0 %v1427
        %6083 = vmatpush.msra.mxu0 %v1423
        %6084 = vmatpush.msra.mxu0 %v1419
        %6085 = vmatpush.msra.mxu0 %v1415
        %6086 = vmatpush.msra.mxu0 %v1411
        %6087 = vmatpush.msra.mxu0 %v1407
        %6088 = vmatpush.msra.mxu0 %v1403
        %6089 = vmatpush.msra.mxu0 %v1399
        %6090 = vmatpush.msra.mxu0 %v1395
        %6091 = vmatpush.msra.mxu0 %v1391
        %6092 = vmatpush.msra.mxu0 %v1387
        %6093 = vmatmul.f32.gmra.mxu0 %v5301
        %v6094 = vpop.f32.mrf.mxu0
        %v6095 = vadd.f32 0.0, %v6094
        %6096 = vmatmul.f32.gmra.mxu0 %v5317
        %v6097 = vpop.f32.mrf.mxu0
        %v6098 = vadd.f32 0.0, %v6097
        %6099 = vdwg.mxu0
        %6100 = vmatpush.msra.mxu0 %v1511
        %6101 = vmatpush.msra.mxu0 %v1507
        %6102 = vmatpush.msra.mxu0 %v1503
        %6103 = vmatpush.msra.mxu0 %v1499
        %6104 = vmatpush.msra.mxu0 %v1495
        %6105 = vmatpush.msra.mxu0 %v1491
        %6106 = vmatpush.msra.mxu0 %v1487
        %6107 = vmatpush.msra.mxu0 %v1483
        %6108 = vmatpush.msra.mxu0 %v1479
        %6109 = vmatpush.msra.mxu0 %v1475
        %6110 = vmatpush.msra.mxu0 %v1471
        %6111 = vmatpush.msra.mxu0 %v1467
        %6112 = vmatpush.msra.mxu0 %v1463
        %6113 = vmatpush.msra.mxu0 %v1459
        %6114 = vmatpush.msra.mxu0 %v1455
        %6115 = vmatpush.msra.mxu0 %v1451
        %6116 = vmatmul.f32.gmra.mxu0 %v5302
        %v6117 = vpop.f32.mrf.mxu0
        %v6118 = vadd.f32 %v6095, %v6117
        %6119 = vmatmul.f32.gmra.mxu0 %v5318
        %v6120 = vpop.f32.mrf.mxu0
        %v6121 = vadd.f32 %v6098, %v6120
        %6122 = vdwg.mxu0
        %6123 = vmatpush.msra.mxu0 %v1575
        %6124 = vmatpush.msra.mxu0 %v1571
        %6125 = vmatpush.msra.mxu0 %v1567
        %6126 = vmatpush.msra.mxu0 %v1563
        %6127 = vmatpush.msra.mxu0 %v1559
        %6128 = vmatpush.msra.mxu0 %v1555
        %6129 = vmatpush.msra.mxu0 %v1551
        %6130 = vmatpush.msra.mxu0 %v1547
        %6131 = vmatpush.msra.mxu0 %v1543
        %6132 = vmatpush.msra.mxu0 %v1539
        %6133 = vmatpush.msra.mxu0 %v1535
        %6134 = vmatpush.msra.mxu0 %v1531
        %6135 = vmatpush.msra.mxu0 %v1527
        %6136 = vmatpush.msra.mxu0 %v1523
        %6137 = vmatpush.msra.mxu0 %v1519
        %6138 = vmatpush.msra.mxu0 %v1515
        %6139 = vmatmul.f32.gmra.mxu0 %v5303
        %v6140 = vpop.f32.mrf.mxu0
        %v6141 = vadd.f32 %v6118, %v6140
        %6142 = vmatmul.f32.gmra.mxu0 %v5319
        %v6143 = vpop.f32.mrf.mxu0
        %v6144 = vadd.f32 %v6121, %v6143
        %6145 = vdwg.mxu0
        %6146 = vmatpush.msra.mxu0 %v1639
        %6147 = vmatpush.msra.mxu0 %v1635
        %6148 = vmatpush.msra.mxu0 %v1631
        %6149 = vmatpush.msra.mxu0 %v1627
        %6150 = vmatpush.msra.mxu0 %v1623
        %6151 = vmatpush.msra.mxu0 %v1619
        %6152 = vmatpush.msra.mxu0 %v1615
        %6153 = vmatpush.msra.mxu0 %v1611
        %6154 = vmatpush.msra.mxu0 %v1607
        %6155 = vmatpush.msra.mxu0 %v1603
        %6156 = vmatpush.msra.mxu0 %v1599
        %6157 = vmatpush.msra.mxu0 %v1595
        %6158 = vmatpush.msra.mxu0 %v1591
        %6159 = vmatpush.msra.mxu0 %v1587
        %6160 = vmatpush.msra.mxu0 %v1583
        %6161 = vmatpush.msra.mxu0 %v1579
        %6162 = vmatmul.f32.gmra.mxu0 %v5304
        %v6163 = vpop.f32.mrf.mxu0
        %v6164 = vadd.f32 %v6141, %v6163
        %6165 = vmatmul.f32.gmra.mxu0 %v5320
        %v6166 = vpop.f32.mrf.mxu0
        %v6167 = vadd.f32 %v6144, %v6166
        %6168 = vdwg.mxu0
        %6169 = vmatpush.msra.mxu0 %v1703
        %6170 = vmatpush.msra.mxu0 %v1699
        %6171 = vmatpush.msra.mxu0 %v1695
        %6172 = vmatpush.msra.mxu0 %v1691
        %6173 = vmatpush.msra.mxu0 %v1687
        %6174 = vmatpush.msra.mxu0 %v1683
        %6175 = vmatpush.msra.mxu0 %v1679
        %6176 = vmatpush.msra.mxu0 %v1675
        %6177 = vmatpush.msra.mxu0 %v1671
        %6178 = vmatpush.msra.mxu0 %v1667
        %6179 = vmatpush.msra.mxu0 %v1663
        %6180 = vmatpush.msra.mxu0 %v1659
        %6181 = vmatpush.msra.mxu0 %v1655
        %6182 = vmatpush.msra.mxu0 %v1651
        %6183 = vmatpush.msra.mxu0 %v1647
        %6184 = vmatpush.msra.mxu0 %v1643
        %6185 = vmatmul.f32.gmra.mxu0 %v5305
        %v6186 = vpop.f32.mrf.mxu0
        %v6187 = vadd.f32 %v6164, %v6186
        %6188 = vmatmul.f32.gmra.mxu0 %v5321
        %v6189 = vpop.f32.mrf.mxu0
        %v6190 = vadd.f32 %v6167, %v6189
        %6191 = vdwg.mxu0
        %6192 = vmatpush.msra.mxu0 %v1767
        %6193 = vmatpush.msra.mxu0 %v1763
        %6194 = vmatpush.msra.mxu0 %v1759
        %6195 = vmatpush.msra.mxu0 %v1755
        %6196 = vmatpush.msra.mxu0 %v1751
        %6197 = vmatpush.msra.mxu0 %v1747
        %6198 = vmatpush.msra.mxu0 %v1743
        %6199 = vmatpush.msra.mxu0 %v1739
        %6200 = vmatpush.msra.mxu0 %v1735
        %6201 = vmatpush.msra.mxu0 %v1731
        %6202 = vmatpush.msra.mxu0 %v1727
        %6203 = vmatpush.msra.mxu0 %v1723
        %6204 = vmatpush.msra.mxu0 %v1719
        %6205 = vmatpush.msra.mxu0 %v1715
        %6206 = vmatpush.msra.mxu0 %v1711
        %6207 = vmatpush.msra.mxu0 %v1707
        %6208 = vmatmul.f32.gmra.mxu0 %v5306
        %v6209 = vpop.f32.mrf.mxu0
        %v6210 = vadd.f32 %v6187, %v6209
        %6211 = vmatmul.f32.gmra.mxu0 %v5322
        %v6212 = vpop.f32.mrf.mxu0
        %v6213 = vadd.f32 %v6190, %v6212
        %6214 = vdwg.mxu0
        %6215 = vmatpush.msra.mxu0 %v1831
        %6216 = vmatpush.msra.mxu0 %v1827
        %6217 = vmatpush.msra.mxu0 %v1823
        %6218 = vmatpush.msra.mxu0 %v1819
        %6219 = vmatpush.msra.mxu0 %v1815
        %6220 = vmatpush.msra.mxu0 %v1811
        %6221 = vmatpush.msra.mxu0 %v1807
        %6222 = vmatpush.msra.mxu0 %v1803
        %6223 = vmatpush.msra.mxu0 %v1799
        %6224 = vmatpush.msra.mxu0 %v1795
        %6225 = vmatpush.msra.mxu0 %v1791
        %6226 = vmatpush.msra.mxu0 %v1787
        %6227 = vmatpush.msra.mxu0 %v1783
        %6228 = vmatpush.msra.mxu0 %v1779
        %6229 = vmatpush.msra.mxu0 %v1775
        %6230 = vmatpush.msra.mxu0 %v1771
        %6231 = vmatmul.f32.gmra.mxu0 %v5307
        %v6232 = vpop.f32.mrf.mxu0
        %v6233 = vadd.f32 %v6210, %v6232
        %6234 = vmatmul.f32.gmra.mxu0 %v5323
        %v6235 = vpop.f32.mrf.mxu0
        %v6236 = vadd.f32 %v6213, %v6235
        %6237 = vdwg.mxu0
        %6238 = vmatpush.msra.mxu0 %v1895
        %6239 = vmatpush.msra.mxu0 %v1891
        %6240 = vmatpush.msra.mxu0 %v1887
        %6241 = vmatpush.msra.mxu0 %v1883
        %6242 = vmatpush.msra.mxu0 %v1879
        %6243 = vmatpush.msra.mxu0 %v1875
        %6244 = vmatpush.msra.mxu0 %v1871
        %6245 = vmatpush.msra.mxu0 %v1867
        %6246 = vmatpush.msra.mxu0 %v1863
        %6247 = vmatpush.msra.mxu0 %v1859
        %6248 = vmatpush.msra.mxu0 %v1855
        %6249 = vmatpush.msra.mxu0 %v1851
        %6250 = vmatpush.msra.mxu0 %v1847
        %6251 = vmatpush.msra.mxu0 %v1843
        %6252 = vmatpush.msra.mxu0 %v1839
        %6253 = vmatpush.msra.mxu0 %v1835
        %6254 = vmatmul.f32.gmra.mxu0 %v5308
        %v6255 = vpop.f32.mrf.mxu0
        %v6256 = vadd.f32 %v6233, %v6255
        %6257 = vmatmul.f32.gmra.mxu0 %v5324
        %v6258 = vpop.f32.mrf.mxu0
        %v6259 = vadd.f32 %v6236, %v6258
        %6260 = vdwg.mxu0
        %6261 = vmatpush.msra.mxu0 %v1959
        %6262 = vmatpush.msra.mxu0 %v1955
        %6263 = vmatpush.msra.mxu0 %v1951
        %6264 = vmatpush.msra.mxu0 %v1947
        %6265 = vmatpush.msra.mxu0 %v1943
        %6266 = vmatpush.msra.mxu0 %v1939
        %6267 = vmatpush.msra.mxu0 %v1935
        %6268 = vmatpush.msra.mxu0 %v1931
        %6269 = vmatpush.msra.mxu0 %v1927
        %6270 = vmatpush.msra.mxu0 %v1923
        %6271 = vmatpush.msra.mxu0 %v1919
        %6272 = vmatpush.msra.mxu0 %v1915
        %6273 = vmatpush.msra.mxu0 %v1911
        %6274 = vmatpush.msra.mxu0 %v1907
        %6275 = vmatpush.msra.mxu0 %v1903
        %6276 = vmatpush.msra.mxu0 %v1899
        %6277 = vmatmul.f32.gmra.mxu0 %v5309
        %v6278 = vpop.f32.mrf.mxu0
        %v6279 = vadd.f32 %v6256, %v6278
        %6280 = vmatmul.f32.gmra.mxu0 %v5325
        %v6281 = vpop.f32.mrf.mxu0
        %v6282 = vadd.f32 %v6259, %v6281
        %6283 = vdwg.mxu0
        %6284 = vmatpush.msra.mxu0 %v2023
        %6285 = vmatpush.msra.mxu0 %v2019
        %6286 = vmatpush.msra.mxu0 %v2015
        %6287 = vmatpush.msra.mxu0 %v2011
        %6288 = vmatpush.msra.mxu0 %v2007
        %6289 = vmatpush.msra.mxu0 %v2003
        %6290 = vmatpush.msra.mxu0 %v1999
        %6291 = vmatpush.msra.mxu0 %v1995
        %6292 = vmatpush.msra.mxu0 %v1991
        %6293 = vmatpush.msra.mxu0 %v1987
        %6294 = vmatpush.msra.mxu0 %v1983
        %6295 = vmatpush.msra.mxu0 %v1979
        %6296 = vmatpush.msra.mxu0 %v1975
        %6297 = vmatpush.msra.mxu0 %v1971
        %6298 = vmatpush.msra.mxu0 %v1967
        %6299 = vmatpush.msra.mxu0 %v1963
        %6300 = vmatmul.f32.gmra.mxu0 %v5310
        %v6301 = vpop.f32.mrf.mxu0
        %v6302 = vadd.f32 %v6279, %v6301
        %6303 = vmatmul.f32.gmra.mxu0 %v5326
        %v6304 = vpop.f32.mrf.mxu0
        %v6305 = vadd.f32 %v6282, %v6304
        %6306 = vdwg.mxu0
        %6307 = vmatpush.msra.mxu0 %v2087
        %6308 = vmatpush.msra.mxu0 %v2083
        %6309 = vmatpush.msra.mxu0 %v2079
        %6310 = vmatpush.msra.mxu0 %v2075
        %6311 = vmatpush.msra.mxu0 %v2071
        %6312 = vmatpush.msra.mxu0 %v2067
        %6313 = vmatpush.msra.mxu0 %v2063
        %6314 = vmatpush.msra.mxu0 %v2059
        %6315 = vmatpush.msra.mxu0 %v2055
        %6316 = vmatpush.msra.mxu0 %v2051
        %6317 = vmatpush.msra.mxu0 %v2047
        %6318 = vmatpush.msra.mxu0 %v2043
        %6319 = vmatpush.msra.mxu0 %v2039
        %6320 = vmatpush.msra.mxu0 %v2035
        %6321 = vmatpush.msra.mxu0 %v2031
        %6322 = vmatpush.msra.mxu0 %v2027
        %6323 = vmatmul.f32.gmra.mxu0 %v5311
        %v6324 = vpop.f32.mrf.mxu0
        %v6325 = vadd.f32 %v6302, %v6324
        %6326 = vmatmul.f32.gmra.mxu0 %v5327
        %v6327 = vpop.f32.mrf.mxu0
        %v6328 = vadd.f32 %v6305, %v6327
        %6329 = vdwg.mxu0
        %6330 = vmatpush.msra.mxu0 %v2151
        %6331 = vmatpush.msra.mxu0 %v2147
        %6332 = vmatpush.msra.mxu0 %v2143
        %6333 = vmatpush.msra.mxu0 %v2139
        %6334 = vmatpush.msra.mxu0 %v2135
        %6335 = vmatpush.msra.mxu0 %v2131
        %6336 = vmatpush.msra.mxu0 %v2127
        %6337 = vmatpush.msra.mxu0 %v2123
        %6338 = vmatpush.msra.mxu0 %v2119
        %6339 = vmatpush.msra.mxu0 %v2115
        %6340 = vmatpush.msra.mxu0 %v2111
        %6341 = vmatpush.msra.mxu0 %v2107
        %6342 = vmatpush.msra.mxu0 %v2103
        %6343 = vmatpush.msra.mxu0 %v2099
        %6344 = vmatpush.msra.mxu0 %v2095
        %6345 = vmatpush.msra.mxu0 %v2091
        %6346 = vmatmul.f32.gmra.mxu0 %v5312
        %v6347 = vpop.f32.mrf.mxu0
        %v6348 = vadd.f32 %v6325, %v6347
        %6349 = vmatmul.f32.gmra.mxu0 %v5328
        %v6350 = vpop.f32.mrf.mxu0
        %v6351 = vadd.f32 %v6328, %v6350
        %6352 = vdwg.mxu0
        %6353 = vmatpush.msra.mxu0 %v2215
        %6354 = vmatpush.msra.mxu0 %v2211
        %6355 = vmatpush.msra.mxu0 %v2207
        %6356 = vmatpush.msra.mxu0 %v2203
        %6357 = vmatpush.msra.mxu0 %v2199
        %6358 = vmatpush.msra.mxu0 %v2195
        %6359 = vmatpush.msra.mxu0 %v2191
        %6360 = vmatpush.msra.mxu0 %v2187
        %6361 = vmatpush.msra.mxu0 %v2183
        %6362 = vmatpush.msra.mxu0 %v2179
        %6363 = vmatpush.msra.mxu0 %v2175
        %6364 = vmatpush.msra.mxu0 %v2171
        %6365 = vmatpush.msra.mxu0 %v2167
        %6366 = vmatpush.msra.mxu0 %v2163
        %6367 = vmatpush.msra.mxu0 %v2159
        %6368 = vmatpush.msra.mxu0 %v2155
        %6369 = vmatmul.f32.gmra.mxu0 %v5313
        %v6370 = vpop.f32.mrf.mxu0
        %v6371 = vadd.f32 %v6348, %v6370
        %6372 = vmatmul.f32.gmra.mxu0 %v5329
        %v6373 = vpop.f32.mrf.mxu0
        %v6374 = vadd.f32 %v6351, %v6373
        %6375 = vdwg.mxu0
        %6376 = vmatpush.msra.mxu0 %v2279
        %6377 = vmatpush.msra.mxu0 %v2275
        %6378 = vmatpush.msra.mxu0 %v2271
        %6379 = vmatpush.msra.mxu0 %v2267
        %6380 = vmatpush.msra.mxu0 %v2263
        %6381 = vmatpush.msra.mxu0 %v2259
        %6382 = vmatpush.msra.mxu0 %v2255
        %6383 = vmatpush.msra.mxu0 %v2251
        %6384 = vmatpush.msra.mxu0 %v2247
        %6385 = vmatpush.msra.mxu0 %v2243
        %6386 = vmatpush.msra.mxu0 %v2239
        %6387 = vmatpush.msra.mxu0 %v2235
        %6388 = vmatpush.msra.mxu0 %v2231
        %6389 = vmatpush.msra.mxu0 %v2227
        %6390 = vmatpush.msra.mxu0 %v2223
        %6391 = vmatpush.msra.mxu0 %v2219
        %6392 = vmatmul.f32.gmra.mxu0 %v5314
        %v6393 = vpop.f32.mrf.mxu0
        %v6394 = vadd.f32 %v6371, %v6393
        %6395 = vmatmul.f32.gmra.mxu0 %v5330
        %v6396 = vpop.f32.mrf.mxu0
        %v6397 = vadd.f32 %v6374, %v6396
        %6398 = vdwg.mxu0
        %6399 = vmatpush.msra.mxu0 %v2343
        %6400 = vmatpush.msra.mxu0 %v2339
        %6401 = vmatpush.msra.mxu0 %v2335
        %6402 = vmatpush.msra.mxu0 %v2331
        %6403 = vmatpush.msra.mxu0 %v2327
        %6404 = vmatpush.msra.mxu0 %v2323
        %6405 = vmatpush.msra.mxu0 %v2319
        %6406 = vmatpush.msra.mxu0 %v2315
        %6407 = vmatpush.msra.mxu0 %v2311
        %6408 = vmatpush.msra.mxu0 %v2307
        %6409 = vmatpush.msra.mxu0 %v2303
        %6410 = vmatpush.msra.mxu0 %v2299
        %6411 = vmatpush.msra.mxu0 %v2295
        %6412 = vmatpush.msra.mxu0 %v2291
        %6413 = vmatpush.msra.mxu0 %v2287
        %6414 = vmatpush.msra.mxu0 %v2283
        %6415 = vmatmul.f32.gmra.mxu0 %v5315
        %v6416 = vpop.f32.mrf.mxu0
        %v6417 = vadd.f32 %v6394, %v6416
        %6418 = vmatmul.f32.gmra.mxu0 %v5331
        %v6419 = vpop.f32.mrf.mxu0
        %v6420 = vadd.f32 %v6397, %v6419
        %6421 = vdwg.mxu0
        %6422 = vmatpush.msra.mxu0 %v2407
        %6423 = vmatpush.msra.mxu0 %v2403
        %6424 = vmatpush.msra.mxu0 %v2399
        %6425 = vmatpush.msra.mxu0 %v2395
        %6426 = vmatpush.msra.mxu0 %v2391
        %6427 = vmatpush.msra.mxu0 %v2387
        %6428 = vmatpush.msra.mxu0 %v2383
        %6429 = vmatpush.msra.mxu0 %v2379
        %6430 = vmatpush.msra.mxu0 %v2375
        %6431 = vmatpush.msra.mxu0 %v2371
        %6432 = vmatpush.msra.mxu0 %v2367
        %6433 = vmatpush.msra.mxu0 %v2363
        %6434 = vmatpush.msra.mxu0 %v2359
        %6435 = vmatpush.msra.mxu0 %v2355
        %6436 = vmatpush.msra.mxu0 %v2351
        %6437 = vmatpush.msra.mxu0 %v2347
        %6438 = vmatmul.f32.gmra.mxu0 %v5316
        %v6439 = vpop.f32.mrf.mxu0
        %v6440 = vadd.f32 %v6417, %v6439
        %6441 = vmatmul.f32.gmra.mxu0 %v5332
        %v6442 = vpop.f32.mrf.mxu0
        %v6443 = vadd.f32 %v6420, %v6442
        %6444 = vdwg.mxu0
        %6445 = vmatpush.msra.mxu0 %v1448
        %6446 = vmatpush.msra.mxu0 %v1444
        %6447 = vmatpush.msra.mxu0 %v1440
        %6448 = vmatpush.msra.mxu0 %v1436
        %6449 = vmatpush.msra.mxu0 %v1432
        %6450 = vmatpush.msra.mxu0 %v1428
        %6451 = vmatpush.msra.mxu0 %v1424
        %6452 = vmatpush.msra.mxu0 %v1420
        %6453 = vmatpush.msra.mxu0 %v1416
        %6454 = vmatpush.msra.mxu0 %v1412
        %6455 = vmatpush.msra.mxu0 %v1408
        %6456 = vmatpush.msra.mxu0 %v1404
        %6457 = vmatpush.msra.mxu0 %v1400
        %6458 = vmatpush.msra.mxu0 %v1396
        %6459 = vmatpush.msra.mxu0 %v1392
        %6460 = vmatpush.msra.mxu0 %v1388
        %6461 = vmatmul.f32.gmra.mxu0 %v5301
        %v6462 = vpop.f32.mrf.mxu0
        %v6463 = vadd.f32 0.0, %v6462
        %6464 = vmatmul.f32.gmra.mxu0 %v5317
        %v6465 = vpop.f32.mrf.mxu0
        %v6466 = vadd.f32 0.0, %v6465
        %6467 = vdwg.mxu0
        %6468 = vmatpush.msra.mxu0 %v1512
        %6469 = vmatpush.msra.mxu0 %v1508
        %6470 = vmatpush.msra.mxu0 %v1504
        %6471 = vmatpush.msra.mxu0 %v1500
        %6472 = vmatpush.msra.mxu0 %v1496
        %6473 = vmatpush.msra.mxu0 %v1492
        %6474 = vmatpush.msra.mxu0 %v1488
        %6475 = vmatpush.msra.mxu0 %v1484
        %6476 = vmatpush.msra.mxu0 %v1480
        %6477 = vmatpush.msra.mxu0 %v1476
        %6478 = vmatpush.msra.mxu0 %v1472
        %6479 = vmatpush.msra.mxu0 %v1468
        %6480 = vmatpush.msra.mxu0 %v1464
        %6481 = vmatpush.msra.mxu0 %v1460
        %6482 = vmatpush.msra.mxu0 %v1456
        %6483 = vmatpush.msra.mxu0 %v1452
        %6484 = vmatmul.f32.gmra.mxu0 %v5302
        %v6485 = vpop.f32.mrf.mxu0
        %v6486 = vadd.f32 %v6463, %v6485
        %6487 = vmatmul.f32.gmra.mxu0 %v5318
        %v6488 = vpop.f32.mrf.mxu0
        %v6489 = vadd.f32 %v6466, %v6488
        %6490 = vdwg.mxu0
        %6491 = vmatpush.msra.mxu0 %v1576
        %6492 = vmatpush.msra.mxu0 %v1572
        %6493 = vmatpush.msra.mxu0 %v1568
        %6494 = vmatpush.msra.mxu0 %v1564
        %6495 = vmatpush.msra.mxu0 %v1560
        %6496 = vmatpush.msra.mxu0 %v1556
        %6497 = vmatpush.msra.mxu0 %v1552
        %6498 = vmatpush.msra.mxu0 %v1548
        %6499 = vmatpush.msra.mxu0 %v1544
        %6500 = vmatpush.msra.mxu0 %v1540
        %6501 = vmatpush.msra.mxu0 %v1536
        %6502 = vmatpush.msra.mxu0 %v1532
        %6503 = vmatpush.msra.mxu0 %v1528
        %6504 = vmatpush.msra.mxu0 %v1524
        %6505 = vmatpush.msra.mxu0 %v1520
        %6506 = vmatpush.msra.mxu0 %v1516
        %6507 = vmatmul.f32.gmra.mxu0 %v5303
        %v6508 = vpop.f32.mrf.mxu0
        %v6509 = vadd.f32 %v6486, %v6508
        %6510 = vmatmul.f32.gmra.mxu0 %v5319
        %v6511 = vpop.f32.mrf.mxu0
        %v6512 = vadd.f32 %v6489, %v6511
        %6513 = vdwg.mxu0
        %6514 = vmatpush.msra.mxu0 %v1640
        %6515 = vmatpush.msra.mxu0 %v1636
        %6516 = vmatpush.msra.mxu0 %v1632
        %6517 = vmatpush.msra.mxu0 %v1628
        %6518 = vmatpush.msra.mxu0 %v1624
        %6519 = vmatpush.msra.mxu0 %v1620
        %6520 = vmatpush.msra.mxu0 %v1616
        %6521 = vmatpush.msra.mxu0 %v1612
        %6522 = vmatpush.msra.mxu0 %v1608
        %6523 = vmatpush.msra.mxu0 %v1604
        %6524 = vmatpush.msra.mxu0 %v1600
        %6525 = vmatpush.msra.mxu0 %v1596
        %6526 = vmatpush.msra.mxu0 %v1592
        %6527 = vmatpush.msra.mxu0 %v1588
        %6528 = vmatpush.msra.mxu0 %v1584
        %6529 = vmatpush.msra.mxu0 %v1580
        %6530 = vmatmul.f32.gmra.mxu0 %v5304
        %v6531 = vpop.f32.mrf.mxu0
        %v6532 = vadd.f32 %v6509, %v6531
        %6533 = vmatmul.f32.gmra.mxu0 %v5320
        %v6534 = vpop.f32.mrf.mxu0
        %v6535 = vadd.f32 %v6512, %v6534
        %6536 = vdwg.mxu0
        %6537 = vmatpush.msra.mxu0 %v1704
        %6538 = vmatpush.msra.mxu0 %v1700
        %6539 = vmatpush.msra.mxu0 %v1696
        %6540 = vmatpush.msra.mxu0 %v1692
        %6541 = vmatpush.msra.mxu0 %v1688
        %6542 = vmatpush.msra.mxu0 %v1684
        %6543 = vmatpush.msra.mxu0 %v1680
        %6544 = vmatpush.msra.mxu0 %v1676
        %6545 = vmatpush.msra.mxu0 %v1672
        %6546 = vmatpush.msra.mxu0 %v1668
        %6547 = vmatpush.msra.mxu0 %v1664
        %6548 = vmatpush.msra.mxu0 %v1660
        %6549 = vmatpush.msra.mxu0 %v1656
        %6550 = vmatpush.msra.mxu0 %v1652
        %6551 = vmatpush.msra.mxu0 %v1648
        %6552 = vmatpush.msra.mxu0 %v1644
        %6553 = vmatmul.f32.gmra.mxu0 %v5305
        %v6554 = vpop.f32.mrf.mxu0
        %v6555 = vadd.f32 %v6532, %v6554
        %6556 = vmatmul.f32.gmra.mxu0 %v5321
        %v6557 = vpop.f32.mrf.mxu0
        %v6558 = vadd.f32 %v6535, %v6557
        %6559 = vdwg.mxu0
        %6560 = vmatpush.msra.mxu0 %v1768
        %6561 = vmatpush.msra.mxu0 %v1764
        %6562 = vmatpush.msra.mxu0 %v1760
        %6563 = vmatpush.msra.mxu0 %v1756
        %6564 = vmatpush.msra.mxu0 %v1752
        %6565 = vmatpush.msra.mxu0 %v1748
        %6566 = vmatpush.msra.mxu0 %v1744
        %6567 = vmatpush.msra.mxu0 %v1740
        %6568 = vmatpush.msra.mxu0 %v1736
        %6569 = vmatpush.msra.mxu0 %v1732
        %6570 = vmatpush.msra.mxu0 %v1728
        %6571 = vmatpush.msra.mxu0 %v1724
        %6572 = vmatpush.msra.mxu0 %v1720
        %6573 = vmatpush.msra.mxu0 %v1716
        %6574 = vmatpush.msra.mxu0 %v1712
        %6575 = vmatpush.msra.mxu0 %v1708
        %6576 = vmatmul.f32.gmra.mxu0 %v5306
        %v6577 = vpop.f32.mrf.mxu0
        %v6578 = vadd.f32 %v6555, %v6577
        %6579 = vmatmul.f32.gmra.mxu0 %v5322
        %v6580 = vpop.f32.mrf.mxu0
        %v6581 = vadd.f32 %v6558, %v6580
        %6582 = vdwg.mxu0
        %6583 = vmatpush.msra.mxu0 %v1832
        %6584 = vmatpush.msra.mxu0 %v1828
        %6585 = vmatpush.msra.mxu0 %v1824
        %6586 = vmatpush.msra.mxu0 %v1820
        %6587 = vmatpush.msra.mxu0 %v1816
        %6588 = vmatpush.msra.mxu0 %v1812
        %6589 = vmatpush.msra.mxu0 %v1808
        %6590 = vmatpush.msra.mxu0 %v1804
        %6591 = vmatpush.msra.mxu0 %v1800
        %6592 = vmatpush.msra.mxu0 %v1796
        %6593 = vmatpush.msra.mxu0 %v1792
        %6594 = vmatpush.msra.mxu0 %v1788
        %6595 = vmatpush.msra.mxu0 %v1784
        %6596 = vmatpush.msra.mxu0 %v1780
        %6597 = vmatpush.msra.mxu0 %v1776
        %6598 = vmatpush.msra.mxu0 %v1772
        %6599 = vmatmul.f32.gmra.mxu0 %v5307
        %v6600 = vpop.f32.mrf.mxu0
        %v6601 = vadd.f32 %v6578, %v6600
        %6602 = vmatmul.f32.gmra.mxu0 %v5323
        %v6603 = vpop.f32.mrf.mxu0
        %v6604 = vadd.f32 %v6581, %v6603
        %6605 = vdwg.mxu0
        %6606 = vmatpush.msra.mxu0 %v1896
        %6607 = vmatpush.msra.mxu0 %v1892
        %6608 = vmatpush.msra.mxu0 %v1888
        %6609 = vmatpush.msra.mxu0 %v1884
        %6610 = vmatpush.msra.mxu0 %v1880
        %6611 = vmatpush.msra.mxu0 %v1876
        %6612 = vmatpush.msra.mxu0 %v1872
        %6613 = vmatpush.msra.mxu0 %v1868
        %6614 = vmatpush.msra.mxu0 %v1864
        %6615 = vmatpush.msra.mxu0 %v1860
        %6616 = vmatpush.msra.mxu0 %v1856
        %6617 = vmatpush.msra.mxu0 %v1852
        %6618 = vmatpush.msra.mxu0 %v1848
        %6619 = vmatpush.msra.mxu0 %v1844
        %6620 = vmatpush.msra.mxu0 %v1840
        %6621 = vmatpush.msra.mxu0 %v1836
        %6622 = vmatmul.f32.gmra.mxu0 %v5308
        %v6623 = vpop.f32.mrf.mxu0
        %v6624 = vadd.f32 %v6601, %v6623
        %6625 = vmatmul.f32.gmra.mxu0 %v5324
        %v6626 = vpop.f32.mrf.mxu0
        %v6627 = vadd.f32 %v6604, %v6626
        %6628 = vdwg.mxu0
        %6629 = vmatpush.msra.mxu0 %v1960
        %6630 = vmatpush.msra.mxu0 %v1956
        %6631 = vmatpush.msra.mxu0 %v1952
        %6632 = vmatpush.msra.mxu0 %v1948
        %6633 = vmatpush.msra.mxu0 %v1944
        %6634 = vmatpush.msra.mxu0 %v1940
        %6635 = vmatpush.msra.mxu0 %v1936
        %6636 = vmatpush.msra.mxu0 %v1932
        %6637 = vmatpush.msra.mxu0 %v1928
        %6638 = vmatpush.msra.mxu0 %v1924
        %6639 = vmatpush.msra.mxu0 %v1920
        %6640 = vmatpush.msra.mxu0 %v1916
        %6641 = vmatpush.msra.mxu0 %v1912
        %6642 = vmatpush.msra.mxu0 %v1908
        %6643 = vmatpush.msra.mxu0 %v1904
        %6644 = vmatpush.msra.mxu0 %v1900
        %6645 = vmatmul.f32.gmra.mxu0 %v5309
        %v6646 = vpop.f32.mrf.mxu0
        %v6647 = vadd.f32 %v6624, %v6646
        %6648 = vmatmul.f32.gmra.mxu0 %v5325
        %v6649 = vpop.f32.mrf.mxu0
        %v6650 = vadd.f32 %v6627, %v6649
        %6651 = vdwg.mxu0
        %6652 = vmatpush.msra.mxu0 %v2024
        %6653 = vmatpush.msra.mxu0 %v2020
        %6654 = vmatpush.msra.mxu0 %v2016
        %6655 = vmatpush.msra.mxu0 %v2012
        %6656 = vmatpush.msra.mxu0 %v2008
        %6657 = vmatpush.msra.mxu0 %v2004
        %6658 = vmatpush.msra.mxu0 %v2000
        %6659 = vmatpush.msra.mxu0 %v1996
        %6660 = vmatpush.msra.mxu0 %v1992
        %6661 = vmatpush.msra.mxu0 %v1988
        %6662 = vmatpush.msra.mxu0 %v1984
        %6663 = vmatpush.msra.mxu0 %v1980
        %6664 = vmatpush.msra.mxu0 %v1976
        %6665 = vmatpush.msra.mxu0 %v1972
        %6666 = vmatpush.msra.mxu0 %v1968
        %6667 = vmatpush.msra.mxu0 %v1964
        %6668 = vmatmul.f32.gmra.mxu0 %v5310
        %v6669 = vpop.f32.mrf.mxu0
        %v6670 = vadd.f32 %v6647, %v6669
        %6671 = vmatmul.f32.gmra.mxu0 %v5326
        %v6672 = vpop.f32.mrf.mxu0
        %v6673 = vadd.f32 %v6650, %v6672
        %6674 = vdwg.mxu0
        %6675 = vmatpush.msra.mxu0 %v2088
        %6676 = vmatpush.msra.mxu0 %v2084
        %6677 = vmatpush.msra.mxu0 %v2080
        %6678 = vmatpush.msra.mxu0 %v2076
        %6679 = vmatpush.msra.mxu0 %v2072
        %6680 = vmatpush.msra.mxu0 %v2068
        %6681 = vmatpush.msra.mxu0 %v2064
        %6682 = vmatpush.msra.mxu0 %v2060
        %6683 = vmatpush.msra.mxu0 %v2056
        %6684 = vmatpush.msra.mxu0 %v2052
        %6685 = vmatpush.msra.mxu0 %v2048
        %6686 = vmatpush.msra.mxu0 %v2044
        %6687 = vmatpush.msra.mxu0 %v2040
        %6688 = vmatpush.msra.mxu0 %v2036
        %6689 = vmatpush.msra.mxu0 %v2032
        %6690 = vmatpush.msra.mxu0 %v2028
        %6691 = vmatmul.f32.gmra.mxu0 %v5311
        %v6692 = vpop.f32.mrf.mxu0
        %v6693 = vadd.f32 %v6670, %v6692
        %6694 = vmatmul.f32.gmra.mxu0 %v5327
        %v6695 = vpop.f32.mrf.mxu0
        %v6696 = vadd.f32 %v6673, %v6695
        %6697 = vdwg.mxu0
        %6698 = vmatpush.msra.mxu0 %v2152
        %6699 = vmatpush.msra.mxu0 %v2148
        %6700 = vmatpush.msra.mxu0 %v2144
        %6701 = vmatpush.msra.mxu0 %v2140
        %6702 = vmatpush.msra.mxu0 %v2136
        %6703 = vmatpush.msra.mxu0 %v2132
        %6704 = vmatpush.msra.mxu0 %v2128
        %6705 = vmatpush.msra.mxu0 %v2124
        %6706 = vmatpush.msra.mxu0 %v2120
        %6707 = vmatpush.msra.mxu0 %v2116
        %6708 = vmatpush.msra.mxu0 %v2112
        %6709 = vmatpush.msra.mxu0 %v2108
        %6710 = vmatpush.msra.mxu0 %v2104
        %6711 = vmatpush.msra.mxu0 %v2100
        %6712 = vmatpush.msra.mxu0 %v2096
        %6713 = vmatpush.msra.mxu0 %v2092
        %6714 = vmatmul.f32.gmra.mxu0 %v5312
        %v6715 = vpop.f32.mrf.mxu0
        %v6716 = vadd.f32 %v6693, %v6715
        %6717 = vmatmul.f32.gmra.mxu0 %v5328
        %v6718 = vpop.f32.mrf.mxu0
        %v6719 = vadd.f32 %v6696, %v6718
        %6720 = vdwg.mxu0
        %6721 = vmatpush.msra.mxu0 %v2216
        %6722 = vmatpush.msra.mxu0 %v2212
        %6723 = vmatpush.msra.mxu0 %v2208
        %6724 = vmatpush.msra.mxu0 %v2204
        %6725 = vmatpush.msra.mxu0 %v2200
        %6726 = vmatpush.msra.mxu0 %v2196
        %6727 = vmatpush.msra.mxu0 %v2192
        %6728 = vmatpush.msra.mxu0 %v2188
        %6729 = vmatpush.msra.mxu0 %v2184
        %6730 = vmatpush.msra.mxu0 %v2180
        %6731 = vmatpush.msra.mxu0 %v2176
        %6732 = vmatpush.msra.mxu0 %v2172
        %6733 = vmatpush.msra.mxu0 %v2168
        %6734 = vmatpush.msra.mxu0 %v2164
        %6735 = vmatpush.msra.mxu0 %v2160
        %6736 = vmatpush.msra.mxu0 %v2156
        %6737 = vmatmul.f32.gmra.mxu0 %v5313
        %v6738 = vpop.f32.mrf.mxu0
        %v6739 = vadd.f32 %v6716, %v6738
        %6740 = vmatmul.f32.gmra.mxu0 %v5329
        %v6741 = vpop.f32.mrf.mxu0
        %v6742 = vadd.f32 %v6719, %v6741
        %6743 = vdwg.mxu0
        %6744 = vmatpush.msra.mxu0 %v2280
        %6745 = vmatpush.msra.mxu0 %v2276
        %6746 = vmatpush.msra.mxu0 %v2272
        %6747 = vmatpush.msra.mxu0 %v2268
        %6748 = vmatpush.msra.mxu0 %v2264
        %6749 = vmatpush.msra.mxu0 %v2260
        %6750 = vmatpush.msra.mxu0 %v2256
        %6751 = vmatpush.msra.mxu0 %v2252
        %6752 = vmatpush.msra.mxu0 %v2248
        %6753 = vmatpush.msra.mxu0 %v2244
        %6754 = vmatpush.msra.mxu0 %v2240
        %6755 = vmatpush.msra.mxu0 %v2236
        %6756 = vmatpush.msra.mxu0 %v2232
        %6757 = vmatpush.msra.mxu0 %v2228
        %6758 = vmatpush.msra.mxu0 %v2224
        %6759 = vmatpush.msra.mxu0 %v2220
        %6760 = vmatmul.f32.gmra.mxu0 %v5314
        %v6761 = vpop.f32.mrf.mxu0
        %v6762 = vadd.f32 %v6739, %v6761
        %6763 = vmatmul.f32.gmra.mxu0 %v5330
        %v6764 = vpop.f32.mrf.mxu0
        %v6765 = vadd.f32 %v6742, %v6764
        %6766 = vdwg.mxu0
        %6767 = vmatpush.msra.mxu0 %v2344
        %6768 = vmatpush.msra.mxu0 %v2340
        %6769 = vmatpush.msra.mxu0 %v2336
        %6770 = vmatpush.msra.mxu0 %v2332
        %6771 = vmatpush.msra.mxu0 %v2328
        %6772 = vmatpush.msra.mxu0 %v2324
        %6773 = vmatpush.msra.mxu0 %v2320
        %6774 = vmatpush.msra.mxu0 %v2316
        %6775 = vmatpush.msra.mxu0 %v2312
        %6776 = vmatpush.msra.mxu0 %v2308
        %6777 = vmatpush.msra.mxu0 %v2304
        %6778 = vmatpush.msra.mxu0 %v2300
        %6779 = vmatpush.msra.mxu0 %v2296
        %6780 = vmatpush.msra.mxu0 %v2292
        %6781 = vmatpush.msra.mxu0 %v2288
        %6782 = vmatpush.msra.mxu0 %v2284
        %6783 = vmatmul.f32.gmra.mxu0 %v5315
        %v6784 = vpop.f32.mrf.mxu0
        %v6785 = vadd.f32 %v6762, %v6784
        %6786 = vmatmul.f32.gmra.mxu0 %v5331
        %v6787 = vpop.f32.mrf.mxu0
        %v6788 = vadd.f32 %v6765, %v6787
        %6789 = vdwg.mxu0
        %6790 = vmatpush.msra.mxu0 %v2408
        %6791 = vmatpush.msra.mxu0 %v2404
        %6792 = vmatpush.msra.mxu0 %v2400
        %6793 = vmatpush.msra.mxu0 %v2396
        %6794 = vmatpush.msra.mxu0 %v2392
        %6795 = vmatpush.msra.mxu0 %v2388
        %6796 = vmatpush.msra.mxu0 %v2384
        %6797 = vmatpush.msra.mxu0 %v2380
        %6798 = vmatpush.msra.mxu0 %v2376
        %6799 = vmatpush.msra.mxu0 %v2372
        %6800 = vmatpush.msra.mxu0 %v2368
        %6801 = vmatpush.msra.mxu0 %v2364
        %6802 = vmatpush.msra.mxu0 %v2360
        %6803 = vmatpush.msra.mxu0 %v2356
        %6804 = vmatpush.msra.mxu0 %v2352
        %6805 = vmatpush.msra.mxu0 %v2348
        %6806 = vmatmul.f32.gmra.mxu0 %v5316
        %v6807 = vpop.f32.mrf.mxu0
        %v6808 = vadd.f32 %v6785, %v6807
        %6809 = vmatmul.f32.gmra.mxu0 %v5332
        %v6810 = vpop.f32.mrf.mxu0
        %v6811 = vadd.f32 %v6788, %v6810
        %6812 = vdwg.mxu0
        %v6813 = vadd.f32 %v5333, %v5704
        %v6814 = vadd.f32 %v5334, %v6072
        %v6815 = vadd.f32 %v5335, %v6440
        %v6816 = vadd.f32 %v5336, %v6808
        %v6817 = vadd.f32 %v5337, %v5707
        %v6818 = vadd.f32 %v5338, %v6075
        %v6819 = vadd.f32 %v5339, %v6443
        %v6820 = vadd.f32 %v5340, %v6811
        %6821 = vst [vmem:[#allocation2] sm:$0xff] %v6813
        %6822 = vst [vmem:[#allocation2 + $0x8] sm:$0xff] %v6814
        %6823 = vst [vmem:[#allocation2 + $0x10] sm:$0xff] %v6815
        %6824 = vst [vmem:[#allocation2 + $0x18] sm:$0xff] %v6816
        %6825 = vst [vmem:[#allocation2 + $0x20] sm:$0xff] %v6817
        %6826 = vst [vmem:[#allocation2 + $0x28] sm:$0xff] %v6818
        %6827 = vst [vmem:[#allocation2 + $0x30] sm:$0xff] %v6819
        %6828 = vst [vmem:[#allocation2 + $0x38] sm:$0xff] %v6820
        // Predicated region
        $region65: #{tpu_custom_call.1} parent=39 // pred_check
          %p6829 = pneg %p349
        $region66: #{tpu_custom_call.1} parent=39 // pred_check_branch
          %6831 = sbr.rel (%p6829) target = $region68
        $region67: #{tpu_custom_call.1} parent=39 // pred_region
          %v6832 = vld [vmem:[#allocation2] sm:$0xff]
          %v6833 = vld [vmem:[#allocation2 + $0x8] sm:$0xff]
          %v6834 = vld [vmem:[#allocation2 + $0x10] sm:$0xff]
          %v6835 = vld [vmem:[#allocation2 + $0x18] sm:$0xff]
          %v6836 = vld [vmem:[#allocation2 + $0x20] sm:$0xff]
          %v6837 = vld [vmem:[#allocation2 + $0x28] sm:$0xff]
          %v6838 = vld [vmem:[#allocation2 + $0x30] sm:$0xff]
          %v6839 = vld [vmem:[#allocation2 + $0x38] sm:$0xff]
          %v6840 = vld [vmem:[#allocation11] sm:$0xf]
          %v6842 = vperm.slane %v6840, 0
          %v6843 = vperm.slane %v6840, 1
          %v6844 = vperm.slane %v6840, 2
          %v6845 = vperm.slane %v6840, 3
          %v6850 = vadd.f32 %v6832, %v6842
          %v6851 = vadd.f32 %v6833, %v6843
          %v6852 = vadd.f32 %v6834, %v6844
          %v6853 = vadd.f32 %v6835, %v6845
          %v6854 = vadd.f32 %v6836, %v6842
          %v6855 = vadd.f32 %v6837, %v6843
          %v6856 = vadd.f32 %v6838, %v6844
          %v6857 = vadd.f32 %v6839, %v6845
          %6858 = vst [vmem:[%s343] sm:$0xff] %v6850
          %6859 = vst [vmem:[%s343 + $0x8] sm:$0xff] %v6851
          %6860 = vst [vmem:[%s343 + $0x10] sm:$0xff] %v6852
          %6861 = vst [vmem:[%s343 + $0x18] sm:$0xff] %v6853
          %6862 = vst [vmem:[%s343 + $0x20] sm:$0xff] %v6854
          %6863 = vst [vmem:[%s343 + $0x28] sm:$0xff] %v6855
          %6864 = vst [vmem:[%s343 + $0x30] sm:$0xff] %v6856
          %6865 = vst [vmem:[%s343 + $0x38] sm:$0xff] %v6857
        $region68: #{tpu_custom_call.1} parent=39 // pred_fallthru
          _
        %s6866 = sand.u32 %s169, 1
        %s6867 = scalar_lea.sflag [#allocation5], %s6866
        %s6868 = sand.u32 %s169, 1
        %s6869 = smul.addr %s6868, 64
        %s6870 = scalar_lea.vmem [#allocation12], %s6869
        // Predicated region
        $region69: #{tpu_custom_call.1} parent=39 // pred_check
          %p6871 = pneg %p179
        $region70: #{tpu_custom_call.1} parent=39 // pred_check_branch
          %6873 = sbr.rel (%p6871) target = $region72
        $region71: #{tpu_custom_call.1} parent=39 // pred_region
          %s6874 = smul.u32 2, %s28
          %6876 = vsyncadd %s6867, 0
          %s6877 = smul.addr %s6874, 4
          %s6878 = smul.addr %s6877, 8
          %s6879 = scalar_lea.hbm %s5, %s6878
          %s6880 = sshll.u32 %s6870, 4
          %s6881 = int_to_ptr.vmem [resolvable:$true] %s6880
          %s6882 = sshll.u32 %s6879, 4
          %s6883 = int_to_ptr.hbm [resolvable:$true] %s6882
          %6888 = dma.vmem_to_hbm [thread:$0]  %s6881, 1024, %s6883, %s6867, 512, 512, 32
        $region72: #{tpu_custom_call.1} parent=39 // pred_fallthru
          _
      $region40: #{tpu_custom_call.1} parent=5 // pred_fallthru
        _
      %p6889 = scmp.le.s32.totalorder 2, %s19
      // Predicated region
      $region73: #{tpu_custom_call.1} parent=5 // pred_check
        %p6890 = pneg %p6889
      $region74: #{tpu_custom_call.1} parent=5 // pred_check_branch
        %6892 = sbr.rel (%p6890) target = $region76
      $region75: #{tpu_custom_call.1} parent=5 // pred_region
        %s6893 = ssub.s32 %s19, 2
        // Predicated region
        $region77: #{tpu_custom_call.1} parent=75 // pred_check
          %p6894 = pneg %p185
        $region78: #{tpu_custom_call.1} parent=75 // pred_check_branch
          %6896 = sbr.rel (%p6894) target = $region80
        $region79: #{tpu_custom_call.1} parent=75 // pred_region
          %s6897 = sand.u32 %s170, 1
          %s6898 = scalar_lea.sflag [#allocation5], %s6897
          %s6899 = sand.u32 %s170, 1
          %s6900 = smul.addr %s6899, 64
          %s6901 = scalar_lea.vmem [#allocation12], %s6900
          %6903 = dma.done %s6898, 1024
        $region80: #{tpu_custom_call.1} parent=75 // pred_fallthru
          _
      $region76: #{tpu_custom_call.1} parent=5 // pred_fallthru
        _
    $region6: #{tpu_custom_call.1} parent=1 // loop_footer
      %s23 = sadd.s32 1, %s19
    $region7: #{tpu_custom_call.1} parent=1 // loop_footer_branch
      %18 = sbr.rel target = $region3
    $region8: #{tpu_custom_call.1} parent=1 // loop_exit
      _
    %6904 = vsyncpa [#allocation4], 1
    %s6905 = scalar_lea.sflag [#allocation4], 1
    %6906 = vsyncpa %s6905, 1
    %6907 = vsyncpa [#allocation7], 1
    %6908 = vsyncpa [#allocation10], 1
    %6909 = vsyncpa [#allocation5], 1
    %s6910 = scalar_lea.sflag [#allocation5], 1
    %6911 = vsyncpa %s6910, 1

</llo_original>
